<compile_context>
chip_gen: v7x
topology: tpu7x:2x2x1
jax: 0.10.0
libtpu: 0.0.40
codegen_flags: <defaults>
</compile_context>

<pallas_src>
import jax
import jax.numpy as jnp
from jax import lax
from jax.experimental import pallas as pl
from jax.experimental.pallas import tpu as pltpu


# ---------------------------------------------------------------------------
# In-kernel helpers
# ---------------------------------------------------------------------------
def _conv3x3_9dots(src_ref, w_ref, hout, wout, cin, cout):
    """3x3 conv as 9 accumulated MXU dots read straight from the padded scratch.
    src_ref: (hout+2, wout+2, cin) f32 zero-padded activation.
    w_ref:   (9*cin, cout) bf16 flattened HWIO weights.
    Returns (hout*wout, cout) f32."""
    acc = jnp.zeros((hout * wout, cout), jnp.float32)
    for ky in range(3):
        for kx in range(3):
            tap = src_ref[pl.ds(ky, hout), pl.ds(kx, wout), :]        # (hout, wout, cin) f32
            tap = tap.astype(jnp.bfloat16).reshape(hout * wout, cin)  # bf16 only for MXU
            w_tap = w_ref[pl.ds((ky * 3 + kx) * cin, cin), :]         # (cin, cout) bf16
            acc = acc + jnp.dot(tap, w_tap, preferred_element_type=jnp.float32)
    return acc


def _zero_border(ref, hin, win, c):
    """Zero only the 1-pixel border of a (hin+2, win+2, c) padded scratch."""
    zrow = jnp.zeros((1, win + 2, c), ref.dtype)
    zcol = jnp.zeros((hin + 2, 1, c), ref.dtype)
    ref[pl.ds(0, 1), :, :] = zrow
    ref[pl.ds(hin + 1, 1), :, :] = zrow
    ref[:, pl.ds(0, 1), :] = zcol
    ref[:, pl.ds(win + 1, 1), :] = zcol


def _resblock_kernel(x_ref, wt_ref, w1_ref, w2_ref, bn_ref, o_ref, xp_scr, tp_scr):
    _, h, w, cin = x_ref.shape
    _, ho, wo, cout = o_ref.shape
    bn = bn_ref[...]                                                  # (6, cout) f32

    # Per-step border-only zeroing (interiors are fully overwritten below).  This is
    # ~free compared to full-tile zeroing and, unlike a program_id==0 zero-once, is
    # correct when the parallel batch axis is split across two TensorCores (v7x).
    _zero_border(xp_scr, h, w, cin)
    _zero_border(tp_scr, ho, wo, cout)

    # pad=1: interior store of the bf16 input block (single upcast to the f32 scratch).
    xp_scr[pl.ds(1, h), pl.ds(1, w), :] = (
        x_ref[...].reshape(h, w, cin).astype(jnp.float32))

    # --- TransitionBlock: conv3x3 -> maxpool2x2 -> BN -> ReLU -----------------
    conv_t = _conv3x3_9dots(xp_scr, wt_ref, h, w, cin, cout)          # (h*w, cout) f32
    # 2x2 / stride-2 max-pool via reshape + max (lane dim preserved, no strided slices)
    colmax = jnp.max(conv_t.reshape(h * wo, 2, cout), axis=1)         # max over adjacent cols
    pooled = jnp.max(colmax.reshape(ho, 2, wo, cout), axis=1)         # max over adjacent rows
    t = jnp.maximum(pooled * bn[0:1, :] + bn[1:2, :], 0.0)            # (ho, wo, cout) f32

    # Stage t in the already-resident output block so it is not live in vregs across
    # the two ConvBN matmuls; the kernel finishes with o_ref += r.
    o_ref[...] = t.reshape(1, ho, wo, cout)
    tp_scr[pl.ds(1, ho), pl.ds(1, wo), :] = t

    # --- ConvBNBlock 1 ----------------------------------------------------------
    acc1 = _conv3x3_9dots(tp_scr, w1_ref, ho, wo, cout, cout)
    h1 = jnp.maximum(acc1 * bn[2:3, :] + bn[3:4, :], 0.0)             # (ho*wo, cout)

    # --- ConvBNBlock 2 (reuse tp_scr; 1-px border is still zero) + residual add --
    tp_scr[pl.ds(1, ho), pl.ds(1, wo), :] = h1.reshape(ho, wo, cout)
    acc2 = _conv3x3_9dots(tp_scr, w2_ref, ho, wo, cout, cout)
    r = jnp.maximum(acc2 * bn[4:5, :] + bn[5:6, :], 0.0)

    # TODO(synk): with Cout < 128 this store is lane-masked; for real model widths
    # pad channels to a multiple of 128 (slice back in the wrapper) to hit the
    # unmasked-store fast path.
    o_ref[...] += r.reshape(1, ho, wo, cout)


# ---------------------------------------------------------------------------
# Wrapper (hoisted parameter prep + pallas_call plumbing)
# ---------------------------------------------------------------------------
def _fold_bn(bn, eps=1e-5):
    gamma, beta, mean, var = bn
    scale = gamma / jnp.sqrt(var + eps)
    return scale, beta - mean * scale


def _prep_params(params):
    """Hoisted once per forward: OIHW -> flattened (9*Cin, Cout) bf16 weights and
    folded BN stacked as (6, Cout) f32 [scale_t, shift_t, s1, sh1, s2, sh2]."""
    (wt, bnt), (w1, bn1), (w2, bn2) = params

    def prep_w(wq):
        cout, cin = wq.shape[0], wq.shape[1]
        return (jnp.transpose(wq, (2, 3, 1, 0))          # OIHW -> HWIO
                .reshape(9 * cin, cout)
                .astype(jnp.bfloat16))

    st, sht = _fold_bn(bnt)
    s1, sh1 = _fold_bn(bn1)
    s2, sh2 = _fold_bn(bn2)
    bn_all = jnp.stack([st, sht, s1, sh1, s2, sh2]).astype(jnp.float32)
    return prep_w(wt), prep_w(w1), prep_w(w2), bn_all


@jax.jit
def res_block_forward(x_nchw, params):
    """ResBlock.forward: t = transition(x); out = t + convbn2(convbn1(t))."""
    # NCHW -> NHWC and f32 -> bf16 in a single fused XLA pass (halves input DMA bytes).
    x = jnp.transpose(x_nchw, (0, 2, 3, 1)).astype(jnp.bfloat16)
    b, h, w, cin = x.shape
    assert h % 2 == 0 and w % 2 == 0, "fused 2x2 maxpool needs even H and W"
    wt2, w12, w22, bn_all = _prep_params(params)
    cout = wt2.shape[1]
    ho, wo = h // 2, w // 2

    flops = 2 * b * (h * w * 9 * cin * cout + 2 * ho * wo * 9 * cout * cout)
    bytes_accessed = (x.size * 2 + b * ho * wo * cout * 4
                      + (wt2.size + w12.size + w22.size) * 2 + bn_all.size * 4)

    # Per-step VMEM: padded f32 scratches + double-buffered I/O blocks + resident
    # (pipeline double-buffered) weights + BN.
    vmem_need = (
        ((h + 2) * (w + 2) * cin + (ho + 2) * (wo + 2) * cout) * 4
        + 2 * (h * w * cin * 2 + ho * wo * cout * 4)
        + 2 * ((9 * cin + 18 * cout) * cout * 2 + 6 * cout * 4))
    try:  # size the scoped-VMEM request from the actual chip (~75% of per-core VMEM)
        phys_vmem = pltpu.get_tpu_info().vmem_capacity_bytes
    except Exception:
        phys_vmem = 64 * 1024 * 1024           # conservative default: v7x per-TC VMEM
    vmem_limit = int(min(int(phys_vmem) * 3 // 4,
                         max(16 * 1024 * 1024, 4 * vmem_need)))

    out_nhwc = pl.pallas_call(
        _resblock_kernel,
        out_shape=jax.ShapeDtypeStruct((b, ho, wo, cout), jnp.float32),
        grid=(b,),
        in_specs=[
            pl.BlockSpec((1, h, w, cin), lambda i: (i, 0, 0, 0)),        # x, one batch elem/step
            pl.BlockSpec((9 * cin, cout), lambda i: (0, 0)),             # wt (resident)
            pl.BlockSpec((9 * cout, cout), lambda i: (0, 0)),            # w1 (resident)
            pl.BlockSpec((9 * cout, cout), lambda i: (0, 0)),            # w2 (resident)
            pl.BlockSpec((6, cout), lambda i: (0, 0)),                   # folded BN (resident)
        ],
        out_specs=pl.BlockSpec((1, ho, wo, cout), lambda i: (i, 0, 0, 0)),
        scratch_shapes=[
            pltpu.VMEM((h + 2, w + 2, cin), jnp.float32),                # padded input
            pltpu.VMEM((ho + 2, wo + 2, cout), jnp.float32),             # padded t / h1 (reused)
        ],
        compiler_params=pltpu.CompilerParams(
            dimension_semantics=("parallel",),
            vmem_limit_bytes=vmem_limit),
        cost_estimate=pl.CostEstimate(flops=flops, transcendentals=0,
                                      bytes_accessed=bytes_accessed),
    )(x, wt2, w12, w22, bn_all)

    # TODO(synk): for large H*W add a second "parallel" grid axis over output-row
    # strips (with per-stage halo rows) so pipeline depth is not tied to batch size
    # and the padded scratches stay bounded on v7x's 64 MiB per-core VMEM.
    return jnp.transpose(out_nhwc, (0, 3, 1, 2))                         # NHWC -> NCHW


# ---------------------------------------------------------------------------
# Deterministic parameter init (shapes from the PyTorch __init__)
# ---------------------------------------------------------------------------
def init_resblock_params(key, in_planes, planes):
    def block(k, cin, cout):
        k1, k2, k3, k4, k5 = jax.random.split(k, 5)
        wq = 0.1 * jax.random.normal(k1, (cout, cin, 3, 3), jnp.float32)  # OIHW, no bias
        gamma = 1.0 + 0.1 * jax.random.normal(k2, (cout,), jnp.float32)
        beta = 0.1 * jax.random.normal(k3, (cout,), jnp.float32)
        mean = 0.1 * jax.random.normal(k4, (cout,), jnp.float32)
        var = 0.5 + jax.random.uniform(k5, (cout,), jnp.float32)
        return wq, (gamma, beta, mean, var)

    kt, k1, k2 = jax.random.split(key, 3)
    return (block(kt, in_planes, planes),
            block(k1, planes, planes),
            block(k2, planes, planes))


# ---------------------------------------------------------------------------
# Plain-JAX reference (sanity check only; bf16 MXU path => loose tolerance)
# ---------------------------------------------------------------------------
def _ref_forward(x_nchw, params):
    def conv(x, wq):
        return lax.conv_general_dilated(x, wq, (1, 1), ((1, 1), (1, 1)),
                                        dimension_numbers=("NCHW", "OIHW", "NCHW"))

    def bn_relu(x, bn):
        g, bb, m, v = bn
        s = g / jnp.sqrt(v + 1e-5)
        sh = bb - m * s
        return jnp.maximum(x * s[None, :, None, None] + sh[None, :, None, None], 0.0)

    def maxpool(x):
        return lax.reduce_window(x, -jnp.inf, lax.max,
                                 (1, 1, 2, 2), (1, 1, 2, 2), "VALID")

    (wt, bnt), (w1, bn1), (w2, bn2) = params
    t = bn_relu(maxpool(conv(x_nchw, wt)), bnt)
    h1 = bn_relu(conv(t, w1), bn1)
    r = bn_relu(conv(h1, w2), bn2)
    return t + r


if __name__ == "__main__":
    key = jax.random.PRNGKey(0)
    kx, kp = jax.random.split(key)

    in_planes, planes = 4, 8
    x = jax.random.normal(kx, (2, in_planes, 16, 16), jnp.float32)        # NCHW, like PyTorch
    params = init_resblock_params(kp, in_planes, planes)

    out = jax.block_until_ready(res_block_forward(x, params))
    ref = jax.block_until_ready(_ref_forward(x, params))

    assert out.shape == (2, planes, 8, 8), out.shape
    # bf16 activations/weights on the MXU (f32 accumulate) => small deviation vs f32 ref.
    if not jnp.allclose(out, ref, rtol=5e-2, atol=5e-2):
        err = float(jnp.max(jnp.abs(out - ref)))
        raise AssertionError(f"Pallas ResBlock does not match reference (max abs err={err})")
    print("KERNEL_OK")
</pallas_src>

<mosaic_0001>
module attributes {stable_mosaic.version = 11 : i64} {
  func.func @_resblock_kernel(%arg0: i32, %arg1: memref<1x16x16x4xbf16, #tpu.memory_space<vmem>>, %arg2: memref<36x8xbf16, #tpu.memory_space<vmem>>, %arg3: memref<72x8xbf16, #tpu.memory_space<vmem>>, %arg4: memref<72x8xbf16, #tpu.memory_space<vmem>>, %arg5: memref<6x8xf32, #tpu.memory_space<vmem>>, %arg6: memref<1x8x8x8xf32, #tpu.memory_space<vmem>>, %arg7: memref<18x18x4xf32, #tpu.memory_space<vmem>>, %arg8: memref<10x10x8xf32, #tpu.memory_space<vmem>>) attributes {dimension_semantics = [#tpu.dimension_semantics<parallel>], iteration_bounds = array<i64: 2>, scalar_prefetch = 0 : i64, scratch_operands = 2 : i64, tpu.core_type = #tpu.core_type<tc>, window_params = [{transform_indices = @transform_0, window_bounds = array<i64: 1, 16, 16, 4>}, {pipeline_mode = #tpu.pipeline_mode<synchronous>, transform_indices = @transform_1, window_bounds = array<i64: 36, 8>}, {pipeline_mode = #tpu.pipeline_mode<synchronous>, transform_indices = @transform_2, window_bounds = array<i64: 72, 8>}, {pipeline_mode = #tpu.pipeline_mode<synchronous>, transform_indices = @transform_3, window_bounds = array<i64: 72, 8>}, {pipeline_mode = #tpu.pipeline_mode<synchronous>, transform_indices = @transform_4, window_bounds = array<i64: 6, 8>}, {transform_indices = @transform_5, window_bounds = array<i64: 1, 8, 8, 8>}]} {
    %c0 = arith.constant 0 : index
    %c0_0 = arith.constant 0 : index
    %0 = vector.load %arg5[%c0, %c0_0] : memref<6x8xf32, #tpu.memory_space<vmem>>, vector<6x8xf32>
    %cst = arith.constant 0.000000e+00 : f32
    %1 = vector.broadcast %cst : f32 to vector<1x18x4xf32>
    %cst_1 = arith.constant 0.000000e+00 : f32
    %2 = vector.broadcast %cst_1 : f32 to vector<18x1x4xf32>
    %c0_2 = arith.constant 0 : index
    %c0_3 = arith.constant 0 : index
    %c0_4 = arith.constant 0 : index
    %3 = vector.load %arg7[%c0_2, %c0_3, %c0_4] : memref<18x18x4xf32, #tpu.memory_space<vmem>>, vector<1x18x4xf32>
    tpu.vector_store %arg7[%c0_2, %c0_3, %c0_4], %1 {strides = array<i32>} : memref<18x18x4xf32, #tpu.memory_space<vmem>>, vector<1x18x4xf32>,
    %c17 = arith.constant 17 : index
    %c0_5 = arith.constant 0 : index
    %c0_6 = arith.constant 0 : index
    %4 = vector.load %arg7[%c17, %c0_5, %c0_6] : memref<18x18x4xf32, #tpu.memory_space<vmem>>, vector<1x18x4xf32>
    tpu.vector_store %arg7[%c17, %c0_5, %c0_6], %1 {strides = array<i32>} : memref<18x18x4xf32, #tpu.memory_space<vmem>>, vector<1x18x4xf32>,
    %c0_7 = arith.constant 0 : index
    %c0_8 = arith.constant 0 : index
    %c0_9 = arith.constant 0 : index
    %5 = vector.load %arg7[%c0_7, %c0_8, %c0_9] : memref<18x18x4xf32, #tpu.memory_space<vmem>>, vector<18x1x4xf32>
    tpu.vector_store %arg7[%c0_7, %c0_8, %c0_9], %2 {strides = array<i32>} : memref<18x18x4xf32, #tpu.memory_space<vmem>>, vector<18x1x4xf32>,
    %c0_10 = arith.constant 0 : index
    %c17_11 = arith.constant 17 : index
    %c0_12 = arith.constant 0 : index
    %6 = vector.load %arg7[%c0_10, %c17_11, %c0_12] : memref<18x18x4xf32, #tpu.memory_space<vmem>>, vector<18x1x4xf32>
    tpu.vector_store %arg7[%c0_10, %c17_11, %c0_12], %2 {strides = array<i32>} : memref<18x18x4xf32, #tpu.memory_space<vmem>>, vector<18x1x4xf32>,
    %cst_13 = arith.constant 0.000000e+00 : f32
    %7 = vector.broadcast %cst_13 : f32 to vector<1x10x8xf32>
    %cst_14 = arith.constant 0.000000e+00 : f32
    %8 = vector.broadcast %cst_14 : f32 to vector<10x1x8xf32>
    %c0_15 = arith.constant 0 : index
    %c0_16 = arith.constant 0 : index
    %c0_17 = arith.constant 0 : index
    %9 = vector.load %arg8[%c0_15, %c0_16, %c0_17] : memref<10x10x8xf32, #tpu.memory_space<vmem>>, vector<1x10x8xf32>
    tpu.vector_store %arg8[%c0_15, %c0_16, %c0_17], %7 {strides = array<i32>} : memref<10x10x8xf32, #tpu.memory_space<vmem>>, vector<1x10x8xf32>,
    %c9 = arith.constant 9 : index
    %c0_18 = arith.constant 0 : index
    %c0_19 = arith.constant 0 : index
    %10 = vector.load %arg8[%c9, %c0_18, %c0_19] : memref<10x10x8xf32, #tpu.memory_space<vmem>>, vector<1x10x8xf32>
    tpu.vector_store %arg8[%c9, %c0_18, %c0_19], %7 {strides = array<i32>} : memref<10x10x8xf32, #tpu.memory_space<vmem>>, vector<1x10x8xf32>,
    %c0_20 = arith.constant 0 : index
    %c0_21 = arith.constant 0 : index
    %c0_22 = arith.constant 0 : index
    %11 = vector.load %arg8[%c0_20, %c0_21, %c0_22] : memref<10x10x8xf32, #tpu.memory_space<vmem>>, vector<10x1x8xf32>
    tpu.vector_store %arg8[%c0_20, %c0_21, %c0_22], %8 {strides = array<i32>} : memref<10x10x8xf32, #tpu.memory_space<vmem>>, vector<10x1x8xf32>,
    %c0_23 = arith.constant 0 : index
    %c9_24 = arith.constant 9 : index
    %c0_25 = arith.constant 0 : index
    %12 = vector.load %arg8[%c0_23, %c9_24, %c0_25] : memref<10x10x8xf32, #tpu.memory_space<vmem>>, vector<10x1x8xf32>
    tpu.vector_store %arg8[%c0_23, %c9_24, %c0_25], %8 {strides = array<i32>} : memref<10x10x8xf32, #tpu.memory_space<vmem>>, vector<10x1x8xf32>,
    %c0_26 = arith.constant 0 : index
    %c0_27 = arith.constant 0 : index
    %c0_28 = arith.constant 0 : index
    %c0_29 = arith.constant 0 : index
    %13 = vector.load %arg1[%c0_26, %c0_27, %c0_28, %c0_29] : memref<1x16x16x4xbf16, #tpu.memory_space<vmem>>, vector<1x16x16x4xbf16>
    %14 = vector.shape_cast %13 : vector<1x16x16x4xbf16> to vector<16x16x4xbf16>
    %15 = arith.extf %14 : vector<16x16x4xbf16> to vector<16x16x4xf32>
    %c1 = arith.constant 1 : index
    %c1_30 = arith.constant 1 : index
    %c0_31 = arith.constant 0 : index
    %16 = vector.load %arg7[%c1, %c1_30, %c0_31] : memref<18x18x4xf32, #tpu.memory_space<vmem>>, vector<16x16x4xf32>
    tpu.vector_store %arg7[%c1, %c1_30, %c0_31], %15 {strides = array<i32>} : memref<18x18x4xf32, #tpu.memory_space<vmem>>, vector<16x16x4xf32>,
    %cst_32 = arith.constant 0.000000e+00 : f32
    %17 = vector.broadcast %cst_32 : f32 to vector<256x8xf32>
    %c0_33 = arith.constant 0 : index
    %c0_34 = arith.constant 0 : index
    %c0_35 = arith.constant 0 : index
    %18 = vector.load %arg7[%c0_33, %c0_34, %c0_35] : memref<18x18x4xf32, #tpu.memory_space<vmem>>, vector<16x16x4xf32>
    %19 = arith.truncf %18 : vector<16x16x4xf32> to vector<16x16x4xbf16>
    %20 = vector.shape_cast %19 : vector<16x16x4xbf16> to vector<256x4xbf16>
    %c0_36 = arith.constant 0 : index
    %c0_37 = arith.constant 0 : index
    %21 = vector.load %arg2[%c0_36, %c0_37] : memref<36x8xbf16, #tpu.memory_space<vmem>>, vector<4x8xbf16>
    %cst_38 = arith.constant dense<0.000000e+00> : vector<256x8xf32>
    %22 = tpu.matmul %20, %21, %cst_38 {dimension_numbers = #tpu.dot_dimension_numbers<[1], [0], [0], [1], [0, 0, 1, 1], [], []>} : vector<256x4xbf16>, vector<4x8xbf16>, vector<256x8xf32> -> vector<256x8xf32>
    %23 = arith.addf %17, %22 : vector<256x8xf32>
    %c0_39 = arith.constant 0 : index
    %c1_40 = arith.constant 1 : index
    %c0_41 = arith.constant 0 : index
    %24 = vector.load %arg7[%c0_39, %c1_40, %c0_41] : memref<18x18x4xf32, #tpu.memory_space<vmem>>, vector<16x16x4xf32>
    %25 = arith.truncf %24 : vector<16x16x4xf32> to vector<16x16x4xbf16>
    %26 = vector.shape_cast %25 : vector<16x16x4xbf16> to vector<256x4xbf16>
    %c4 = arith.constant 4 : index
    %c0_42 = arith.constant 0 : index
    %27 = vector.load %arg2[%c4, %c0_42] : memref<36x8xbf16, #tpu.memory_space<vmem>>, vector<4x8xbf16>
    %cst_43 = arith.constant dense<0.000000e+00> : vector<256x8xf32>
    %28 = tpu.matmul %26, %27, %cst_43 {dimension_numbers = #tpu.dot_dimension_numbers<[1], [0], [0], [1], [0, 0, 1, 1], [], []>} : vector<256x4xbf16>, vector<4x8xbf16>, vector<256x8xf32> -> vector<256x8xf32>
    %29 = arith.addf %23, %28 : vector<256x8xf32>
    %c0_44 = arith.constant 0 : index
    %c2 = arith.constant 2 : index
    %c0_45 = arith.constant 0 : index
    %30 = vector.load %arg7[%c0_44, %c2, %c0_45] : memref<18x18x4xf32, #tpu.memory_space<vmem>>, vector<16x16x4xf32>
    %31 = arith.truncf %30 : vector<16x16x4xf32> to vector<16x16x4xbf16>
    %32 = vector.shape_cast %31 : vector<16x16x4xbf16> to vector<256x4xbf16>
    %c8 = arith.constant 8 : index
    %c0_46 = arith.constant 0 : index
    %33 = vector.load %arg2[%c8, %c0_46] : memref<36x8xbf16, #tpu.memory_space<vmem>>, vector<4x8xbf16>
    %cst_47 = arith.constant dense<0.000000e+00> : vector<256x8xf32>
    %34 = tpu.matmul %32, %33, %cst_47 {dimension_numbers = #tpu.dot_dimension_numbers<[1], [0], [0], [1], [0, 0, 1, 1], [], []>} : vector<256x4xbf16>, vector<4x8xbf16>, vector<256x8xf32> -> vector<256x8xf32>
    %35 = arith.addf %29, %34 : vector<256x8xf32>
    %c1_48 = arith.constant 1 : index
    %c0_49 = arith.constant 0 : index
    %c0_50 = arith.constant 0 : index
    %36 = vector.load %arg7[%c1_48, %c0_49, %c0_50] : memref<18x18x4xf32, #tpu.memory_space<vmem>>, vector<16x16x4xf32>
    %37 = arith.truncf %36 : vector<16x16x4xf32> to vector<16x16x4xbf16>
    %38 = vector.shape_cast %37 : vector<16x16x4xbf16> to vector<256x4xbf16>
    %c12 = arith.constant 12 : index
    %c0_51 = arith.constant 0 : index
    %39 = vector.load %arg2[%c12, %c0_51] : memref<36x8xbf16, #tpu.memory_space<vmem>>, vector<4x8xbf16>
    %cst_52 = arith.constant dense<0.000000e+00> : vector<256x8xf32>
    %40 = tpu.matmul %38, %39, %cst_52 {dimension_numbers = #tpu.dot_dimension_numbers<[1], [0], [0], [1], [0, 0, 1, 1], [], []>} : vector<256x4xbf16>, vector<4x8xbf16>, vector<256x8xf32> -> vector<256x8xf32>
    %41 = arith.addf %35, %40 : vector<256x8xf32>
    %c1_53 = arith.constant 1 : index
    %c1_54 = arith.constant 1 : index
    %c0_55 = arith.constant 0 : index
    %42 = vector.load %arg7[%c1_53, %c1_54, %c0_55] : memref<18x18x4xf32, #tpu.memory_space<vmem>>, vector<16x16x4xf32>
    %43 = arith.truncf %42 : vector<16x16x4xf32> to vector<16x16x4xbf16>
    %44 = vector.shape_cast %43 : vector<16x16x4xbf16> to vector<256x4xbf16>
    %c16 = arith.constant 16 : index
    %c0_56 = arith.constant 0 : index
    %45 = vector.load %arg2[%c16, %c0_56] : memref<36x8xbf16, #tpu.memory_space<vmem>>, vector<4x8xbf16>
    %cst_57 = arith.constant dense<0.000000e+00> : vector<256x8xf32>
    %46 = tpu.matmul %44, %45, %cst_57 {dimension_numbers = #tpu.dot_dimension_numbers<[1], [0], [0], [1], [0, 0, 1, 1], [], []>} : vector<256x4xbf16>, vector<4x8xbf16>, vector<256x8xf32> -> vector<256x8xf32>
    %47 = arith.addf %41, %46 : vector<256x8xf32>
    %c1_58 = arith.constant 1 : index
    %c2_59 = arith.constant 2 : index
    %c0_60 = arith.constant 0 : index
    %48 = vector.load %arg7[%c1_58, %c2_59, %c0_60] : memref<18x18x4xf32, #tpu.memory_space<vmem>>, vector<16x16x4xf32>
    %49 = arith.truncf %48 : vector<16x16x4xf32> to vector<16x16x4xbf16>
    %50 = vector.shape_cast %49 : vector<16x16x4xbf16> to vector<256x4xbf16>
    %c20 = arith.constant 20 : index
    %c0_61 = arith.constant 0 : index
    %51 = vector.load %arg2[%c20, %c0_61] : memref<36x8xbf16, #tpu.memory_space<vmem>>, vector<4x8xbf16>
    %cst_62 = arith.constant dense<0.000000e+00> : vector<256x8xf32>
    %52 = tpu.matmul %50, %51, %cst_62 {dimension_numbers = #tpu.dot_dimension_numbers<[1], [0], [0], [1], [0, 0, 1, 1], [], []>} : vector<256x4xbf16>, vector<4x8xbf16>, vector<256x8xf32> -> vector<256x8xf32>
    %53 = arith.addf %47, %52 : vector<256x8xf32>
    %c2_63 = arith.constant 2 : index
    %c0_64 = arith.constant 0 : index
    %c0_65 = arith.constant 0 : index
    %54 = vector.load %arg7[%c2_63, %c0_64, %c0_65] : memref<18x18x4xf32, #tpu.memory_space<vmem>>, vector<16x16x4xf32>
    %55 = arith.truncf %54 : vector<16x16x4xf32> to vector<16x16x4xbf16>
    %56 = vector.shape_cast %55 : vector<16x16x4xbf16> to vector<256x4xbf16>
    %c24 = arith.constant 24 : index
    %c0_66 = arith.constant 0 : index
    %57 = vector.load %arg2[%c24, %c0_66] : memref<36x8xbf16, #tpu.memory_space<vmem>>, vector<4x8xbf16>
    %cst_67 = arith.constant dense<0.000000e+00> : vector<256x8xf32>
    %58 = tpu.matmul %56, %57, %cst_67 {dimension_numbers = #tpu.dot_dimension_numbers<[1], [0], [0], [1], [0, 0, 1, 1], [], []>} : vector<256x4xbf16>, vector<4x8xbf16>, vector<256x8xf32> -> vector<256x8xf32>
    %59 = arith.addf %53, %58 : vector<256x8xf32>
    %c2_68 = arith.constant 2 : index
    %c1_69 = arith.constant 1 : index
    %c0_70 = arith.constant 0 : index
    %60 = vector.load %arg7[%c2_68, %c1_69, %c0_70] : memref<18x18x4xf32, #tpu.memory_space<vmem>>, vector<16x16x4xf32>
    %61 = arith.truncf %60 : vector<16x16x4xf32> to vector<16x16x4xbf16>
    %62 = vector.shape_cast %61 : vector<16x16x4xbf16> to vector<256x4xbf16>
    %c28 = arith.constant 28 : index
    %c0_71 = arith.constant 0 : index
    %63 = vector.load %arg2[%c28, %c0_71] : memref<36x8xbf16, #tpu.memory_space<vmem>>, vector<4x8xbf16>
    %cst_72 = arith.constant dense<0.000000e+00> : vector<256x8xf32>
    %64 = tpu.matmul %62, %63, %cst_72 {dimension_numbers = #tpu.dot_dimension_numbers<[1], [0], [0], [1], [0, 0, 1, 1], [], []>} : vector<256x4xbf16>, vector<4x8xbf16>, vector<256x8xf32> -> vector<256x8xf32>
    %65 = arith.addf %59, %64 : vector<256x8xf32>
    %c2_73 = arith.constant 2 : index
    %c2_74 = arith.constant 2 : index
    %c0_75 = arith.constant 0 : index
    %66 = vector.load %arg7[%c2_73, %c2_74, %c0_75] : memref<18x18x4xf32, #tpu.memory_space<vmem>>, vector<16x16x4xf32>
    %67 = arith.truncf %66 : vector<16x16x4xf32> to vector<16x16x4xbf16>
    %68 = vector.shape_cast %67 : vector<16x16x4xbf16> to vector<256x4xbf16>
    %c32 = arith.constant 32 : index
    %c0_76 = arith.constant 0 : index
    %69 = vector.load %arg2[%c32, %c0_76] : memref<36x8xbf16, #tpu.memory_space<vmem>>, vector<4x8xbf16>
    %cst_77 = arith.constant dense<0.000000e+00> : vector<256x8xf32>
    %70 = tpu.matmul %68, %69, %cst_77 {dimension_numbers = #tpu.dot_dimension_numbers<[1], [0], [0], [1], [0, 0, 1, 1], [], []>} : vector<256x4xbf16>, vector<4x8xbf16>, vector<256x8xf32> -> vector<256x8xf32>
    %71 = arith.addf %65, %70 : vector<256x8xf32>
    %72 = vector.shape_cast %71 : vector<256x8xf32> to vector<128x2x8xf32>
    %cst_78 = arith.constant dense<0xFF800000> : vector<128x8xf32>
    %73 = vector.multi_reduction <maximumf>, %72, %cst_78 [1] : vector<128x2x8xf32> to vector<128x8xf32>
    %74 = vector.shape_cast %73 : vector<128x8xf32> to vector<8x2x8x8xf32>
    %cst_79 = arith.constant dense<0xFF800000> : vector<8x8x8xf32>
    %75 = vector.multi_reduction <maximumf>, %74, %cst_79 [1] : vector<8x2x8x8xf32> to vector<8x8x8xf32>
    %76 = vector.extract_strided_slice %0 {offsets = [0, 0], sizes = [1, 8], strides = [1, 1]} : vector<6x8xf32> to vector<1x8xf32>
    %77 = vector.shape_cast %76 : vector<1x8xf32> to vector<1x1x8xf32>
    %78 = vector.broadcast %77 : vector<1x1x8xf32> to vector<8x8x8xf32>
    %79 = arith.mulf %75, %78 : vector<8x8x8xf32>
    %80 = vector.extract_strided_slice %0 {offsets = [1, 0], sizes = [1, 8], strides = [1, 1]} : vector<6x8xf32> to vector<1x8xf32>
    %81 = vector.shape_cast %80 : vector<1x8xf32> to vector<1x1x8xf32>
    %82 = vector.broadcast %81 : vector<1x1x8xf32> to vector<8x8x8xf32>
    %83 = arith.addf %79, %82 : vector<8x8x8xf32>
    %cst_80 = arith.constant 0.000000e+00 : f32
    %84 = vector.broadcast %cst_80 : f32 to vector<8x8x8xf32>
    %85 = arith.maximumf %83, %84 : vector<8x8x8xf32>
    %86 = vector.shape_cast %85 : vector<8x8x8xf32> to vector<1x8x8x8xf32>
    %c0_81 = arith.constant 0 : index
    %c0_82 = arith.constant 0 : index
    %c0_83 = arith.constant 0 : index
    %c0_84 = arith.constant 0 : index
    %87 = vector.load %arg6[%c0_81, %c0_82, %c0_83, %c0_84] : memref<1x8x8x8xf32, #tpu.memory_space<vmem>>, vector<1x8x8x8xf32>
    tpu.vector_store %arg6[%c0_81, %c0_82, %c0_83, %c0_84], %86 {strides = array<i32>} : memref<1x8x8x8xf32, #tpu.memory_space<vmem>>, vector<1x8x8x8xf32>,
    %c1_85 = arith.constant 1 : index
    %c1_86 = arith.constant 1 : index
    %c0_87 = arith.constant 0 : index
    %88 = vector.load %arg8[%c1_85, %c1_86, %c0_87] : memref<10x10x8xf32, #tpu.memory_space<vmem>>, vector<8x8x8xf32>
    tpu.vector_store %arg8[%c1_85, %c1_86, %c0_87], %85 {strides = array<i32>} : memref<10x10x8xf32, #tpu.memory_space<vmem>>, vector<8x8x8xf32>,
    %cst_88 = arith.constant 0.000000e+00 : f32
    %89 = vector.broadcast %cst_88 : f32 to vector<64x8xf32>
    %c0_89 = arith.constant 0 : index
    %c0_90 = arith.constant 0 : index
    %c0_91 = arith.constant 0 : index
    %90 = vector.load %arg8[%c0_89, %c0_90, %c0_91] : memref<10x10x8xf32, #tpu.memory_space<vmem>>, vector<8x8x8xf32>
    %91 = arith.truncf %90 : vector<8x8x8xf32> to vector<8x8x8xbf16>
    %92 = vector.shape_cast %91 : vector<8x8x8xbf16> to vector<64x8xbf16>
    %c0_92 = arith.constant 0 : index
    %c0_93 = arith.constant 0 : index
    %93 = vector.load %arg3[%c0_92, %c0_93] : memref<72x8xbf16, #tpu.memory_space<vmem>>, vector<8x8xbf16>
    %cst_94 = arith.constant dense<0.000000e+00> : vector<64x8xf32>
    %94 = tpu.matmul %92, %93, %cst_94 {dimension_numbers = #tpu.dot_dimension_numbers<[1], [0], [0], [1], [0, 0, 1, 1], [], []>} : vector<64x8xbf16>, vector<8x8xbf16>, vector<64x8xf32> -> vector<64x8xf32>
    %95 = arith.addf %89, %94 : vector<64x8xf32>
    %c0_95 = arith.constant 0 : index
    %c1_96 = arith.constant 1 : index
    %c0_97 = arith.constant 0 : index
    %96 = vector.load %arg8[%c0_95, %c1_96, %c0_97] : memref<10x10x8xf32, #tpu.memory_space<vmem>>, vector<8x8x8xf32>
    %97 = arith.truncf %96 : vector<8x8x8xf32> to vector<8x8x8xbf16>
    %98 = vector.shape_cast %97 : vector<8x8x8xbf16> to vector<64x8xbf16>
    %c8_98 = arith.constant 8 : index
    %c0_99 = arith.constant 0 : index
    %99 = vector.load %arg3[%c8_98, %c0_99] : memref<72x8xbf16, #tpu.memory_space<vmem>>, vector<8x8xbf16>
    %cst_100 = arith.constant dense<0.000000e+00> : vector<64x8xf32>
    %100 = tpu.matmul %98, %99, %cst_100 {dimension_numbers = #tpu.dot_dimension_numbers<[1], [0], [0], [1], [0, 0, 1, 1], [], []>} : vector<64x8xbf16>, vector<8x8xbf16>, vector<64x8xf32> -> vector<64x8xf32>
    %101 = arith.addf %95, %100 : vector<64x8xf32>
    %c0_101 = arith.constant 0 : index
    %c2_102 = arith.constant 2 : index
    %c0_103 = arith.constant 0 : index
    %102 = vector.load %arg8[%c0_101, %c2_102, %c0_103] : memref<10x10x8xf32, #tpu.memory_space<vmem>>, vector<8x8x8xf32>
    %103 = arith.truncf %102 : vector<8x8x8xf32> to vector<8x8x8xbf16>
    %104 = vector.shape_cast %103 : vector<8x8x8xbf16> to vector<64x8xbf16>
    %c16_104 = arith.constant 16 : index
    %c0_105 = arith.constant 0 : index
    %105 = vector.load %arg3[%c16_104, %c0_105] : memref<72x8xbf16, #tpu.memory_space<vmem>>, vector<8x8xbf16>
    %cst_106 = arith.constant dense<0.000000e+00> : vector<64x8xf32>
    %106 = tpu.matmul %104, %105, %cst_106 {dimension_numbers = #tpu.dot_dimension_numbers<[1], [0], [0], [1], [0, 0, 1, 1], [], []>} : vector<64x8xbf16>, vector<8x8xbf16>, vector<64x8xf32> -> vector<64x8xf32>
    %107 = arith.addf %101, %106 : vector<64x8xf32>
    %c1_107 = arith.constant 1 : index
    %c0_108 = arith.constant 0 : index
    %c0_109 = arith.constant 0 : index
    %108 = vector.load %arg8[%c1_107, %c0_108, %c0_109] : memref<10x10x8xf32, #tpu.memory_space<vmem>>, vector<8x8x8xf32>
    %109 = arith.truncf %108 : vector<8x8x8xf32> to vector<8x8x8xbf16>
    %110 = vector.shape_cast %109 : vector<8x8x8xbf16> to vector<64x8xbf16>
    %c24_110 = arith.constant 24 : index
    %c0_111 = arith.constant 0 : index
    %111 = vector.load %arg3[%c24_110, %c0_111] : memref<72x8xbf16, #tpu.memory_space<vmem>>, vector<8x8xbf16>
    %cst_112 = arith.constant dense<0.000000e+00> : vector<64x8xf32>
    %112 = tpu.matmul %110, %111, %cst_112 {dimension_numbers = #tpu.dot_dimension_numbers<[1], [0], [0], [1], [0, 0, 1, 1], [], []>} : vector<64x8xbf16>, vector<8x8xbf16>, vector<64x8xf32> -> vector<64x8xf32>
    %113 = arith.addf %107, %112 : vector<64x8xf32>
    %c1_113 = arith.constant 1 : index
    %c1_114 = arith.constant 1 : index
    %c0_115 = arith.constant 0 : index
    %114 = vector.load %arg8[%c1_113, %c1_114, %c0_115] : memref<10x10x8xf32, #tpu.memory_space<vmem>>, vector<8x8x8xf32>
    %115 = arith.truncf %114 : vector<8x8x8xf32> to vector<8x8x8xbf16>
    %116 = vector.shape_cast %115 : vector<8x8x8xbf16> to vector<64x8xbf16>
    %c32_116 = arith.constant 32 : index
    %c0_117 = arith.constant 0 : index
    %117 = vector.load %arg3[%c32_116, %c0_117] : memref<72x8xbf16, #tpu.memory_space<vmem>>, vector<8x8xbf16>
    %cst_118 = arith.constant dense<0.000000e+00> : vector<64x8xf32>
    %118 = tpu.matmul %116, %117, %cst_118 {dimension_numbers = #tpu.dot_dimension_numbers<[1], [0], [0], [1], [0, 0, 1, 1], [], []>} : vector<64x8xbf16>, vector<8x8xbf16>, vector<64x8xf32> -> vector<64x8xf32>
    %119 = arith.addf %113, %118 : vector<64x8xf32>
    %c1_119 = arith.constant 1 : index
    %c2_120 = arith.constant 2 : index
    %c0_121 = arith.constant 0 : index
    %120 = vector.load %arg8[%c1_119, %c2_120, %c0_121] : memref<10x10x8xf32, #tpu.memory_space<vmem>>, vector<8x8x8xf32>
    %121 = arith.truncf %120 : vector<8x8x8xf32> to vector<8x8x8xbf16>
    %122 = vector.shape_cast %121 : vector<8x8x8xbf16> to vector<64x8xbf16>
    %c40 = arith.constant 40 : index
    %c0_122 = arith.constant 0 : index
    %123 = vector.load %arg3[%c40, %c0_122] : memref<72x8xbf16, #tpu.memory_space<vmem>>, vector<8x8xbf16>
    %cst_123 = arith.constant dense<0.000000e+00> : vector<64x8xf32>
    %124 = tpu.matmul %122, %123, %cst_123 {dimension_numbers = #tpu.dot_dimension_numbers<[1], [0], [0], [1], [0, 0, 1, 1], [], []>} : vector<64x8xbf16>, vector<8x8xbf16>, vector<64x8xf32> -> vector<64x8xf32>
    %125 = arith.addf %119, %124 : vector<64x8xf32>
    %c2_124 = arith.constant 2 : index
    %c0_125 = arith.constant 0 : index
    %c0_126 = arith.constant 0 : index
    %126 = vector.load %arg8[%c2_124, %c0_125, %c0_126] : memref<10x10x8xf32, #tpu.memory_space<vmem>>, vector<8x8x8xf32>
    %127 = arith.truncf %126 : vector<8x8x8xf32> to vector<8x8x8xbf16>
    %128 = vector.shape_cast %127 : vector<8x8x8xbf16> to vector<64x8xbf16>
    %c48 = arith.constant 48 : index
    %c0_127 = arith.constant 0 : index
    %129 = vector.load %arg3[%c48, %c0_127] : memref<72x8xbf16, #tpu.memory_space<vmem>>, vector<8x8xbf16>
    %cst_128 = arith.constant dense<0.000000e+00> : vector<64x8xf32>
    %130 = tpu.matmul %128, %129, %cst_128 {dimension_numbers = #tpu.dot_dimension_numbers<[1], [0], [0], [1], [0, 0, 1, 1], [], []>} : vector<64x8xbf16>, vector<8x8xbf16>, vector<64x8xf32> -> vector<64x8xf32>
    %131 = arith.addf %125, %130 : vector<64x8xf32>
    %c2_129 = arith.constant 2 : index
    %c1_130 = arith.constant 1 : index
    %c0_131 = arith.constant 0 : index
    %132 = vector.load %arg8[%c2_129, %c1_130, %c0_131] : memref<10x10x8xf32, #tpu.memory_space<vmem>>, vector<8x8x8xf32>
    %133 = arith.truncf %132 : vector<8x8x8xf32> to vector<8x8x8xbf16>
    %134 = vector.shape_cast %133 : vector<8x8x8xbf16> to vector<64x8xbf16>
    %c56 = arith.constant 56 : index
    %c0_132 = arith.constant 0 : index
    %135 = vector.load %arg3[%c56, %c0_132] : memref<72x8xbf16, #tpu.memory_space<vmem>>, vector<8x8xbf16>
    %cst_133 = arith.constant dense<0.000000e+00> : vector<64x8xf32>
    %136 = tpu.matmul %134, %135, %cst_133 {dimension_numbers = #tpu.dot_dimension_numbers<[1], [0], [0], [1], [0, 0, 1, 1], [], []>} : vector<64x8xbf16>, vector<8x8xbf16>, vector<64x8xf32> -> vector<64x8xf32>
    %137 = arith.addf %131, %136 : vector<64x8xf32>
    %c2_134 = arith.constant 2 : index
    %c2_135 = arith.constant 2 : index
    %c0_136 = arith.constant 0 : index
    %138 = vector.load %arg8[%c2_134, %c2_135, %c0_136] : memref<10x10x8xf32, #tpu.memory_space<vmem>>, vector<8x8x8xf32>
    %139 = arith.truncf %138 : vector<8x8x8xf32> to vector<8x8x8xbf16>
    %140 = vector.shape_cast %139 : vector<8x8x8xbf16> to vector<64x8xbf16>
    %c64 = arith.constant 64 : index
    %c0_137 = arith.constant 0 : index
    %141 = vector.load %arg3[%c64, %c0_137] : memref<72x8xbf16, #tpu.memory_space<vmem>>, vector<8x8xbf16>
    %cst_138 = arith.constant dense<0.000000e+00> : vector<64x8xf32>
    %142 = tpu.matmul %140, %141, %cst_138 {dimension_numbers = #tpu.dot_dimension_numbers<[1], [0], [0], [1], [0, 0, 1, 1], [], []>} : vector<64x8xbf16>, vector<8x8xbf16>, vector<64x8xf32> -> vector<64x8xf32>
    %143 = arith.addf %137, %142 : vector<64x8xf32>
    %144 = vector.extract_strided_slice %0 {offsets = [2, 0], sizes = [1, 8], strides = [1, 1]} : vector<6x8xf32> to vector<1x8xf32>
    %145 = vector.broadcast %144 : vector<1x8xf32> to vector<64x8xf32>
    %146 = arith.mulf %143, %145 : vector<64x8xf32>
    %147 = vector.extract_strided_slice %0 {offsets = [3, 0], sizes = [1, 8], strides = [1, 1]} : vector<6x8xf32> to vector<1x8xf32>
    %148 = vector.broadcast %147 : vector<1x8xf32> to vector<64x8xf32>
    %149 = arith.addf %146, %148 : vector<64x8xf32>
    %cst_139 = arith.constant 0.000000e+00 : f32
    %150 = vector.broadcast %cst_139 : f32 to vector<64x8xf32>
    %151 = arith.maximumf %149, %150 : vector<64x8xf32>
    %152 = vector.shape_cast %151 : vector<64x8xf32> to vector<8x8x8xf32>
    %c1_140 = arith.constant 1 : index
    %c1_141 = arith.constant 1 : index
    %c0_142 = arith.constant 0 : index
    %153 = vector.load %arg8[%c1_140, %c1_141, %c0_142] : memref<10x10x8xf32, #tpu.memory_space<vmem>>, vector<8x8x8xf32>
    tpu.vector_store %arg8[%c1_140, %c1_141, %c0_142], %152 {strides = array<i32>} : memref<10x10x8xf32, #tpu.memory_space<vmem>>, vector<8x8x8xf32>,
    %cst_143 = arith.constant 0.000000e+00 : f32
    %154 = vector.broadcast %cst_143 : f32 to vector<64x8xf32>
    %c0_144 = arith.constant 0 : index
    %c0_145 = arith.constant 0 : index
    %c0_146 = arith.constant 0 : index
    %155 = vector.load %arg8[%c0_144, %c0_145, %c0_146] : memref<10x10x8xf32, #tpu.memory_space<vmem>>, vector<8x8x8xf32>
    %156 = arith.truncf %155 : vector<8x8x8xf32> to vector<8x8x8xbf16>
    %157 = vector.shape_cast %156 : vector<8x8x8xbf16> to vector<64x8xbf16>
    %c0_147 = arith.constant 0 : index
    %c0_148 = arith.constant 0 : index
    %158 = vector.load %arg4[%c0_147, %c0_148] : memref<72x8xbf16, #tpu.memory_space<vmem>>, vector<8x8xbf16>
    %cst_149 = arith.constant dense<0.000000e+00> : vector<64x8xf32>
    %159 = tpu.matmul %157, %158, %cst_149 {dimension_numbers = #tpu.dot_dimension_numbers<[1], [0], [0], [1], [0, 0, 1, 1], [], []>} : vector<64x8xbf16>, vector<8x8xbf16>, vector<64x8xf32> -> vector<64x8xf32>
    %160 = arith.addf %154, %159 : vector<64x8xf32>
    %c0_150 = arith.constant 0 : index
    %c1_151 = arith.constant 1 : index
    %c0_152 = arith.constant 0 : index
    %161 = vector.load %arg8[%c0_150, %c1_151, %c0_152] : memref<10x10x8xf32, #tpu.memory_space<vmem>>, vector<8x8x8xf32>
    %162 = arith.truncf %161 : vector<8x8x8xf32> to vector<8x8x8xbf16>
    %163 = vector.shape_cast %162 : vector<8x8x8xbf16> to vector<64x8xbf16>
    %c8_153 = arith.constant 8 : index
    %c0_154 = arith.constant 0 : index
    %164 = vector.load %arg4[%c8_153, %c0_154] : memref<72x8xbf16, #tpu.memory_space<vmem>>, vector<8x8xbf16>
    %cst_155 = arith.constant dense<0.000000e+00> : vector<64x8xf32>
    %165 = tpu.matmul %163, %164, %cst_155 {dimension_numbers = #tpu.dot_dimension_numbers<[1], [0], [0], [1], [0, 0, 1, 1], [], []>} : vector<64x8xbf16>, vector<8x8xbf16>, vector<64x8xf32> -> vector<64x8xf32>
    %166 = arith.addf %160, %165 : vector<64x8xf32>
    %c0_156 = arith.constant 0 : index
    %c2_157 = arith.constant 2 : index
    %c0_158 = arith.constant 0 : index
    %167 = vector.load %arg8[%c0_156, %c2_157, %c0_158] : memref<10x10x8xf32, #tpu.memory_space<vmem>>, vector<8x8x8xf32>
    %168 = arith.truncf %167 : vector<8x8x8xf32> to vector<8x8x8xbf16>
    %169 = vector.shape_cast %168 : vector<8x8x8xbf16> to vector<64x8xbf16>
    %c16_159 = arith.constant 16 : index
    %c0_160 = arith.constant 0 : index
    %170 = vector.load %arg4[%c16_159, %c0_160] : memref<72x8xbf16, #tpu.memory_space<vmem>>, vector<8x8xbf16>
    %cst_161 = arith.constant dense<0.000000e+00> : vector<64x8xf32>
    %171 = tpu.matmul %169, %170, %cst_161 {dimension_numbers = #tpu.dot_dimension_numbers<[1], [0], [0], [1], [0, 0, 1, 1], [], []>} : vector<64x8xbf16>, vector<8x8xbf16>, vector<64x8xf32> -> vector<64x8xf32>
    %172 = arith.addf %166, %171 : vector<64x8xf32>
    %c1_162 = arith.constant 1 : index
    %c0_163 = arith.constant 0 : index
    %c0_164 = arith.constant 0 : index
    %173 = vector.load %arg8[%c1_162, %c0_163, %c0_164] : memref<10x10x8xf32, #tpu.memory_space<vmem>>, vector<8x8x8xf32>
    %174 = arith.truncf %173 : vector<8x8x8xf32> to vector<8x8x8xbf16>
    %175 = vector.shape_cast %174 : vector<8x8x8xbf16> to vector<64x8xbf16>
    %c24_165 = arith.constant 24 : index
    %c0_166 = arith.constant 0 : index
    %176 = vector.load %arg4[%c24_165, %c0_166] : memref<72x8xbf16, #tpu.memory_space<vmem>>, vector<8x8xbf16>
    %cst_167 = arith.constant dense<0.000000e+00> : vector<64x8xf32>
    %177 = tpu.matmul %175, %176, %cst_167 {dimension_numbers = #tpu.dot_dimension_numbers<[1], [0], [0], [1], [0, 0, 1, 1], [], []>} : vector<64x8xbf16>, vector<8x8xbf16>, vector<64x8xf32> -> vector<64x8xf32>
    %178 = arith.addf %172, %177 : vector<64x8xf32>
    %c1_168 = arith.constant 1 : index
    %c1_169 = arith.constant 1 : index
    %c0_170 = arith.constant 0 : index
    %179 = vector.load %arg8[%c1_168, %c1_169, %c0_170] : memref<10x10x8xf32, #tpu.memory_space<vmem>>, vector<8x8x8xf32>
    %180 = arith.truncf %179 : vector<8x8x8xf32> to vector<8x8x8xbf16>
    %181 = vector.shape_cast %180 : vector<8x8x8xbf16> to vector<64x8xbf16>
    %c32_171 = arith.constant 32 : index
    %c0_172 = arith.constant 0 : index
    %182 = vector.load %arg4[%c32_171, %c0_172] : memref<72x8xbf16, #tpu.memory_space<vmem>>, vector<8x8xbf16>
    %cst_173 = arith.constant dense<0.000000e+00> : vector<64x8xf32>
    %183 = tpu.matmul %181, %182, %cst_173 {dimension_numbers = #tpu.dot_dimension_numbers<[1], [0], [0], [1], [0, 0, 1, 1], [], []>} : vector<64x8xbf16>, vector<8x8xbf16>, vector<64x8xf32> -> vector<64x8xf32>
    %184 = arith.addf %178, %183 : vector<64x8xf32>
    %c1_174 = arith.constant 1 : index
    %c2_175 = arith.constant 2 : index
    %c0_176 = arith.constant 0 : index
    %185 = vector.load %arg8[%c1_174, %c2_175, %c0_176] : memref<10x10x8xf32, #tpu.memory_space<vmem>>, vector<8x8x8xf32>
    %186 = arith.truncf %185 : vector<8x8x8xf32> to vector<8x8x8xbf16>
    %187 = vector.shape_cast %186 : vector<8x8x8xbf16> to vector<64x8xbf16>
    %c40_177 = arith.constant 40 : index
    %c0_178 = arith.constant 0 : index
    %188 = vector.load %arg4[%c40_177, %c0_178] : memref<72x8xbf16, #tpu.memory_space<vmem>>, vector<8x8xbf16>
    %cst_179 = arith.constant dense<0.000000e+00> : vector<64x8xf32>
    %189 = tpu.matmul %187, %188, %cst_179 {dimension_numbers = #tpu.dot_dimension_numbers<[1], [0], [0], [1], [0, 0, 1, 1], [], []>} : vector<64x8xbf16>, vector<8x8xbf16>, vector<64x8xf32> -> vector<64x8xf32>
    %190 = arith.addf %184, %189 : vector<64x8xf32>
    %c2_180 = arith.constant 2 : index
    %c0_181 = arith.constant 0 : index
    %c0_182 = arith.constant 0 : index
    %191 = vector.load %arg8[%c2_180, %c0_181, %c0_182] : memref<10x10x8xf32, #tpu.memory_space<vmem>>, vector<8x8x8xf32>
    %192 = arith.truncf %191 : vector<8x8x8xf32> to vector<8x8x8xbf16>
    %193 = vector.shape_cast %192 : vector<8x8x8xbf16> to vector<64x8xbf16>
    %c48_183 = arith.constant 48 : index
    %c0_184 = arith.constant 0 : index
    %194 = vector.load %arg4[%c48_183, %c0_184] : memref<72x8xbf16, #tpu.memory_space<vmem>>, vector<8x8xbf16>
    %cst_185 = arith.constant dense<0.000000e+00> : vector<64x8xf32>
    %195 = tpu.matmul %193, %194, %cst_185 {dimension_numbers = #tpu.dot_dimension_numbers<[1], [0], [0], [1], [0, 0, 1, 1], [], []>} : vector<64x8xbf16>, vector<8x8xbf16>, vector<64x8xf32> -> vector<64x8xf32>
    %196 = arith.addf %190, %195 : vector<64x8xf32>
    %c2_186 = arith.constant 2 : index
    %c1_187 = arith.constant 1 : index
    %c0_188 = arith.constant 0 : index
    %197 = vector.load %arg8[%c2_186, %c1_187, %c0_188] : memref<10x10x8xf32, #tpu.memory_space<vmem>>, vector<8x8x8xf32>
    %198 = arith.truncf %197 : vector<8x8x8xf32> to vector<8x8x8xbf16>
    %199 = vector.shape_cast %198 : vector<8x8x8xbf16> to vector<64x8xbf16>
    %c56_189 = arith.constant 56 : index
    %c0_190 = arith.constant 0 : index
    %200 = vector.load %arg4[%c56_189, %c0_190] : memref<72x8xbf16, #tpu.memory_space<vmem>>, vector<8x8xbf16>
    %cst_191 = arith.constant dense<0.000000e+00> : vector<64x8xf32>
    %201 = tpu.matmul %199, %200, %cst_191 {dimension_numbers = #tpu.dot_dimension_numbers<[1], [0], [0], [1], [0, 0, 1, 1], [], []>} : vector<64x8xbf16>, vector<8x8xbf16>, vector<64x8xf32> -> vector<64x8xf32>
    %202 = arith.addf %196, %201 : vector<64x8xf32>
    %c2_192 = arith.constant 2 : index
    %c2_193 = arith.constant 2 : index
    %c0_194 = arith.constant 0 : index
    %203 = vector.load %arg8[%c2_192, %c2_193, %c0_194] : memref<10x10x8xf32, #tpu.memory_space<vmem>>, vector<8x8x8xf32>
    %204 = arith.truncf %203 : vector<8x8x8xf32> to vector<8x8x8xbf16>
    %205 = vector.shape_cast %204 : vector<8x8x8xbf16> to vector<64x8xbf16>
    %c64_195 = arith.constant 64 : index
    %c0_196 = arith.constant 0 : index
    %206 = vector.load %arg4[%c64_195, %c0_196] : memref<72x8xbf16, #tpu.memory_space<vmem>>, vector<8x8xbf16>
    %cst_197 = arith.constant dense<0.000000e+00> : vector<64x8xf32>
    %207 = tpu.matmul %205, %206, %cst_197 {dimension_numbers = #tpu.dot_dimension_numbers<[1], [0], [0], [1], [0, 0, 1, 1], [], []>} : vector<64x8xbf16>, vector<8x8xbf16>, vector<64x8xf32> -> vector<64x8xf32>
    %208 = arith.addf %202, %207 : vector<64x8xf32>
    %209 = vector.extract_strided_slice %0 {offsets = [4, 0], sizes = [1, 8], strides = [1, 1]} : vector<6x8xf32> to vector<1x8xf32>
    %210 = vector.broadcast %209 : vector<1x8xf32> to vector<64x8xf32>
    %211 = arith.mulf %208, %210 : vector<64x8xf32>
    %212 = vector.extract_strided_slice %0 {offsets = [5, 0], sizes = [1, 8], strides = [1, 1]} : vector<6x8xf32> to vector<1x8xf32>
    %213 = vector.broadcast %212 : vector<1x8xf32> to vector<64x8xf32>
    %214 = arith.addf %211, %213 : vector<64x8xf32>
    %cst_198 = arith.constant 0.000000e+00 : f32
    %215 = vector.broadcast %cst_198 : f32 to vector<64x8xf32>
    %216 = arith.maximumf %214, %215 : vector<64x8xf32>
    %c0_199 = arith.constant 0 : index
    %c0_200 = arith.constant 0 : index
    %c0_201 = arith.constant 0 : index
    %c0_202 = arith.constant 0 : index
    %217 = vector.load %arg6[%c0_199, %c0_200, %c0_201, %c0_202] : memref<1x8x8x8xf32, #tpu.memory_space<vmem>>, vector<1x8x8x8xf32>
    %218 = vector.shape_cast %216 : vector<64x8xf32> to vector<1x8x8x8xf32>
    %219 = arith.addf %217, %218 : vector<1x8x8x8xf32>
    %c0_203 = arith.constant 0 : index
    %c0_204 = arith.constant 0 : index
    %c0_205 = arith.constant 0 : index
    %c0_206 = arith.constant 0 : index
    %220 = vector.load %arg6[%c0_203, %c0_204, %c0_205, %c0_206] : memref<1x8x8x8xf32, #tpu.memory_space<vmem>>, vector<1x8x8x8xf32>
    tpu.vector_store %arg6[%c0_203, %c0_204, %c0_205, %c0_206], %219 {strides = array<i32>} : memref<1x8x8x8xf32, #tpu.memory_space<vmem>>, vector<1x8x8x8xf32>,
    return
  }
  func.func @transform_0(%arg0: i32) -> (i32, i32, i32, i32) {
    %c0_i32 = arith.constant 0 : i32
    %c0_i32_0 = arith.constant 0 : i32
    %c0_i32_1 = arith.constant 0 : i32
    %c0_i32_2 = arith.constant 0 : i32
    return %arg0, %c0_i32, %c0_i32_0, %c0_i32_1 : i32, i32, i32, i32
  }
  func.func @transform_1(%arg0: i32) -> (i32, i32) {
    %c0_i32 = arith.constant 0 : i32
    %c0_i32_0 = arith.constant 0 : i32
    %c0_i32_1 = arith.constant 0 : i32
    return %c0_i32, %c0_i32_0 : i32, i32
  }
  func.func @transform_2(%arg0: i32) -> (i32, i32) {
    %c0_i32 = arith.constant 0 : i32
    %c0_i32_0 = arith.constant 0 : i32
    %c0_i32_1 = arith.constant 0 : i32
    return %c0_i32, %c0_i32_0 : i32, i32
  }
  func.func @transform_3(%arg0: i32) -> (i32, i32) {
    %c0_i32 = arith.constant 0 : i32
    %c0_i32_0 = arith.constant 0 : i32
    %c0_i32_1 = arith.constant 0 : i32
    return %c0_i32, %c0_i32_0 : i32, i32
  }
  func.func @transform_4(%arg0: i32) -> (i32, i32) {
    %c0_i32 = arith.constant 0 : i32
    %c0_i32_0 = arith.constant 0 : i32
    %c0_i32_1 = arith.constant 0 : i32
    return %c0_i32, %c0_i32_0 : i32, i32
  }
  func.func @transform_5(%arg0: i32) -> (i32, i32, i32, i32) {
    %c0_i32 = arith.constant 0 : i32
    %c0_i32_0 = arith.constant 0 : i32
    %c0_i32_1 = arith.constant 0 : i32
    %c0_i32_2 = arith.constant 0 : i32
    return %arg0, %c0_i32, %c0_i32_0, %c0_i32_1 : i32, i32, i32, i32
  }
}

</mosaic_0001>

<llo_original>
// kernel: res_block_forward.1
$region0: #{res_block_forward.1}
  #allocation0 [shape = 'u32[]', space=smem, size = 0x4, offset = 0x4, fixed_abs, tag = 'smem constant byte address 0x4 - core index']
  #allocation1 [shape = 'u32[144,128]{1,0:T(1,128)}', space=vmem, size = 0x12000, scoped, tag = 'internal scratch']
  #allocation2 [shape = 'f32[18,18,4]{2,1,0:T(8,128)}', space=vmem, size = 0x36000, scoped, tag = 'scratch operand']
  #allocation3 [shape = 'f32[10,10,8]{2,1,0:T(8,128)}', space=vmem, size = 0x14000, scoped, tag = 'scratch operand']
  %s0 = inlined_call_operand.vmem [shape: bf16[2,16,16,4], index: 0, kind: input, shape index: {}]
  %s1 = inlined_call_operand.vmem [shape: bf16[36,8], index: 1, kind: input, shape index: {}]
  %s2 = inlined_call_operand.vmem [shape: bf16[72,8], index: 2, kind: input, shape index: {}]
  %s3 = inlined_call_operand.vmem [shape: bf16[72,8], index: 3, kind: input, shape index: {}]
  %s4 = inlined_call_operand.vmem [shape: f32[6,8], index: 4, kind: input, shape index: {}]
  %s5 = inlined_call_operand.vmem [shape: f32[2,8,8,8], index: 5, kind: output, shape index: {}]
  %s6 = sld [smem:[#allocation0]]
  $region53: #{res_block_forward.1} parent=0
    _
  %s8 = ssub.s32 1, %s6
  %s9 = scalar_select 0, %s8, %s6
  loop: start=0, step=1, limit=4
  $region2: #{res_block_forward.1} parent=0 // loop_pre_header
    _
  $region3: #{res_block_forward.1} parent=0 // loop_header
    %s11 = sphi 0, %s15
    %p12 = scmp.ge.s32.totalorder %s11, 4
    %s21 = sphi 0, %s23
    %s24 = sphi 0, %s21
    %s25 = sphi 0, %s24
    %s41 = sphi 0, %s25
    %s45 = sphi 0, %s45
    %s47 = sphi 0, %s45
    %s48 = sphi 0, %s47
    %s62 = sphi 0, %s48
    %s66 = sphi 0, %s66
    %s68 = sphi 0, %s66
    %s69 = sphi 0, %s68
    %s83 = sphi 0, %s69
    %s87 = sphi 0, %s87
    %s89 = sphi 0, %s87
    %s90 = sphi 0, %s89
    %s104 = sphi 0, %s90
    %s108 = sphi 0, %s108
    %s110 = sphi 0, %s108
    %s111 = sphi 0, %s110
    %s125 = sphi 0, %s111
    %s131 = sphi 0, %s133
    %s134 = sphi 0, %s131
    %s135 = sphi 0, %s134
    %s151 = sphi 0, %s135
  $region4: #{res_block_forward.1} parent=0 // loop_header_branch
    %14 = sbr.rel (%p12) target = $region8
  $region5: #{res_block_forward.1} parent=0 // loop_body
    %s16 = ssub.s32 %s11, 1
    %s17 = ssub.s32 %s11, 2
    %s18 = sadd.s32 %s11, 1
    %s19 = ssub.s32 %s11, %s18
    %p20 = scmp.eq.s32.totalorder %s19, 0
    %s22 = sadd.s32 %s21, 1
    %s23 = scalar_select %p20, %s21, %s22
    %p26 = pneg %p20
    %p27 = scmp.eq.s32.totalorder %s11, 1
    %p28 = por %p26, %p27
    %p29 = scmp.ne.s32.totalorder %s21, %s24
    %p30 = scmp.eq.s32.totalorder %s11, 0
    %p31 = por %p29, %p30
    %p32 = scmp.ne.s32.totalorder %s21, %s24
    %p33 = scmp.eq.s32.totalorder %s16, 1
    %p34 = por %p32, %p33
    %p35 = scmp.ne.s32.totalorder %s24, %s25
    %p36 = scmp.eq.s32.totalorder %s16, 0
    %p37 = por %p35, %p36
    %p38 = scmp.ne.s32.totalorder %s24, %s25
    %p39 = scmp.eq.s32.totalorder %s17, 1
    %p40 = por %p38, %p39
    %p42 = scmp.ne.s32.totalorder %s25, %s41
    %p43 = scmp.eq.s32.totalorder %s17, 0
    %p44 = por %p42, %p43
    %s46 = sadd.s32 %s45, 1
    %p49 = scmp.eq.s32.totalorder %s11, 1
    %p50 = scmp.ne.s32.totalorder %s45, %s47
    %p51 = scmp.eq.s32.totalorder %s11, 0
    %p52 = por %p50, %p51
    %p53 = scmp.ne.s32.totalorder %s45, %s47
    %p54 = scmp.eq.s32.totalorder %s16, 1
    %p55 = por %p53, %p54
    %p56 = scmp.ne.s32.totalorder %s47, %s48
    %p57 = scmp.eq.s32.totalorder %s16, 0
    %p58 = por %p56, %p57
    %p59 = scmp.ne.s32.totalorder %s47, %s48
    %p60 = scmp.eq.s32.totalorder %s17, 1
    %p61 = por %p59, %p60
    %p63 = scmp.ne.s32.totalorder %s48, %s62
    %p64 = scmp.eq.s32.totalorder %s17, 0
    %p65 = por %p63, %p64
    %s67 = sadd.s32 %s66, 1
    %p70 = scmp.eq.s32.totalorder %s11, 1
    %p71 = scmp.ne.s32.totalorder %s66, %s68
    %p72 = scmp.eq.s32.totalorder %s11, 0
    %p73 = por %p71, %p72
    %p74 = scmp.ne.s32.totalorder %s66, %s68
    %p75 = scmp.eq.s32.totalorder %s16, 1
    %p76 = por %p74, %p75
    %p77 = scmp.ne.s32.totalorder %s68, %s69
    %p78 = scmp.eq.s32.totalorder %s16, 0
    %p79 = por %p77, %p78
    %p80 = scmp.ne.s32.totalorder %s68, %s69
    %p81 = scmp.eq.s32.totalorder %s17, 1
    %p82 = por %p80, %p81
    %p84 = scmp.ne.s32.totalorder %s69, %s83
    %p85 = scmp.eq.s32.totalorder %s17, 0
    %p86 = por %p84, %p85
    %s88 = sadd.s32 %s87, 1
    %p91 = scmp.eq.s32.totalorder %s11, 1
    %p92 = scmp.ne.s32.totalorder %s87, %s89
    %p93 = scmp.eq.s32.totalorder %s11, 0
    %p94 = por %p92, %p93
    %p95 = scmp.ne.s32.totalorder %s87, %s89
    %p96 = scmp.eq.s32.totalorder %s16, 1
    %p97 = por %p95, %p96
    %p98 = scmp.ne.s32.totalorder %s89, %s90
    %p99 = scmp.eq.s32.totalorder %s16, 0
    %p100 = por %p98, %p99
    %p101 = scmp.ne.s32.totalorder %s89, %s90
    %p102 = scmp.eq.s32.totalorder %s17, 1
    %p103 = por %p101, %p102
    %p105 = scmp.ne.s32.totalorder %s90, %s104
    %p106 = scmp.eq.s32.totalorder %s17, 0
    %p107 = por %p105, %p106
    %s109 = sadd.s32 %s108, 1
    %p112 = scmp.eq.s32.totalorder %s11, 1
    %p113 = scmp.ne.s32.totalorder %s108, %s110
    %p114 = scmp.eq.s32.totalorder %s11, 0
    %p115 = por %p113, %p114
    %p116 = scmp.ne.s32.totalorder %s108, %s110
    %p117 = scmp.eq.s32.totalorder %s16, 1
    %p118 = por %p116, %p117
    %p119 = scmp.ne.s32.totalorder %s110, %s111
    %p120 = scmp.eq.s32.totalorder %s16, 0
    %p121 = por %p119, %p120
    %p122 = scmp.ne.s32.totalorder %s110, %s111
    %p123 = scmp.eq.s32.totalorder %s17, 1
    %p124 = por %p122, %p123
    %p126 = scmp.ne.s32.totalorder %s111, %s125
    %p127 = scmp.eq.s32.totalorder %s17, 0
    %p128 = por %p126, %p127
    %s129 = ssub.s32 %s11, %s18
    %p130 = scmp.eq.s32.totalorder %s129, 0
    %s132 = sadd.s32 %s131, 1
    %s133 = scalar_select %p130, %s131, %s132
    %p136 = pneg %p130
    %p137 = scmp.eq.s32.totalorder %s11, 1
    %p138 = por %p136, %p137
    %p139 = scmp.ne.s32.totalorder %s131, %s134
    %p140 = scmp.eq.s32.totalorder %s11, 0
    %p141 = por %p139, %p140
    %p142 = scmp.ne.s32.totalorder %s131, %s134
    %p143 = scmp.eq.s32.totalorder %s16, 1
    %p144 = por %p142, %p143
    %p145 = scmp.ne.s32.totalorder %s134, %s135
    %p146 = scmp.eq.s32.totalorder %s16, 0
    %p147 = por %p145, %p146
    %p148 = scmp.ne.s32.totalorder %s134, %s135
    %p149 = scmp.eq.s32.totalorder %s17, 1
    %p150 = por %p148, %p149
    %p152 = scmp.ne.s32.totalorder %s135, %s151
    %p153 = scmp.eq.s32.totalorder %s17, 0
    %p154 = por %p152, %p153
    %p155 = scmp.le.s32.totalorder 1, %s11
    %p156 = scmp.lt.s32.totalorder %s11, 3
    %p157 = pnand %p155, %p156
    %p158 = pneg %p157
    // Predicated region
    $region9: #{res_block_forward.1} parent=5 // pred_check
      _
    $region10: #{res_block_forward.1} parent=5 // pred_check_branch
      %160 = sbr.rel (%p157) target = $region12
    $region11: #{res_block_forward.1} parent=5 // pred_region
      %s161 = ssub.s32 %s11, 1
      // Predicated region
      $region13: #{res_block_forward.1} parent=11 // pred_check
        %p162 = pneg %p58
      $region14: #{res_block_forward.1} parent=11 // pred_check_branch
        %164 = sbr.rel (%p162) target = $region16
      $region15: #{res_block_forward.1} parent=11 // pred_region
        _
      $region16: #{res_block_forward.1} parent=11 // pred_fallthru
        _
      // Predicated region
      $region17: #{res_block_forward.1} parent=11 // pred_check
        %p165 = pneg %p79
      $region18: #{res_block_forward.1} parent=11 // pred_check_branch
        %167 = sbr.rel (%p165) target = $region20
      $region19: #{res_block_forward.1} parent=11 // pred_region
        _
      $region20: #{res_block_forward.1} parent=11 // pred_fallthru
        _
      // Predicated region
      $region21: #{res_block_forward.1} parent=11 // pred_check
        %p168 = pneg %p100
      $region22: #{res_block_forward.1} parent=11 // pred_check_branch
        %170 = sbr.rel (%p168) target = $region24
      $region23: #{res_block_forward.1} parent=11 // pred_region
        _
      $region24: #{res_block_forward.1} parent=11 // pred_fallthru
        _
      // Predicated region
      $region25: #{res_block_forward.1} parent=11 // pred_check
        %p171 = pneg %p121
      $region26: #{res_block_forward.1} parent=11 // pred_check_branch
        %173 = sbr.rel (%p171) target = $region28
      $region27: #{res_block_forward.1} parent=11 // pred_region
        _
      $region28: #{res_block_forward.1} parent=11 // pred_fallthru
        _
    $region12: #{res_block_forward.1} parent=5 // pred_fallthru
      _
    %p174 = scmp.lt.s32.totalorder %s11, 2
    // Predicated region
    $region29: #{res_block_forward.1} parent=5 // pred_check
      %p175 = pneg %p174
    $region30: #{res_block_forward.1} parent=5 // pred_check_branch
      %177 = sbr.rel (%p175) target = $region32
    $region31: #{res_block_forward.1} parent=5 // pred_region
      // Predicated region
      $region33: #{res_block_forward.1} parent=31 // pred_check
        %p178 = pneg %p31
      $region34: #{res_block_forward.1} parent=31 // pred_check_branch
        %180 = sbr.rel (%p178) target = $region36
      $region35: #{res_block_forward.1} parent=31 // pred_region
        %p181 = scmp.lt.s32.totalorder %s11, 1
        %s182 = scalar_select %p181, %s11, 1
        %s183 = smul.addr %s182, 32
        %s184 = smul.addr %s183, 4
        %s185 = scalar_lea.vmem %s0, %s184
      $region36: #{res_block_forward.1} parent=31 // pred_fallthru
        _
    $region32: #{res_block_forward.1} parent=5 // pred_fallthru
      _
    %p186 = scmp.le.s32.totalorder 1, %s11
    %p187 = scmp.lt.s32.totalorder %s11, 3
    %p188 = pnand %p186, %p187
    %p189 = pneg %p188
    // Predicated region
    $region37: #{res_block_forward.1} parent=5 // pred_check
      _
    $region38: #{res_block_forward.1} parent=5 // pred_check_branch
      %191 = sbr.rel (%p188) target = $region40
    $region39: #{res_block_forward.1} parent=5 // pred_region
      %s192 = ssub.s32 %s11, 1
      %p193 = scmp.lt.s32.totalorder %s16, 1
      %s194 = scalar_select %p193, %s16, 1
      %s195 = smul.addr %s194, 32
      %s196 = smul.addr %s195, 4
      %s197 = scalar_lea.vmem %s0, %s196
      %p198 = pneg %p37
      %p199 = pneg %p34
      %p200 = pneg %p58
      %p201 = pneg %p55
      %p202 = pneg %p79
      %p203 = pneg %p76
      %p204 = pneg %p100
      %p205 = pneg %p97
      %p206 = pneg %p121
      %p207 = pneg %p118
      %p208 = pneg %p147
      %p209 = pneg %p144
      %p210 = scmp.lt.s32.totalorder %s16, 1
      %s211 = scalar_select %p210, %s16, 1
      %s212 = smul.addr %s211, 8
      %s213 = smul.addr %s212, 8
      %s214 = scalar_lea.vmem %s5, %s213
      %p215 = scmp.lt.s32.totalorder %s16, 1
      %s216 = scalar_select %p215, %s16, 1
      %s217 = smul.addr %s216, 32
      %s218 = smul.addr %s217, 4
      %s219 = scalar_lea.vmem %s0, %s218
      %p220 = scmp.lt.s32.totalorder %s16, 1
      %s221 = scalar_select %p220, %s16, 1
      %s222 = smul.addr %s221, 8
      %s223 = smul.addr %s222, 8
      %s224 = scalar_lea.vmem %s5, %s223
      %v226 = vld [vmem:[%s4] sm:$0x3f]
      %vm227 = vcmask 31744
      %228 = vst.msk [vmem:[#allocation2] sm:$0xff] %vm227, 0.0
      %229 = vst.msk [vmem:[#allocation2 + $0x8] sm:$0xff] %vm227, 0.0
      %vm230 = vcmask 25600
      %231 = vst.msk [vmem:[#allocation2 + $0x10] sm:$0x3] %vm230, 0.0
      %s232 = scalar_lea.vmem [#allocation2], 408
      %233 = vst.msk [vmem:[%s232] sm:$0xff] %vm227, 0.0
      %234 = vst.msk [vmem:[%s232 + $0x8] sm:$0xff] %vm227, 0.0
      %235 = vst.msk [vmem:[%s232 + $0x10] sm:$0x3] %vm230, 0.0
      %vm236 = vcmask 24576
      %237 = vst.msk [vmem:[#allocation2] sm:$0x1] %vm236, 0.0
      %238 = vst.msk [vmem:[#allocation2 + $0x18] sm:$0x1] %vm236, 0.0
      %239 = vst.msk [vmem:[#allocation2 + $0x30] sm:$0x1] %vm236, 0.0
      %240 = vst.msk [vmem:[#allocation2 + $0x48] sm:$0x1] %vm236, 0.0
      %241 = vst.msk [vmem:[#allocation2 + $0x60] sm:$0x1] %vm236, 0.0
      %242 = vst.msk [vmem:[#allocation2 + $0x78] sm:$0x1] %vm236, 0.0
      %243 = vst.msk [vmem:[#allocation2 + $0x90] sm:$0x1] %vm236, 0.0
      %244 = vst.msk [vmem:[#allocation2 + $0xa8] sm:$0x1] %vm236, 0.0
      %245 = vst.msk [vmem:[#allocation2 + $0xc0] sm:$0x1] %vm236, 0.0
      %246 = vst.msk [vmem:[#allocation2 + $0xd8] sm:$0x1] %vm236, 0.0
      %247 = vst.msk [vmem:[#allocation2 + $0xf0] sm:$0x1] %vm236, 0.0
      %248 = vst.msk [vmem:[#allocation2 + $0x108] sm:$0x1] %vm236, 0.0
      %249 = vst.msk [vmem:[#allocation2 + $0x120] sm:$0x1] %vm236, 0.0
      %250 = vst.msk [vmem:[#allocation2 + $0x138] sm:$0x1] %vm236, 0.0
      %251 = vst.msk [vmem:[#allocation2 + $0x150] sm:$0x1] %vm236, 0.0
      %252 = vst.msk [vmem:[#allocation2 + $0x168] sm:$0x1] %vm236, 0.0
      %253 = vst.msk [vmem:[#allocation2 + $0x180] sm:$0x1] %vm236, 0.0
      %254 = vst.msk [vmem:[#allocation2 + $0x198] sm:$0x1] %vm236, 0.0
      %255 = vst.msk [vmem:[#allocation2 + $0x11] sm:$0x1] %vm236, 0.0
      %256 = vst.msk [vmem:[#allocation2 + $0x29] sm:$0x1] %vm236, 0.0
      %257 = vst.msk [vmem:[#allocation2 + $0x41] sm:$0x1] %vm236, 0.0
      %258 = vst.msk [vmem:[#allocation2 + $0x59] sm:$0x1] %vm236, 0.0
      %259 = vst.msk [vmem:[#allocation2 + $0x71] sm:$0x1] %vm236, 0.0
      %260 = vst.msk [vmem:[#allocation2 + $0x89] sm:$0x1] %vm236, 0.0
      %261 = vst.msk [vmem:[#allocation2 + $0xa1] sm:$0x1] %vm236, 0.0
      %262 = vst.msk [vmem:[#allocation2 + $0xb9] sm:$0x1] %vm236, 0.0
      %263 = vst.msk [vmem:[#allocation2 + $0xd1] sm:$0x1] %vm236, 0.0
      %264 = vst.msk [vmem:[#allocation2 + $0xe9] sm:$0x1] %vm236, 0.0
      %265 = vst.msk [vmem:[#allocation2 + $0x101] sm:$0x1] %vm236, 0.0
      %266 = vst.msk [vmem:[#allocation2 + $0x119] sm:$0x1] %vm236, 0.0
      %267 = vst.msk [vmem:[#allocation2 + $0x131] sm:$0x1] %vm236, 0.0
      %268 = vst.msk [vmem:[#allocation2 + $0x149] sm:$0x1] %vm236, 0.0
      %269 = vst.msk [vmem:[#allocation2 + $0x161] sm:$0x1] %vm236, 0.0
      %270 = vst.msk [vmem:[#allocation2 + $0x179] sm:$0x1] %vm236, 0.0
      %271 = vst.msk [vmem:[#allocation2 + $0x191] sm:$0x1] %vm236, 0.0
      %272 = vst.msk [vmem:[#allocation2 + $0x1a9] sm:$0x1] %vm236, 0.0
      %vm273 = vcmask 64512
      %274 = vst.msk [vmem:[#allocation3] sm:$0xff] %vm273, 0.0
      %vm275 = vcmask 58368
      %276 = vst.msk [vmem:[#allocation3 + $0x8] sm:$0x3] %vm275, 0.0
      %s277 = scalar_lea.vmem [#allocation3], 144
      %278 = vst.msk [vmem:[%s277] sm:$0xff] %vm273, 0.0
      %279 = vst.msk [vmem:[%s277 + $0x8] sm:$0x3] %vm275, 0.0
      %vm280 = vcmask 57344
      %281 = vst.msk [vmem:[#allocation3] sm:$0x1] %vm280, 0.0
      %282 = vst.msk [vmem:[#allocation3 + $0x10] sm:$0x1] %vm280, 0.0
      %283 = vst.msk [vmem:[#allocation3 + $0x20] sm:$0x1] %vm280, 0.0
      %284 = vst.msk [vmem:[#allocation3 + $0x30] sm:$0x1] %vm280, 0.0
      %285 = vst.msk [vmem:[#allocation3 + $0x40] sm:$0x1] %vm280, 0.0
      %286 = vst.msk [vmem:[#allocation3 + $0x50] sm:$0x1] %vm280, 0.0
      %287 = vst.msk [vmem:[#allocation3 + $0x60] sm:$0x1] %vm280, 0.0
      %288 = vst.msk [vmem:[#allocation3 + $0x70] sm:$0x1] %vm280, 0.0
      %289 = vst.msk [vmem:[#allocation3 + $0x80] sm:$0x1] %vm280, 0.0
      %290 = vst.msk [vmem:[#allocation3 + $0x90] sm:$0x1] %vm280, 0.0
      %291 = vst.msk [vmem:[#allocation3 + $0x9] sm:$0x1] %vm280, 0.0
      %292 = vst.msk [vmem:[#allocation3 + $0x19] sm:$0x1] %vm280, 0.0
      %293 = vst.msk [vmem:[#allocation3 + $0x29] sm:$0x1] %vm280, 0.0
      %294 = vst.msk [vmem:[#allocation3 + $0x39] sm:$0x1] %vm280, 0.0
      %295 = vst.msk [vmem:[#allocation3 + $0x49] sm:$0x1] %vm280, 0.0
      %296 = vst.msk [vmem:[#allocation3 + $0x59] sm:$0x1] %vm280, 0.0
      %297 = vst.msk [vmem:[#allocation3 + $0x69] sm:$0x1] %vm280, 0.0
      %298 = vst.msk [vmem:[#allocation3 + $0x79] sm:$0x1] %vm280, 0.0
      %299 = vst.msk [vmem:[#allocation3 + $0x89] sm:$0x1] %vm280, 0.0
      %300 = vst.msk [vmem:[#allocation3 + $0x99] sm:$0x1] %vm280, 0.0
      %v301 = vld [vmem:[%s219] sm:$0xf]
      %v302 = vld [vmem:[%s219 + $0x4] sm:$0xf]
      %v303 = vld [vmem:[%s219 + $0x8] sm:$0xf]
      %v304 = vld [vmem:[%s219 + $0xc] sm:$0xf]
      %v305 = vld [vmem:[%s219 + $0x10] sm:$0xf]
      %v306 = vld [vmem:[%s219 + $0x14] sm:$0xf]
      %v307 = vld [vmem:[%s219 + $0x18] sm:$0xf]
      %v308 = vld [vmem:[%s219 + $0x1c] sm:$0xf]
      %v309 = vld [vmem:[%s219 + $0x20] sm:$0xf]
      %v310 = vld [vmem:[%s219 + $0x24] sm:$0xf]
      %v311 = vld [vmem:[%s219 + $0x28] sm:$0xf]
      %v312 = vld [vmem:[%s219 + $0x2c] sm:$0xf]
      %v313 = vld [vmem:[%s219 + $0x30] sm:$0xf]
      %v314 = vld [vmem:[%s219 + $0x34] sm:$0xf]
      %v315 = vld [vmem:[%s219 + $0x38] sm:$0xf]
      %v316 = vld [vmem:[%s219 + $0x3c] sm:$0xf]
      %v317 = vld [vmem:[%s219 + $0x40] sm:$0xf]
      %v318 = vld [vmem:[%s219 + $0x44] sm:$0xf]
      %v319 = vld [vmem:[%s219 + $0x48] sm:$0xf]
      %v320 = vld [vmem:[%s219 + $0x4c] sm:$0xf]
      %v321 = vld [vmem:[%s219 + $0x50] sm:$0xf]
      %v322 = vld [vmem:[%s219 + $0x54] sm:$0xf]
      %v323 = vld [vmem:[%s219 + $0x58] sm:$0xf]
      %v324 = vld [vmem:[%s219 + $0x5c] sm:$0xf]
      %v325 = vld [vmem:[%s219 + $0x60] sm:$0xf]
      %v326 = vld [vmem:[%s219 + $0x64] sm:$0xf]
      %v327 = vld [vmem:[%s219 + $0x68] sm:$0xf]
      %v328 = vld [vmem:[%s219 + $0x6c] sm:$0xf]
      %v329 = vld [vmem:[%s219 + $0x70] sm:$0xf]
      %v330 = vld [vmem:[%s219 + $0x74] sm:$0xf]
      %v331 = vld [vmem:[%s219 + $0x78] sm:$0xf]
      %v332 = vld [vmem:[%s219 + $0x7c] sm:$0xf]
      %v333 = vunpack.c.l.bf16 %v301
      %v334 = vunpack.c.l.bf16 %v302
      %v335 = vunpack.c.l.bf16 %v303
      %v336 = vunpack.c.l.bf16 %v304
      %v337 = vunpack.c.l.bf16 %v305
      %v338 = vunpack.c.l.bf16 %v306
      %v339 = vunpack.c.l.bf16 %v307
      %v340 = vunpack.c.l.bf16 %v308
      %v341 = vunpack.c.l.bf16 %v309
      %v342 = vunpack.c.l.bf16 %v310
      %v343 = vunpack.c.l.bf16 %v311
      %v344 = vunpack.c.l.bf16 %v312
      %v345 = vunpack.c.l.bf16 %v313
      %v346 = vunpack.c.l.bf16 %v314
      %v347 = vunpack.c.l.bf16 %v315
      %v348 = vunpack.c.l.bf16 %v316
      %v349 = vunpack.c.l.bf16 %v317
      %v350 = vunpack.c.l.bf16 %v318
      %v351 = vunpack.c.l.bf16 %v319
      %v352 = vunpack.c.l.bf16 %v320
      %v353 = vunpack.c.l.bf16 %v321
      %v354 = vunpack.c.l.bf16 %v322
      %v355 = vunpack.c.l.bf16 %v323
      %v356 = vunpack.c.l.bf16 %v324
      %v357 = vunpack.c.l.bf16 %v325
      %v358 = vunpack.c.l.bf16 %v326
      %v359 = vunpack.c.l.bf16 %v327
      %v360 = vunpack.c.l.bf16 %v328
      %v361 = vunpack.c.l.bf16 %v329
      %v362 = vunpack.c.l.bf16 %v330
      %v363 = vunpack.c.l.bf16 %v331
      %v364 = vunpack.c.l.bf16 %v332
      %s365 = scalar_lea.vmem [#allocation2], 24
      %366 = vst.msk [vmem:[%s365 + $0x1] sm:$0xff] %vm227, %v333
      %367 = vst.msk [vmem:[%s365 + $0x9] sm:$0xff] %vm227, %v334
      %368 = vst.msk [vmem:[%s365 + $0x19] sm:$0xff] %vm227, %v335
      %369 = vst.msk [vmem:[%s365 + $0x21] sm:$0xff] %vm227, %v336
      %370 = vst.msk [vmem:[%s365 + $0x31] sm:$0xff] %vm227, %v337
      %371 = vst.msk [vmem:[%s365 + $0x39] sm:$0xff] %vm227, %v338
      %372 = vst.msk [vmem:[%s365 + $0x49] sm:$0xff] %vm227, %v339
      %373 = vst.msk [vmem:[%s365 + $0x51] sm:$0xff] %vm227, %v340
      %374 = vst.msk [vmem:[%s365 + $0x61] sm:$0xff] %vm227, %v341
      %375 = vst.msk [vmem:[%s365 + $0x69] sm:$0xff] %vm227, %v342
      %376 = vst.msk [vmem:[%s365 + $0x79] sm:$0xff] %vm227, %v343
      %377 = vst.msk [vmem:[%s365 + $0x81] sm:$0xff] %vm227, %v344
      %378 = vst.msk [vmem:[%s365 + $0x91] sm:$0xff] %vm227, %v345
      %379 = vst.msk [vmem:[%s365 + $0x99] sm:$0xff] %vm227, %v346
      %380 = vst.msk [vmem:[%s365 + $0xa9] sm:$0xff] %vm227, %v347
      %381 = vst.msk [vmem:[%s365 + $0xb1] sm:$0xff] %vm227, %v348
      %382 = vst.msk [vmem:[%s365 + $0xc1] sm:$0xff] %vm227, %v349
      %383 = vst.msk [vmem:[%s365 + $0xc9] sm:$0xff] %vm227, %v350
      %384 = vst.msk [vmem:[%s365 + $0xd9] sm:$0xff] %vm227, %v351
      %385 = vst.msk [vmem:[%s365 + $0xe1] sm:$0xff] %vm227, %v352
      %386 = vst.msk [vmem:[%s365 + $0xf1] sm:$0xff] %vm227, %v353
      %387 = vst.msk [vmem:[%s365 + $0xf9] sm:$0xff] %vm227, %v354
      %388 = vst.msk [vmem:[%s365 + $0x109] sm:$0xff] %vm227, %v355
      %389 = vst.msk [vmem:[%s365 + $0x111] sm:$0xff] %vm227, %v356
      %390 = vst.msk [vmem:[%s365 + $0x121] sm:$0xff] %vm227, %v357
      %391 = vst.msk [vmem:[%s365 + $0x129] sm:$0xff] %vm227, %v358
      %392 = vst.msk [vmem:[%s365 + $0x139] sm:$0xff] %vm227, %v359
      %393 = vst.msk [vmem:[%s365 + $0x141] sm:$0xff] %vm227, %v360
      %394 = vst.msk [vmem:[%s365 + $0x151] sm:$0xff] %vm227, %v361
      %395 = vst.msk [vmem:[%s365 + $0x159] sm:$0xff] %vm227, %v362
      %396 = vst.msk [vmem:[%s365 + $0x169] sm:$0xff] %vm227, %v363
      %397 = vst.msk [vmem:[%s365 + $0x171] sm:$0xff] %vm227, %v364
      %v398 = vld [vmem:[#allocation2] sm:$0xff]
      %v399 = vld [vmem:[#allocation2 + $0x8] sm:$0xff]
      %v400 = vld [vmem:[#allocation2 + $0x18] sm:$0xff]
      %v401 = vld [vmem:[#allocation2 + $0x20] sm:$0xff]
      %v402 = vld [vmem:[#allocation2 + $0x30] sm:$0xff]
      %v403 = vld [vmem:[#allocation2 + $0x38] sm:$0xff]
      %v404 = vld [vmem:[#allocation2 + $0x48] sm:$0xff]
      %v405 = vld [vmem:[#allocation2 + $0x50] sm:$0xff]
      %v406 = vld [vmem:[#allocation2 + $0x60] sm:$0xff]
      %v407 = vld [vmem:[#allocation2 + $0x68] sm:$0xff]
      %v408 = vld [vmem:[#allocation2 + $0x78] sm:$0xff]
      %v409 = vld [vmem:[#allocation2 + $0x80] sm:$0xff]
      %v410 = vld [vmem:[#allocation2 + $0x90] sm:$0xff]
      %v411 = vld [vmem:[#allocation2 + $0x98] sm:$0xff]
      %v412 = vld [vmem:[#allocation2 + $0xa8] sm:$0xff]
      %v413 = vld [vmem:[#allocation2 + $0xb0] sm:$0xff]
      %v414 = vld [vmem:[#allocation2 + $0xc0] sm:$0xff]
      %v415 = vld [vmem:[#allocation2 + $0xc8] sm:$0xff]
      %v416 = vld [vmem:[#allocation2 + $0xd8] sm:$0xff]
      %v417 = vld [vmem:[#allocation2 + $0xe0] sm:$0xff]
      %v418 = vld [vmem:[#allocation2 + $0xf0] sm:$0xff]
      %v419 = vld [vmem:[#allocation2 + $0xf8] sm:$0xff]
      %v420 = vld [vmem:[#allocation2 + $0x108] sm:$0xff]
      %v421 = vld [vmem:[#allocation2 + $0x110] sm:$0xff]
      %v422 = vld [vmem:[#allocation2 + $0x120] sm:$0xff]
      %v423 = vld [vmem:[#allocation2 + $0x128] sm:$0xff]
      %v424 = vld [vmem:[#allocation2 + $0x138] sm:$0xff]
      %v425 = vld [vmem:[#allocation2 + $0x140] sm:$0xff]
      %v426 = vld [vmem:[#allocation2 + $0x150] sm:$0xff]
      %v427 = vld [vmem:[#allocation2 + $0x158] sm:$0xff]
      %v428 = vld [vmem:[#allocation2 + $0x168] sm:$0xff]
      %v429 = vld [vmem:[#allocation2 + $0x170] sm:$0xff]
      %v430 = vpack.c.bf16 %v399, %v398
      %v431 = vpack.c.bf16 %v401, %v400
      %v432 = vpack.c.bf16 %v403, %v402
      %v433 = vpack.c.bf16 %v405, %v404
      %v434 = vpack.c.bf16 %v407, %v406
      %v435 = vpack.c.bf16 %v409, %v408
      %v436 = vpack.c.bf16 %v411, %v410
      %v437 = vpack.c.bf16 %v413, %v412
      %v438 = vpack.c.bf16 %v415, %v414
      %v439 = vpack.c.bf16 %v417, %v416
      %v440 = vpack.c.bf16 %v419, %v418
      %v441 = vpack.c.bf16 %v421, %v420
      %v442 = vpack.c.bf16 %v423, %v422
      %v443 = vpack.c.bf16 %v425, %v424
      %v444 = vpack.c.bf16 %v427, %v426
      %v445 = vpack.c.bf16 %v429, %v428
      %v446 = vld [vmem:[%s1] sm:$0x3]
      %v447 = vld [vmem:[#allocation2 + $0x1] sm:$0xff]
      %v448 = vld [vmem:[#allocation2 + $0x9] sm:$0xff]
      %v449 = vld [vmem:[#allocation2 + $0x19] sm:$0xff]
      %v450 = vld [vmem:[#allocation2 + $0x21] sm:$0xff]
      %v451 = vld [vmem:[#allocation2 + $0x31] sm:$0xff]
      %v452 = vld [vmem:[#allocation2 + $0x39] sm:$0xff]
      %v453 = vld [vmem:[#allocation2 + $0x49] sm:$0xff]
      %v454 = vld [vmem:[#allocation2 + $0x51] sm:$0xff]
      %v455 = vld [vmem:[#allocation2 + $0x61] sm:$0xff]
      %v456 = vld [vmem:[#allocation2 + $0x69] sm:$0xff]
      %v457 = vld [vmem:[#allocation2 + $0x79] sm:$0xff]
      %v458 = vld [vmem:[#allocation2 + $0x81] sm:$0xff]
      %v459 = vld [vmem:[#allocation2 + $0x91] sm:$0xff]
      %v460 = vld [vmem:[#allocation2 + $0x99] sm:$0xff]
      %v461 = vld [vmem:[#allocation2 + $0xa9] sm:$0xff]
      %v462 = vld [vmem:[#allocation2 + $0xb1] sm:$0xff]
      %v463 = vld [vmem:[#allocation2 + $0xc1] sm:$0xff]
      %v464 = vld [vmem:[#allocation2 + $0xc9] sm:$0xff]
      %v465 = vld [vmem:[#allocation2 + $0xd9] sm:$0xff]
      %v466 = vld [vmem:[#allocation2 + $0xe1] sm:$0xff]
      %v467 = vld [vmem:[#allocation2 + $0xf1] sm:$0xff]
      %v468 = vld [vmem:[#allocation2 + $0xf9] sm:$0xff]
      %v469 = vld [vmem:[#allocation2 + $0x109] sm:$0xff]
      %v470 = vld [vmem:[#allocation2 + $0x111] sm:$0xff]
      %v471 = vld [vmem:[#allocation2 + $0x121] sm:$0xff]
      %v472 = vld [vmem:[#allocation2 + $0x129] sm:$0xff]
      %v473 = vld [vmem:[#allocation2 + $0x139] sm:$0xff]
      %v474 = vld [vmem:[#allocation2 + $0x141] sm:$0xff]
      %v475 = vld [vmem:[#allocation2 + $0x151] sm:$0xff]
      %v476 = vld [vmem:[#allocation2 + $0x159] sm:$0xff]
      %v477 = vld [vmem:[#allocation2 + $0x169] sm:$0xff]
      %v478 = vld [vmem:[#allocation2 + $0x171] sm:$0xff]
      %v479 = vpack.c.bf16 %v448, %v447
      %v480 = vpack.c.bf16 %v450, %v449
      %v481 = vpack.c.bf16 %v452, %v451
      %v482 = vpack.c.bf16 %v454, %v453
      %v483 = vpack.c.bf16 %v456, %v455
      %v484 = vpack.c.bf16 %v458, %v457
      %v485 = vpack.c.bf16 %v460, %v459
      %v486 = vpack.c.bf16 %v462, %v461
      %v487 = vpack.c.bf16 %v464, %v463
      %v488 = vpack.c.bf16 %v466, %v465
      %v489 = vpack.c.bf16 %v468, %v467
      %v490 = vpack.c.bf16 %v470, %v469
      %v491 = vpack.c.bf16 %v472, %v471
      %v492 = vpack.c.bf16 %v474, %v473
      %v493 = vpack.c.bf16 %v476, %v475
      %v494 = vpack.c.bf16 %v478, %v477
      %v495 = vld [vmem:[%s1] sm:$0xc]
      %v497 = vunpack.c.l.b16 %v495
      %v498 = vpack.c.b16 %v497, %v497
      %v499 = vrot.slane %v498, 2
      %v501 = vsel %vm227, %v479, 0
      %v504 = vsel %vm227, %v480, 0
      %v507 = vsel %vm227, %v481, 0
      %v510 = vsel %vm227, %v482, 0
      %v513 = vsel %vm227, %v483, 0
      %v516 = vsel %vm227, %v484, 0
      %v519 = vsel %vm227, %v485, 0
      %v522 = vsel %vm227, %v486, 0
      %v525 = vsel %vm227, %v487, 0
      %v528 = vsel %vm227, %v488, 0
      %v531 = vsel %vm227, %v489, 0
      %v534 = vsel %vm227, %v490, 0
      %v537 = vsel %vm227, %v491, 0
      %v540 = vsel %vm227, %v492, 0
      %v543 = vsel %vm227, %v493, 0
      %v546 = vsel %vm227, %v494, 0
      %vm548 = vcmask 1041408
      %v550 = vsel %vm548, %v499, 0
      %552 = vmatprep.subr.bf16.mxu0 0
      %553 = vmatpush1.bf16.msra.mxu0 %v550
      %554 = vmatprep.subr.bf16.mxu0 0
      %555 = vmatpush1.bf16.msra.mxu0 0
      %556 = vmatprep.subr.bf16.mxu0 0
      %557 = vmatpush1.bf16.msra.mxu0 0
      %558 = vmatprep.subr.bf16.mxu0 0
      %559 = vmatpush1.bf16.msra.mxu0 0
      %560 = vmatprep.subr.bf16.mxu0 0
      %561 = vmatpush1.bf16.msra.mxu0 0
      %562 = vmatprep.subr.bf16.mxu0 0
      %563 = vmatpush1.bf16.msra.mxu0 0
      %564 = vmatprep.subr.bf16.mxu0 0
      %565 = vmatpush1.bf16.msra.mxu0 0
      %566 = vmatprep.subr.bf16.mxu0 0
      %567 = vmatpush1.bf16.msra.mxu0 0
      %568 = vmatprep.subr.bf16.mxu0 0
      %569 = vmatpush1.bf16.msra.mxu0 0
      %570 = vmatprep.subr.bf16.mxu0 0
      %571 = vmatpush1.bf16.msra.mxu0 0
      %572 = vmatprep.subr.bf16.mxu0 0
      %573 = vmatpush1.bf16.msra.mxu0 0
      %574 = vmatprep.subr.bf16.mxu0 0
      %575 = vmatpush1.bf16.msra.mxu0 0
      %576 = vmatprep.subr.bf16.mxu0 0
      %577 = vmatpush1.bf16.msra.mxu0 0
      %578 = vmatprep.subr.bf16.mxu0 0
      %579 = vmatpush1.bf16.msra.mxu0 0
      %580 = vmatprep.subr.bf16.mxu0 0
      %581 = vmatpush1.bf16.msra.mxu0 0
      %582 = vmatprep.subr.bf16.mxu0 0
      %583 = vmatpush1.bf16.msra.mxu0 0
      %584 = vmatprep.mubr.bf16.mxu0 0
      %585 = vmatmul.mubr.bf16.gmra.mrb[0].mxu0 %v501
      %v586 = vpop.f32.mrb[0].mxu0
      %v587 = vadd.f32 0.0, %v586
      %v588 = vpop.f32.mrb[0].mxu0
      %v589 = vpop.f32.mrb[0].mxu0
      %v590 = vadd.f32 0.0, %v589
      %v591 = vpop.f32.mrb[0].mxu0
      %592 = vmatprep.mubr.bf16.mxu0 0
      %593 = vmatmul.mubr.bf16.gmra.mrb[0].mxu0 %v504
      %v594 = vpop.f32.mrb[0].mxu0
      %v595 = vadd.f32 0.0, %v594
      %v596 = vpop.f32.mrb[0].mxu0
      %v597 = vpop.f32.mrb[0].mxu0
      %v598 = vadd.f32 0.0, %v597
      %v599 = vpop.f32.mrb[0].mxu0
      %600 = vmatprep.mubr.bf16.mxu0 0
      %601 = vmatmul.mubr.bf16.gmra.mrb[0].mxu0 %v507
      %v602 = vpop.f32.mrb[0].mxu0
      %v603 = vadd.f32 0.0, %v602
      %v604 = vpop.f32.mrb[0].mxu0
      %v605 = vpop.f32.mrb[0].mxu0
      %v606 = vadd.f32 0.0, %v605
      %v607 = vpop.f32.mrb[0].mxu0
      %608 = vmatprep.mubr.bf16.mxu0 0
      %609 = vmatmul.mubr.bf16.gmra.mrb[0].mxu0 %v510
      %v610 = vpop.f32.mrb[0].mxu0
      %v611 = vadd.f32 0.0, %v610
      %v612 = vpop.f32.mrb[0].mxu0
      %v613 = vpop.f32.mrb[0].mxu0
      %v614 = vadd.f32 0.0, %v613
      %v615 = vpop.f32.mrb[0].mxu0
      %616 = vmatprep.mubr.bf16.mxu0 0
      %617 = vmatmul.mubr.bf16.gmra.mrb[0].mxu0 %v513
      %v618 = vpop.f32.mrb[0].mxu0
      %v619 = vadd.f32 0.0, %v618
      %v620 = vpop.f32.mrb[0].mxu0
      %v621 = vpop.f32.mrb[0].mxu0
      %v622 = vadd.f32 0.0, %v621
      %v623 = vpop.f32.mrb[0].mxu0
      %624 = vmatprep.mubr.bf16.mxu0 0
      %625 = vmatmul.mubr.bf16.gmra.mrb[0].mxu0 %v516
      %v626 = vpop.f32.mrb[0].mxu0
      %v627 = vadd.f32 0.0, %v626
      %v628 = vpop.f32.mrb[0].mxu0
      %v629 = vpop.f32.mrb[0].mxu0
      %v630 = vadd.f32 0.0, %v629
      %v631 = vpop.f32.mrb[0].mxu0
      %632 = vmatprep.mubr.bf16.mxu0 0
      %633 = vmatmul.mubr.bf16.gmra.mrb[0].mxu0 %v519
      %v634 = vpop.f32.mrb[0].mxu0
      %v635 = vadd.f32 0.0, %v634
      %v636 = vpop.f32.mrb[0].mxu0
      %v637 = vpop.f32.mrb[0].mxu0
      %v638 = vadd.f32 0.0, %v637
      %v639 = vpop.f32.mrb[0].mxu0
      %640 = vmatprep.mubr.bf16.mxu0 0
      %641 = vmatmul.mubr.bf16.gmra.mrb[0].mxu0 %v522
      %v642 = vpop.f32.mrb[0].mxu0
      %v643 = vadd.f32 0.0, %v642
      %v644 = vpop.f32.mrb[0].mxu0
      %v645 = vpop.f32.mrb[0].mxu0
      %v646 = vadd.f32 0.0, %v645
      %v647 = vpop.f32.mrb[0].mxu0
      %648 = vmatprep.mubr.bf16.mxu0 0
      %649 = vmatmul.mubr.bf16.gmra.mrb[0].mxu0 %v525
      %v650 = vpop.f32.mrb[0].mxu0
      %v651 = vadd.f32 0.0, %v650
      %v652 = vpop.f32.mrb[0].mxu0
      %v653 = vpop.f32.mrb[0].mxu0
      %v654 = vadd.f32 0.0, %v653
      %v655 = vpop.f32.mrb[0].mxu0
      %656 = vmatprep.mubr.bf16.mxu0 0
      %657 = vmatmul.mubr.bf16.gmra.mrb[0].mxu0 %v528
      %v658 = vpop.f32.mrb[0].mxu0
      %v659 = vadd.f32 0.0, %v658
      %v660 = vpop.f32.mrb[0].mxu0
      %v661 = vpop.f32.mrb[0].mxu0
      %v662 = vadd.f32 0.0, %v661
      %v663 = vpop.f32.mrb[0].mxu0
      %664 = vmatprep.mubr.bf16.mxu0 0
      %665 = vmatmul.mubr.bf16.gmra.mrb[0].mxu0 %v531
      %v666 = vpop.f32.mrb[0].mxu0
      %v667 = vadd.f32 0.0, %v666
      %v668 = vpop.f32.mrb[0].mxu0
      %v669 = vpop.f32.mrb[0].mxu0
      %v670 = vadd.f32 0.0, %v669
      %v671 = vpop.f32.mrb[0].mxu0
      %672 = vmatprep.mubr.bf16.mxu0 0
      %673 = vmatmul.mubr.bf16.gmra.mrb[0].mxu0 %v534
      %v674 = vpop.f32.mrb[0].mxu0
      %v675 = vadd.f32 0.0, %v674
      %v676 = vpop.f32.mrb[0].mxu0
      %v677 = vpop.f32.mrb[0].mxu0
      %v678 = vadd.f32 0.0, %v677
      %v679 = vpop.f32.mrb[0].mxu0
      %680 = vmatprep.mubr.bf16.mxu0 0
      %681 = vmatmul.mubr.bf16.gmra.mrb[0].mxu0 %v537
      %v682 = vpop.f32.mrb[0].mxu0
      %v683 = vadd.f32 0.0, %v682
      %v684 = vpop.f32.mrb[0].mxu0
      %v685 = vpop.f32.mrb[0].mxu0
      %v686 = vadd.f32 0.0, %v685
      %v687 = vpop.f32.mrb[0].mxu0
      %688 = vmatprep.mubr.bf16.mxu0 0
      %689 = vmatmul.mubr.bf16.gmra.mrb[0].mxu0 %v540
      %v690 = vpop.f32.mrb[0].mxu0
      %v691 = vadd.f32 0.0, %v690
      %v692 = vpop.f32.mrb[0].mxu0
      %v693 = vpop.f32.mrb[0].mxu0
      %v694 = vadd.f32 0.0, %v693
      %v695 = vpop.f32.mrb[0].mxu0
      %696 = vmatprep.mubr.bf16.mxu0 0
      %697 = vmatmul.mubr.bf16.gmra.mrb[0].mxu0 %v543
      %v698 = vpop.f32.mrb[0].mxu0
      %v699 = vadd.f32 0.0, %v698
      %v700 = vpop.f32.mrb[0].mxu0
      %v701 = vpop.f32.mrb[0].mxu0
      %v702 = vadd.f32 0.0, %v701
      %v703 = vpop.f32.mrb[0].mxu0
      %704 = vmatprep.mubr.bf16.mxu0 0
      %705 = vmatmul.mubr.bf16.gmra.mrb[0].mxu0 %v546
      %v706 = vpop.f32.mrb[0].mxu0
      %v707 = vadd.f32 0.0, %v706
      %v708 = vpop.f32.mrb[0].mxu0
      %v709 = vpop.f32.mrb[0].mxu0
      %v710 = vadd.f32 0.0, %v709
      %v711 = vpop.f32.mrb[0].mxu0
      %712 = vdwg.mxu0
      %v714 = vsel %vm227, %v430, 0
      %v717 = vsel %vm227, %v431, 0
      %v720 = vsel %vm227, %v432, 0
      %v723 = vsel %vm227, %v433, 0
      %v726 = vsel %vm227, %v434, 0
      %v729 = vsel %vm227, %v435, 0
      %v732 = vsel %vm227, %v436, 0
      %v735 = vsel %vm227, %v437, 0
      %v738 = vsel %vm227, %v438, 0
      %v741 = vsel %vm227, %v439, 0
      %v744 = vsel %vm227, %v440, 0
      %v747 = vsel %vm227, %v441, 0
      %v750 = vsel %vm227, %v442, 0
      %v753 = vsel %vm227, %v443, 0
      %v756 = vsel %vm227, %v444, 0
      %v759 = vsel %vm227, %v445, 0
      %v762 = vsel %vm548, %v446, 0
      %764 = vmatprep.subr.bf16.mxu0 0
      %765 = vmatpush1.bf16.msra.mxu0 %v762
      %766 = vmatprep.subr.bf16.mxu0 0
      %767 = vmatpush1.bf16.msra.mxu0 0
      %768 = vmatprep.subr.bf16.mxu0 0
      %769 = vmatpush1.bf16.msra.mxu0 0
      %770 = vmatprep.subr.bf16.mxu0 0
      %771 = vmatpush1.bf16.msra.mxu0 0
      %772 = vmatprep.subr.bf16.mxu0 0
      %773 = vmatpush1.bf16.msra.mxu0 0
      %774 = vmatprep.subr.bf16.mxu0 0
      %775 = vmatpush1.bf16.msra.mxu0 0
      %776 = vmatprep.subr.bf16.mxu0 0
      %777 = vmatpush1.bf16.msra.mxu0 0
      %778 = vmatprep.subr.bf16.mxu0 0
      %779 = vmatpush1.bf16.msra.mxu0 0
      %780 = vmatprep.subr.bf16.mxu0 0
      %781 = vmatpush1.bf16.msra.mxu0 0
      %782 = vmatprep.subr.bf16.mxu0 0
      %783 = vmatpush1.bf16.msra.mxu0 0
      %784 = vmatprep.subr.bf16.mxu0 0
      %785 = vmatpush1.bf16.msra.mxu0 0
      %786 = vmatprep.subr.bf16.mxu0 0
      %787 = vmatpush1.bf16.msra.mxu0 0
      %788 = vmatprep.subr.bf16.mxu0 0
      %789 = vmatpush1.bf16.msra.mxu0 0
      %790 = vmatprep.subr.bf16.mxu0 0
      %791 = vmatpush1.bf16.msra.mxu0 0
      %792 = vmatprep.subr.bf16.mxu0 0
      %793 = vmatpush1.bf16.msra.mxu0 0
      %794 = vmatprep.subr.bf16.mxu0 0
      %795 = vmatpush1.bf16.msra.mxu0 0
      %796 = vmatprep.mubr.bf16.mxu0 0
      %797 = vmatmul.mubr.bf16.gmra.mrb[0].mxu0 %v714
      %v798 = vpop.f32.mrb[0].mxu0
      %v799 = vadd.f32 %v587, %v798
      %v800 = vpop.f32.mrb[0].mxu0
      %v801 = vpop.f32.mrb[0].mxu0
      %v802 = vadd.f32 %v590, %v801
      %v803 = vpop.f32.mrb[0].mxu0
      %804 = vmatprep.mubr.bf16.mxu0 0
      %805 = vmatmul.mubr.bf16.gmra.mrb[0].mxu0 %v717
      %v806 = vpop.f32.mrb[0].mxu0
      %v807 = vadd.f32 %v595, %v806
      %v808 = vpop.f32.mrb[0].mxu0
      %v809 = vpop.f32.mrb[0].mxu0
      %v810 = vadd.f32 %v598, %v809
      %v811 = vpop.f32.mrb[0].mxu0
      %812 = vmatprep.mubr.bf16.mxu0 0
      %813 = vmatmul.mubr.bf16.gmra.mrb[0].mxu0 %v720
      %v814 = vpop.f32.mrb[0].mxu0
      %v815 = vadd.f32 %v603, %v814
      %v816 = vpop.f32.mrb[0].mxu0
      %v817 = vpop.f32.mrb[0].mxu0
      %v818 = vadd.f32 %v606, %v817
      %v819 = vpop.f32.mrb[0].mxu0
      %820 = vmatprep.mubr.bf16.mxu0 0
      %821 = vmatmul.mubr.bf16.gmra.mrb[0].mxu0 %v723
      %v822 = vpop.f32.mrb[0].mxu0
      %v823 = vadd.f32 %v611, %v822
      %v824 = vpop.f32.mrb[0].mxu0
      %v825 = vpop.f32.mrb[0].mxu0
      %v826 = vadd.f32 %v614, %v825
      %v827 = vpop.f32.mrb[0].mxu0
      %828 = vmatprep.mubr.bf16.mxu0 0
      %829 = vmatmul.mubr.bf16.gmra.mrb[0].mxu0 %v726
      %v830 = vpop.f32.mrb[0].mxu0
      %v831 = vadd.f32 %v619, %v830
      %v832 = vpop.f32.mrb[0].mxu0
      %v833 = vpop.f32.mrb[0].mxu0
      %v834 = vadd.f32 %v622, %v833
      %v835 = vpop.f32.mrb[0].mxu0
      %836 = vmatprep.mubr.bf16.mxu0 0
      %837 = vmatmul.mubr.bf16.gmra.mrb[0].mxu0 %v729
      %v838 = vpop.f32.mrb[0].mxu0
      %v839 = vadd.f32 %v627, %v838
      %v840 = vpop.f32.mrb[0].mxu0
      %v841 = vpop.f32.mrb[0].mxu0
      %v842 = vadd.f32 %v630, %v841
      %v843 = vpop.f32.mrb[0].mxu0
      %844 = vmatprep.mubr.bf16.mxu0 0
      %845 = vmatmul.mubr.bf16.gmra.mrb[0].mxu0 %v732
      %v846 = vpop.f32.mrb[0].mxu0
      %v847 = vadd.f32 %v635, %v846
      %v848 = vpop.f32.mrb[0].mxu0
      %v849 = vpop.f32.mrb[0].mxu0
      %v850 = vadd.f32 %v638, %v849
      %v851 = vpop.f32.mrb[0].mxu0
      %852 = vmatprep.mubr.bf16.mxu0 0
      %853 = vmatmul.mubr.bf16.gmra.mrb[0].mxu0 %v735
      %v854 = vpop.f32.mrb[0].mxu0
      %v855 = vadd.f32 %v643, %v854
      %v856 = vpop.f32.mrb[0].mxu0
      %v857 = vpop.f32.mrb[0].mxu0
      %v858 = vadd.f32 %v646, %v857
      %v859 = vpop.f32.mrb[0].mxu0
      %860 = vmatprep.mubr.bf16.mxu0 0
      %861 = vmatmul.mubr.bf16.gmra.mrb[0].mxu0 %v738
      %v862 = vpop.f32.mrb[0].mxu0
      %v863 = vadd.f32 %v651, %v862
      %v864 = vpop.f32.mrb[0].mxu0
      %v865 = vpop.f32.mrb[0].mxu0
      %v866 = vadd.f32 %v654, %v865
      %v867 = vpop.f32.mrb[0].mxu0
      %868 = vmatprep.mubr.bf16.mxu0 0
      %869 = vmatmul.mubr.bf16.gmra.mrb[0].mxu0 %v741
      %v870 = vpop.f32.mrb[0].mxu0
      %v871 = vadd.f32 %v659, %v870
      %v872 = vpop.f32.mrb[0].mxu0
      %v873 = vpop.f32.mrb[0].mxu0
      %v874 = vadd.f32 %v662, %v873
      %v875 = vpop.f32.mrb[0].mxu0
      %876 = vmatprep.mubr.bf16.mxu0 0
      %877 = vmatmul.mubr.bf16.gmra.mrb[0].mxu0 %v744
      %v878 = vpop.f32.mrb[0].mxu0
      %v879 = vadd.f32 %v667, %v878
      %v880 = vpop.f32.mrb[0].mxu0
      %v881 = vpop.f32.mrb[0].mxu0
      %v882 = vadd.f32 %v670, %v881
      %v883 = vpop.f32.mrb[0].mxu0
      %884 = vmatprep.mubr.bf16.mxu0 0
      %885 = vmatmul.mubr.bf16.gmra.mrb[0].mxu0 %v747
      %v886 = vpop.f32.mrb[0].mxu0
      %v887 = vadd.f32 %v675, %v886
      %v888 = vpop.f32.mrb[0].mxu0
      %v889 = vpop.f32.mrb[0].mxu0
      %v890 = vadd.f32 %v678, %v889
      %v891 = vpop.f32.mrb[0].mxu0
      %892 = vmatprep.mubr.bf16.mxu0 0
      %893 = vmatmul.mubr.bf16.gmra.mrb[0].mxu0 %v750
      %v894 = vpop.f32.mrb[0].mxu0
      %v895 = vadd.f32 %v683, %v894
      %v896 = vpop.f32.mrb[0].mxu0
      %v897 = vpop.f32.mrb[0].mxu0
      %v898 = vadd.f32 %v686, %v897
      %v899 = vpop.f32.mrb[0].mxu0
      %900 = vmatprep.mubr.bf16.mxu0 0
      %901 = vmatmul.mubr.bf16.gmra.mrb[0].mxu0 %v753
      %v902 = vpop.f32.mrb[0].mxu0
      %v903 = vadd.f32 %v691, %v902
      %v904 = vpop.f32.mrb[0].mxu0
      %v905 = vpop.f32.mrb[0].mxu0
      %v906 = vadd.f32 %v694, %v905
      %v907 = vpop.f32.mrb[0].mxu0
      %908 = vmatprep.mubr.bf16.mxu0 0
      %909 = vmatmul.mubr.bf16.gmra.mrb[0].mxu0 %v756
      %v910 = vpop.f32.mrb[0].mxu0
      %v911 = vadd.f32 %v699, %v910
      %v912 = vpop.f32.mrb[0].mxu0
      %v913 = vpop.f32.mrb[0].mxu0
      %v914 = vadd.f32 %v702, %v913
      %v915 = vpop.f32.mrb[0].mxu0
      %916 = vmatprep.mubr.bf16.mxu0 0
      %917 = vmatmul.mubr.bf16.gmra.mrb[0].mxu0 %v759
      %v918 = vpop.f32.mrb[0].mxu0
      %v919 = vadd.f32 %v707, %v918
      %v920 = vpop.f32.mrb[0].mxu0
      %v921 = vpop.f32.mrb[0].mxu0
      %v922 = vadd.f32 %v710, %v921
      %v923 = vpop.f32.mrb[0].mxu0
      %924 = vdwg.mxu0
      %v925 = vld [vmem:[#allocation2 + $0x2] sm:$0xff]
      %v926 = vld [vmem:[#allocation2 + $0xa] sm:$0xff]
      %v927 = vld [vmem:[#allocation2 + $0x1a] sm:$0xff]
      %v928 = vld [vmem:[#allocation2 + $0x22] sm:$0xff]
      %v929 = vld [vmem:[#allocation2 + $0x32] sm:$0xff]
      %v930 = vld [vmem:[#allocation2 + $0x3a] sm:$0xff]
      %v931 = vld [vmem:[#allocation2 + $0x4a] sm:$0xff]
      %v932 = vld [vmem:[#allocation2 + $0x52] sm:$0xff]
      %v933 = vld [vmem:[#allocation2 + $0x62] sm:$0xff]
      %v934 = vld [vmem:[#allocation2 + $0x6a] sm:$0xff]
      %v935 = vld [vmem:[#allocation2 + $0x7a] sm:$0xff]
      %v936 = vld [vmem:[#allocation2 + $0x82] sm:$0xff]
      %v937 = vld [vmem:[#allocation2 + $0x92] sm:$0xff]
      %v938 = vld [vmem:[#allocation2 + $0x9a] sm:$0xff]
      %v939 = vld [vmem:[#allocation2 + $0xaa] sm:$0xff]
      %v940 = vld [vmem:[#allocation2 + $0xb2] sm:$0xff]
      %v941 = vld [vmem:[#allocation2 + $0xc2] sm:$0xff]
      %v942 = vld [vmem:[#allocation2 + $0xca] sm:$0xff]
      %v943 = vld [vmem:[#allocation2 + $0xda] sm:$0xff]
      %v944 = vld [vmem:[#allocation2 + $0xe2] sm:$0xff]
      %v945 = vld [vmem:[#allocation2 + $0xf2] sm:$0xff]
      %v946 = vld [vmem:[#allocation2 + $0xfa] sm:$0xff]
      %v947 = vld [vmem:[#allocation2 + $0x10a] sm:$0xff]
      %v948 = vld [vmem:[#allocation2 + $0x112] sm:$0xff]
      %v949 = vld [vmem:[#allocation2 + $0x122] sm:$0xff]
      %v950 = vld [vmem:[#allocation2 + $0x12a] sm:$0xff]
      %v951 = vld [vmem:[#allocation2 + $0x13a] sm:$0xff]
      %v952 = vld [vmem:[#allocation2 + $0x142] sm:$0xff]
      %v953 = vld [vmem:[#allocation2 + $0x152] sm:$0xff]
      %v954 = vld [vmem:[#allocation2 + $0x15a] sm:$0xff]
      %v955 = vld [vmem:[#allocation2 + $0x16a] sm:$0xff]
      %v956 = vld [vmem:[#allocation2 + $0x172] sm:$0xff]
      %v957 = vpack.c.bf16 %v926, %v925
      %v958 = vpack.c.bf16 %v928, %v927
      %v959 = vpack.c.bf16 %v930, %v929
      %v960 = vpack.c.bf16 %v932, %v931
      %v961 = vpack.c.bf16 %v934, %v933
      %v962 = vpack.c.bf16 %v936, %v935
      %v963 = vpack.c.bf16 %v938, %v937
      %v964 = vpack.c.bf16 %v940, %v939
      %v965 = vpack.c.bf16 %v942, %v941
      %v966 = vpack.c.bf16 %v944, %v943
      %v967 = vpack.c.bf16 %v946, %v945
      %v968 = vpack.c.bf16 %v948, %v947
      %v969 = vpack.c.bf16 %v950, %v949
      %v970 = vpack.c.bf16 %v952, %v951
      %v971 = vpack.c.bf16 %v954, %v953
      %v972 = vpack.c.bf16 %v956, %v955
      %v973 = vld [vmem:[%s1 + $0x4] sm:$0x3]
      %v975 = vsel %vm227, %v957, 0
      %v978 = vsel %vm227, %v958, 0
      %v981 = vsel %vm227, %v959, 0
      %v984 = vsel %vm227, %v960, 0
      %v987 = vsel %vm227, %v961, 0
      %v990 = vsel %vm227, %v962, 0
      %v993 = vsel %vm227, %v963, 0
      %v996 = vsel %vm227, %v964, 0
      %v999 = vsel %vm227, %v965, 0
      %v1002 = vsel %vm227, %v966, 0
      %v1005 = vsel %vm227, %v967, 0
      %v1008 = vsel %vm227, %v968, 0
      %v1011 = vsel %vm227, %v969, 0
      %v1014 = vsel %vm227, %v970, 0
      %v1017 = vsel %vm227, %v971, 0
      %v1020 = vsel %vm227, %v972, 0
      %v1023 = vsel %vm548, %v973, 0
      %1025 = vmatprep.subr.bf16.mxu0 0
      %1026 = vmatpush1.bf16.msra.mxu0 %v1023
      %1027 = vmatprep.subr.bf16.mxu0 0
      %1028 = vmatpush1.bf16.msra.mxu0 0
      %1029 = vmatprep.subr.bf16.mxu0 0
      %1030 = vmatpush1.bf16.msra.mxu0 0
      %1031 = vmatprep.subr.bf16.mxu0 0
      %1032 = vmatpush1.bf16.msra.mxu0 0
      %1033 = vmatprep.subr.bf16.mxu0 0
      %1034 = vmatpush1.bf16.msra.mxu0 0
      %1035 = vmatprep.subr.bf16.mxu0 0
      %1036 = vmatpush1.bf16.msra.mxu0 0
      %1037 = vmatprep.subr.bf16.mxu0 0
      %1038 = vmatpush1.bf16.msra.mxu0 0
      %1039 = vmatprep.subr.bf16.mxu0 0
      %1040 = vmatpush1.bf16.msra.mxu0 0
      %1041 = vmatprep.subr.bf16.mxu0 0
      %1042 = vmatpush1.bf16.msra.mxu0 0
      %1043 = vmatprep.subr.bf16.mxu0 0
      %1044 = vmatpush1.bf16.msra.mxu0 0
      %1045 = vmatprep.subr.bf16.mxu0 0
      %1046 = vmatpush1.bf16.msra.mxu0 0
      %1047 = vmatprep.subr.bf16.mxu0 0
      %1048 = vmatpush1.bf16.msra.mxu0 0
      %1049 = vmatprep.subr.bf16.mxu0 0
      %1050 = vmatpush1.bf16.msra.mxu0 0
      %1051 = vmatprep.subr.bf16.mxu0 0
      %1052 = vmatpush1.bf16.msra.mxu0 0
      %1053 = vmatprep.subr.bf16.mxu0 0
      %1054 = vmatpush1.bf16.msra.mxu0 0
      %1055 = vmatprep.subr.bf16.mxu0 0
      %1056 = vmatpush1.bf16.msra.mxu0 0
      %1057 = vmatprep.mubr.bf16.mxu0 0
      %1058 = vmatmul.mubr.bf16.gmra.mrb[0].mxu0 %v975
      %v1059 = vpop.f32.mrb[0].mxu0
      %v1060 = vadd.f32 0.0, %v1059
      %v1061 = vpop.f32.mrb[0].mxu0
      %v1062 = vpop.f32.mrb[0].mxu0
      %v1063 = vadd.f32 0.0, %v1062
      %v1064 = vpop.f32.mrb[0].mxu0
      %1065 = vmatprep.mubr.bf16.mxu0 0
      %1066 = vmatmul.mubr.bf16.gmra.mrb[0].mxu0 %v978
      %v1067 = vpop.f32.mrb[0].mxu0
      %v1068 = vadd.f32 0.0, %v1067
      %v1069 = vpop.f32.mrb[0].mxu0
      %v1070 = vpop.f32.mrb[0].mxu0
      %v1071 = vadd.f32 0.0, %v1070
      %v1072 = vpop.f32.mrb[0].mxu0
      %1073 = vmatprep.mubr.bf16.mxu0 0
      %1074 = vmatmul.mubr.bf16.gmra.mrb[0].mxu0 %v981
      %v1075 = vpop.f32.mrb[0].mxu0
      %v1076 = vadd.f32 0.0, %v1075
      %v1077 = vpop.f32.mrb[0].mxu0
      %v1078 = vpop.f32.mrb[0].mxu0
      %v1079 = vadd.f32 0.0, %v1078
      %v1080 = vpop.f32.mrb[0].mxu0
      %1081 = vmatprep.mubr.bf16.mxu0 0
      %1082 = vmatmul.mubr.bf16.gmra.mrb[0].mxu0 %v984
      %v1083 = vpop.f32.mrb[0].mxu0
      %v1084 = vadd.f32 0.0, %v1083
      %v1085 = vpop.f32.mrb[0].mxu0
      %v1086 = vpop.f32.mrb[0].mxu0
      %v1087 = vadd.f32 0.0, %v1086
      %v1088 = vpop.f32.mrb[0].mxu0
      %1089 = vmatprep.mubr.bf16.mxu0 0
      %1090 = vmatmul.mubr.bf16.gmra.mrb[0].mxu0 %v987
      %v1091 = vpop.f32.mrb[0].mxu0
      %v1092 = vadd.f32 0.0, %v1091
      %v1093 = vpop.f32.mrb[0].mxu0
      %v1094 = vpop.f32.mrb[0].mxu0
      %v1095 = vadd.f32 0.0, %v1094
      %v1096 = vpop.f32.mrb[0].mxu0
      %1097 = vmatprep.mubr.bf16.mxu0 0
      %1098 = vmatmul.mubr.bf16.gmra.mrb[0].mxu0 %v990
      %v1099 = vpop.f32.mrb[0].mxu0
      %v1100 = vadd.f32 0.0, %v1099
      %v1101 = vpop.f32.mrb[0].mxu0
      %v1102 = vpop.f32.mrb[0].mxu0
      %v1103 = vadd.f32 0.0, %v1102
      %v1104 = vpop.f32.mrb[0].mxu0
      %1105 = vmatprep.mubr.bf16.mxu0 0
      %1106 = vmatmul.mubr.bf16.gmra.mrb[0].mxu0 %v993
      %v1107 = vpop.f32.mrb[0].mxu0
      %v1108 = vadd.f32 0.0, %v1107
      %v1109 = vpop.f32.mrb[0].mxu0
      %v1110 = vpop.f32.mrb[0].mxu0
      %v1111 = vadd.f32 0.0, %v1110
      %v1112 = vpop.f32.mrb[0].mxu0
      %1113 = vmatprep.mubr.bf16.mxu0 0
      %1114 = vmatmul.mubr.bf16.gmra.mrb[0].mxu0 %v996
      %v1115 = vpop.f32.mrb[0].mxu0
      %v1116 = vadd.f32 0.0, %v1115
      %v1117 = vpop.f32.mrb[0].mxu0
      %v1118 = vpop.f32.mrb[0].mxu0
      %v1119 = vadd.f32 0.0, %v1118
      %v1120 = vpop.f32.mrb[0].mxu0
      %1121 = vmatprep.mubr.bf16.mxu0 0
      %1122 = vmatmul.mubr.bf16.gmra.mrb[0].mxu0 %v999
      %v1123 = vpop.f32.mrb[0].mxu0
      %v1124 = vadd.f32 0.0, %v1123
      %v1125 = vpop.f32.mrb[0].mxu0
      %v1126 = vpop.f32.mrb[0].mxu0
      %v1127 = vadd.f32 0.0, %v1126
      %v1128 = vpop.f32.mrb[0].mxu0
      %1129 = vmatprep.mubr.bf16.mxu0 0
      %1130 = vmatmul.mubr.bf16.gmra.mrb[0].mxu0 %v1002
      %v1131 = vpop.f32.mrb[0].mxu0
      %v1132 = vadd.f32 0.0, %v1131
      %v1133 = vpop.f32.mrb[0].mxu0
      %v1134 = vpop.f32.mrb[0].mxu0
      %v1135 = vadd.f32 0.0, %v1134
      %v1136 = vpop.f32.mrb[0].mxu0
      %1137 = vmatprep.mubr.bf16.mxu0 0
      %1138 = vmatmul.mubr.bf16.gmra.mrb[0].mxu0 %v1005
      %v1139 = vpop.f32.mrb[0].mxu0
      %v1140 = vadd.f32 0.0, %v1139
      %v1141 = vpop.f32.mrb[0].mxu0
      %v1142 = vpop.f32.mrb[0].mxu0
      %v1143 = vadd.f32 0.0, %v1142
      %v1144 = vpop.f32.mrb[0].mxu0
      %1145 = vmatprep.mubr.bf16.mxu0 0
      %1146 = vmatmul.mubr.bf16.gmra.mrb[0].mxu0 %v1008
      %v1147 = vpop.f32.mrb[0].mxu0
      %v1148 = vadd.f32 0.0, %v1147
      %v1149 = vpop.f32.mrb[0].mxu0
      %v1150 = vpop.f32.mrb[0].mxu0
      %v1151 = vadd.f32 0.0, %v1150
      %v1152 = vpop.f32.mrb[0].mxu0
      %1153 = vmatprep.mubr.bf16.mxu0 0
      %1154 = vmatmul.mubr.bf16.gmra.mrb[0].mxu0 %v1011
      %v1155 = vpop.f32.mrb[0].mxu0
      %v1156 = vadd.f32 0.0, %v1155
      %v1157 = vpop.f32.mrb[0].mxu0
      %v1158 = vpop.f32.mrb[0].mxu0
      %v1159 = vadd.f32 0.0, %v1158
      %v1160 = vpop.f32.mrb[0].mxu0
      %1161 = vmatprep.mubr.bf16.mxu0 0
      %1162 = vmatmul.mubr.bf16.gmra.mrb[0].mxu0 %v1014
      %v1163 = vpop.f32.mrb[0].mxu0
      %v1164 = vadd.f32 0.0, %v1163
      %v1165 = vpop.f32.mrb[0].mxu0
      %v1166 = vpop.f32.mrb[0].mxu0
      %v1167 = vadd.f32 0.0, %v1166
      %v1168 = vpop.f32.mrb[0].mxu0
      %1169 = vmatprep.mubr.bf16.mxu0 0
      %1170 = vmatmul.mubr.bf16.gmra.mrb[0].mxu0 %v1017
      %v1171 = vpop.f32.mrb[0].mxu0
      %v1172 = vadd.f32 0.0, %v1171
      %v1173 = vpop.f32.mrb[0].mxu0
      %v1174 = vpop.f32.mrb[0].mxu0
      %v1175 = vadd.f32 0.0, %v1174
      %v1176 = vpop.f32.mrb[0].mxu0
      %1177 = vmatprep.mubr.bf16.mxu0 0
      %1178 = vmatmul.mubr.bf16.gmra.mrb[0].mxu0 %v1020
      %v1179 = vpop.f32.mrb[0].mxu0
      %v1180 = vadd.f32 0.0, %v1179
      %v1181 = vpop.f32.mrb[0].mxu0
      %v1182 = vpop.f32.mrb[0].mxu0
      %v1183 = vadd.f32 0.0, %v1182
      %v1184 = vpop.f32.mrb[0].mxu0
      %1185 = vdwg.mxu0
      %v1186 = vadd.f32 %v799, %v1060
      %v1187 = vadd.f32 %v802, %v1063
      %v1188 = vadd.f32 %v807, %v1068
      %v1189 = vadd.f32 %v810, %v1071
      %v1190 = vadd.f32 %v815, %v1076
      %v1191 = vadd.f32 %v818, %v1079
      %v1192 = vadd.f32 %v823, %v1084
      %v1193 = vadd.f32 %v826, %v1087
      %v1194 = vadd.f32 %v831, %v1092
      %v1195 = vadd.f32 %v834, %v1095
      %v1196 = vadd.f32 %v839, %v1100
      %v1197 = vadd.f32 %v842, %v1103
      %v1198 = vadd.f32 %v847, %v1108
      %v1199 = vadd.f32 %v850, %v1111
      %v1200 = vadd.f32 %v855, %v1116
      %v1201 = vadd.f32 %v858, %v1119
      %v1202 = vadd.f32 %v863, %v1124
      %v1203 = vadd.f32 %v866, %v1127
      %v1204 = vadd.f32 %v871, %v1132
      %v1205 = vadd.f32 %v874, %v1135
      %v1206 = vadd.f32 %v879, %v1140
      %v1207 = vadd.f32 %v882, %v1143
      %v1208 = vadd.f32 %v887, %v1148
      %v1209 = vadd.f32 %v890, %v1151
      %v1210 = vadd.f32 %v895, %v1156
      %v1211 = vadd.f32 %v898, %v1159
      %v1212 = vadd.f32 %v903, %v1164
      %v1213 = vadd.f32 %v906, %v1167
      %v1214 = vadd.f32 %v911, %v1172
      %v1215 = vadd.f32 %v914, %v1175
      %v1216 = vadd.f32 %v919, %v1180
      %v1217 = vadd.f32 %v922, %v1183
      %v1218 = vld [vmem:[%s365] sm:$0xff]
      %v1219 = vld [vmem:[%s365 + $0x8] sm:$0xff]
      %v1220 = vld [vmem:[%s365 + $0x18] sm:$0xff]
      %v1221 = vld [vmem:[%s365 + $0x20] sm:$0xff]
      %v1222 = vld [vmem:[%s365 + $0x30] sm:$0xff]
      %v1223 = vld [vmem:[%s365 + $0x38] sm:$0xff]
      %v1224 = vld [vmem:[%s365 + $0x48] sm:$0xff]
      %v1225 = vld [vmem:[%s365 + $0x50] sm:$0xff]
      %v1226 = vld [vmem:[%s365 + $0x60] sm:$0xff]
      %v1227 = vld [vmem:[%s365 + $0x68] sm:$0xff]
      %v1228 = vld [vmem:[%s365 + $0x78] sm:$0xff]
      %v1229 = vld [vmem:[%s365 + $0x80] sm:$0xff]
      %v1230 = vld [vmem:[%s365 + $0x90] sm:$0xff]
      %v1231 = vld [vmem:[%s365 + $0x98] sm:$0xff]
      %v1232 = vld [vmem:[%s365 + $0xa8] sm:$0xff]
      %v1233 = vld [vmem:[%s365 + $0xb0] sm:$0xff]
      %v1234 = vld [vmem:[%s365 + $0xc0] sm:$0xff]
      %v1235 = vld [vmem:[%s365 + $0xc8] sm:$0xff]
      %v1236 = vld [vmem:[%s365 + $0xd8] sm:$0xff]
      %v1237 = vld [vmem:[%s365 + $0xe0] sm:$0xff]
      %v1238 = vld [vmem:[%s365 + $0xf0] sm:$0xff]
      %v1239 = vld [vmem:[%s365 + $0xf8] sm:$0xff]
      %v1240 = vld [vmem:[%s365 + $0x108] sm:$0xff]
      %v1241 = vld [vmem:[%s365 + $0x110] sm:$0xff]
      %v1242 = vld [vmem:[%s365 + $0x120] sm:$0xff]
      %v1243 = vld [vmem:[%s365 + $0x128] sm:$0xff]
      %v1244 = vld [vmem:[%s365 + $0x138] sm:$0xff]
      %v1245 = vld [vmem:[%s365 + $0x140] sm:$0xff]
      %v1246 = vld [vmem:[%s365 + $0x150] sm:$0xff]
      %v1247 = vld [vmem:[%s365 + $0x158] sm:$0xff]
      %v1248 = vld [vmem:[%s365 + $0x168] sm:$0xff]
      %v1249 = vld [vmem:[%s365 + $0x170] sm:$0xff]
      %v1250 = vpack.c.bf16 %v1219, %v1218
      %v1251 = vpack.c.bf16 %v1221, %v1220
      %v1252 = vpack.c.bf16 %v1223, %v1222
      %v1253 = vpack.c.bf16 %v1225, %v1224
      %v1254 = vpack.c.bf16 %v1227, %v1226
      %v1255 = vpack.c.bf16 %v1229, %v1228
      %v1256 = vpack.c.bf16 %v1231, %v1230
      %v1257 = vpack.c.bf16 %v1233, %v1232
      %v1258 = vpack.c.bf16 %v1235, %v1234
      %v1259 = vpack.c.bf16 %v1237, %v1236
      %v1260 = vpack.c.bf16 %v1239, %v1238
      %v1261 = vpack.c.bf16 %v1241, %v1240
      %v1262 = vpack.c.bf16 %v1243, %v1242
      %v1263 = vpack.c.bf16 %v1245, %v1244
      %v1264 = vpack.c.bf16 %v1247, %v1246
      %v1265 = vpack.c.bf16 %v1249, %v1248
      %v1266 = vld [vmem:[%s1 + $0x4] sm:$0xc]
      %v1268 = vunpack.c.l.b16 %v1266
      %v1269 = vpack.c.b16 %v1268, %v1268
      %v1270 = vrot.slane %v1269, 2
      %v1272 = vsel %vm227, %v1250, 0
      %v1275 = vsel %vm227, %v1251, 0
      %v1278 = vsel %vm227, %v1252, 0
      %v1281 = vsel %vm227, %v1253, 0
      %v1284 = vsel %vm227, %v1254, 0
      %v1287 = vsel %vm227, %v1255, 0
      %v1290 = vsel %vm227, %v1256, 0
      %v1293 = vsel %vm227, %v1257, 0
      %v1296 = vsel %vm227, %v1258, 0
      %v1299 = vsel %vm227, %v1259, 0
      %v1302 = vsel %vm227, %v1260, 0
      %v1305 = vsel %vm227, %v1261, 0
      %v1308 = vsel %vm227, %v1262, 0
      %v1311 = vsel %vm227, %v1263, 0
      %v1314 = vsel %vm227, %v1264, 0
      %v1317 = vsel %vm227, %v1265, 0
      %v1320 = vsel %vm548, %v1270, 0
      %1322 = vmatprep.subr.bf16.mxu0 0
      %1323 = vmatpush1.bf16.msra.mxu0 %v1320
      %1324 = vmatprep.subr.bf16.mxu0 0
      %1325 = vmatpush1.bf16.msra.mxu0 0
      %1326 = vmatprep.subr.bf16.mxu0 0
      %1327 = vmatpush1.bf16.msra.mxu0 0
      %1328 = vmatprep.subr.bf16.mxu0 0
      %1329 = vmatpush1.bf16.msra.mxu0 0
      %1330 = vmatprep.subr.bf16.mxu0 0
      %1331 = vmatpush1.bf16.msra.mxu0 0
      %1332 = vmatprep.subr.bf16.mxu0 0
      %1333 = vmatpush1.bf16.msra.mxu0 0
      %1334 = vmatprep.subr.bf16.mxu0 0
      %1335 = vmatpush1.bf16.msra.mxu0 0
      %1336 = vmatprep.subr.bf16.mxu0 0
      %1337 = vmatpush1.bf16.msra.mxu0 0
      %1338 = vmatprep.subr.bf16.mxu0 0
      %1339 = vmatpush1.bf16.msra.mxu0 0
      %1340 = vmatprep.subr.bf16.mxu0 0
      %1341 = vmatpush1.bf16.msra.mxu0 0
      %1342 = vmatprep.subr.bf16.mxu0 0
      %1343 = vmatpush1.bf16.msra.mxu0 0
      %1344 = vmatprep.subr.bf16.mxu0 0
      %1345 = vmatpush1.bf16.msra.mxu0 0
      %1346 = vmatprep.subr.bf16.mxu0 0
      %1347 = vmatpush1.bf16.msra.mxu0 0
      %1348 = vmatprep.subr.bf16.mxu0 0
      %1349 = vmatpush1.bf16.msra.mxu0 0
      %1350 = vmatprep.subr.bf16.mxu0 0
      %1351 = vmatpush1.bf16.msra.mxu0 0
      %1352 = vmatprep.subr.bf16.mxu0 0
      %1353 = vmatpush1.bf16.msra.mxu0 0
      %1354 = vmatprep.mubr.bf16.mxu0 0
      %1355 = vmatmul.mubr.bf16.gmra.mrb[0].mxu0 %v1272
      %v1356 = vpop.f32.mrb[0].mxu0
      %v1357 = vadd.f32 0.0, %v1356
      %v1358 = vpop.f32.mrb[0].mxu0
      %v1359 = vpop.f32.mrb[0].mxu0
      %v1360 = vadd.f32 0.0, %v1359
      %v1361 = vpop.f32.mrb[0].mxu0
      %1362 = vmatprep.mubr.bf16.mxu0 0
      %1363 = vmatmul.mubr.bf16.gmra.mrb[0].mxu0 %v1275
      %v1364 = vpop.f32.mrb[0].mxu0
      %v1365 = vadd.f32 0.0, %v1364
      %v1366 = vpop.f32.mrb[0].mxu0
      %v1367 = vpop.f32.mrb[0].mxu0
      %v1368 = vadd.f32 0.0, %v1367
      %v1369 = vpop.f32.mrb[0].mxu0
      %1370 = vmatprep.mubr.bf16.mxu0 0
      %1371 = vmatmul.mubr.bf16.gmra.mrb[0].mxu0 %v1278
      %v1372 = vpop.f32.mrb[0].mxu0
      %v1373 = vadd.f32 0.0, %v1372
      %v1374 = vpop.f32.mrb[0].mxu0
      %v1375 = vpop.f32.mrb[0].mxu0
      %v1376 = vadd.f32 0.0, %v1375
      %v1377 = vpop.f32.mrb[0].mxu0
      %1378 = vmatprep.mubr.bf16.mxu0 0
      %1379 = vmatmul.mubr.bf16.gmra.mrb[0].mxu0 %v1281
      %v1380 = vpop.f32.mrb[0].mxu0
      %v1381 = vadd.f32 0.0, %v1380
      %v1382 = vpop.f32.mrb[0].mxu0
      %v1383 = vpop.f32.mrb[0].mxu0
      %v1384 = vadd.f32 0.0, %v1383
      %v1385 = vpop.f32.mrb[0].mxu0
      %1386 = vmatprep.mubr.bf16.mxu0 0
      %1387 = vmatmul.mubr.bf16.gmra.mrb[0].mxu0 %v1284
      %v1388 = vpop.f32.mrb[0].mxu0
      %v1389 = vadd.f32 0.0, %v1388
      %v1390 = vpop.f32.mrb[0].mxu0
      %v1391 = vpop.f32.mrb[0].mxu0
      %v1392 = vadd.f32 0.0, %v1391
      %v1393 = vpop.f32.mrb[0].mxu0
      %1394 = vmatprep.mubr.bf16.mxu0 0
      %1395 = vmatmul.mubr.bf16.gmra.mrb[0].mxu0 %v1287
      %v1396 = vpop.f32.mrb[0].mxu0
      %v1397 = vadd.f32 0.0, %v1396
      %v1398 = vpop.f32.mrb[0].mxu0
      %v1399 = vpop.f32.mrb[0].mxu0
      %v1400 = vadd.f32 0.0, %v1399
      %v1401 = vpop.f32.mrb[0].mxu0
      %1402 = vmatprep.mubr.bf16.mxu0 0
      %1403 = vmatmul.mubr.bf16.gmra.mrb[0].mxu0 %v1290
      %v1404 = vpop.f32.mrb[0].mxu0
      %v1405 = vadd.f32 0.0, %v1404
      %v1406 = vpop.f32.mrb[0].mxu0
      %v1407 = vpop.f32.mrb[0].mxu0
      %v1408 = vadd.f32 0.0, %v1407
      %v1409 = vpop.f32.mrb[0].mxu0
      %1410 = vmatprep.mubr.bf16.mxu0 0
      %1411 = vmatmul.mubr.bf16.gmra.mrb[0].mxu0 %v1293
      %v1412 = vpop.f32.mrb[0].mxu0
      %v1413 = vadd.f32 0.0, %v1412
      %v1414 = vpop.f32.mrb[0].mxu0
      %v1415 = vpop.f32.mrb[0].mxu0
      %v1416 = vadd.f32 0.0, %v1415
      %v1417 = vpop.f32.mrb[0].mxu0
      %1418 = vmatprep.mubr.bf16.mxu0 0
      %1419 = vmatmul.mubr.bf16.gmra.mrb[0].mxu0 %v1296
      %v1420 = vpop.f32.mrb[0].mxu0
      %v1421 = vadd.f32 0.0, %v1420
      %v1422 = vpop.f32.mrb[0].mxu0
      %v1423 = vpop.f32.mrb[0].mxu0
      %v1424 = vadd.f32 0.0, %v1423
      %v1425 = vpop.f32.mrb[0].mxu0
      %1426 = vmatprep.mubr.bf16.mxu0 0
      %1427 = vmatmul.mubr.bf16.gmra.mrb[0].mxu0 %v1299
      %v1428 = vpop.f32.mrb[0].mxu0
      %v1429 = vadd.f32 0.0, %v1428
      %v1430 = vpop.f32.mrb[0].mxu0
      %v1431 = vpop.f32.mrb[0].mxu0
      %v1432 = vadd.f32 0.0, %v1431
      %v1433 = vpop.f32.mrb[0].mxu0
      %1434 = vmatprep.mubr.bf16.mxu0 0
      %1435 = vmatmul.mubr.bf16.gmra.mrb[0].mxu0 %v1302
      %v1436 = vpop.f32.mrb[0].mxu0
      %v1437 = vadd.f32 0.0, %v1436
      %v1438 = vpop.f32.mrb[0].mxu0
      %v1439 = vpop.f32.mrb[0].mxu0
      %v1440 = vadd.f32 0.0, %v1439
      %v1441 = vpop.f32.mrb[0].mxu0
      %1442 = vmatprep.mubr.bf16.mxu0 0
      %1443 = vmatmul.mubr.bf16.gmra.mrb[0].mxu0 %v1305
      %v1444 = vpop.f32.mrb[0].mxu0
      %v1445 = vadd.f32 0.0, %v1444
      %v1446 = vpop.f32.mrb[0].mxu0
      %v1447 = vpop.f32.mrb[0].mxu0
      %v1448 = vadd.f32 0.0, %v1447
      %v1449 = vpop.f32.mrb[0].mxu0
      %1450 = vmatprep.mubr.bf16.mxu0 0
      %1451 = vmatmul.mubr.bf16.gmra.mrb[0].mxu0 %v1308
      %v1452 = vpop.f32.mrb[0].mxu0
      %v1453 = vadd.f32 0.0, %v1452
      %v1454 = vpop.f32.mrb[0].mxu0
      %v1455 = vpop.f32.mrb[0].mxu0
      %v1456 = vadd.f32 0.0, %v1455
      %v1457 = vpop.f32.mrb[0].mxu0
      %1458 = vmatprep.mubr.bf16.mxu0 0
      %1459 = vmatmul.mubr.bf16.gmra.mrb[0].mxu0 %v1311
      %v1460 = vpop.f32.mrb[0].mxu0
      %v1461 = vadd.f32 0.0, %v1460
      %v1462 = vpop.f32.mrb[0].mxu0
      %v1463 = vpop.f32.mrb[0].mxu0
      %v1464 = vadd.f32 0.0, %v1463
      %v1465 = vpop.f32.mrb[0].mxu0
      %1466 = vmatprep.mubr.bf16.mxu0 0
      %1467 = vmatmul.mubr.bf16.gmra.mrb[0].mxu0 %v1314
      %v1468 = vpop.f32.mrb[0].mxu0
      %v1469 = vadd.f32 0.0, %v1468
      %v1470 = vpop.f32.mrb[0].mxu0
      %v1471 = vpop.f32.mrb[0].mxu0
      %v1472 = vadd.f32 0.0, %v1471
      %v1473 = vpop.f32.mrb[0].mxu0
      %1474 = vmatprep.mubr.bf16.mxu0 0
      %1475 = vmatmul.mubr.bf16.gmra.mrb[0].mxu0 %v1317
      %v1476 = vpop.f32.mrb[0].mxu0
      %v1477 = vadd.f32 0.0, %v1476
      %v1478 = vpop.f32.mrb[0].mxu0
      %v1479 = vpop.f32.mrb[0].mxu0
      %v1480 = vadd.f32 0.0, %v1479
      %v1481 = vpop.f32.mrb[0].mxu0
      %1482 = vdwg.mxu0
      %v1483 = vadd.f32 %v1186, %v1357
      %v1484 = vadd.f32 %v1187, %v1360
      %v1485 = vadd.f32 %v1188, %v1365
      %v1486 = vadd.f32 %v1189, %v1368
      %v1487 = vadd.f32 %v1190, %v1373
      %v1488 = vadd.f32 %v1191, %v1376
      %v1489 = vadd.f32 %v1192, %v1381
      %v1490 = vadd.f32 %v1193, %v1384
      %v1491 = vadd.f32 %v1194, %v1389
      %v1492 = vadd.f32 %v1195, %v1392
      %v1493 = vadd.f32 %v1196, %v1397
      %v1494 = vadd.f32 %v1197, %v1400
      %v1495 = vadd.f32 %v1198, %v1405
      %v1496 = vadd.f32 %v1199, %v1408
      %v1497 = vadd.f32 %v1200, %v1413
      %v1498 = vadd.f32 %v1201, %v1416
      %v1499 = vadd.f32 %v1202, %v1421
      %v1500 = vadd.f32 %v1203, %v1424
      %v1501 = vadd.f32 %v1204, %v1429
      %v1502 = vadd.f32 %v1205, %v1432
      %v1503 = vadd.f32 %v1206, %v1437
      %v1504 = vadd.f32 %v1207, %v1440
      %v1505 = vadd.f32 %v1208, %v1445
      %v1506 = vadd.f32 %v1209, %v1448
      %v1507 = vadd.f32 %v1210, %v1453
      %v1508 = vadd.f32 %v1211, %v1456
      %v1509 = vadd.f32 %v1212, %v1461
      %v1510 = vadd.f32 %v1213, %v1464
      %v1511 = vadd.f32 %v1214, %v1469
      %v1512 = vadd.f32 %v1215, %v1472
      %v1513 = vadd.f32 %v1216, %v1477
      %v1514 = vadd.f32 %v1217, %v1480
      %v1515 = vld [vmem:[%s365 + $0x1] sm:$0xff]
      %v1516 = vld [vmem:[%s365 + $0x9] sm:$0xff]
      %v1517 = vld [vmem:[%s365 + $0x19] sm:$0xff]
      %v1518 = vld [vmem:[%s365 + $0x21] sm:$0xff]
      %v1519 = vld [vmem:[%s365 + $0x31] sm:$0xff]
      %v1520 = vld [vmem:[%s365 + $0x39] sm:$0xff]
      %v1521 = vld [vmem:[%s365 + $0x49] sm:$0xff]
      %v1522 = vld [vmem:[%s365 + $0x51] sm:$0xff]
      %v1523 = vld [vmem:[%s365 + $0x61] sm:$0xff]
      %v1524 = vld [vmem:[%s365 + $0x69] sm:$0xff]
      %v1525 = vld [vmem:[%s365 + $0x79] sm:$0xff]
      %v1526 = vld [vmem:[%s365 + $0x81] sm:$0xff]
      %v1527 = vld [vmem:[%s365 + $0x91] sm:$0xff]
      %v1528 = vld [vmem:[%s365 + $0x99] sm:$0xff]
      %v1529 = vld [vmem:[%s365 + $0xa9] sm:$0xff]
      %v1530 = vld [vmem:[%s365 + $0xb1] sm:$0xff]
      %v1531 = vld [vmem:[%s365 + $0xc1] sm:$0xff]
      %v1532 = vld [vmem:[%s365 + $0xc9] sm:$0xff]
      %v1533 = vld [vmem:[%s365 + $0xd9] sm:$0xff]
      %v1534 = vld [vmem:[%s365 + $0xe1] sm:$0xff]
      %v1535 = vld [vmem:[%s365 + $0xf1] sm:$0xff]
      %v1536 = vld [vmem:[%s365 + $0xf9] sm:$0xff]
      %v1537 = vld [vmem:[%s365 + $0x109] sm:$0xff]
      %v1538 = vld [vmem:[%s365 + $0x111] sm:$0xff]
      %v1539 = vld [vmem:[%s365 + $0x121] sm:$0xff]
      %v1540 = vld [vmem:[%s365 + $0x129] sm:$0xff]
      %v1541 = vld [vmem:[%s365 + $0x139] sm:$0xff]
      %v1542 = vld [vmem:[%s365 + $0x141] sm:$0xff]
      %v1543 = vld [vmem:[%s365 + $0x151] sm:$0xff]
      %v1544 = vld [vmem:[%s365 + $0x159] sm:$0xff]
      %v1545 = vld [vmem:[%s365 + $0x169] sm:$0xff]
      %v1546 = vld [vmem:[%s365 + $0x171] sm:$0xff]
      %v1547 = vpack.c.bf16 %v1516, %v1515
      %v1548 = vpack.c.bf16 %v1518, %v1517
      %v1549 = vpack.c.bf16 %v1520, %v1519
      %v1550 = vpack.c.bf16 %v1522, %v1521
      %v1551 = vpack.c.bf16 %v1524, %v1523
      %v1552 = vpack.c.bf16 %v1526, %v1525
      %v1553 = vpack.c.bf16 %v1528, %v1527
      %v1554 = vpack.c.bf16 %v1530, %v1529
      %v1555 = vpack.c.bf16 %v1532, %v1531
      %v1556 = vpack.c.bf16 %v1534, %v1533
      %v1557 = vpack.c.bf16 %v1536, %v1535
      %v1558 = vpack.c.bf16 %v1538, %v1537
      %v1559 = vpack.c.bf16 %v1540, %v1539
      %v1560 = vpack.c.bf16 %v1542, %v1541
      %v1561 = vpack.c.bf16 %v1544, %v1543
      %v1562 = vpack.c.bf16 %v1546, %v1545
      %v1563 = vld [vmem:[%s1 + $0x8] sm:$0x3]
      %v1565 = vsel %vm227, %v1547, 0
      %v1568 = vsel %vm227, %v1548, 0
      %v1571 = vsel %vm227, %v1549, 0
      %v1574 = vsel %vm227, %v1550, 0
      %v1577 = vsel %vm227, %v1551, 0
      %v1580 = vsel %vm227, %v1552, 0
      %v1583 = vsel %vm227, %v1553, 0
      %v1586 = vsel %vm227, %v1554, 0
      %v1589 = vsel %vm227, %v1555, 0
      %v1592 = vsel %vm227, %v1556, 0
      %v1595 = vsel %vm227, %v1557, 0
      %v1598 = vsel %vm227, %v1558, 0
      %v1601 = vsel %vm227, %v1559, 0
      %v1604 = vsel %vm227, %v1560, 0
      %v1607 = vsel %vm227, %v1561, 0
      %v1610 = vsel %vm227, %v1562, 0
      %v1613 = vsel %vm548, %v1563, 0
      %1615 = vmatprep.subr.bf16.mxu0 0
      %1616 = vmatpush1.bf16.msra.mxu0 %v1613
      %1617 = vmatprep.subr.bf16.mxu0 0
      %1618 = vmatpush1.bf16.msra.mxu0 0
      %1619 = vmatprep.subr.bf16.mxu0 0
      %1620 = vmatpush1.bf16.msra.mxu0 0
      %1621 = vmatprep.subr.bf16.mxu0 0
      %1622 = vmatpush1.bf16.msra.mxu0 0
      %1623 = vmatprep.subr.bf16.mxu0 0
      %1624 = vmatpush1.bf16.msra.mxu0 0
      %1625 = vmatprep.subr.bf16.mxu0 0
      %1626 = vmatpush1.bf16.msra.mxu0 0
      %1627 = vmatprep.subr.bf16.mxu0 0
      %1628 = vmatpush1.bf16.msra.mxu0 0
      %1629 = vmatprep.subr.bf16.mxu0 0
      %1630 = vmatpush1.bf16.msra.mxu0 0
      %1631 = vmatprep.subr.bf16.mxu0 0
      %1632 = vmatpush1.bf16.msra.mxu0 0
      %1633 = vmatprep.subr.bf16.mxu0 0
      %1634 = vmatpush1.bf16.msra.mxu0 0
      %1635 = vmatprep.subr.bf16.mxu0 0
      %1636 = vmatpush1.bf16.msra.mxu0 0
      %1637 = vmatprep.subr.bf16.mxu0 0
      %1638 = vmatpush1.bf16.msra.mxu0 0
      %1639 = vmatprep.subr.bf16.mxu0 0
      %1640 = vmatpush1.bf16.msra.mxu0 0
      %1641 = vmatprep.subr.bf16.mxu0 0
      %1642 = vmatpush1.bf16.msra.mxu0 0
      %1643 = vmatprep.subr.bf16.mxu0 0
      %1644 = vmatpush1.bf16.msra.mxu0 0
      %1645 = vmatprep.subr.bf16.mxu0 0
      %1646 = vmatpush1.bf16.msra.mxu0 0
      %1647 = vmatprep.mubr.bf16.mxu0 0
      %1648 = vmatmul.mubr.bf16.gmra.mrb[0].mxu0 %v1565
      %v1649 = vpop.f32.mrb[0].mxu0
      %v1650 = vadd.f32 0.0, %v1649
      %v1651 = vpop.f32.mrb[0].mxu0
      %v1652 = vpop.f32.mrb[0].mxu0
      %v1653 = vadd.f32 0.0, %v1652
      %v1654 = vpop.f32.mrb[0].mxu0
      %1655 = vmatprep.mubr.bf16.mxu0 0
      %1656 = vmatmul.mubr.bf16.gmra.mrb[0].mxu0 %v1568
      %v1657 = vpop.f32.mrb[0].mxu0
      %v1658 = vadd.f32 0.0, %v1657
      %v1659 = vpop.f32.mrb[0].mxu0
      %v1660 = vpop.f32.mrb[0].mxu0
      %v1661 = vadd.f32 0.0, %v1660
      %v1662 = vpop.f32.mrb[0].mxu0
      %1663 = vmatprep.mubr.bf16.mxu0 0
      %1664 = vmatmul.mubr.bf16.gmra.mrb[0].mxu0 %v1571
      %v1665 = vpop.f32.mrb[0].mxu0
      %v1666 = vadd.f32 0.0, %v1665
      %v1667 = vpop.f32.mrb[0].mxu0
      %v1668 = vpop.f32.mrb[0].mxu0
      %v1669 = vadd.f32 0.0, %v1668
      %v1670 = vpop.f32.mrb[0].mxu0
      %1671 = vmatprep.mubr.bf16.mxu0 0
      %1672 = vmatmul.mubr.bf16.gmra.mrb[0].mxu0 %v1574
      %v1673 = vpop.f32.mrb[0].mxu0
      %v1674 = vadd.f32 0.0, %v1673
      %v1675 = vpop.f32.mrb[0].mxu0
      %v1676 = vpop.f32.mrb[0].mxu0
      %v1677 = vadd.f32 0.0, %v1676
      %v1678 = vpop.f32.mrb[0].mxu0
      %1679 = vmatprep.mubr.bf16.mxu0 0
      %1680 = vmatmul.mubr.bf16.gmra.mrb[0].mxu0 %v1577
      %v1681 = vpop.f32.mrb[0].mxu0
      %v1682 = vadd.f32 0.0, %v1681
      %v1683 = vpop.f32.mrb[0].mxu0
      %v1684 = vpop.f32.mrb[0].mxu0
      %v1685 = vadd.f32 0.0, %v1684
      %v1686 = vpop.f32.mrb[0].mxu0
      %1687 = vmatprep.mubr.bf16.mxu0 0
      %1688 = vmatmul.mubr.bf16.gmra.mrb[0].mxu0 %v1580
      %v1689 = vpop.f32.mrb[0].mxu0
      %v1690 = vadd.f32 0.0, %v1689
      %v1691 = vpop.f32.mrb[0].mxu0
      %v1692 = vpop.f32.mrb[0].mxu0
      %v1693 = vadd.f32 0.0, %v1692
      %v1694 = vpop.f32.mrb[0].mxu0
      %1695 = vmatprep.mubr.bf16.mxu0 0
      %1696 = vmatmul.mubr.bf16.gmra.mrb[0].mxu0 %v1583
      %v1697 = vpop.f32.mrb[0].mxu0
      %v1698 = vadd.f32 0.0, %v1697
      %v1699 = vpop.f32.mrb[0].mxu0
      %v1700 = vpop.f32.mrb[0].mxu0
      %v1701 = vadd.f32 0.0, %v1700
      %v1702 = vpop.f32.mrb[0].mxu0
      %1703 = vmatprep.mubr.bf16.mxu0 0
      %1704 = vmatmul.mubr.bf16.gmra.mrb[0].mxu0 %v1586
      %v1705 = vpop.f32.mrb[0].mxu0
      %v1706 = vadd.f32 0.0, %v1705
      %v1707 = vpop.f32.mrb[0].mxu0
      %v1708 = vpop.f32.mrb[0].mxu0
      %v1709 = vadd.f32 0.0, %v1708
      %v1710 = vpop.f32.mrb[0].mxu0
      %1711 = vmatprep.mubr.bf16.mxu0 0
      %1712 = vmatmul.mubr.bf16.gmra.mrb[0].mxu0 %v1589
      %v1713 = vpop.f32.mrb[0].mxu0
      %v1714 = vadd.f32 0.0, %v1713
      %v1715 = vpop.f32.mrb[0].mxu0
      %v1716 = vpop.f32.mrb[0].mxu0
      %v1717 = vadd.f32 0.0, %v1716
      %v1718 = vpop.f32.mrb[0].mxu0
      %1719 = vmatprep.mubr.bf16.mxu0 0
      %1720 = vmatmul.mubr.bf16.gmra.mrb[0].mxu0 %v1592
      %v1721 = vpop.f32.mrb[0].mxu0
      %v1722 = vadd.f32 0.0, %v1721
      %v1723 = vpop.f32.mrb[0].mxu0
      %v1724 = vpop.f32.mrb[0].mxu0
      %v1725 = vadd.f32 0.0, %v1724
      %v1726 = vpop.f32.mrb[0].mxu0
      %1727 = vmatprep.mubr.bf16.mxu0 0
      %1728 = vmatmul.mubr.bf16.gmra.mrb[0].mxu0 %v1595
      %v1729 = vpop.f32.mrb[0].mxu0
      %v1730 = vadd.f32 0.0, %v1729
      %v1731 = vpop.f32.mrb[0].mxu0
      %v1732 = vpop.f32.mrb[0].mxu0
      %v1733 = vadd.f32 0.0, %v1732
      %v1734 = vpop.f32.mrb[0].mxu0
      %1735 = vmatprep.mubr.bf16.mxu0 0
      %1736 = vmatmul.mubr.bf16.gmra.mrb[0].mxu0 %v1598
      %v1737 = vpop.f32.mrb[0].mxu0
      %v1738 = vadd.f32 0.0, %v1737
      %v1739 = vpop.f32.mrb[0].mxu0
      %v1740 = vpop.f32.mrb[0].mxu0
      %v1741 = vadd.f32 0.0, %v1740
      %v1742 = vpop.f32.mrb[0].mxu0
      %1743 = vmatprep.mubr.bf16.mxu0 0
      %1744 = vmatmul.mubr.bf16.gmra.mrb[0].mxu0 %v1601
      %v1745 = vpop.f32.mrb[0].mxu0
      %v1746 = vadd.f32 0.0, %v1745
      %v1747 = vpop.f32.mrb[0].mxu0
      %v1748 = vpop.f32.mrb[0].mxu0
      %v1749 = vadd.f32 0.0, %v1748
      %v1750 = vpop.f32.mrb[0].mxu0
      %1751 = vmatprep.mubr.bf16.mxu0 0
      %1752 = vmatmul.mubr.bf16.gmra.mrb[0].mxu0 %v1604
      %v1753 = vpop.f32.mrb[0].mxu0
      %v1754 = vadd.f32 0.0, %v1753
      %v1755 = vpop.f32.mrb[0].mxu0
      %v1756 = vpop.f32.mrb[0].mxu0
      %v1757 = vadd.f32 0.0, %v1756
      %v1758 = vpop.f32.mrb[0].mxu0
      %1759 = vmatprep.mubr.bf16.mxu0 0
      %1760 = vmatmul.mubr.bf16.gmra.mrb[0].mxu0 %v1607
      %v1761 = vpop.f32.mrb[0].mxu0
      %v1762 = vadd.f32 0.0, %v1761
      %v1763 = vpop.f32.mrb[0].mxu0
      %v1764 = vpop.f32.mrb[0].mxu0
      %v1765 = vadd.f32 0.0, %v1764
      %v1766 = vpop.f32.mrb[0].mxu0
      %1767 = vmatprep.mubr.bf16.mxu0 0
      %1768 = vmatmul.mubr.bf16.gmra.mrb[0].mxu0 %v1610
      %v1769 = vpop.f32.mrb[0].mxu0
      %v1770 = vadd.f32 0.0, %v1769
      %v1771 = vpop.f32.mrb[0].mxu0
      %v1772 = vpop.f32.mrb[0].mxu0
      %v1773 = vadd.f32 0.0, %v1772
      %v1774 = vpop.f32.mrb[0].mxu0
      %1775 = vdwg.mxu0
      %v1776 = vadd.f32 %v1483, %v1650
      %v1777 = vadd.f32 %v1484, %v1653
      %v1778 = vadd.f32 %v1485, %v1658
      %v1779 = vadd.f32 %v1486, %v1661
      %v1780 = vadd.f32 %v1487, %v1666
      %v1781 = vadd.f32 %v1488, %v1669
      %v1782 = vadd.f32 %v1489, %v1674
      %v1783 = vadd.f32 %v1490, %v1677
      %v1784 = vadd.f32 %v1491, %v1682
      %v1785 = vadd.f32 %v1492, %v1685
      %v1786 = vadd.f32 %v1493, %v1690
      %v1787 = vadd.f32 %v1494, %v1693
      %v1788 = vadd.f32 %v1495, %v1698
      %v1789 = vadd.f32 %v1496, %v1701
      %v1790 = vadd.f32 %v1497, %v1706
      %v1791 = vadd.f32 %v1498, %v1709
      %v1792 = vadd.f32 %v1499, %v1714
      %v1793 = vadd.f32 %v1500, %v1717
      %v1794 = vadd.f32 %v1501, %v1722
      %v1795 = vadd.f32 %v1502, %v1725
      %v1796 = vadd.f32 %v1503, %v1730
      %v1797 = vadd.f32 %v1504, %v1733
      %v1798 = vadd.f32 %v1505, %v1738
      %v1799 = vadd.f32 %v1506, %v1741
      %v1800 = vadd.f32 %v1507, %v1746
      %v1801 = vadd.f32 %v1508, %v1749
      %v1802 = vadd.f32 %v1509, %v1754
      %v1803 = vadd.f32 %v1510, %v1757
      %v1804 = vadd.f32 %v1511, %v1762
      %v1805 = vadd.f32 %v1512, %v1765
      %v1806 = vadd.f32 %v1513, %v1770
      %v1807 = vadd.f32 %v1514, %v1773
      %v1808 = vld [vmem:[%s365 + $0x2] sm:$0xff]
      %v1809 = vld [vmem:[%s365 + $0xa] sm:$0xff]
      %v1810 = vld [vmem:[%s365 + $0x1a] sm:$0xff]
      %v1811 = vld [vmem:[%s365 + $0x22] sm:$0xff]
      %v1812 = vld [vmem:[%s365 + $0x32] sm:$0xff]
      %v1813 = vld [vmem:[%s365 + $0x3a] sm:$0xff]
      %v1814 = vld [vmem:[%s365 + $0x4a] sm:$0xff]
      %v1815 = vld [vmem:[%s365 + $0x52] sm:$0xff]
      %v1816 = vld [vmem:[%s365 + $0x62] sm:$0xff]
      %v1817 = vld [vmem:[%s365 + $0x6a] sm:$0xff]
      %v1818 = vld [vmem:[%s365 + $0x7a] sm:$0xff]
      %v1819 = vld [vmem:[%s365 + $0x82] sm:$0xff]
      %v1820 = vld [vmem:[%s365 + $0x92] sm:$0xff]
      %v1821 = vld [vmem:[%s365 + $0x9a] sm:$0xff]
      %v1822 = vld [vmem:[%s365 + $0xaa] sm:$0xff]
      %v1823 = vld [vmem:[%s365 + $0xb2] sm:$0xff]
      %v1824 = vld [vmem:[%s365 + $0xc2] sm:$0xff]
      %v1825 = vld [vmem:[%s365 + $0xca] sm:$0xff]
      %v1826 = vld [vmem:[%s365 + $0xda] sm:$0xff]
      %v1827 = vld [vmem:[%s365 + $0xe2] sm:$0xff]
      %v1828 = vld [vmem:[%s365 + $0xf2] sm:$0xff]
      %v1829 = vld [vmem:[%s365 + $0xfa] sm:$0xff]
      %v1830 = vld [vmem:[%s365 + $0x10a] sm:$0xff]
      %v1831 = vld [vmem:[%s365 + $0x112] sm:$0xff]
      %v1832 = vld [vmem:[%s365 + $0x122] sm:$0xff]
      %v1833 = vld [vmem:[%s365 + $0x12a] sm:$0xff]
      %v1834 = vld [vmem:[%s365 + $0x13a] sm:$0xff]
      %v1835 = vld [vmem:[%s365 + $0x142] sm:$0xff]
      %v1836 = vld [vmem:[%s365 + $0x152] sm:$0xff]
      %v1837 = vld [vmem:[%s365 + $0x15a] sm:$0xff]
      %v1838 = vld [vmem:[%s365 + $0x16a] sm:$0xff]
      %v1839 = vld [vmem:[%s365 + $0x172] sm:$0xff]
      %v1840 = vpack.c.bf16 %v1809, %v1808
      %v1841 = vpack.c.bf16 %v1811, %v1810
      %v1842 = vpack.c.bf16 %v1813, %v1812
      %v1843 = vpack.c.bf16 %v1815, %v1814
      %v1844 = vpack.c.bf16 %v1817, %v1816
      %v1845 = vpack.c.bf16 %v1819, %v1818
      %v1846 = vpack.c.bf16 %v1821, %v1820
      %v1847 = vpack.c.bf16 %v1823, %v1822
      %v1848 = vpack.c.bf16 %v1825, %v1824
      %v1849 = vpack.c.bf16 %v1827, %v1826
      %v1850 = vpack.c.bf16 %v1829, %v1828
      %v1851 = vpack.c.bf16 %v1831, %v1830
      %v1852 = vpack.c.bf16 %v1833, %v1832
      %v1853 = vpack.c.bf16 %v1835, %v1834
      %v1854 = vpack.c.bf16 %v1837, %v1836
      %v1855 = vpack.c.bf16 %v1839, %v1838
      %v1856 = vld [vmem:[%s1 + $0x8] sm:$0xc]
      %v1858 = vunpack.c.l.b16 %v1856
      %v1859 = vpack.c.b16 %v1858, %v1858
      %v1860 = vrot.slane %v1859, 2
      %v1862 = vsel %vm227, %v1840, 0
      %v1865 = vsel %vm227, %v1841, 0
      %v1868 = vsel %vm227, %v1842, 0
      %v1871 = vsel %vm227, %v1843, 0
      %v1874 = vsel %vm227, %v1844, 0
      %v1877 = vsel %vm227, %v1845, 0
      %v1880 = vsel %vm227, %v1846, 0
      %v1883 = vsel %vm227, %v1847, 0
      %v1886 = vsel %vm227, %v1848, 0
      %v1889 = vsel %vm227, %v1849, 0
      %v1892 = vsel %vm227, %v1850, 0
      %v1895 = vsel %vm227, %v1851, 0
      %v1898 = vsel %vm227, %v1852, 0
      %v1901 = vsel %vm227, %v1853, 0
      %v1904 = vsel %vm227, %v1854, 0
      %v1907 = vsel %vm227, %v1855, 0
      %v1910 = vsel %vm548, %v1860, 0
      %1912 = vmatprep.subr.bf16.mxu0 0
      %1913 = vmatpush1.bf16.msra.mxu0 %v1910
      %1914 = vmatprep.subr.bf16.mxu0 0
      %1915 = vmatpush1.bf16.msra.mxu0 0
      %1916 = vmatprep.subr.bf16.mxu0 0
      %1917 = vmatpush1.bf16.msra.mxu0 0
      %1918 = vmatprep.subr.bf16.mxu0 0
      %1919 = vmatpush1.bf16.msra.mxu0 0
      %1920 = vmatprep.subr.bf16.mxu0 0
      %1921 = vmatpush1.bf16.msra.mxu0 0
      %1922 = vmatprep.subr.bf16.mxu0 0
      %1923 = vmatpush1.bf16.msra.mxu0 0
      %1924 = vmatprep.subr.bf16.mxu0 0
      %1925 = vmatpush1.bf16.msra.mxu0 0
      %1926 = vmatprep.subr.bf16.mxu0 0
      %1927 = vmatpush1.bf16.msra.mxu0 0
      %1928 = vmatprep.subr.bf16.mxu0 0
      %1929 = vmatpush1.bf16.msra.mxu0 0
      %1930 = vmatprep.subr.bf16.mxu0 0
      %1931 = vmatpush1.bf16.msra.mxu0 0
      %1932 = vmatprep.subr.bf16.mxu0 0
      %1933 = vmatpush1.bf16.msra.mxu0 0
      %1934 = vmatprep.subr.bf16.mxu0 0
      %1935 = vmatpush1.bf16.msra.mxu0 0
      %1936 = vmatprep.subr.bf16.mxu0 0
      %1937 = vmatpush1.bf16.msra.mxu0 0
      %1938 = vmatprep.subr.bf16.mxu0 0
      %1939 = vmatpush1.bf16.msra.mxu0 0
      %1940 = vmatprep.subr.bf16.mxu0 0
      %1941 = vmatpush1.bf16.msra.mxu0 0
      %1942 = vmatprep.subr.bf16.mxu0 0
      %1943 = vmatpush1.bf16.msra.mxu0 0
      %1944 = vmatprep.mubr.bf16.mxu0 0
      %1945 = vmatmul.mubr.bf16.gmra.mrb[0].mxu0 %v1862
      %v1946 = vpop.f32.mrb[0].mxu0
      %v1947 = vadd.f32 0.0, %v1946
      %v1948 = vpop.f32.mrb[0].mxu0
      %v1949 = vpop.f32.mrb[0].mxu0
      %v1950 = vadd.f32 0.0, %v1949
      %v1951 = vpop.f32.mrb[0].mxu0
      %1952 = vmatprep.mubr.bf16.mxu0 0
      %1953 = vmatmul.mubr.bf16.gmra.mrb[0].mxu0 %v1865
      %v1954 = vpop.f32.mrb[0].mxu0
      %v1955 = vadd.f32 0.0, %v1954
      %v1956 = vpop.f32.mrb[0].mxu0
      %v1957 = vpop.f32.mrb[0].mxu0
      %v1958 = vadd.f32 0.0, %v1957
      %v1959 = vpop.f32.mrb[0].mxu0
      %1960 = vmatprep.mubr.bf16.mxu0 0
      %1961 = vmatmul.mubr.bf16.gmra.mrb[0].mxu0 %v1868
      %v1962 = vpop.f32.mrb[0].mxu0
      %v1963 = vadd.f32 0.0, %v1962
      %v1964 = vpop.f32.mrb[0].mxu0
      %v1965 = vpop.f32.mrb[0].mxu0
      %v1966 = vadd.f32 0.0, %v1965
      %v1967 = vpop.f32.mrb[0].mxu0
      %1968 = vmatprep.mubr.bf16.mxu0 0
      %1969 = vmatmul.mubr.bf16.gmra.mrb[0].mxu0 %v1871
      %v1970 = vpop.f32.mrb[0].mxu0
      %v1971 = vadd.f32 0.0, %v1970
      %v1972 = vpop.f32.mrb[0].mxu0
      %v1973 = vpop.f32.mrb[0].mxu0
      %v1974 = vadd.f32 0.0, %v1973
      %v1975 = vpop.f32.mrb[0].mxu0
      %1976 = vmatprep.mubr.bf16.mxu0 0
      %1977 = vmatmul.mubr.bf16.gmra.mrb[0].mxu0 %v1874
      %v1978 = vpop.f32.mrb[0].mxu0
      %v1979 = vadd.f32 0.0, %v1978
      %v1980 = vpop.f32.mrb[0].mxu0
      %v1981 = vpop.f32.mrb[0].mxu0
      %v1982 = vadd.f32 0.0, %v1981
      %v1983 = vpop.f32.mrb[0].mxu0
      %1984 = vmatprep.mubr.bf16.mxu0 0
      %1985 = vmatmul.mubr.bf16.gmra.mrb[0].mxu0 %v1877
      %v1986 = vpop.f32.mrb[0].mxu0
      %v1987 = vadd.f32 0.0, %v1986
      %v1988 = vpop.f32.mrb[0].mxu0
      %v1989 = vpop.f32.mrb[0].mxu0
      %v1990 = vadd.f32 0.0, %v1989
      %v1991 = vpop.f32.mrb[0].mxu0
      %1992 = vmatprep.mubr.bf16.mxu0 0
      %1993 = vmatmul.mubr.bf16.gmra.mrb[0].mxu0 %v1880
      %v1994 = vpop.f32.mrb[0].mxu0
      %v1995 = vadd.f32 0.0, %v1994
      %v1996 = vpop.f32.mrb[0].mxu0
      %v1997 = vpop.f32.mrb[0].mxu0
      %v1998 = vadd.f32 0.0, %v1997
      %v1999 = vpop.f32.mrb[0].mxu0
      %2000 = vmatprep.mubr.bf16.mxu0 0
      %2001 = vmatmul.mubr.bf16.gmra.mrb[0].mxu0 %v1883
      %v2002 = vpop.f32.mrb[0].mxu0
      %v2003 = vadd.f32 0.0, %v2002
      %v2004 = vpop.f32.mrb[0].mxu0
      %v2005 = vpop.f32.mrb[0].mxu0
      %v2006 = vadd.f32 0.0, %v2005
      %v2007 = vpop.f32.mrb[0].mxu0
      %2008 = vmatprep.mubr.bf16.mxu0 0
      %2009 = vmatmul.mubr.bf16.gmra.mrb[0].mxu0 %v1886
      %v2010 = vpop.f32.mrb[0].mxu0
      %v2011 = vadd.f32 0.0, %v2010
      %v2012 = vpop.f32.mrb[0].mxu0
      %v2013 = vpop.f32.mrb[0].mxu0
      %v2014 = vadd.f32 0.0, %v2013
      %v2015 = vpop.f32.mrb[0].mxu0
      %2016 = vmatprep.mubr.bf16.mxu0 0
      %2017 = vmatmul.mubr.bf16.gmra.mrb[0].mxu0 %v1889
      %v2018 = vpop.f32.mrb[0].mxu0
      %v2019 = vadd.f32 0.0, %v2018
      %v2020 = vpop.f32.mrb[0].mxu0
      %v2021 = vpop.f32.mrb[0].mxu0
      %v2022 = vadd.f32 0.0, %v2021
      %v2023 = vpop.f32.mrb[0].mxu0
      %2024 = vmatprep.mubr.bf16.mxu0 0
      %2025 = vmatmul.mubr.bf16.gmra.mrb[0].mxu0 %v1892
      %v2026 = vpop.f32.mrb[0].mxu0
      %v2027 = vadd.f32 0.0, %v2026
      %v2028 = vpop.f32.mrb[0].mxu0
      %v2029 = vpop.f32.mrb[0].mxu0
      %v2030 = vadd.f32 0.0, %v2029
      %v2031 = vpop.f32.mrb[0].mxu0
      %2032 = vmatprep.mubr.bf16.mxu0 0
      %2033 = vmatmul.mubr.bf16.gmra.mrb[0].mxu0 %v1895
      %v2034 = vpop.f32.mrb[0].mxu0
      %v2035 = vadd.f32 0.0, %v2034
      %v2036 = vpop.f32.mrb[0].mxu0
      %v2037 = vpop.f32.mrb[0].mxu0
      %v2038 = vadd.f32 0.0, %v2037
      %v2039 = vpop.f32.mrb[0].mxu0
      %2040 = vmatprep.mubr.bf16.mxu0 0
      %2041 = vmatmul.mubr.bf16.gmra.mrb[0].mxu0 %v1898
      %v2042 = vpop.f32.mrb[0].mxu0
      %v2043 = vadd.f32 0.0, %v2042
      %v2044 = vpop.f32.mrb[0].mxu0
      %v2045 = vpop.f32.mrb[0].mxu0
      %v2046 = vadd.f32 0.0, %v2045
      %v2047 = vpop.f32.mrb[0].mxu0
      %2048 = vmatprep.mubr.bf16.mxu0 0
      %2049 = vmatmul.mubr.bf16.gmra.mrb[0].mxu0 %v1901
      %v2050 = vpop.f32.mrb[0].mxu0
      %v2051 = vadd.f32 0.0, %v2050
      %v2052 = vpop.f32.mrb[0].mxu0
      %v2053 = vpop.f32.mrb[0].mxu0
      %v2054 = vadd.f32 0.0, %v2053
      %v2055 = vpop.f32.mrb[0].mxu0
      %2056 = vmatprep.mubr.bf16.mxu0 0
      %2057 = vmatmul.mubr.bf16.gmra.mrb[0].mxu0 %v1904
      %v2058 = vpop.f32.mrb[0].mxu0
      %v2059 = vadd.f32 0.0, %v2058
      %v2060 = vpop.f32.mrb[0].mxu0
      %v2061 = vpop.f32.mrb[0].mxu0
      %v2062 = vadd.f32 0.0, %v2061
      %v2063 = vpop.f32.mrb[0].mxu0
      %2064 = vmatprep.mubr.bf16.mxu0 0
      %2065 = vmatmul.mubr.bf16.gmra.mrb[0].mxu0 %v1907
      %v2066 = vpop.f32.mrb[0].mxu0
      %v2067 = vadd.f32 0.0, %v2066
      %v2068 = vpop.f32.mrb[0].mxu0
      %v2069 = vpop.f32.mrb[0].mxu0
      %v2070 = vadd.f32 0.0, %v2069
      %v2071 = vpop.f32.mrb[0].mxu0
      %2072 = vdwg.mxu0
      %v2073 = vadd.f32 %v1776, %v1947
      %v2074 = vadd.f32 %v1777, %v1950
      %v2075 = vadd.f32 %v1778, %v1955
      %v2076 = vadd.f32 %v1779, %v1958
      %v2077 = vadd.f32 %v1780, %v1963
      %v2078 = vadd.f32 %v1781, %v1966
      %v2079 = vadd.f32 %v1782, %v1971
      %v2080 = vadd.f32 %v1783, %v1974
      %v2081 = vadd.f32 %v1784, %v1979
      %v2082 = vadd.f32 %v1785, %v1982
      %v2083 = vadd.f32 %v1786, %v1987
      %v2084 = vadd.f32 %v1787, %v1990
      %v2085 = vadd.f32 %v1788, %v1995
      %v2086 = vadd.f32 %v1789, %v1998
      %v2087 = vadd.f32 %v1790, %v2003
      %v2088 = vadd.f32 %v1791, %v2006
      %v2089 = vadd.f32 %v1792, %v2011
      %v2090 = vadd.f32 %v1793, %v2014
      %v2091 = vadd.f32 %v1794, %v2019
      %v2092 = vadd.f32 %v1795, %v2022
      %v2093 = vadd.f32 %v1796, %v2027
      %v2094 = vadd.f32 %v1797, %v2030
      %v2095 = vadd.f32 %v1798, %v2035
      %v2096 = vadd.f32 %v1799, %v2038
      %v2097 = vadd.f32 %v1800, %v2043
      %v2098 = vadd.f32 %v1801, %v2046
      %v2099 = vadd.f32 %v1802, %v2051
      %v2100 = vadd.f32 %v1803, %v2054
      %v2101 = vadd.f32 %v1804, %v2059
      %v2102 = vadd.f32 %v1805, %v2062
      %v2103 = vadd.f32 %v1806, %v2067
      %v2104 = vadd.f32 %v1807, %v2070
      %s2105 = scalar_lea.vmem [#allocation2], 48
      %v2106 = vld [vmem:[%s2105] sm:$0xff]
      %v2107 = vld [vmem:[%s2105 + $0x8] sm:$0xff]
      %v2108 = vld [vmem:[%s2105 + $0x18] sm:$0xff]
      %v2109 = vld [vmem:[%s2105 + $0x20] sm:$0xff]
      %v2110 = vld [vmem:[%s2105 + $0x30] sm:$0xff]
      %v2111 = vld [vmem:[%s2105 + $0x38] sm:$0xff]
      %v2112 = vld [vmem:[%s2105 + $0x48] sm:$0xff]
      %v2113 = vld [vmem:[%s2105 + $0x50] sm:$0xff]
      %v2114 = vld [vmem:[%s2105 + $0x60] sm:$0xff]
      %v2115 = vld [vmem:[%s2105 + $0x68] sm:$0xff]
      %v2116 = vld [vmem:[%s2105 + $0x78] sm:$0xff]
      %v2117 = vld [vmem:[%s2105 + $0x80] sm:$0xff]
      %v2118 = vld [vmem:[%s2105 + $0x90] sm:$0xff]
      %v2119 = vld [vmem:[%s2105 + $0x98] sm:$0xff]
      %v2120 = vld [vmem:[%s2105 + $0xa8] sm:$0xff]
      %v2121 = vld [vmem:[%s2105 + $0xb0] sm:$0xff]
      %v2122 = vld [vmem:[%s2105 + $0xc0] sm:$0xff]
      %v2123 = vld [vmem:[%s2105 + $0xc8] sm:$0xff]
      %v2124 = vld [vmem:[%s2105 + $0xd8] sm:$0xff]
      %v2125 = vld [vmem:[%s2105 + $0xe0] sm:$0xff]
      %v2126 = vld [vmem:[%s2105 + $0xf0] sm:$0xff]
      %v2127 = vld [vmem:[%s2105 + $0xf8] sm:$0xff]
      %v2128 = vld [vmem:[%s2105 + $0x108] sm:$0xff]
      %v2129 = vld [vmem:[%s2105 + $0x110] sm:$0xff]
      %v2130 = vld [vmem:[%s2105 + $0x120] sm:$0xff]
      %v2131 = vld [vmem:[%s2105 + $0x128] sm:$0xff]
      %v2132 = vld [vmem:[%s2105 + $0x138] sm:$0xff]
      %v2133 = vld [vmem:[%s2105 + $0x140] sm:$0xff]
      %v2134 = vld [vmem:[%s2105 + $0x150] sm:$0xff]
      %v2135 = vld [vmem:[%s2105 + $0x158] sm:$0xff]
      %v2136 = vld [vmem:[%s2105 + $0x168] sm:$0xff]
      %v2137 = vld [vmem:[%s2105 + $0x170] sm:$0xff]
      %v2138 = vpack.c.bf16 %v2107, %v2106
      %v2139 = vpack.c.bf16 %v2109, %v2108
      %v2140 = vpack.c.bf16 %v2111, %v2110
      %v2141 = vpack.c.bf16 %v2113, %v2112
      %v2142 = vpack.c.bf16 %v2115, %v2114
      %v2143 = vpack.c.bf16 %v2117, %v2116
      %v2144 = vpack.c.bf16 %v2119, %v2118
      %v2145 = vpack.c.bf16 %v2121, %v2120
      %v2146 = vpack.c.bf16 %v2123, %v2122
      %v2147 = vpack.c.bf16 %v2125, %v2124
      %v2148 = vpack.c.bf16 %v2127, %v2126
      %v2149 = vpack.c.bf16 %v2129, %v2128
      %v2150 = vpack.c.bf16 %v2131, %v2130
      %v2151 = vpack.c.bf16 %v2133, %v2132
      %v2152 = vpack.c.bf16 %v2135, %v2134
      %v2153 = vpack.c.bf16 %v2137, %v2136
      %v2154 = vld [vmem:[%s1 + $0xc] sm:$0x3]
      %v2156 = vsel %vm227, %v2138, 0
      %v2159 = vsel %vm227, %v2139, 0
      %v2162 = vsel %vm227, %v2140, 0
      %v2165 = vsel %vm227, %v2141, 0
      %v2168 = vsel %vm227, %v2142, 0
      %v2171 = vsel %vm227, %v2143, 0
      %v2174 = vsel %vm227, %v2144, 0
      %v2177 = vsel %vm227, %v2145, 0
      %v2180 = vsel %vm227, %v2146, 0
      %v2183 = vsel %vm227, %v2147, 0
      %v2186 = vsel %vm227, %v2148, 0
      %v2189 = vsel %vm227, %v2149, 0
      %v2192 = vsel %vm227, %v2150, 0
      %v2195 = vsel %vm227, %v2151, 0
      %v2198 = vsel %vm227, %v2152, 0
      %v2201 = vsel %vm227, %v2153, 0
      %v2204 = vsel %vm548, %v2154, 0
      %2206 = vmatprep.subr.bf16.mxu0 0
      %2207 = vmatpush1.bf16.msra.mxu0 %v2204
      %2208 = vmatprep.subr.bf16.mxu0 0
      %2209 = vmatpush1.bf16.msra.mxu0 0
      %2210 = vmatprep.subr.bf16.mxu0 0
      %2211 = vmatpush1.bf16.msra.mxu0 0
      %2212 = vmatprep.subr.bf16.mxu0 0
      %2213 = vmatpush1.bf16.msra.mxu0 0
      %2214 = vmatprep.subr.bf16.mxu0 0
      %2215 = vmatpush1.bf16.msra.mxu0 0
      %2216 = vmatprep.subr.bf16.mxu0 0
      %2217 = vmatpush1.bf16.msra.mxu0 0
      %2218 = vmatprep.subr.bf16.mxu0 0
      %2219 = vmatpush1.bf16.msra.mxu0 0
      %2220 = vmatprep.subr.bf16.mxu0 0
      %2221 = vmatpush1.bf16.msra.mxu0 0
      %2222 = vmatprep.subr.bf16.mxu0 0
      %2223 = vmatpush1.bf16.msra.mxu0 0
      %2224 = vmatprep.subr.bf16.mxu0 0
      %2225 = vmatpush1.bf16.msra.mxu0 0
      %2226 = vmatprep.subr.bf16.mxu0 0
      %2227 = vmatpush1.bf16.msra.mxu0 0
      %2228 = vmatprep.subr.bf16.mxu0 0
      %2229 = vmatpush1.bf16.msra.mxu0 0
      %2230 = vmatprep.subr.bf16.mxu0 0
      %2231 = vmatpush1.bf16.msra.mxu0 0
      %2232 = vmatprep.subr.bf16.mxu0 0
      %2233 = vmatpush1.bf16.msra.mxu0 0
      %2234 = vmatprep.subr.bf16.mxu0 0
      %2235 = vmatpush1.bf16.msra.mxu0 0
      %2236 = vmatprep.subr.bf16.mxu0 0
      %2237 = vmatpush1.bf16.msra.mxu0 0
      %2238 = vmatprep.mubr.bf16.mxu0 0
      %2239 = vmatmul.mubr.bf16.gmra.mrb[0].mxu0 %v2156
      %v2240 = vpop.f32.mrb[0].mxu0
      %v2241 = vadd.f32 0.0, %v2240
      %v2242 = vpop.f32.mrb[0].mxu0
      %v2243 = vpop.f32.mrb[0].mxu0
      %v2244 = vadd.f32 0.0, %v2243
      %v2245 = vpop.f32.mrb[0].mxu0
      %2246 = vmatprep.mubr.bf16.mxu0 0
      %2247 = vmatmul.mubr.bf16.gmra.mrb[0].mxu0 %v2159
      %v2248 = vpop.f32.mrb[0].mxu0
      %v2249 = vadd.f32 0.0, %v2248
      %v2250 = vpop.f32.mrb[0].mxu0
      %v2251 = vpop.f32.mrb[0].mxu0
      %v2252 = vadd.f32 0.0, %v2251
      %v2253 = vpop.f32.mrb[0].mxu0
      %2254 = vmatprep.mubr.bf16.mxu0 0
      %2255 = vmatmul.mubr.bf16.gmra.mrb[0].mxu0 %v2162
      %v2256 = vpop.f32.mrb[0].mxu0
      %v2257 = vadd.f32 0.0, %v2256
      %v2258 = vpop.f32.mrb[0].mxu0
      %v2259 = vpop.f32.mrb[0].mxu0
      %v2260 = vadd.f32 0.0, %v2259
      %v2261 = vpop.f32.mrb[0].mxu0
      %2262 = vmatprep.mubr.bf16.mxu0 0
      %2263 = vmatmul.mubr.bf16.gmra.mrb[0].mxu0 %v2165
      %v2264 = vpop.f32.mrb[0].mxu0
      %v2265 = vadd.f32 0.0, %v2264
      %v2266 = vpop.f32.mrb[0].mxu0
      %v2267 = vpop.f32.mrb[0].mxu0
      %v2268 = vadd.f32 0.0, %v2267
      %v2269 = vpop.f32.mrb[0].mxu0
      %2270 = vmatprep.mubr.bf16.mxu0 0
      %2271 = vmatmul.mubr.bf16.gmra.mrb[0].mxu0 %v2168
      %v2272 = vpop.f32.mrb[0].mxu0
      %v2273 = vadd.f32 0.0, %v2272
      %v2274 = vpop.f32.mrb[0].mxu0
      %v2275 = vpop.f32.mrb[0].mxu0
      %v2276 = vadd.f32 0.0, %v2275
      %v2277 = vpop.f32.mrb[0].mxu0
      %2278 = vmatprep.mubr.bf16.mxu0 0
      %2279 = vmatmul.mubr.bf16.gmra.mrb[0].mxu0 %v2171
      %v2280 = vpop.f32.mrb[0].mxu0
      %v2281 = vadd.f32 0.0, %v2280
      %v2282 = vpop.f32.mrb[0].mxu0
      %v2283 = vpop.f32.mrb[0].mxu0
      %v2284 = vadd.f32 0.0, %v2283
      %v2285 = vpop.f32.mrb[0].mxu0
      %2286 = vmatprep.mubr.bf16.mxu0 0
      %2287 = vmatmul.mubr.bf16.gmra.mrb[0].mxu0 %v2174
      %v2288 = vpop.f32.mrb[0].mxu0
      %v2289 = vadd.f32 0.0, %v2288
      %v2290 = vpop.f32.mrb[0].mxu0
      %v2291 = vpop.f32.mrb[0].mxu0
      %v2292 = vadd.f32 0.0, %v2291
      %v2293 = vpop.f32.mrb[0].mxu0
      %2294 = vmatprep.mubr.bf16.mxu0 0
      %2295 = vmatmul.mubr.bf16.gmra.mrb[0].mxu0 %v2177
      %v2296 = vpop.f32.mrb[0].mxu0
      %v2297 = vadd.f32 0.0, %v2296
      %v2298 = vpop.f32.mrb[0].mxu0
      %v2299 = vpop.f32.mrb[0].mxu0
      %v2300 = vadd.f32 0.0, %v2299
      %v2301 = vpop.f32.mrb[0].mxu0
      %2302 = vmatprep.mubr.bf16.mxu0 0
      %2303 = vmatmul.mubr.bf16.gmra.mrb[0].mxu0 %v2180
      %v2304 = vpop.f32.mrb[0].mxu0
      %v2305 = vadd.f32 0.0, %v2304
      %v2306 = vpop.f32.mrb[0].mxu0
      %v2307 = vpop.f32.mrb[0].mxu0
      %v2308 = vadd.f32 0.0, %v2307
      %v2309 = vpop.f32.mrb[0].mxu0
      %2310 = vmatprep.mubr.bf16.mxu0 0
      %2311 = vmatmul.mubr.bf16.gmra.mrb[0].mxu0 %v2183
      %v2312 = vpop.f32.mrb[0].mxu0
      %v2313 = vadd.f32 0.0, %v2312
      %v2314 = vpop.f32.mrb[0].mxu0
      %v2315 = vpop.f32.mrb[0].mxu0
      %v2316 = vadd.f32 0.0, %v2315
      %v2317 = vpop.f32.mrb[0].mxu0
      %2318 = vmatprep.mubr.bf16.mxu0 0
      %2319 = vmatmul.mubr.bf16.gmra.mrb[0].mxu0 %v2186
      %v2320 = vpop.f32.mrb[0].mxu0
      %v2321 = vadd.f32 0.0, %v2320
      %v2322 = vpop.f32.mrb[0].mxu0
      %v2323 = vpop.f32.mrb[0].mxu0
      %v2324 = vadd.f32 0.0, %v2323
      %v2325 = vpop.f32.mrb[0].mxu0
      %2326 = vmatprep.mubr.bf16.mxu0 0
      %2327 = vmatmul.mubr.bf16.gmra.mrb[0].mxu0 %v2189
      %v2328 = vpop.f32.mrb[0].mxu0
      %v2329 = vadd.f32 0.0, %v2328
      %v2330 = vpop.f32.mrb[0].mxu0
      %v2331 = vpop.f32.mrb[0].mxu0
      %v2332 = vadd.f32 0.0, %v2331
      %v2333 = vpop.f32.mrb[0].mxu0
      %2334 = vmatprep.mubr.bf16.mxu0 0
      %2335 = vmatmul.mubr.bf16.gmra.mrb[0].mxu0 %v2192
      %v2336 = vpop.f32.mrb[0].mxu0
      %v2337 = vadd.f32 0.0, %v2336
      %v2338 = vpop.f32.mrb[0].mxu0
      %v2339 = vpop.f32.mrb[0].mxu0
      %v2340 = vadd.f32 0.0, %v2339
      %v2341 = vpop.f32.mrb[0].mxu0
      %2342 = vmatprep.mubr.bf16.mxu0 0
      %2343 = vmatmul.mubr.bf16.gmra.mrb[0].mxu0 %v2195
      %v2344 = vpop.f32.mrb[0].mxu0
      %v2345 = vadd.f32 0.0, %v2344
      %v2346 = vpop.f32.mrb[0].mxu0
      %v2347 = vpop.f32.mrb[0].mxu0
      %v2348 = vadd.f32 0.0, %v2347
      %v2349 = vpop.f32.mrb[0].mxu0
      %2350 = vmatprep.mubr.bf16.mxu0 0
      %2351 = vmatmul.mubr.bf16.gmra.mrb[0].mxu0 %v2198
      %v2352 = vpop.f32.mrb[0].mxu0
      %v2353 = vadd.f32 0.0, %v2352
      %v2354 = vpop.f32.mrb[0].mxu0
      %v2355 = vpop.f32.mrb[0].mxu0
      %v2356 = vadd.f32 0.0, %v2355
      %v2357 = vpop.f32.mrb[0].mxu0
      %2358 = vmatprep.mubr.bf16.mxu0 0
      %2359 = vmatmul.mubr.bf16.gmra.mrb[0].mxu0 %v2201
      %v2360 = vpop.f32.mrb[0].mxu0
      %v2361 = vadd.f32 0.0, %v2360
      %v2362 = vpop.f32.mrb[0].mxu0
      %v2363 = vpop.f32.mrb[0].mxu0
      %v2364 = vadd.f32 0.0, %v2363
      %v2365 = vpop.f32.mrb[0].mxu0
      %2366 = vdwg.mxu0
      %v2367 = vadd.f32 %v2073, %v2241
      %v2368 = vadd.f32 %v2074, %v2244
      %v2369 = vadd.f32 %v2075, %v2249
      %v2370 = vadd.f32 %v2076, %v2252
      %v2371 = vadd.f32 %v2077, %v2257
      %v2372 = vadd.f32 %v2078, %v2260
      %v2373 = vadd.f32 %v2079, %v2265
      %v2374 = vadd.f32 %v2080, %v2268
      %v2375 = vadd.f32 %v2081, %v2273
      %v2376 = vadd.f32 %v2082, %v2276
      %v2377 = vadd.f32 %v2083, %v2281
      %v2378 = vadd.f32 %v2084, %v2284
      %v2379 = vadd.f32 %v2085, %v2289
      %v2380 = vadd.f32 %v2086, %v2292
      %v2381 = vadd.f32 %v2087, %v2297
      %v2382 = vadd.f32 %v2088, %v2300
      %v2383 = vadd.f32 %v2089, %v2305
      %v2384 = vadd.f32 %v2090, %v2308
      %v2385 = vadd.f32 %v2091, %v2313
      %v2386 = vadd.f32 %v2092, %v2316
      %v2387 = vadd.f32 %v2093, %v2321
      %v2388 = vadd.f32 %v2094, %v2324
      %v2389 = vadd.f32 %v2095, %v2329
      %v2390 = vadd.f32 %v2096, %v2332
      %v2391 = vadd.f32 %v2097, %v2337
      %v2392 = vadd.f32 %v2098, %v2340
      %v2393 = vadd.f32 %v2099, %v2345
      %v2394 = vadd.f32 %v2100, %v2348
      %v2395 = vadd.f32 %v2101, %v2353
      %v2396 = vadd.f32 %v2102, %v2356
      %v2397 = vadd.f32 %v2103, %v2361
      %v2398 = vadd.f32 %v2104, %v2364
      %v2399 = vld [vmem:[%s2105 + $0x1] sm:$0xff]
      %v2400 = vld [vmem:[%s2105 + $0x9] sm:$0xff]
      %v2401 = vld [vmem:[%s2105 + $0x19] sm:$0xff]
      %v2402 = vld [vmem:[%s2105 + $0x21] sm:$0xff]
      %v2403 = vld [vmem:[%s2105 + $0x31] sm:$0xff]
      %v2404 = vld [vmem:[%s2105 + $0x39] sm:$0xff]
      %v2405 = vld [vmem:[%s2105 + $0x49] sm:$0xff]
      %v2406 = vld [vmem:[%s2105 + $0x51] sm:$0xff]
      %v2407 = vld [vmem:[%s2105 + $0x61] sm:$0xff]
      %v2408 = vld [vmem:[%s2105 + $0x69] sm:$0xff]
      %v2409 = vld [vmem:[%s2105 + $0x79] sm:$0xff]
      %v2410 = vld [vmem:[%s2105 + $0x81] sm:$0xff]
      %v2411 = vld [vmem:[%s2105 + $0x91] sm:$0xff]
      %v2412 = vld [vmem:[%s2105 + $0x99] sm:$0xff]
      %v2413 = vld [vmem:[%s2105 + $0xa9] sm:$0xff]
      %v2414 = vld [vmem:[%s2105 + $0xb1] sm:$0xff]
      %v2415 = vld [vmem:[%s2105 + $0xc1] sm:$0xff]
      %v2416 = vld [vmem:[%s2105 + $0xc9] sm:$0xff]
      %v2417 = vld [vmem:[%s2105 + $0xd9] sm:$0xff]
      %v2418 = vld [vmem:[%s2105 + $0xe1] sm:$0xff]
      %v2419 = vld [vmem:[%s2105 + $0xf1] sm:$0xff]
      %v2420 = vld [vmem:[%s2105 + $0xf9] sm:$0xff]
      %v2421 = vld [vmem:[%s2105 + $0x109] sm:$0xff]
      %v2422 = vld [vmem:[%s2105 + $0x111] sm:$0xff]
      %v2423 = vld [vmem:[%s2105 + $0x121] sm:$0xff]
      %v2424 = vld [vmem:[%s2105 + $0x129] sm:$0xff]
      %v2425 = vld [vmem:[%s2105 + $0x139] sm:$0xff]
      %v2426 = vld [vmem:[%s2105 + $0x141] sm:$0xff]
      %v2427 = vld [vmem:[%s2105 + $0x151] sm:$0xff]
      %v2428 = vld [vmem:[%s2105 + $0x159] sm:$0xff]
      %v2429 = vld [vmem:[%s2105 + $0x169] sm:$0xff]
      %v2430 = vld [vmem:[%s2105 + $0x171] sm:$0xff]
      %v2431 = vpack.c.bf16 %v2400, %v2399
      %v2432 = vpack.c.bf16 %v2402, %v2401
      %v2433 = vpack.c.bf16 %v2404, %v2403
      %v2434 = vpack.c.bf16 %v2406, %v2405
      %v2435 = vpack.c.bf16 %v2408, %v2407
      %v2436 = vpack.c.bf16 %v2410, %v2409
      %v2437 = vpack.c.bf16 %v2412, %v2411
      %v2438 = vpack.c.bf16 %v2414, %v2413
      %v2439 = vpack.c.bf16 %v2416, %v2415
      %v2440 = vpack.c.bf16 %v2418, %v2417
      %v2441 = vpack.c.bf16 %v2420, %v2419
      %v2442 = vpack.c.bf16 %v2422, %v2421
      %v2443 = vpack.c.bf16 %v2424, %v2423
      %v2444 = vpack.c.bf16 %v2426, %v2425
      %v2445 = vpack.c.bf16 %v2428, %v2427
      %v2446 = vpack.c.bf16 %v2430, %v2429
      %v2447 = vld [vmem:[%s1 + $0xc] sm:$0xc]
      %v2449 = vunpack.c.l.b16 %v2447
      %v2450 = vpack.c.b16 %v2449, %v2449
      %v2451 = vrot.slane %v2450, 2
      %v2453 = vsel %vm227, %v2431, 0
      %v2456 = vsel %vm227, %v2432, 0
      %v2459 = vsel %vm227, %v2433, 0
      %v2462 = vsel %vm227, %v2434, 0
      %v2465 = vsel %vm227, %v2435, 0
      %v2468 = vsel %vm227, %v2436, 0
      %v2471 = vsel %vm227, %v2437, 0
      %v2474 = vsel %vm227, %v2438, 0
      %v2477 = vsel %vm227, %v2439, 0
      %v2480 = vsel %vm227, %v2440, 0
      %v2483 = vsel %vm227, %v2441, 0
      %v2486 = vsel %vm227, %v2442, 0
      %v2489 = vsel %vm227, %v2443, 0
      %v2492 = vsel %vm227, %v2444, 0
      %v2495 = vsel %vm227, %v2445, 0
      %v2498 = vsel %vm227, %v2446, 0
      %v2501 = vsel %vm548, %v2451, 0
      %2503 = vmatprep.subr.bf16.mxu0 0
      %2504 = vmatpush1.bf16.msra.mxu0 %v2501
      %2505 = vmatprep.subr.bf16.mxu0 0
      %2506 = vmatpush1.bf16.msra.mxu0 0
      %2507 = vmatprep.subr.bf16.mxu0 0
      %2508 = vmatpush1.bf16.msra.mxu0 0
      %2509 = vmatprep.subr.bf16.mxu0 0
      %2510 = vmatpush1.bf16.msra.mxu0 0
      %2511 = vmatprep.subr.bf16.mxu0 0
      %2512 = vmatpush1.bf16.msra.mxu0 0
      %2513 = vmatprep.subr.bf16.mxu0 0
      %2514 = vmatpush1.bf16.msra.mxu0 0
      %2515 = vmatprep.subr.bf16.mxu0 0
      %2516 = vmatpush1.bf16.msra.mxu0 0
      %2517 = vmatprep.subr.bf16.mxu0 0
      %2518 = vmatpush1.bf16.msra.mxu0 0
      %2519 = vmatprep.subr.bf16.mxu0 0
      %2520 = vmatpush1.bf16.msra.mxu0 0
      %2521 = vmatprep.subr.bf16.mxu0 0
      %2522 = vmatpush1.bf16.msra.mxu0 0
      %2523 = vmatprep.subr.bf16.mxu0 0
      %2524 = vmatpush1.bf16.msra.mxu0 0
      %2525 = vmatprep.subr.bf16.mxu0 0
      %2526 = vmatpush1.bf16.msra.mxu0 0
      %2527 = vmatprep.subr.bf16.mxu0 0
      %2528 = vmatpush1.bf16.msra.mxu0 0
      %2529 = vmatprep.subr.bf16.mxu0 0
      %2530 = vmatpush1.bf16.msra.mxu0 0
      %2531 = vmatprep.subr.bf16.mxu0 0
      %2532 = vmatpush1.bf16.msra.mxu0 0
      %2533 = vmatprep.subr.bf16.mxu0 0
      %2534 = vmatpush1.bf16.msra.mxu0 0
      %2535 = vmatprep.mubr.bf16.mxu0 0
      %2536 = vmatmul.mubr.bf16.gmra.mrb[0].mxu0 %v2453
      %v2537 = vpop.f32.mrb[0].mxu0
      %v2538 = vadd.f32 0.0, %v2537
      %v2539 = vpop.f32.mrb[0].mxu0
      %v2540 = vpop.f32.mrb[0].mxu0
      %v2541 = vadd.f32 0.0, %v2540
      %v2542 = vpop.f32.mrb[0].mxu0
      %2543 = vmatprep.mubr.bf16.mxu0 0
      %2544 = vmatmul.mubr.bf16.gmra.mrb[0].mxu0 %v2456
      %v2545 = vpop.f32.mrb[0].mxu0
      %v2546 = vadd.f32 0.0, %v2545
      %v2547 = vpop.f32.mrb[0].mxu0
      %v2548 = vpop.f32.mrb[0].mxu0
      %v2549 = vadd.f32 0.0, %v2548
      %v2550 = vpop.f32.mrb[0].mxu0
      %2551 = vmatprep.mubr.bf16.mxu0 0
      %2552 = vmatmul.mubr.bf16.gmra.mrb[0].mxu0 %v2459
      %v2553 = vpop.f32.mrb[0].mxu0
      %v2554 = vadd.f32 0.0, %v2553
      %v2555 = vpop.f32.mrb[0].mxu0
      %v2556 = vpop.f32.mrb[0].mxu0
      %v2557 = vadd.f32 0.0, %v2556
      %v2558 = vpop.f32.mrb[0].mxu0
      %2559 = vmatprep.mubr.bf16.mxu0 0
      %2560 = vmatmul.mubr.bf16.gmra.mrb[0].mxu0 %v2462
      %v2561 = vpop.f32.mrb[0].mxu0
      %v2562 = vadd.f32 0.0, %v2561
      %v2563 = vpop.f32.mrb[0].mxu0
      %v2564 = vpop.f32.mrb[0].mxu0
      %v2565 = vadd.f32 0.0, %v2564
      %v2566 = vpop.f32.mrb[0].mxu0
      %2567 = vmatprep.mubr.bf16.mxu0 0
      %2568 = vmatmul.mubr.bf16.gmra.mrb[0].mxu0 %v2465
      %v2569 = vpop.f32.mrb[0].mxu0
      %v2570 = vadd.f32 0.0, %v2569
      %v2571 = vpop.f32.mrb[0].mxu0
      %v2572 = vpop.f32.mrb[0].mxu0
      %v2573 = vadd.f32 0.0, %v2572
      %v2574 = vpop.f32.mrb[0].mxu0
      %2575 = vmatprep.mubr.bf16.mxu0 0
      %2576 = vmatmul.mubr.bf16.gmra.mrb[0].mxu0 %v2468
      %v2577 = vpop.f32.mrb[0].mxu0
      %v2578 = vadd.f32 0.0, %v2577
      %v2579 = vpop.f32.mrb[0].mxu0
      %v2580 = vpop.f32.mrb[0].mxu0
      %v2581 = vadd.f32 0.0, %v2580
      %v2582 = vpop.f32.mrb[0].mxu0
      %2583 = vmatprep.mubr.bf16.mxu0 0
      %2584 = vmatmul.mubr.bf16.gmra.mrb[0].mxu0 %v2471
      %v2585 = vpop.f32.mrb[0].mxu0
      %v2586 = vadd.f32 0.0, %v2585
      %v2587 = vpop.f32.mrb[0].mxu0
      %v2588 = vpop.f32.mrb[0].mxu0
      %v2589 = vadd.f32 0.0, %v2588
      %v2590 = vpop.f32.mrb[0].mxu0
      %2591 = vmatprep.mubr.bf16.mxu0 0
      %2592 = vmatmul.mubr.bf16.gmra.mrb[0].mxu0 %v2474
      %v2593 = vpop.f32.mrb[0].mxu0
      %v2594 = vadd.f32 0.0, %v2593
      %v2595 = vpop.f32.mrb[0].mxu0
      %v2596 = vpop.f32.mrb[0].mxu0
      %v2597 = vadd.f32 0.0, %v2596
      %v2598 = vpop.f32.mrb[0].mxu0
      %2599 = vmatprep.mubr.bf16.mxu0 0
      %2600 = vmatmul.mubr.bf16.gmra.mrb[0].mxu0 %v2477
      %v2601 = vpop.f32.mrb[0].mxu0
      %v2602 = vadd.f32 0.0, %v2601
      %v2603 = vpop.f32.mrb[0].mxu0
      %v2604 = vpop.f32.mrb[0].mxu0
      %v2605 = vadd.f32 0.0, %v2604
      %v2606 = vpop.f32.mrb[0].mxu0
      %2607 = vmatprep.mubr.bf16.mxu0 0
      %2608 = vmatmul.mubr.bf16.gmra.mrb[0].mxu0 %v2480
      %v2609 = vpop.f32.mrb[0].mxu0
      %v2610 = vadd.f32 0.0, %v2609
      %v2611 = vpop.f32.mrb[0].mxu0
      %v2612 = vpop.f32.mrb[0].mxu0
      %v2613 = vadd.f32 0.0, %v2612
      %v2614 = vpop.f32.mrb[0].mxu0
      %2615 = vmatprep.mubr.bf16.mxu0 0
      %2616 = vmatmul.mubr.bf16.gmra.mrb[0].mxu0 %v2483
      %v2617 = vpop.f32.mrb[0].mxu0
      %v2618 = vadd.f32 0.0, %v2617
      %v2619 = vpop.f32.mrb[0].mxu0
      %v2620 = vpop.f32.mrb[0].mxu0
      %v2621 = vadd.f32 0.0, %v2620
      %v2622 = vpop.f32.mrb[0].mxu0
      %2623 = vmatprep.mubr.bf16.mxu0 0
      %2624 = vmatmul.mubr.bf16.gmra.mrb[0].mxu0 %v2486
      %v2625 = vpop.f32.mrb[0].mxu0
      %v2626 = vadd.f32 0.0, %v2625
      %v2627 = vpop.f32.mrb[0].mxu0
      %v2628 = vpop.f32.mrb[0].mxu0
      %v2629 = vadd.f32 0.0, %v2628
      %v2630 = vpop.f32.mrb[0].mxu0
      %2631 = vmatprep.mubr.bf16.mxu0 0
      %2632 = vmatmul.mubr.bf16.gmra.mrb[0].mxu0 %v2489
      %v2633 = vpop.f32.mrb[0].mxu0
      %v2634 = vadd.f32 0.0, %v2633
      %v2635 = vpop.f32.mrb[0].mxu0
      %v2636 = vpop.f32.mrb[0].mxu0
      %v2637 = vadd.f32 0.0, %v2636
      %v2638 = vpop.f32.mrb[0].mxu0
      %2639 = vmatprep.mubr.bf16.mxu0 0
      %2640 = vmatmul.mubr.bf16.gmra.mrb[0].mxu0 %v2492
      %v2641 = vpop.f32.mrb[0].mxu0
      %v2642 = vadd.f32 0.0, %v2641
      %v2643 = vpop.f32.mrb[0].mxu0
      %v2644 = vpop.f32.mrb[0].mxu0
      %v2645 = vadd.f32 0.0, %v2644
      %v2646 = vpop.f32.mrb[0].mxu0
      %2647 = vmatprep.mubr.bf16.mxu0 0
      %2648 = vmatmul.mubr.bf16.gmra.mrb[0].mxu0 %v2495
      %v2649 = vpop.f32.mrb[0].mxu0
      %v2650 = vadd.f32 0.0, %v2649
      %v2651 = vpop.f32.mrb[0].mxu0
      %v2652 = vpop.f32.mrb[0].mxu0
      %v2653 = vadd.f32 0.0, %v2652
      %v2654 = vpop.f32.mrb[0].mxu0
      %2655 = vmatprep.mubr.bf16.mxu0 0
      %2656 = vmatmul.mubr.bf16.gmra.mrb[0].mxu0 %v2498
      %v2657 = vpop.f32.mrb[0].mxu0
      %v2658 = vadd.f32 0.0, %v2657
      %v2659 = vpop.f32.mrb[0].mxu0
      %v2660 = vpop.f32.mrb[0].mxu0
      %v2661 = vadd.f32 0.0, %v2660
      %v2662 = vpop.f32.mrb[0].mxu0
      %2663 = vdwg.mxu0
      %v2664 = vadd.f32 %v2367, %v2538
      %v2665 = vadd.f32 %v2368, %v2541
      %v2666 = vadd.f32 %v2369, %v2546
      %v2667 = vadd.f32 %v2370, %v2549
      %v2668 = vadd.f32 %v2371, %v2554
      %v2669 = vadd.f32 %v2372, %v2557
      %v2670 = vadd.f32 %v2373, %v2562
      %v2671 = vadd.f32 %v2374, %v2565
      %v2672 = vadd.f32 %v2375, %v2570
      %v2673 = vadd.f32 %v2376, %v2573
      %v2674 = vadd.f32 %v2377, %v2578
      %v2675 = vadd.f32 %v2378, %v2581
      %v2676 = vadd.f32 %v2379, %v2586
      %v2677 = vadd.f32 %v2380, %v2589
      %v2678 = vadd.f32 %v2381, %v2594
      %v2679 = vadd.f32 %v2382, %v2597
      %v2680 = vadd.f32 %v2383, %v2602
      %v2681 = vadd.f32 %v2384, %v2605
      %v2682 = vadd.f32 %v2385, %v2610
      %v2683 = vadd.f32 %v2386, %v2613
      %v2684 = vadd.f32 %v2387, %v2618
      %v2685 = vadd.f32 %v2388, %v2621
      %v2686 = vadd.f32 %v2389, %v2626
      %v2687 = vadd.f32 %v2390, %v2629
      %v2688 = vadd.f32 %v2391, %v2634
      %v2689 = vadd.f32 %v2392, %v2637
      %v2690 = vadd.f32 %v2393, %v2642
      %v2691 = vadd.f32 %v2394, %v2645
      %v2692 = vadd.f32 %v2395, %v2650
      %v2693 = vadd.f32 %v2396, %v2653
      %v2694 = vadd.f32 %v2397, %v2658
      %v2695 = vadd.f32 %v2398, %v2661
      %v2696 = vld [vmem:[%s2105 + $0x2] sm:$0xff]
      %v2697 = vld [vmem:[%s2105 + $0xa] sm:$0xff]
      %v2698 = vld [vmem:[%s2105 + $0x1a] sm:$0xff]
      %v2699 = vld [vmem:[%s2105 + $0x22] sm:$0xff]
      %v2700 = vld [vmem:[%s2105 + $0x32] sm:$0xff]
      %v2701 = vld [vmem:[%s2105 + $0x3a] sm:$0xff]
      %v2702 = vld [vmem:[%s2105 + $0x4a] sm:$0xff]
      %v2703 = vld [vmem:[%s2105 + $0x52] sm:$0xff]
      %v2704 = vld [vmem:[%s2105 + $0x62] sm:$0xff]
      %v2705 = vld [vmem:[%s2105 + $0x6a] sm:$0xff]
      %v2706 = vld [vmem:[%s2105 + $0x7a] sm:$0xff]
      %v2707 = vld [vmem:[%s2105 + $0x82] sm:$0xff]
      %v2708 = vld [vmem:[%s2105 + $0x92] sm:$0xff]
      %v2709 = vld [vmem:[%s2105 + $0x9a] sm:$0xff]
      %v2710 = vld [vmem:[%s2105 + $0xaa] sm:$0xff]
      %v2711 = vld [vmem:[%s2105 + $0xb2] sm:$0xff]
      %v2712 = vld [vmem:[%s2105 + $0xc2] sm:$0xff]
      %v2713 = vld [vmem:[%s2105 + $0xca] sm:$0xff]
      %v2714 = vld [vmem:[%s2105 + $0xda] sm:$0xff]
      %v2715 = vld [vmem:[%s2105 + $0xe2] sm:$0xff]
      %v2716 = vld [vmem:[%s2105 + $0xf2] sm:$0xff]
      %v2717 = vld [vmem:[%s2105 + $0xfa] sm:$0xff]
      %v2718 = vld [vmem:[%s2105 + $0x10a] sm:$0xff]
      %v2719 = vld [vmem:[%s2105 + $0x112] sm:$0xff]
      %v2720 = vld [vmem:[%s2105 + $0x122] sm:$0xff]
      %v2721 = vld [vmem:[%s2105 + $0x12a] sm:$0xff]
      %v2722 = vld [vmem:[%s2105 + $0x13a] sm:$0xff]
      %v2723 = vld [vmem:[%s2105 + $0x142] sm:$0xff]
      %v2724 = vld [vmem:[%s2105 + $0x152] sm:$0xff]
      %v2725 = vld [vmem:[%s2105 + $0x15a] sm:$0xff]
      %v2726 = vld [vmem:[%s2105 + $0x16a] sm:$0xff]
      %v2727 = vld [vmem:[%s2105 + $0x172] sm:$0xff]
      %v2728 = vpack.c.bf16 %v2697, %v2696
      %v2729 = vpack.c.bf16 %v2699, %v2698
      %v2730 = vpack.c.bf16 %v2701, %v2700
      %v2731 = vpack.c.bf16 %v2703, %v2702
      %v2732 = vpack.c.bf16 %v2705, %v2704
      %v2733 = vpack.c.bf16 %v2707, %v2706
      %v2734 = vpack.c.bf16 %v2709, %v2708
      %v2735 = vpack.c.bf16 %v2711, %v2710
      %v2736 = vpack.c.bf16 %v2713, %v2712
      %v2737 = vpack.c.bf16 %v2715, %v2714
      %v2738 = vpack.c.bf16 %v2717, %v2716
      %v2739 = vpack.c.bf16 %v2719, %v2718
      %v2740 = vpack.c.bf16 %v2721, %v2720
      %v2741 = vpack.c.bf16 %v2723, %v2722
      %v2742 = vpack.c.bf16 %v2725, %v2724
      %v2743 = vpack.c.bf16 %v2727, %v2726
      %v2744 = vld [vmem:[%s1 + $0x10] sm:$0x3]
      %v2746 = vsel %vm227, %v2728, 0
      %v2749 = vsel %vm227, %v2729, 0
      %v2752 = vsel %vm227, %v2730, 0
      %v2755 = vsel %vm227, %v2731, 0
      %v2758 = vsel %vm227, %v2732, 0
      %v2761 = vsel %vm227, %v2733, 0
      %v2764 = vsel %vm227, %v2734, 0
      %v2767 = vsel %vm227, %v2735, 0
      %v2770 = vsel %vm227, %v2736, 0
      %v2773 = vsel %vm227, %v2737, 0
      %v2776 = vsel %vm227, %v2738, 0
      %v2779 = vsel %vm227, %v2739, 0
      %v2782 = vsel %vm227, %v2740, 0
      %v2785 = vsel %vm227, %v2741, 0
      %v2788 = vsel %vm227, %v2742, 0
      %v2791 = vsel %vm227, %v2743, 0
      %v2794 = vsel %vm548, %v2744, 0
      %2796 = vmatprep.subr.bf16.mxu0 0
      %2797 = vmatpush1.bf16.msra.mxu0 %v2794
      %2798 = vmatprep.subr.bf16.mxu0 0
      %2799 = vmatpush1.bf16.msra.mxu0 0
      %2800 = vmatprep.subr.bf16.mxu0 0
      %2801 = vmatpush1.bf16.msra.mxu0 0
      %2802 = vmatprep.subr.bf16.mxu0 0
      %2803 = vmatpush1.bf16.msra.mxu0 0
      %2804 = vmatprep.subr.bf16.mxu0 0
      %2805 = vmatpush1.bf16.msra.mxu0 0
      %2806 = vmatprep.subr.bf16.mxu0 0
      %2807 = vmatpush1.bf16.msra.mxu0 0
      %2808 = vmatprep.subr.bf16.mxu0 0
      %2809 = vmatpush1.bf16.msra.mxu0 0
      %2810 = vmatprep.subr.bf16.mxu0 0
      %2811 = vmatpush1.bf16.msra.mxu0 0
      %2812 = vmatprep.subr.bf16.mxu0 0
      %2813 = vmatpush1.bf16.msra.mxu0 0
      %2814 = vmatprep.subr.bf16.mxu0 0
      %2815 = vmatpush1.bf16.msra.mxu0 0
      %2816 = vmatprep.subr.bf16.mxu0 0
      %2817 = vmatpush1.bf16.msra.mxu0 0
      %2818 = vmatprep.subr.bf16.mxu0 0
      %2819 = vmatpush1.bf16.msra.mxu0 0
      %2820 = vmatprep.subr.bf16.mxu0 0
      %2821 = vmatpush1.bf16.msra.mxu0 0
      %2822 = vmatprep.subr.bf16.mxu0 0
      %2823 = vmatpush1.bf16.msra.mxu0 0
      %2824 = vmatprep.subr.bf16.mxu0 0
      %2825 = vmatpush1.bf16.msra.mxu0 0
      %2826 = vmatprep.subr.bf16.mxu0 0
      %2827 = vmatpush1.bf16.msra.mxu0 0
      %2828 = vmatprep.mubr.bf16.mxu0 0
      %2829 = vmatmul.mubr.bf16.gmra.mrb[0].mxu0 %v2746
      %v2830 = vpop.f32.mrb[0].mxu0
      %v2831 = vadd.f32 0.0, %v2830
      %v2832 = vpop.f32.mrb[0].mxu0
      %v2833 = vpop.f32.mrb[0].mxu0
      %v2834 = vadd.f32 0.0, %v2833
      %v2835 = vpop.f32.mrb[0].mxu0
      %2836 = vmatprep.mubr.bf16.mxu0 0
      %2837 = vmatmul.mubr.bf16.gmra.mrb[0].mxu0 %v2749
      %v2838 = vpop.f32.mrb[0].mxu0
      %v2839 = vadd.f32 0.0, %v2838
      %v2840 = vpop.f32.mrb[0].mxu0
      %v2841 = vpop.f32.mrb[0].mxu0
      %v2842 = vadd.f32 0.0, %v2841
      %v2843 = vpop.f32.mrb[0].mxu0
      %2844 = vmatprep.mubr.bf16.mxu0 0
      %2845 = vmatmul.mubr.bf16.gmra.mrb[0].mxu0 %v2752
      %v2846 = vpop.f32.mrb[0].mxu0
      %v2847 = vadd.f32 0.0, %v2846
      %v2848 = vpop.f32.mrb[0].mxu0
      %v2849 = vpop.f32.mrb[0].mxu0
      %v2850 = vadd.f32 0.0, %v2849
      %v2851 = vpop.f32.mrb[0].mxu0
      %2852 = vmatprep.mubr.bf16.mxu0 0
      %2853 = vmatmul.mubr.bf16.gmra.mrb[0].mxu0 %v2755
      %v2854 = vpop.f32.mrb[0].mxu0
      %v2855 = vadd.f32 0.0, %v2854
      %v2856 = vpop.f32.mrb[0].mxu0
      %v2857 = vpop.f32.mrb[0].mxu0
      %v2858 = vadd.f32 0.0, %v2857
      %v2859 = vpop.f32.mrb[0].mxu0
      %2860 = vmatprep.mubr.bf16.mxu0 0
      %2861 = vmatmul.mubr.bf16.gmra.mrb[0].mxu0 %v2758
      %v2862 = vpop.f32.mrb[0].mxu0
      %v2863 = vadd.f32 0.0, %v2862
      %v2864 = vpop.f32.mrb[0].mxu0
      %v2865 = vpop.f32.mrb[0].mxu0
      %v2866 = vadd.f32 0.0, %v2865
      %v2867 = vpop.f32.mrb[0].mxu0
      %2868 = vmatprep.mubr.bf16.mxu0 0
      %2869 = vmatmul.mubr.bf16.gmra.mrb[0].mxu0 %v2761
      %v2870 = vpop.f32.mrb[0].mxu0
      %v2871 = vadd.f32 0.0, %v2870
      %v2872 = vpop.f32.mrb[0].mxu0
      %v2873 = vpop.f32.mrb[0].mxu0
      %v2874 = vadd.f32 0.0, %v2873
      %v2875 = vpop.f32.mrb[0].mxu0
      %2876 = vmatprep.mubr.bf16.mxu0 0
      %2877 = vmatmul.mubr.bf16.gmra.mrb[0].mxu0 %v2764
      %v2878 = vpop.f32.mrb[0].mxu0
      %v2879 = vadd.f32 0.0, %v2878
      %v2880 = vpop.f32.mrb[0].mxu0
      %v2881 = vpop.f32.mrb[0].mxu0
      %v2882 = vadd.f32 0.0, %v2881
      %v2883 = vpop.f32.mrb[0].mxu0
      %2884 = vmatprep.mubr.bf16.mxu0 0
      %2885 = vmatmul.mubr.bf16.gmra.mrb[0].mxu0 %v2767
      %v2886 = vpop.f32.mrb[0].mxu0
      %v2887 = vadd.f32 0.0, %v2886
      %v2888 = vpop.f32.mrb[0].mxu0
      %v2889 = vpop.f32.mrb[0].mxu0
      %v2890 = vadd.f32 0.0, %v2889
      %v2891 = vpop.f32.mrb[0].mxu0
      %2892 = vmatprep.mubr.bf16.mxu0 0
      %2893 = vmatmul.mubr.bf16.gmra.mrb[0].mxu0 %v2770
      %v2894 = vpop.f32.mrb[0].mxu0
      %v2895 = vadd.f32 0.0, %v2894
      %v2896 = vpop.f32.mrb[0].mxu0
      %v2897 = vpop.f32.mrb[0].mxu0
      %v2898 = vadd.f32 0.0, %v2897
      %v2899 = vpop.f32.mrb[0].mxu0
      %2900 = vmatprep.mubr.bf16.mxu0 0
      %2901 = vmatmul.mubr.bf16.gmra.mrb[0].mxu0 %v2773
      %v2902 = vpop.f32.mrb[0].mxu0
      %v2903 = vadd.f32 0.0, %v2902
      %v2904 = vpop.f32.mrb[0].mxu0
      %v2905 = vpop.f32.mrb[0].mxu0
      %v2906 = vadd.f32 0.0, %v2905
      %v2907 = vpop.f32.mrb[0].mxu0
      %2908 = vmatprep.mubr.bf16.mxu0 0
      %2909 = vmatmul.mubr.bf16.gmra.mrb[0].mxu0 %v2776
      %v2910 = vpop.f32.mrb[0].mxu0
      %v2911 = vadd.f32 0.0, %v2910
      %v2912 = vpop.f32.mrb[0].mxu0
      %v2913 = vpop.f32.mrb[0].mxu0
      %v2914 = vadd.f32 0.0, %v2913
      %v2915 = vpop.f32.mrb[0].mxu0
      %2916 = vmatprep.mubr.bf16.mxu0 0
      %2917 = vmatmul.mubr.bf16.gmra.mrb[0].mxu0 %v2779
      %v2918 = vpop.f32.mrb[0].mxu0
      %v2919 = vadd.f32 0.0, %v2918
      %v2920 = vpop.f32.mrb[0].mxu0
      %v2921 = vpop.f32.mrb[0].mxu0
      %v2922 = vadd.f32 0.0, %v2921
      %v2923 = vpop.f32.mrb[0].mxu0
      %2924 = vmatprep.mubr.bf16.mxu0 0
      %2925 = vmatmul.mubr.bf16.gmra.mrb[0].mxu0 %v2782
      %v2926 = vpop.f32.mrb[0].mxu0
      %v2927 = vadd.f32 0.0, %v2926
      %v2928 = vpop.f32.mrb[0].mxu0
      %v2929 = vpop.f32.mrb[0].mxu0
      %v2930 = vadd.f32 0.0, %v2929
      %v2931 = vpop.f32.mrb[0].mxu0
      %2932 = vmatprep.mubr.bf16.mxu0 0
      %2933 = vmatmul.mubr.bf16.gmra.mrb[0].mxu0 %v2785
      %v2934 = vpop.f32.mrb[0].mxu0
      %v2935 = vadd.f32 0.0, %v2934
      %v2936 = vpop.f32.mrb[0].mxu0
      %v2937 = vpop.f32.mrb[0].mxu0
      %v2938 = vadd.f32 0.0, %v2937
      %v2939 = vpop.f32.mrb[0].mxu0
      %2940 = vmatprep.mubr.bf16.mxu0 0
      %2941 = vmatmul.mubr.bf16.gmra.mrb[0].mxu0 %v2788
      %v2942 = vpop.f32.mrb[0].mxu0
      %v2943 = vadd.f32 0.0, %v2942
      %v2944 = vpop.f32.mrb[0].mxu0
      %v2945 = vpop.f32.mrb[0].mxu0
      %v2946 = vadd.f32 0.0, %v2945
      %v2947 = vpop.f32.mrb[0].mxu0
      %2948 = vmatprep.mubr.bf16.mxu0 0
      %2949 = vmatmul.mubr.bf16.gmra.mrb[0].mxu0 %v2791
      %v2950 = vpop.f32.mrb[0].mxu0
      %v2951 = vadd.f32 0.0, %v2950
      %v2952 = vpop.f32.mrb[0].mxu0
      %v2953 = vpop.f32.mrb[0].mxu0
      %v2954 = vadd.f32 0.0, %v2953
      %v2955 = vpop.f32.mrb[0].mxu0
      %2956 = vdwg.mxu0
      %v2957 = vadd.f32 %v2664, %v2831
      %v2958 = vadd.f32 %v2665, %v2834
      %v2959 = vadd.f32 %v2666, %v2839
      %v2960 = vadd.f32 %v2667, %v2842
      %v2961 = vadd.f32 %v2668, %v2847
      %v2962 = vadd.f32 %v2669, %v2850
      %v2963 = vadd.f32 %v2670, %v2855
      %v2964 = vadd.f32 %v2671, %v2858
      %v2965 = vadd.f32 %v2672, %v2863
      %v2966 = vadd.f32 %v2673, %v2866
      %v2967 = vadd.f32 %v2674, %v2871
      %v2968 = vadd.f32 %v2675, %v2874
      %v2969 = vadd.f32 %v2676, %v2879
      %v2970 = vadd.f32 %v2677, %v2882
      %v2971 = vadd.f32 %v2678, %v2887
      %v2972 = vadd.f32 %v2679, %v2890
      %v2973 = vadd.f32 %v2680, %v2895
      %v2974 = vadd.f32 %v2681, %v2898
      %v2975 = vadd.f32 %v2682, %v2903
      %v2976 = vadd.f32 %v2683, %v2906
      %v2977 = vadd.f32 %v2684, %v2911
      %v2978 = vadd.f32 %v2685, %v2914
      %v2979 = vadd.f32 %v2686, %v2919
      %v2980 = vadd.f32 %v2687, %v2922
      %v2981 = vadd.f32 %v2688, %v2927
      %v2982 = vadd.f32 %v2689, %v2930
      %v2983 = vadd.f32 %v2690, %v2935
      %v2984 = vadd.f32 %v2691, %v2938
      %v2985 = vadd.f32 %v2692, %v2943
      %v2986 = vadd.f32 %v2693, %v2946
      %v2987 = vadd.f32 %v2694, %v2951
      %v2988 = vadd.f32 %v2695, %v2954
      %v3021 = vcombine.high %v2957, %v2957
      %v3023 = vunpack.c.l.s4 1983009808
      %v3024 = vunpack.c.0.s8 %v3023
      %v3025 = vlaneseq
      %v3026 = vshrl.u32 %v3025, 7
      %v3027 = vsub.s32 %v3024, %v3026
      %v3028 = vrot.slane %v2957, %v3027
      %v3030 = vunpack.c.l.s4 1983009808
      %v3031 = vunpack.c.0.s8 %v3030
      %v3032 = vlaneseq
      %v3033 = vshrl.u32 %v3032, 7
      %v3034 = vsub.s32 %v3031, %v3033
      %v3035 = vrot.slane %v3021, %v3034
      %v3036 = vcombine.high %v3028, %v3028
      %v3037 = vcombine.high %v3035, %v3035
      %v3038 = vcombine.high %v2958, %v2958
      %v3040 = vunpack.c.l.s4 1983009808
      %v3041 = vunpack.c.0.s8 %v3040
      %v3042 = vlaneseq
      %v3043 = vshrl.u32 %v3042, 7
      %v3044 = vsub.s32 %v3041, %v3043
      %v3045 = vrot.slane %v2958, %v3044
      %v3047 = vunpack.c.l.s4 1983009808
      %v3048 = vunpack.c.0.s8 %v3047
      %v3049 = vlaneseq
      %v3050 = vshrl.u32 %v3049, 7
      %v3051 = vsub.s32 %v3048, %v3050
      %v3052 = vrot.slane %v3038, %v3051
      %v3053 = vcombine.high %v3045, %v3045
      %v3054 = vcombine.high %v3052, %v3052
      %v3055 = vcombine.high %v2959, %v2959
      %v3057 = vunpack.c.l.s4 1983009808
      %v3058 = vunpack.c.0.s8 %v3057
      %v3059 = vlaneseq
      %v3060 = vshrl.u32 %v3059, 7
      %v3061 = vsub.s32 %v3058, %v3060
      %v3062 = vrot.slane %v2959, %v3061
      %v3064 = vunpack.c.l.s4 1983009808
      %v3065 = vunpack.c.0.s8 %v3064
      %v3066 = vlaneseq
      %v3067 = vshrl.u32 %v3066, 7
      %v3068 = vsub.s32 %v3065, %v3067
      %v3069 = vrot.slane %v3055, %v3068
      %v3070 = vcombine.high %v3062, %v3062
      %v3071 = vcombine.high %v3069, %v3069
      %v3072 = vcombine.high %v2960, %v2960
      %v3074 = vunpack.c.l.s4 1983009808
      %v3075 = vunpack.c.0.s8 %v3074
      %v3076 = vlaneseq
      %v3077 = vshrl.u32 %v3076, 7
      %v3078 = vsub.s32 %v3075, %v3077
      %v3079 = vrot.slane %v2960, %v3078
      %v3081 = vunpack.c.l.s4 1983009808
      %v3082 = vunpack.c.0.s8 %v3081
      %v3083 = vlaneseq
      %v3084 = vshrl.u32 %v3083, 7
      %v3085 = vsub.s32 %v3082, %v3084
      %v3086 = vrot.slane %v3072, %v3085
      %v3087 = vcombine.high %v3079, %v3079
      %v3088 = vcombine.high %v3086, %v3086
      %v3089 = vcombine.high %v2961, %v2961
      %v3091 = vunpack.c.l.s4 1983009808
      %v3092 = vunpack.c.0.s8 %v3091
      %v3093 = vlaneseq
      %v3094 = vshrl.u32 %v3093, 7
      %v3095 = vsub.s32 %v3092, %v3094
      %v3096 = vrot.slane %v2961, %v3095
      %v3098 = vunpack.c.l.s4 1983009808
      %v3099 = vunpack.c.0.s8 %v3098
      %v3100 = vlaneseq
      %v3101 = vshrl.u32 %v3100, 7
      %v3102 = vsub.s32 %v3099, %v3101
      %v3103 = vrot.slane %v3089, %v3102
      %v3104 = vcombine.high %v3096, %v3096
      %v3105 = vcombine.high %v3103, %v3103
      %v3106 = vcombine.high %v2962, %v2962
      %v3108 = vunpack.c.l.s4 1983009808
      %v3109 = vunpack.c.0.s8 %v3108
      %v3110 = vlaneseq
      %v3111 = vshrl.u32 %v3110, 7
      %v3112 = vsub.s32 %v3109, %v3111
      %v3113 = vrot.slane %v2962, %v3112
      %v3115 = vunpack.c.l.s4 1983009808
      %v3116 = vunpack.c.0.s8 %v3115
      %v3117 = vlaneseq
      %v3118 = vshrl.u32 %v3117, 7
      %v3119 = vsub.s32 %v3116, %v3118
      %v3120 = vrot.slane %v3106, %v3119
      %v3121 = vcombine.high %v3113, %v3113
      %v3122 = vcombine.high %v3120, %v3120
      %v3123 = vcombine.high %v2963, %v2963
      %v3125 = vunpack.c.l.s4 1983009808
      %v3126 = vunpack.c.0.s8 %v3125
      %v3127 = vlaneseq
      %v3128 = vshrl.u32 %v3127, 7
      %v3129 = vsub.s32 %v3126, %v3128
      %v3130 = vrot.slane %v2963, %v3129
      %v3132 = vunpack.c.l.s4 1983009808
      %v3133 = vunpack.c.0.s8 %v3132
      %v3134 = vlaneseq
      %v3135 = vshrl.u32 %v3134, 7
      %v3136 = vsub.s32 %v3133, %v3135
      %v3137 = vrot.slane %v3123, %v3136
      %v3138 = vcombine.high %v3130, %v3130
      %v3139 = vcombine.high %v3137, %v3137
      %v3140 = vcombine.high %v2964, %v2964
      %v3142 = vunpack.c.l.s4 1983009808
      %v3143 = vunpack.c.0.s8 %v3142
      %v3144 = vlaneseq
      %v3145 = vshrl.u32 %v3144, 7
      %v3146 = vsub.s32 %v3143, %v3145
      %v3147 = vrot.slane %v2964, %v3146
      %v3149 = vunpack.c.l.s4 1983009808
      %v3150 = vunpack.c.0.s8 %v3149
      %v3151 = vlaneseq
      %v3152 = vshrl.u32 %v3151, 7
      %v3153 = vsub.s32 %v3150, %v3152
      %v3154 = vrot.slane %v3140, %v3153
      %v3155 = vcombine.high %v3147, %v3147
      %v3156 = vcombine.high %v3154, %v3154
      %v3157 = vcombine.high %v2965, %v2965
      %v3159 = vunpack.c.l.s4 1983009808
      %v3160 = vunpack.c.0.s8 %v3159
      %v3161 = vlaneseq
      %v3162 = vshrl.u32 %v3161, 7
      %v3163 = vsub.s32 %v3160, %v3162
      %v3164 = vrot.slane %v2965, %v3163
      %v3166 = vunpack.c.l.s4 1983009808
      %v3167 = vunpack.c.0.s8 %v3166
      %v3168 = vlaneseq
      %v3169 = vshrl.u32 %v3168, 7
      %v3170 = vsub.s32 %v3167, %v3169
      %v3171 = vrot.slane %v3157, %v3170
      %v3172 = vcombine.high %v3164, %v3164
      %v3173 = vcombine.high %v3171, %v3171
      %v3174 = vcombine.high %v2966, %v2966
      %v3176 = vunpack.c.l.s4 1983009808
      %v3177 = vunpack.c.0.s8 %v3176
      %v3178 = vlaneseq
      %v3179 = vshrl.u32 %v3178, 7
      %v3180 = vsub.s32 %v3177, %v3179
      %v3181 = vrot.slane %v2966, %v3180
      %v3183 = vunpack.c.l.s4 1983009808
      %v3184 = vunpack.c.0.s8 %v3183
      %v3185 = vlaneseq
      %v3186 = vshrl.u32 %v3185, 7
      %v3187 = vsub.s32 %v3184, %v3186
      %v3188 = vrot.slane %v3174, %v3187
      %v3189 = vcombine.high %v3181, %v3181
      %v3190 = vcombine.high %v3188, %v3188
      %v3191 = vcombine.high %v2967, %v2967
      %v3193 = vunpack.c.l.s4 1983009808
      %v3194 = vunpack.c.0.s8 %v3193
      %v3195 = vlaneseq
      %v3196 = vshrl.u32 %v3195, 7
      %v3197 = vsub.s32 %v3194, %v3196
      %v3198 = vrot.slane %v2967, %v3197
      %v3200 = vunpack.c.l.s4 1983009808
      %v3201 = vunpack.c.0.s8 %v3200
      %v3202 = vlaneseq
      %v3203 = vshrl.u32 %v3202, 7
      %v3204 = vsub.s32 %v3201, %v3203
      %v3205 = vrot.slane %v3191, %v3204
      %v3206 = vcombine.high %v3198, %v3198
      %v3207 = vcombine.high %v3205, %v3205
      %v3208 = vcombine.high %v2968, %v2968
      %v3210 = vunpack.c.l.s4 1983009808
      %v3211 = vunpack.c.0.s8 %v3210
      %v3212 = vlaneseq
      %v3213 = vshrl.u32 %v3212, 7
      %v3214 = vsub.s32 %v3211, %v3213
      %v3215 = vrot.slane %v2968, %v3214
      %v3217 = vunpack.c.l.s4 1983009808
      %v3218 = vunpack.c.0.s8 %v3217
      %v3219 = vlaneseq
      %v3220 = vshrl.u32 %v3219, 7
      %v3221 = vsub.s32 %v3218, %v3220
      %v3222 = vrot.slane %v3208, %v3221
      %v3223 = vcombine.high %v3215, %v3215
      %v3224 = vcombine.high %v3222, %v3222
      %v3225 = vcombine.high %v2969, %v2969
      %v3227 = vunpack.c.l.s4 1983009808
      %v3228 = vunpack.c.0.s8 %v3227
      %v3229 = vlaneseq
      %v3230 = vshrl.u32 %v3229, 7
      %v3231 = vsub.s32 %v3228, %v3230
      %v3232 = vrot.slane %v2969, %v3231
      %v3234 = vunpack.c.l.s4 1983009808
      %v3235 = vunpack.c.0.s8 %v3234
      %v3236 = vlaneseq
      %v3237 = vshrl.u32 %v3236, 7
      %v3238 = vsub.s32 %v3235, %v3237
      %v3239 = vrot.slane %v3225, %v3238
      %v3240 = vcombine.high %v3232, %v3232
      %v3241 = vcombine.high %v3239, %v3239
      %v3242 = vcombine.high %v2970, %v2970
      %v3244 = vunpack.c.l.s4 1983009808
      %v3245 = vunpack.c.0.s8 %v3244
      %v3246 = vlaneseq
      %v3247 = vshrl.u32 %v3246, 7
      %v3248 = vsub.s32 %v3245, %v3247
      %v3249 = vrot.slane %v2970, %v3248
      %v3251 = vunpack.c.l.s4 1983009808
      %v3252 = vunpack.c.0.s8 %v3251
      %v3253 = vlaneseq
      %v3254 = vshrl.u32 %v3253, 7
      %v3255 = vsub.s32 %v3252, %v3254
      %v3256 = vrot.slane %v3242, %v3255
      %v3257 = vcombine.high %v3249, %v3249
      %v3258 = vcombine.high %v3256, %v3256
      %v3259 = vcombine.high %v2971, %v2971
      %v3261 = vunpack.c.l.s4 1983009808
      %v3262 = vunpack.c.0.s8 %v3261
      %v3263 = vlaneseq
      %v3264 = vshrl.u32 %v3263, 7
      %v3265 = vsub.s32 %v3262, %v3264
      %v3266 = vrot.slane %v2971, %v3265
      %v3268 = vunpack.c.l.s4 1983009808
      %v3269 = vunpack.c.0.s8 %v3268
      %v3270 = vlaneseq
      %v3271 = vshrl.u32 %v3270, 7
      %v3272 = vsub.s32 %v3269, %v3271
      %v3273 = vrot.slane %v3259, %v3272
      %v3274 = vcombine.high %v3266, %v3266
      %v3275 = vcombine.high %v3273, %v3273
      %v3276 = vcombine.high %v2972, %v2972
      %v3278 = vunpack.c.l.s4 1983009808
      %v3279 = vunpack.c.0.s8 %v3278
      %v3280 = vlaneseq
      %v3281 = vshrl.u32 %v3280, 7
      %v3282 = vsub.s32 %v3279, %v3281
      %v3283 = vrot.slane %v2972, %v3282
      %v3285 = vunpack.c.l.s4 1983009808
      %v3286 = vunpack.c.0.s8 %v3285
      %v3287 = vlaneseq
      %v3288 = vshrl.u32 %v3287, 7
      %v3289 = vsub.s32 %v3286, %v3288
      %v3290 = vrot.slane %v3276, %v3289
      %v3291 = vcombine.high %v3283, %v3283
      %v3292 = vcombine.high %v3290, %v3290
      %v3293 = vcombine.high %v2973, %v2973
      %v3295 = vunpack.c.l.s4 1983009808
      %v3296 = vunpack.c.0.s8 %v3295
      %v3297 = vlaneseq
      %v3298 = vshrl.u32 %v3297, 7
      %v3299 = vsub.s32 %v3296, %v3298
      %v3300 = vrot.slane %v2973, %v3299
      %v3302 = vunpack.c.l.s4 1983009808
      %v3303 = vunpack.c.0.s8 %v3302
      %v3304 = vlaneseq
      %v3305 = vshrl.u32 %v3304, 7
      %v3306 = vsub.s32 %v3303, %v3305
      %v3307 = vrot.slane %v3293, %v3306
      %v3308 = vcombine.high %v3300, %v3300
      %v3309 = vcombine.high %v3307, %v3307
      %v3310 = vcombine.high %v2974, %v2974
      %v3312 = vunpack.c.l.s4 1983009808
      %v3313 = vunpack.c.0.s8 %v3312
      %v3314 = vlaneseq
      %v3315 = vshrl.u32 %v3314, 7
      %v3316 = vsub.s32 %v3313, %v3315
      %v3317 = vrot.slane %v2974, %v3316
      %v3319 = vunpack.c.l.s4 1983009808
      %v3320 = vunpack.c.0.s8 %v3319
      %v3321 = vlaneseq
      %v3322 = vshrl.u32 %v3321, 7
      %v3323 = vsub.s32 %v3320, %v3322
      %v3324 = vrot.slane %v3310, %v3323
      %v3325 = vcombine.high %v3317, %v3317
      %v3326 = vcombine.high %v3324, %v3324
      %v3327 = vcombine.high %v2975, %v2975
      %v3329 = vunpack.c.l.s4 1983009808
      %v3330 = vunpack.c.0.s8 %v3329
      %v3331 = vlaneseq
      %v3332 = vshrl.u32 %v3331, 7
      %v3333 = vsub.s32 %v3330, %v3332
      %v3334 = vrot.slane %v2975, %v3333
      %v3336 = vunpack.c.l.s4 1983009808
      %v3337 = vunpack.c.0.s8 %v3336
      %v3338 = vlaneseq
      %v3339 = vshrl.u32 %v3338, 7
      %v3340 = vsub.s32 %v3337, %v3339
      %v3341 = vrot.slane %v3327, %v3340
      %v3342 = vcombine.high %v3334, %v3334
      %v3343 = vcombine.high %v3341, %v3341
      %v3344 = vcombine.high %v2976, %v2976
      %v3346 = vunpack.c.l.s4 1983009808
      %v3347 = vunpack.c.0.s8 %v3346
      %v3348 = vlaneseq
      %v3349 = vshrl.u32 %v3348, 7
      %v3350 = vsub.s32 %v3347, %v3349
      %v3351 = vrot.slane %v2976, %v3350
      %v3353 = vunpack.c.l.s4 1983009808
      %v3354 = vunpack.c.0.s8 %v3353
      %v3355 = vlaneseq
      %v3356 = vshrl.u32 %v3355, 7
      %v3357 = vsub.s32 %v3354, %v3356
      %v3358 = vrot.slane %v3344, %v3357
      %v3359 = vcombine.high %v3351, %v3351
      %v3360 = vcombine.high %v3358, %v3358
      %v3361 = vcombine.high %v2977, %v2977
      %v3363 = vunpack.c.l.s4 1983009808
      %v3364 = vunpack.c.0.s8 %v3363
      %v3365 = vlaneseq
      %v3366 = vshrl.u32 %v3365, 7
      %v3367 = vsub.s32 %v3364, %v3366
      %v3368 = vrot.slane %v2977, %v3367
      %v3370 = vunpack.c.l.s4 1983009808
      %v3371 = vunpack.c.0.s8 %v3370
      %v3372 = vlaneseq
      %v3373 = vshrl.u32 %v3372, 7
      %v3374 = vsub.s32 %v3371, %v3373
      %v3375 = vrot.slane %v3361, %v3374
      %v3376 = vcombine.high %v3368, %v3368
      %v3377 = vcombine.high %v3375, %v3375
      %v3378 = vcombine.high %v2978, %v2978
      %v3380 = vunpack.c.l.s4 1983009808
      %v3381 = vunpack.c.0.s8 %v3380
      %v3382 = vlaneseq
      %v3383 = vshrl.u32 %v3382, 7
      %v3384 = vsub.s32 %v3381, %v3383
      %v3385 = vrot.slane %v2978, %v3384
      %v3387 = vunpack.c.l.s4 1983009808
      %v3388 = vunpack.c.0.s8 %v3387
      %v3389 = vlaneseq
      %v3390 = vshrl.u32 %v3389, 7
      %v3391 = vsub.s32 %v3388, %v3390
      %v3392 = vrot.slane %v3378, %v3391
      %v3393 = vcombine.high %v3385, %v3385
      %v3394 = vcombine.high %v3392, %v3392
      %v3395 = vcombine.high %v2979, %v2979
      %v3397 = vunpack.c.l.s4 1983009808
      %v3398 = vunpack.c.0.s8 %v3397
      %v3399 = vlaneseq
      %v3400 = vshrl.u32 %v3399, 7
      %v3401 = vsub.s32 %v3398, %v3400
      %v3402 = vrot.slane %v2979, %v3401
      %v3404 = vunpack.c.l.s4 1983009808
      %v3405 = vunpack.c.0.s8 %v3404
      %v3406 = vlaneseq
      %v3407 = vshrl.u32 %v3406, 7
      %v3408 = vsub.s32 %v3405, %v3407
      %v3409 = vrot.slane %v3395, %v3408
      %v3410 = vcombine.high %v3402, %v3402
      %v3411 = vcombine.high %v3409, %v3409
      %v3412 = vcombine.high %v2980, %v2980
      %v3414 = vunpack.c.l.s4 1983009808
      %v3415 = vunpack.c.0.s8 %v3414
      %v3416 = vlaneseq
      %v3417 = vshrl.u32 %v3416, 7
      %v3418 = vsub.s32 %v3415, %v3417
      %v3419 = vrot.slane %v2980, %v3418
      %v3421 = vunpack.c.l.s4 1983009808
      %v3422 = vunpack.c.0.s8 %v3421
      %v3423 = vlaneseq
      %v3424 = vshrl.u32 %v3423, 7
      %v3425 = vsub.s32 %v3422, %v3424
      %v3426 = vrot.slane %v3412, %v3425
      %v3427 = vcombine.high %v3419, %v3419
      %v3428 = vcombine.high %v3426, %v3426
      %v3429 = vcombine.high %v2981, %v2981
      %v3431 = vunpack.c.l.s4 1983009808
      %v3432 = vunpack.c.0.s8 %v3431
      %v3433 = vlaneseq
      %v3434 = vshrl.u32 %v3433, 7
      %v3435 = vsub.s32 %v3432, %v3434
      %v3436 = vrot.slane %v2981, %v3435
      %v3438 = vunpack.c.l.s4 1983009808
      %v3439 = vunpack.c.0.s8 %v3438
      %v3440 = vlaneseq
      %v3441 = vshrl.u32 %v3440, 7
      %v3442 = vsub.s32 %v3439, %v3441
      %v3443 = vrot.slane %v3429, %v3442
      %v3444 = vcombine.high %v3436, %v3436
      %v3445 = vcombine.high %v3443, %v3443
      %v3446 = vcombine.high %v2982, %v2982
      %v3448 = vunpack.c.l.s4 1983009808
      %v3449 = vunpack.c.0.s8 %v3448
      %v3450 = vlaneseq
      %v3451 = vshrl.u32 %v3450, 7
      %v3452 = vsub.s32 %v3449, %v3451
      %v3453 = vrot.slane %v2982, %v3452
      %v3455 = vunpack.c.l.s4 1983009808
      %v3456 = vunpack.c.0.s8 %v3455
      %v3457 = vlaneseq
      %v3458 = vshrl.u32 %v3457, 7
      %v3459 = vsub.s32 %v3456, %v3458
      %v3460 = vrot.slane %v3446, %v3459
      %v3461 = vcombine.high %v3453, %v3453
      %v3462 = vcombine.high %v3460, %v3460
      %v3463 = vcombine.high %v2983, %v2983
      %v3465 = vunpack.c.l.s4 1983009808
      %v3466 = vunpack.c.0.s8 %v3465
      %v3467 = vlaneseq
      %v3468 = vshrl.u32 %v3467, 7
      %v3469 = vsub.s32 %v3466, %v3468
      %v3470 = vrot.slane %v2983, %v3469
      %v3472 = vunpack.c.l.s4 1983009808
      %v3473 = vunpack.c.0.s8 %v3472
      %v3474 = vlaneseq
      %v3475 = vshrl.u32 %v3474, 7
      %v3476 = vsub.s32 %v3473, %v3475
      %v3477 = vrot.slane %v3463, %v3476
      %v3478 = vcombine.high %v3470, %v3470
      %v3479 = vcombine.high %v3477, %v3477
      %v3480 = vcombine.high %v2984, %v2984
      %v3482 = vunpack.c.l.s4 1983009808
      %v3483 = vunpack.c.0.s8 %v3482
      %v3484 = vlaneseq
      %v3485 = vshrl.u32 %v3484, 7
      %v3486 = vsub.s32 %v3483, %v3485
      %v3487 = vrot.slane %v2984, %v3486
      %v3489 = vunpack.c.l.s4 1983009808
      %v3490 = vunpack.c.0.s8 %v3489
      %v3491 = vlaneseq
      %v3492 = vshrl.u32 %v3491, 7
      %v3493 = vsub.s32 %v3490, %v3492
      %v3494 = vrot.slane %v3480, %v3493
      %v3495 = vcombine.high %v3487, %v3487
      %v3496 = vcombine.high %v3494, %v3494
      %v3497 = vcombine.high %v2985, %v2985
      %v3499 = vunpack.c.l.s4 1983009808
      %v3500 = vunpack.c.0.s8 %v3499
      %v3501 = vlaneseq
      %v3502 = vshrl.u32 %v3501, 7
      %v3503 = vsub.s32 %v3500, %v3502
      %v3504 = vrot.slane %v2985, %v3503
      %v3506 = vunpack.c.l.s4 1983009808
      %v3507 = vunpack.c.0.s8 %v3506
      %v3508 = vlaneseq
      %v3509 = vshrl.u32 %v3508, 7
      %v3510 = vsub.s32 %v3507, %v3509
      %v3511 = vrot.slane %v3497, %v3510
      %v3512 = vcombine.high %v3504, %v3504
      %v3513 = vcombine.high %v3511, %v3511
      %v3514 = vcombine.high %v2986, %v2986
      %v3516 = vunpack.c.l.s4 1983009808
      %v3517 = vunpack.c.0.s8 %v3516
      %v3518 = vlaneseq
      %v3519 = vshrl.u32 %v3518, 7
      %v3520 = vsub.s32 %v3517, %v3519
      %v3521 = vrot.slane %v2986, %v3520
      %v3523 = vunpack.c.l.s4 1983009808
      %v3524 = vunpack.c.0.s8 %v3523
      %v3525 = vlaneseq
      %v3526 = vshrl.u32 %v3525, 7
      %v3527 = vsub.s32 %v3524, %v3526
      %v3528 = vrot.slane %v3514, %v3527
      %v3529 = vcombine.high %v3521, %v3521
      %v3530 = vcombine.high %v3528, %v3528
      %v3531 = vcombine.high %v2987, %v2987
      %v3533 = vunpack.c.l.s4 1983009808
      %v3534 = vunpack.c.0.s8 %v3533
      %v3535 = vlaneseq
      %v3536 = vshrl.u32 %v3535, 7
      %v3537 = vsub.s32 %v3534, %v3536
      %v3538 = vrot.slane %v2987, %v3537
      %v3540 = vunpack.c.l.s4 1983009808
      %v3541 = vunpack.c.0.s8 %v3540
      %v3542 = vlaneseq
      %v3543 = vshrl.u32 %v3542, 7
      %v3544 = vsub.s32 %v3541, %v3543
      %v3545 = vrot.slane %v3531, %v3544
      %v3546 = vcombine.high %v3538, %v3538
      %v3547 = vcombine.high %v3545, %v3545
      %v3548 = vcombine.high %v2988, %v2988
      %v3550 = vunpack.c.l.s4 1983009808
      %v3551 = vunpack.c.0.s8 %v3550
      %v3552 = vlaneseq
      %v3553 = vshrl.u32 %v3552, 7
      %v3554 = vsub.s32 %v3551, %v3553
      %v3555 = vrot.slane %v2988, %v3554
      %v3557 = vunpack.c.l.s4 1983009808
      %v3558 = vunpack.c.0.s8 %v3557
      %v3559 = vlaneseq
      %v3560 = vshrl.u32 %v3559, 7
      %v3561 = vsub.s32 %v3558, %v3560
      %v3562 = vrot.slane %v3548, %v3561
      %v3563 = vcombine.high %v3555, %v3555
      %v3564 = vcombine.high %v3562, %v3562
      %v3693 = vsel %vm275, %v3028, -inf
      %v3694 = vrot.slane %v3693, 4
      %v3695 = vmax.f32 %v3693, %v3694
      %v3696 = vrot.slane %v3695, 2
      %v3697 = vmax.f32 %v3695, %v3696
      %v3698 = vrot.slane %v3697, 1
      %v3699 = vmax.f32 %v3697, %v3698
      %v3700 = vsel %vm275, %v3036, -inf
      %v3701 = vrot.slane %v3700, 4
      %v3702 = vmax.f32 %v3700, %v3701
      %v3703 = vrot.slane %v3702, 2
      %v3704 = vmax.f32 %v3702, %v3703
      %v3705 = vrot.slane %v3704, 1
      %v3706 = vmax.f32 %v3704, %v3705
      %v3707 = vsel %vm275, %v3035, -inf
      %v3708 = vrot.slane %v3707, 4
      %v3709 = vmax.f32 %v3707, %v3708
      %v3710 = vrot.slane %v3709, 2
      %v3711 = vmax.f32 %v3709, %v3710
      %v3712 = vrot.slane %v3711, 1
      %v3713 = vmax.f32 %v3711, %v3712
      %v3714 = vsel %vm275, %v3037, -inf
      %v3715 = vrot.slane %v3714, 4
      %v3716 = vmax.f32 %v3714, %v3715
      %v3717 = vrot.slane %v3716, 2
      %v3718 = vmax.f32 %v3716, %v3717
      %v3719 = vrot.slane %v3718, 1
      %v3720 = vmax.f32 %v3718, %v3719
      %v3721 = vsel %vm275, %v3045, -inf
      %v3722 = vrot.slane %v3721, 4
      %v3723 = vmax.f32 %v3721, %v3722
      %v3724 = vrot.slane %v3723, 2
      %v3725 = vmax.f32 %v3723, %v3724
      %v3726 = vrot.slane %v3725, 1
      %v3727 = vmax.f32 %v3725, %v3726
      %v3728 = vsel %vm275, %v3053, -inf
      %v3729 = vrot.slane %v3728, 4
      %v3730 = vmax.f32 %v3728, %v3729
      %v3731 = vrot.slane %v3730, 2
      %v3732 = vmax.f32 %v3730, %v3731
      %v3733 = vrot.slane %v3732, 1
      %v3734 = vmax.f32 %v3732, %v3733
      %v3735 = vsel %vm275, %v3052, -inf
      %v3736 = vrot.slane %v3735, 4
      %v3737 = vmax.f32 %v3735, %v3736
      %v3738 = vrot.slane %v3737, 2
      %v3739 = vmax.f32 %v3737, %v3738
      %v3740 = vrot.slane %v3739, 1
      %v3741 = vmax.f32 %v3739, %v3740
      %v3742 = vsel %vm275, %v3054, -inf
      %v3743 = vrot.slane %v3742, 4
      %v3744 = vmax.f32 %v3742, %v3743
      %v3745 = vrot.slane %v3744, 2
      %v3746 = vmax.f32 %v3744, %v3745
      %v3747 = vrot.slane %v3746, 1
      %v3748 = vmax.f32 %v3746, %v3747
      %v3749 = vsel %vm275, %v3062, -inf
      %v3750 = vrot.slane %v3749, 4
      %v3751 = vmax.f32 %v3749, %v3750
      %v3752 = vrot.slane %v3751, 2
      %v3753 = vmax.f32 %v3751, %v3752
      %v3754 = vrot.slane %v3753, 1
      %v3755 = vmax.f32 %v3753, %v3754
      %v3756 = vsel %vm275, %v3070, -inf
      %v3757 = vrot.slane %v3756, 4
      %v3758 = vmax.f32 %v3756, %v3757
      %v3759 = vrot.slane %v3758, 2
      %v3760 = vmax.f32 %v3758, %v3759
      %v3761 = vrot.slane %v3760, 1
      %v3762 = vmax.f32 %v3760, %v3761
      %v3763 = vsel %vm275, %v3069, -inf
      %v3764 = vrot.slane %v3763, 4
      %v3765 = vmax.f32 %v3763, %v3764
      %v3766 = vrot.slane %v3765, 2
      %v3767 = vmax.f32 %v3765, %v3766
      %v3768 = vrot.slane %v3767, 1
      %v3769 = vmax.f32 %v3767, %v3768
      %v3770 = vsel %vm275, %v3071, -inf
      %v3771 = vrot.slane %v3770, 4
      %v3772 = vmax.f32 %v3770, %v3771
      %v3773 = vrot.slane %v3772, 2
      %v3774 = vmax.f32 %v3772, %v3773
      %v3775 = vrot.slane %v3774, 1
      %v3776 = vmax.f32 %v3774, %v3775
      %v3777 = vsel %vm275, %v3079, -inf
      %v3778 = vrot.slane %v3777, 4
      %v3779 = vmax.f32 %v3777, %v3778
      %v3780 = vrot.slane %v3779, 2
      %v3781 = vmax.f32 %v3779, %v3780
      %v3782 = vrot.slane %v3781, 1
      %v3783 = vmax.f32 %v3781, %v3782
      %v3784 = vsel %vm275, %v3087, -inf
      %v3785 = vrot.slane %v3784, 4
      %v3786 = vmax.f32 %v3784, %v3785
      %v3787 = vrot.slane %v3786, 2
      %v3788 = vmax.f32 %v3786, %v3787
      %v3789 = vrot.slane %v3788, 1
      %v3790 = vmax.f32 %v3788, %v3789
      %v3791 = vsel %vm275, %v3086, -inf
      %v3792 = vrot.slane %v3791, 4
      %v3793 = vmax.f32 %v3791, %v3792
      %v3794 = vrot.slane %v3793, 2
      %v3795 = vmax.f32 %v3793, %v3794
      %v3796 = vrot.slane %v3795, 1
      %v3797 = vmax.f32 %v3795, %v3796
      %v3798 = vsel %vm275, %v3088, -inf
      %v3799 = vrot.slane %v3798, 4
      %v3800 = vmax.f32 %v3798, %v3799
      %v3801 = vrot.slane %v3800, 2
      %v3802 = vmax.f32 %v3800, %v3801
      %v3803 = vrot.slane %v3802, 1
      %v3804 = vmax.f32 %v3802, %v3803
      %v3805 = vsel %vm275, %v3096, -inf
      %v3806 = vrot.slane %v3805, 4
      %v3807 = vmax.f32 %v3805, %v3806
      %v3808 = vrot.slane %v3807, 2
      %v3809 = vmax.f32 %v3807, %v3808
      %v3810 = vrot.slane %v3809, 1
      %v3811 = vmax.f32 %v3809, %v3810
      %v3812 = vsel %vm275, %v3104, -inf
      %v3813 = vrot.slane %v3812, 4
      %v3814 = vmax.f32 %v3812, %v3813
      %v3815 = vrot.slane %v3814, 2
      %v3816 = vmax.f32 %v3814, %v3815
      %v3817 = vrot.slane %v3816, 1
      %v3818 = vmax.f32 %v3816, %v3817
      %v3819 = vsel %vm275, %v3103, -inf
      %v3820 = vrot.slane %v3819, 4
      %v3821 = vmax.f32 %v3819, %v3820
      %v3822 = vrot.slane %v3821, 2
      %v3823 = vmax.f32 %v3821, %v3822
      %v3824 = vrot.slane %v3823, 1
      %v3825 = vmax.f32 %v3823, %v3824
      %v3826 = vsel %vm275, %v3105, -inf
      %v3827 = vrot.slane %v3826, 4
      %v3828 = vmax.f32 %v3826, %v3827
      %v3829 = vrot.slane %v3828, 2
      %v3830 = vmax.f32 %v3828, %v3829
      %v3831 = vrot.slane %v3830, 1
      %v3832 = vmax.f32 %v3830, %v3831
      %v3833 = vsel %vm275, %v3113, -inf
      %v3834 = vrot.slane %v3833, 4
      %v3835 = vmax.f32 %v3833, %v3834
      %v3836 = vrot.slane %v3835, 2
      %v3837 = vmax.f32 %v3835, %v3836
      %v3838 = vrot.slane %v3837, 1
      %v3839 = vmax.f32 %v3837, %v3838
      %v3840 = vsel %vm275, %v3121, -inf
      %v3841 = vrot.slane %v3840, 4
      %v3842 = vmax.f32 %v3840, %v3841
      %v3843 = vrot.slane %v3842, 2
      %v3844 = vmax.f32 %v3842, %v3843
      %v3845 = vrot.slane %v3844, 1
      %v3846 = vmax.f32 %v3844, %v3845
      %v3847 = vsel %vm275, %v3120, -inf
      %v3848 = vrot.slane %v3847, 4
      %v3849 = vmax.f32 %v3847, %v3848
      %v3850 = vrot.slane %v3849, 2
      %v3851 = vmax.f32 %v3849, %v3850
      %v3852 = vrot.slane %v3851, 1
      %v3853 = vmax.f32 %v3851, %v3852
      %v3854 = vsel %vm275, %v3122, -inf
      %v3855 = vrot.slane %v3854, 4
      %v3856 = vmax.f32 %v3854, %v3855
      %v3857 = vrot.slane %v3856, 2
      %v3858 = vmax.f32 %v3856, %v3857
      %v3859 = vrot.slane %v3858, 1
      %v3860 = vmax.f32 %v3858, %v3859
      %v3861 = vsel %vm275, %v3130, -inf
      %v3862 = vrot.slane %v3861, 4
      %v3863 = vmax.f32 %v3861, %v3862
      %v3864 = vrot.slane %v3863, 2
      %v3865 = vmax.f32 %v3863, %v3864
      %v3866 = vrot.slane %v3865, 1
      %v3867 = vmax.f32 %v3865, %v3866
      %v3868 = vsel %vm275, %v3138, -inf
      %v3869 = vrot.slane %v3868, 4
      %v3870 = vmax.f32 %v3868, %v3869
      %v3871 = vrot.slane %v3870, 2
      %v3872 = vmax.f32 %v3870, %v3871
      %v3873 = vrot.slane %v3872, 1
      %v3874 = vmax.f32 %v3872, %v3873
      %v3875 = vsel %vm275, %v3137, -inf
      %v3876 = vrot.slane %v3875, 4
      %v3877 = vmax.f32 %v3875, %v3876
      %v3878 = vrot.slane %v3877, 2
      %v3879 = vmax.f32 %v3877, %v3878
      %v3880 = vrot.slane %v3879, 1
      %v3881 = vmax.f32 %v3879, %v3880
      %v3882 = vsel %vm275, %v3139, -inf
      %v3883 = vrot.slane %v3882, 4
      %v3884 = vmax.f32 %v3882, %v3883
      %v3885 = vrot.slane %v3884, 2
      %v3886 = vmax.f32 %v3884, %v3885
      %v3887 = vrot.slane %v3886, 1
      %v3888 = vmax.f32 %v3886, %v3887
      %v3889 = vsel %vm275, %v3147, -inf
      %v3890 = vrot.slane %v3889, 4
      %v3891 = vmax.f32 %v3889, %v3890
      %v3892 = vrot.slane %v3891, 2
      %v3893 = vmax.f32 %v3891, %v3892
      %v3894 = vrot.slane %v3893, 1
      %v3895 = vmax.f32 %v3893, %v3894
      %v3896 = vsel %vm275, %v3155, -inf
      %v3897 = vrot.slane %v3896, 4
      %v3898 = vmax.f32 %v3896, %v3897
      %v3899 = vrot.slane %v3898, 2
      %v3900 = vmax.f32 %v3898, %v3899
      %v3901 = vrot.slane %v3900, 1
      %v3902 = vmax.f32 %v3900, %v3901
      %v3903 = vsel %vm275, %v3154, -inf
      %v3904 = vrot.slane %v3903, 4
      %v3905 = vmax.f32 %v3903, %v3904
      %v3906 = vrot.slane %v3905, 2
      %v3907 = vmax.f32 %v3905, %v3906
      %v3908 = vrot.slane %v3907, 1
      %v3909 = vmax.f32 %v3907, %v3908
      %v3910 = vsel %vm275, %v3156, -inf
      %v3911 = vrot.slane %v3910, 4
      %v3912 = vmax.f32 %v3910, %v3911
      %v3913 = vrot.slane %v3912, 2
      %v3914 = vmax.f32 %v3912, %v3913
      %v3915 = vrot.slane %v3914, 1
      %v3916 = vmax.f32 %v3914, %v3915
      %v3917 = vsel %vm275, %v3164, -inf
      %v3918 = vrot.slane %v3917, 4
      %v3919 = vmax.f32 %v3917, %v3918
      %v3920 = vrot.slane %v3919, 2
      %v3921 = vmax.f32 %v3919, %v3920
      %v3922 = vrot.slane %v3921, 1
      %v3923 = vmax.f32 %v3921, %v3922
      %v3924 = vsel %vm275, %v3172, -inf
      %v3925 = vrot.slane %v3924, 4
      %v3926 = vmax.f32 %v3924, %v3925
      %v3927 = vrot.slane %v3926, 2
      %v3928 = vmax.f32 %v3926, %v3927
      %v3929 = vrot.slane %v3928, 1
      %v3930 = vmax.f32 %v3928, %v3929
      %v3931 = vsel %vm275, %v3171, -inf
      %v3932 = vrot.slane %v3931, 4
      %v3933 = vmax.f32 %v3931, %v3932
      %v3934 = vrot.slane %v3933, 2
      %v3935 = vmax.f32 %v3933, %v3934
      %v3936 = vrot.slane %v3935, 1
      %v3937 = vmax.f32 %v3935, %v3936
      %v3938 = vsel %vm275, %v3173, -inf
      %v3939 = vrot.slane %v3938, 4
      %v3940 = vmax.f32 %v3938, %v3939
      %v3941 = vrot.slane %v3940, 2
      %v3942 = vmax.f32 %v3940, %v3941
      %v3943 = vrot.slane %v3942, 1
      %v3944 = vmax.f32 %v3942, %v3943
      %v3945 = vsel %vm275, %v3181, -inf
      %v3946 = vrot.slane %v3945, 4
      %v3947 = vmax.f32 %v3945, %v3946
      %v3948 = vrot.slane %v3947, 2
      %v3949 = vmax.f32 %v3947, %v3948
      %v3950 = vrot.slane %v3949, 1
      %v3951 = vmax.f32 %v3949, %v3950
      %v3952 = vsel %vm275, %v3189, -inf
      %v3953 = vrot.slane %v3952, 4
      %v3954 = vmax.f32 %v3952, %v3953
      %v3955 = vrot.slane %v3954, 2
      %v3956 = vmax.f32 %v3954, %v3955
      %v3957 = vrot.slane %v3956, 1
      %v3958 = vmax.f32 %v3956, %v3957
      %v3959 = vsel %vm275, %v3188, -inf
      %v3960 = vrot.slane %v3959, 4
      %v3961 = vmax.f32 %v3959, %v3960
      %v3962 = vrot.slane %v3961, 2
      %v3963 = vmax.f32 %v3961, %v3962
      %v3964 = vrot.slane %v3963, 1
      %v3965 = vmax.f32 %v3963, %v3964
      %v3966 = vsel %vm275, %v3190, -inf
      %v3967 = vrot.slane %v3966, 4
      %v3968 = vmax.f32 %v3966, %v3967
      %v3969 = vrot.slane %v3968, 2
      %v3970 = vmax.f32 %v3968, %v3969
      %v3971 = vrot.slane %v3970, 1
      %v3972 = vmax.f32 %v3970, %v3971
      %v3973 = vsel %vm275, %v3198, -inf
      %v3974 = vrot.slane %v3973, 4
      %v3975 = vmax.f32 %v3973, %v3974
      %v3976 = vrot.slane %v3975, 2
      %v3977 = vmax.f32 %v3975, %v3976
      %v3978 = vrot.slane %v3977, 1
      %v3979 = vmax.f32 %v3977, %v3978
      %v3980 = vsel %vm275, %v3206, -inf
      %v3981 = vrot.slane %v3980, 4
      %v3982 = vmax.f32 %v3980, %v3981
      %v3983 = vrot.slane %v3982, 2
      %v3984 = vmax.f32 %v3982, %v3983
      %v3985 = vrot.slane %v3984, 1
      %v3986 = vmax.f32 %v3984, %v3985
      %v3987 = vsel %vm275, %v3205, -inf
      %v3988 = vrot.slane %v3987, 4
      %v3989 = vmax.f32 %v3987, %v3988
      %v3990 = vrot.slane %v3989, 2
      %v3991 = vmax.f32 %v3989, %v3990
      %v3992 = vrot.slane %v3991, 1
      %v3993 = vmax.f32 %v3991, %v3992
      %v3994 = vsel %vm275, %v3207, -inf
      %v3995 = vrot.slane %v3994, 4
      %v3996 = vmax.f32 %v3994, %v3995
      %v3997 = vrot.slane %v3996, 2
      %v3998 = vmax.f32 %v3996, %v3997
      %v3999 = vrot.slane %v3998, 1
      %v4000 = vmax.f32 %v3998, %v3999
      %v4001 = vsel %vm275, %v3215, -inf
      %v4002 = vrot.slane %v4001, 4
      %v4003 = vmax.f32 %v4001, %v4002
      %v4004 = vrot.slane %v4003, 2
      %v4005 = vmax.f32 %v4003, %v4004
      %v4006 = vrot.slane %v4005, 1
      %v4007 = vmax.f32 %v4005, %v4006
      %v4008 = vsel %vm275, %v3223, -inf
      %v4009 = vrot.slane %v4008, 4
      %v4010 = vmax.f32 %v4008, %v4009
      %v4011 = vrot.slane %v4010, 2
      %v4012 = vmax.f32 %v4010, %v4011
      %v4013 = vrot.slane %v4012, 1
      %v4014 = vmax.f32 %v4012, %v4013
      %v4015 = vsel %vm275, %v3222, -inf
      %v4016 = vrot.slane %v4015, 4
      %v4017 = vmax.f32 %v4015, %v4016
      %v4018 = vrot.slane %v4017, 2
      %v4019 = vmax.f32 %v4017, %v4018
      %v4020 = vrot.slane %v4019, 1
      %v4021 = vmax.f32 %v4019, %v4020
      %v4022 = vsel %vm275, %v3224, -inf
      %v4023 = vrot.slane %v4022, 4
      %v4024 = vmax.f32 %v4022, %v4023
      %v4025 = vrot.slane %v4024, 2
      %v4026 = vmax.f32 %v4024, %v4025
      %v4027 = vrot.slane %v4026, 1
      %v4028 = vmax.f32 %v4026, %v4027
      %v4029 = vsel %vm275, %v3232, -inf
      %v4030 = vrot.slane %v4029, 4
      %v4031 = vmax.f32 %v4029, %v4030
      %v4032 = vrot.slane %v4031, 2
      %v4033 = vmax.f32 %v4031, %v4032
      %v4034 = vrot.slane %v4033, 1
      %v4035 = vmax.f32 %v4033, %v4034
      %v4036 = vsel %vm275, %v3240, -inf
      %v4037 = vrot.slane %v4036, 4
      %v4038 = vmax.f32 %v4036, %v4037
      %v4039 = vrot.slane %v4038, 2
      %v4040 = vmax.f32 %v4038, %v4039
      %v4041 = vrot.slane %v4040, 1
      %v4042 = vmax.f32 %v4040, %v4041
      %v4043 = vsel %vm275, %v3239, -inf
      %v4044 = vrot.slane %v4043, 4
      %v4045 = vmax.f32 %v4043, %v4044
      %v4046 = vrot.slane %v4045, 2
      %v4047 = vmax.f32 %v4045, %v4046
      %v4048 = vrot.slane %v4047, 1
      %v4049 = vmax.f32 %v4047, %v4048
      %v4050 = vsel %vm275, %v3241, -inf
      %v4051 = vrot.slane %v4050, 4
      %v4052 = vmax.f32 %v4050, %v4051
      %v4053 = vrot.slane %v4052, 2
      %v4054 = vmax.f32 %v4052, %v4053
      %v4055 = vrot.slane %v4054, 1
      %v4056 = vmax.f32 %v4054, %v4055
      %v4057 = vsel %vm275, %v3249, -inf
      %v4058 = vrot.slane %v4057, 4
      %v4059 = vmax.f32 %v4057, %v4058
      %v4060 = vrot.slane %v4059, 2
      %v4061 = vmax.f32 %v4059, %v4060
      %v4062 = vrot.slane %v4061, 1
      %v4063 = vmax.f32 %v4061, %v4062
      %v4064 = vsel %vm275, %v3257, -inf
      %v4065 = vrot.slane %v4064, 4
      %v4066 = vmax.f32 %v4064, %v4065
      %v4067 = vrot.slane %v4066, 2
      %v4068 = vmax.f32 %v4066, %v4067
      %v4069 = vrot.slane %v4068, 1
      %v4070 = vmax.f32 %v4068, %v4069
      %v4071 = vsel %vm275, %v3256, -inf
      %v4072 = vrot.slane %v4071, 4
      %v4073 = vmax.f32 %v4071, %v4072
      %v4074 = vrot.slane %v4073, 2
      %v4075 = vmax.f32 %v4073, %v4074
      %v4076 = vrot.slane %v4075, 1
      %v4077 = vmax.f32 %v4075, %v4076
      %v4078 = vsel %vm275, %v3258, -inf
      %v4079 = vrot.slane %v4078, 4
      %v4080 = vmax.f32 %v4078, %v4079
      %v4081 = vrot.slane %v4080, 2
      %v4082 = vmax.f32 %v4080, %v4081
      %v4083 = vrot.slane %v4082, 1
      %v4084 = vmax.f32 %v4082, %v4083
      %v4085 = vsel %vm275, %v3266, -inf
      %v4086 = vrot.slane %v4085, 4
      %v4087 = vmax.f32 %v4085, %v4086
      %v4088 = vrot.slane %v4087, 2
      %v4089 = vmax.f32 %v4087, %v4088
      %v4090 = vrot.slane %v4089, 1
      %v4091 = vmax.f32 %v4089, %v4090
      %v4092 = vsel %vm275, %v3274, -inf
      %v4093 = vrot.slane %v4092, 4
      %v4094 = vmax.f32 %v4092, %v4093
      %v4095 = vrot.slane %v4094, 2
      %v4096 = vmax.f32 %v4094, %v4095
      %v4097 = vrot.slane %v4096, 1
      %v4098 = vmax.f32 %v4096, %v4097
      %v4099 = vsel %vm275, %v3273, -inf
      %v4100 = vrot.slane %v4099, 4
      %v4101 = vmax.f32 %v4099, %v4100
      %v4102 = vrot.slane %v4101, 2
      %v4103 = vmax.f32 %v4101, %v4102
      %v4104 = vrot.slane %v4103, 1
      %v4105 = vmax.f32 %v4103, %v4104
      %v4106 = vsel %vm275, %v3275, -inf
      %v4107 = vrot.slane %v4106, 4
      %v4108 = vmax.f32 %v4106, %v4107
      %v4109 = vrot.slane %v4108, 2
      %v4110 = vmax.f32 %v4108, %v4109
      %v4111 = vrot.slane %v4110, 1
      %v4112 = vmax.f32 %v4110, %v4111
      %v4113 = vsel %vm275, %v3283, -inf
      %v4114 = vrot.slane %v4113, 4
      %v4115 = vmax.f32 %v4113, %v4114
      %v4116 = vrot.slane %v4115, 2
      %v4117 = vmax.f32 %v4115, %v4116
      %v4118 = vrot.slane %v4117, 1
      %v4119 = vmax.f32 %v4117, %v4118
      %v4120 = vsel %vm275, %v3291, -inf
      %v4121 = vrot.slane %v4120, 4
      %v4122 = vmax.f32 %v4120, %v4121
      %v4123 = vrot.slane %v4122, 2
      %v4124 = vmax.f32 %v4122, %v4123
      %v4125 = vrot.slane %v4124, 1
      %v4126 = vmax.f32 %v4124, %v4125
      %v4127 = vsel %vm275, %v3290, -inf
      %v4128 = vrot.slane %v4127, 4
      %v4129 = vmax.f32 %v4127, %v4128
      %v4130 = vrot.slane %v4129, 2
      %v4131 = vmax.f32 %v4129, %v4130
      %v4132 = vrot.slane %v4131, 1
      %v4133 = vmax.f32 %v4131, %v4132
      %v4134 = vsel %vm275, %v3292, -inf
      %v4135 = vrot.slane %v4134, 4
      %v4136 = vmax.f32 %v4134, %v4135
      %v4137 = vrot.slane %v4136, 2
      %v4138 = vmax.f32 %v4136, %v4137
      %v4139 = vrot.slane %v4138, 1
      %v4140 = vmax.f32 %v4138, %v4139
      %v4141 = vsel %vm275, %v3300, -inf
      %v4142 = vrot.slane %v4141, 4
      %v4143 = vmax.f32 %v4141, %v4142
      %v4144 = vrot.slane %v4143, 2
      %v4145 = vmax.f32 %v4143, %v4144
      %v4146 = vrot.slane %v4145, 1
      %v4147 = vmax.f32 %v4145, %v4146
      %v4148 = vsel %vm275, %v3308, -inf
      %v4149 = vrot.slane %v4148, 4
      %v4150 = vmax.f32 %v4148, %v4149
      %v4151 = vrot.slane %v4150, 2
      %v4152 = vmax.f32 %v4150, %v4151
      %v4153 = vrot.slane %v4152, 1
      %v4154 = vmax.f32 %v4152, %v4153
      %v4155 = vsel %vm275, %v3307, -inf
      %v4156 = vrot.slane %v4155, 4
      %v4157 = vmax.f32 %v4155, %v4156
      %v4158 = vrot.slane %v4157, 2
      %v4159 = vmax.f32 %v4157, %v4158
      %v4160 = vrot.slane %v4159, 1
      %v4161 = vmax.f32 %v4159, %v4160
      %v4162 = vsel %vm275, %v3309, -inf
      %v4163 = vrot.slane %v4162, 4
      %v4164 = vmax.f32 %v4162, %v4163
      %v4165 = vrot.slane %v4164, 2
      %v4166 = vmax.f32 %v4164, %v4165
      %v4167 = vrot.slane %v4166, 1
      %v4168 = vmax.f32 %v4166, %v4167
      %v4169 = vsel %vm275, %v3317, -inf
      %v4170 = vrot.slane %v4169, 4
      %v4171 = vmax.f32 %v4169, %v4170
      %v4172 = vrot.slane %v4171, 2
      %v4173 = vmax.f32 %v4171, %v4172
      %v4174 = vrot.slane %v4173, 1
      %v4175 = vmax.f32 %v4173, %v4174
      %v4176 = vsel %vm275, %v3325, -inf
      %v4177 = vrot.slane %v4176, 4
      %v4178 = vmax.f32 %v4176, %v4177
      %v4179 = vrot.slane %v4178, 2
      %v4180 = vmax.f32 %v4178, %v4179
      %v4181 = vrot.slane %v4180, 1
      %v4182 = vmax.f32 %v4180, %v4181
      %v4183 = vsel %vm275, %v3324, -inf
      %v4184 = vrot.slane %v4183, 4
      %v4185 = vmax.f32 %v4183, %v4184
      %v4186 = vrot.slane %v4185, 2
      %v4187 = vmax.f32 %v4185, %v4186
      %v4188 = vrot.slane %v4187, 1
      %v4189 = vmax.f32 %v4187, %v4188
      %v4190 = vsel %vm275, %v3326, -inf
      %v4191 = vrot.slane %v4190, 4
      %v4192 = vmax.f32 %v4190, %v4191
      %v4193 = vrot.slane %v4192, 2
      %v4194 = vmax.f32 %v4192, %v4193
      %v4195 = vrot.slane %v4194, 1
      %v4196 = vmax.f32 %v4194, %v4195
      %v4197 = vsel %vm275, %v3334, -inf
      %v4198 = vrot.slane %v4197, 4
      %v4199 = vmax.f32 %v4197, %v4198
      %v4200 = vrot.slane %v4199, 2
      %v4201 = vmax.f32 %v4199, %v4200
      %v4202 = vrot.slane %v4201, 1
      %v4203 = vmax.f32 %v4201, %v4202
      %v4204 = vsel %vm275, %v3342, -inf
      %v4205 = vrot.slane %v4204, 4
      %v4206 = vmax.f32 %v4204, %v4205
      %v4207 = vrot.slane %v4206, 2
      %v4208 = vmax.f32 %v4206, %v4207
      %v4209 = vrot.slane %v4208, 1
      %v4210 = vmax.f32 %v4208, %v4209
      %v4211 = vsel %vm275, %v3341, -inf
      %v4212 = vrot.slane %v4211, 4
      %v4213 = vmax.f32 %v4211, %v4212
      %v4214 = vrot.slane %v4213, 2
      %v4215 = vmax.f32 %v4213, %v4214
      %v4216 = vrot.slane %v4215, 1
      %v4217 = vmax.f32 %v4215, %v4216
      %v4218 = vsel %vm275, %v3343, -inf
      %v4219 = vrot.slane %v4218, 4
      %v4220 = vmax.f32 %v4218, %v4219
      %v4221 = vrot.slane %v4220, 2
      %v4222 = vmax.f32 %v4220, %v4221
      %v4223 = vrot.slane %v4222, 1
      %v4224 = vmax.f32 %v4222, %v4223
      %v4225 = vsel %vm275, %v3351, -inf
      %v4226 = vrot.slane %v4225, 4
      %v4227 = vmax.f32 %v4225, %v4226
      %v4228 = vrot.slane %v4227, 2
      %v4229 = vmax.f32 %v4227, %v4228
      %v4230 = vrot.slane %v4229, 1
      %v4231 = vmax.f32 %v4229, %v4230
      %v4232 = vsel %vm275, %v3359, -inf
      %v4233 = vrot.slane %v4232, 4
      %v4234 = vmax.f32 %v4232, %v4233
      %v4235 = vrot.slane %v4234, 2
      %v4236 = vmax.f32 %v4234, %v4235
      %v4237 = vrot.slane %v4236, 1
      %v4238 = vmax.f32 %v4236, %v4237
      %v4239 = vsel %vm275, %v3358, -inf
      %v4240 = vrot.slane %v4239, 4
      %v4241 = vmax.f32 %v4239, %v4240
      %v4242 = vrot.slane %v4241, 2
      %v4243 = vmax.f32 %v4241, %v4242
      %v4244 = vrot.slane %v4243, 1
      %v4245 = vmax.f32 %v4243, %v4244
      %v4246 = vsel %vm275, %v3360, -inf
      %v4247 = vrot.slane %v4246, 4
      %v4248 = vmax.f32 %v4246, %v4247
      %v4249 = vrot.slane %v4248, 2
      %v4250 = vmax.f32 %v4248, %v4249
      %v4251 = vrot.slane %v4250, 1
      %v4252 = vmax.f32 %v4250, %v4251
      %v4253 = vsel %vm275, %v3368, -inf
      %v4254 = vrot.slane %v4253, 4
      %v4255 = vmax.f32 %v4253, %v4254
      %v4256 = vrot.slane %v4255, 2
      %v4257 = vmax.f32 %v4255, %v4256
      %v4258 = vrot.slane %v4257, 1
      %v4259 = vmax.f32 %v4257, %v4258
      %v4260 = vsel %vm275, %v3376, -inf
      %v4261 = vrot.slane %v4260, 4
      %v4262 = vmax.f32 %v4260, %v4261
      %v4263 = vrot.slane %v4262, 2
      %v4264 = vmax.f32 %v4262, %v4263
      %v4265 = vrot.slane %v4264, 1
      %v4266 = vmax.f32 %v4264, %v4265
      %v4267 = vsel %vm275, %v3375, -inf
      %v4268 = vrot.slane %v4267, 4
      %v4269 = vmax.f32 %v4267, %v4268
      %v4270 = vrot.slane %v4269, 2
      %v4271 = vmax.f32 %v4269, %v4270
      %v4272 = vrot.slane %v4271, 1
      %v4273 = vmax.f32 %v4271, %v4272
      %v4274 = vsel %vm275, %v3377, -inf
      %v4275 = vrot.slane %v4274, 4
      %v4276 = vmax.f32 %v4274, %v4275
      %v4277 = vrot.slane %v4276, 2
      %v4278 = vmax.f32 %v4276, %v4277
      %v4279 = vrot.slane %v4278, 1
      %v4280 = vmax.f32 %v4278, %v4279
      %v4281 = vsel %vm275, %v3385, -inf
      %v4282 = vrot.slane %v4281, 4
      %v4283 = vmax.f32 %v4281, %v4282
      %v4284 = vrot.slane %v4283, 2
      %v4285 = vmax.f32 %v4283, %v4284
      %v4286 = vrot.slane %v4285, 1
      %v4287 = vmax.f32 %v4285, %v4286
      %v4288 = vsel %vm275, %v3393, -inf
      %v4289 = vrot.slane %v4288, 4
      %v4290 = vmax.f32 %v4288, %v4289
      %v4291 = vrot.slane %v4290, 2
      %v4292 = vmax.f32 %v4290, %v4291
      %v4293 = vrot.slane %v4292, 1
      %v4294 = vmax.f32 %v4292, %v4293
      %v4295 = vsel %vm275, %v3392, -inf
      %v4296 = vrot.slane %v4295, 4
      %v4297 = vmax.f32 %v4295, %v4296
      %v4298 = vrot.slane %v4297, 2
      %v4299 = vmax.f32 %v4297, %v4298
      %v4300 = vrot.slane %v4299, 1
      %v4301 = vmax.f32 %v4299, %v4300
      %v4302 = vsel %vm275, %v3394, -inf
      %v4303 = vrot.slane %v4302, 4
      %v4304 = vmax.f32 %v4302, %v4303
      %v4305 = vrot.slane %v4304, 2
      %v4306 = vmax.f32 %v4304, %v4305
      %v4307 = vrot.slane %v4306, 1
      %v4308 = vmax.f32 %v4306, %v4307
      %v4309 = vsel %vm275, %v3402, -inf
      %v4310 = vrot.slane %v4309, 4
      %v4311 = vmax.f32 %v4309, %v4310
      %v4312 = vrot.slane %v4311, 2
      %v4313 = vmax.f32 %v4311, %v4312
      %v4314 = vrot.slane %v4313, 1
      %v4315 = vmax.f32 %v4313, %v4314
      %v4316 = vsel %vm275, %v3410, -inf
      %v4317 = vrot.slane %v4316, 4
      %v4318 = vmax.f32 %v4316, %v4317
      %v4319 = vrot.slane %v4318, 2
      %v4320 = vmax.f32 %v4318, %v4319
      %v4321 = vrot.slane %v4320, 1
      %v4322 = vmax.f32 %v4320, %v4321
      %v4323 = vsel %vm275, %v3409, -inf
      %v4324 = vrot.slane %v4323, 4
      %v4325 = vmax.f32 %v4323, %v4324
      %v4326 = vrot.slane %v4325, 2
      %v4327 = vmax.f32 %v4325, %v4326
      %v4328 = vrot.slane %v4327, 1
      %v4329 = vmax.f32 %v4327, %v4328
      %v4330 = vsel %vm275, %v3411, -inf
      %v4331 = vrot.slane %v4330, 4
      %v4332 = vmax.f32 %v4330, %v4331
      %v4333 = vrot.slane %v4332, 2
      %v4334 = vmax.f32 %v4332, %v4333
      %v4335 = vrot.slane %v4334, 1
      %v4336 = vmax.f32 %v4334, %v4335
      %v4337 = vsel %vm275, %v3419, -inf
      %v4338 = vrot.slane %v4337, 4
      %v4339 = vmax.f32 %v4337, %v4338
      %v4340 = vrot.slane %v4339, 2
      %v4341 = vmax.f32 %v4339, %v4340
      %v4342 = vrot.slane %v4341, 1
      %v4343 = vmax.f32 %v4341, %v4342
      %v4344 = vsel %vm275, %v3427, -inf
      %v4345 = vrot.slane %v4344, 4
      %v4346 = vmax.f32 %v4344, %v4345
      %v4347 = vrot.slane %v4346, 2
      %v4348 = vmax.f32 %v4346, %v4347
      %v4349 = vrot.slane %v4348, 1
      %v4350 = vmax.f32 %v4348, %v4349
      %v4351 = vsel %vm275, %v3426, -inf
      %v4352 = vrot.slane %v4351, 4
      %v4353 = vmax.f32 %v4351, %v4352
      %v4354 = vrot.slane %v4353, 2
      %v4355 = vmax.f32 %v4353, %v4354
      %v4356 = vrot.slane %v4355, 1
      %v4357 = vmax.f32 %v4355, %v4356
      %v4358 = vsel %vm275, %v3428, -inf
      %v4359 = vrot.slane %v4358, 4
      %v4360 = vmax.f32 %v4358, %v4359
      %v4361 = vrot.slane %v4360, 2
      %v4362 = vmax.f32 %v4360, %v4361
      %v4363 = vrot.slane %v4362, 1
      %v4364 = vmax.f32 %v4362, %v4363
      %v4365 = vsel %vm275, %v3436, -inf
      %v4366 = vrot.slane %v4365, 4
      %v4367 = vmax.f32 %v4365, %v4366
      %v4368 = vrot.slane %v4367, 2
      %v4369 = vmax.f32 %v4367, %v4368
      %v4370 = vrot.slane %v4369, 1
      %v4371 = vmax.f32 %v4369, %v4370
      %v4372 = vsel %vm275, %v3444, -inf
      %v4373 = vrot.slane %v4372, 4
      %v4374 = vmax.f32 %v4372, %v4373
      %v4375 = vrot.slane %v4374, 2
      %v4376 = vmax.f32 %v4374, %v4375
      %v4377 = vrot.slane %v4376, 1
      %v4378 = vmax.f32 %v4376, %v4377
      %v4379 = vsel %vm275, %v3443, -inf
      %v4380 = vrot.slane %v4379, 4
      %v4381 = vmax.f32 %v4379, %v4380
      %v4382 = vrot.slane %v4381, 2
      %v4383 = vmax.f32 %v4381, %v4382
      %v4384 = vrot.slane %v4383, 1
      %v4385 = vmax.f32 %v4383, %v4384
      %v4386 = vsel %vm275, %v3445, -inf
      %v4387 = vrot.slane %v4386, 4
      %v4388 = vmax.f32 %v4386, %v4387
      %v4389 = vrot.slane %v4388, 2
      %v4390 = vmax.f32 %v4388, %v4389
      %v4391 = vrot.slane %v4390, 1
      %v4392 = vmax.f32 %v4390, %v4391
      %v4393 = vsel %vm275, %v3453, -inf
      %v4394 = vrot.slane %v4393, 4
      %v4395 = vmax.f32 %v4393, %v4394
      %v4396 = vrot.slane %v4395, 2
      %v4397 = vmax.f32 %v4395, %v4396
      %v4398 = vrot.slane %v4397, 1
      %v4399 = vmax.f32 %v4397, %v4398
      %v4400 = vsel %vm275, %v3461, -inf
      %v4401 = vrot.slane %v4400, 4
      %v4402 = vmax.f32 %v4400, %v4401
      %v4403 = vrot.slane %v4402, 2
      %v4404 = vmax.f32 %v4402, %v4403
      %v4405 = vrot.slane %v4404, 1
      %v4406 = vmax.f32 %v4404, %v4405
      %v4407 = vsel %vm275, %v3460, -inf
      %v4408 = vrot.slane %v4407, 4
      %v4409 = vmax.f32 %v4407, %v4408
      %v4410 = vrot.slane %v4409, 2
      %v4411 = vmax.f32 %v4409, %v4410
      %v4412 = vrot.slane %v4411, 1
      %v4413 = vmax.f32 %v4411, %v4412
      %v4414 = vsel %vm275, %v3462, -inf
      %v4415 = vrot.slane %v4414, 4
      %v4416 = vmax.f32 %v4414, %v4415
      %v4417 = vrot.slane %v4416, 2
      %v4418 = vmax.f32 %v4416, %v4417
      %v4419 = vrot.slane %v4418, 1
      %v4420 = vmax.f32 %v4418, %v4419
      %v4421 = vsel %vm275, %v3470, -inf
      %v4422 = vrot.slane %v4421, 4
      %v4423 = vmax.f32 %v4421, %v4422
      %v4424 = vrot.slane %v4423, 2
      %v4425 = vmax.f32 %v4423, %v4424
      %v4426 = vrot.slane %v4425, 1
      %v4427 = vmax.f32 %v4425, %v4426
      %v4428 = vsel %vm275, %v3478, -inf
      %v4429 = vrot.slane %v4428, 4
      %v4430 = vmax.f32 %v4428, %v4429
      %v4431 = vrot.slane %v4430, 2
      %v4432 = vmax.f32 %v4430, %v4431
      %v4433 = vrot.slane %v4432, 1
      %v4434 = vmax.f32 %v4432, %v4433
      %v4435 = vsel %vm275, %v3477, -inf
      %v4436 = vrot.slane %v4435, 4
      %v4437 = vmax.f32 %v4435, %v4436
      %v4438 = vrot.slane %v4437, 2
      %v4439 = vmax.f32 %v4437, %v4438
      %v4440 = vrot.slane %v4439, 1
      %v4441 = vmax.f32 %v4439, %v4440
      %v4442 = vsel %vm275, %v3479, -inf
      %v4443 = vrot.slane %v4442, 4
      %v4444 = vmax.f32 %v4442, %v4443
      %v4445 = vrot.slane %v4444, 2
      %v4446 = vmax.f32 %v4444, %v4445
      %v4447 = vrot.slane %v4446, 1
      %v4448 = vmax.f32 %v4446, %v4447
      %v4449 = vsel %vm275, %v3487, -inf
      %v4450 = vrot.slane %v4449, 4
      %v4451 = vmax.f32 %v4449, %v4450
      %v4452 = vrot.slane %v4451, 2
      %v4453 = vmax.f32 %v4451, %v4452
      %v4454 = vrot.slane %v4453, 1
      %v4455 = vmax.f32 %v4453, %v4454
      %v4456 = vsel %vm275, %v3495, -inf
      %v4457 = vrot.slane %v4456, 4
      %v4458 = vmax.f32 %v4456, %v4457
      %v4459 = vrot.slane %v4458, 2
      %v4460 = vmax.f32 %v4458, %v4459
      %v4461 = vrot.slane %v4460, 1
      %v4462 = vmax.f32 %v4460, %v4461
      %v4463 = vsel %vm275, %v3494, -inf
      %v4464 = vrot.slane %v4463, 4
      %v4465 = vmax.f32 %v4463, %v4464
      %v4466 = vrot.slane %v4465, 2
      %v4467 = vmax.f32 %v4465, %v4466
      %v4468 = vrot.slane %v4467, 1
      %v4469 = vmax.f32 %v4467, %v4468
      %v4470 = vsel %vm275, %v3496, -inf
      %v4471 = vrot.slane %v4470, 4
      %v4472 = vmax.f32 %v4470, %v4471
      %v4473 = vrot.slane %v4472, 2
      %v4474 = vmax.f32 %v4472, %v4473
      %v4475 = vrot.slane %v4474, 1
      %v4476 = vmax.f32 %v4474, %v4475
      %v4477 = vsel %vm275, %v3504, -inf
      %v4478 = vrot.slane %v4477, 4
      %v4479 = vmax.f32 %v4477, %v4478
      %v4480 = vrot.slane %v4479, 2
      %v4481 = vmax.f32 %v4479, %v4480
      %v4482 = vrot.slane %v4481, 1
      %v4483 = vmax.f32 %v4481, %v4482
      %v4484 = vsel %vm275, %v3512, -inf
      %v4485 = vrot.slane %v4484, 4
      %v4486 = vmax.f32 %v4484, %v4485
      %v4487 = vrot.slane %v4486, 2
      %v4488 = vmax.f32 %v4486, %v4487
      %v4489 = vrot.slane %v4488, 1
      %v4490 = vmax.f32 %v4488, %v4489
      %v4491 = vsel %vm275, %v3511, -inf
      %v4492 = vrot.slane %v4491, 4
      %v4493 = vmax.f32 %v4491, %v4492
      %v4494 = vrot.slane %v4493, 2
      %v4495 = vmax.f32 %v4493, %v4494
      %v4496 = vrot.slane %v4495, 1
      %v4497 = vmax.f32 %v4495, %v4496
      %v4498 = vsel %vm275, %v3513, -inf
      %v4499 = vrot.slane %v4498, 4
      %v4500 = vmax.f32 %v4498, %v4499
      %v4501 = vrot.slane %v4500, 2
      %v4502 = vmax.f32 %v4500, %v4501
      %v4503 = vrot.slane %v4502, 1
      %v4504 = vmax.f32 %v4502, %v4503
      %v4505 = vsel %vm275, %v3521, -inf
      %v4506 = vrot.slane %v4505, 4
      %v4507 = vmax.f32 %v4505, %v4506
      %v4508 = vrot.slane %v4507, 2
      %v4509 = vmax.f32 %v4507, %v4508
      %v4510 = vrot.slane %v4509, 1
      %v4511 = vmax.f32 %v4509, %v4510
      %v4512 = vsel %vm275, %v3529, -inf
      %v4513 = vrot.slane %v4512, 4
      %v4514 = vmax.f32 %v4512, %v4513
      %v4515 = vrot.slane %v4514, 2
      %v4516 = vmax.f32 %v4514, %v4515
      %v4517 = vrot.slane %v4516, 1
      %v4518 = vmax.f32 %v4516, %v4517
      %v4519 = vsel %vm275, %v3528, -inf
      %v4520 = vrot.slane %v4519, 4
      %v4521 = vmax.f32 %v4519, %v4520
      %v4522 = vrot.slane %v4521, 2
      %v4523 = vmax.f32 %v4521, %v4522
      %v4524 = vrot.slane %v4523, 1
      %v4525 = vmax.f32 %v4523, %v4524
      %v4526 = vsel %vm275, %v3530, -inf
      %v4527 = vrot.slane %v4526, 4
      %v4528 = vmax.f32 %v4526, %v4527
      %v4529 = vrot.slane %v4528, 2
      %v4530 = vmax.f32 %v4528, %v4529
      %v4531 = vrot.slane %v4530, 1
      %v4532 = vmax.f32 %v4530, %v4531
      %v4533 = vsel %vm275, %v3538, -inf
      %v4534 = vrot.slane %v4533, 4
      %v4535 = vmax.f32 %v4533, %v4534
      %v4536 = vrot.slane %v4535, 2
      %v4537 = vmax.f32 %v4535, %v4536
      %v4538 = vrot.slane %v4537, 1
      %v4539 = vmax.f32 %v4537, %v4538
      %v4540 = vsel %vm275, %v3546, -inf
      %v4541 = vrot.slane %v4540, 4
      %v4542 = vmax.f32 %v4540, %v4541
      %v4543 = vrot.slane %v4542, 2
      %v4544 = vmax.f32 %v4542, %v4543
      %v4545 = vrot.slane %v4544, 1
      %v4546 = vmax.f32 %v4544, %v4545
      %v4547 = vsel %vm275, %v3545, -inf
      %v4548 = vrot.slane %v4547, 4
      %v4549 = vmax.f32 %v4547, %v4548
      %v4550 = vrot.slane %v4549, 2
      %v4551 = vmax.f32 %v4549, %v4550
      %v4552 = vrot.slane %v4551, 1
      %v4553 = vmax.f32 %v4551, %v4552
      %v4554 = vsel %vm275, %v3547, -inf
      %v4555 = vrot.slane %v4554, 4
      %v4556 = vmax.f32 %v4554, %v4555
      %v4557 = vrot.slane %v4556, 2
      %v4558 = vmax.f32 %v4556, %v4557
      %v4559 = vrot.slane %v4558, 1
      %v4560 = vmax.f32 %v4558, %v4559
      %v4561 = vsel %vm275, %v3555, -inf
      %v4562 = vrot.slane %v4561, 4
      %v4563 = vmax.f32 %v4561, %v4562
      %v4564 = vrot.slane %v4563, 2
      %v4565 = vmax.f32 %v4563, %v4564
      %v4566 = vrot.slane %v4565, 1
      %v4567 = vmax.f32 %v4565, %v4566
      %v4568 = vsel %vm275, %v3563, -inf
      %v4569 = vrot.slane %v4568, 4
      %v4570 = vmax.f32 %v4568, %v4569
      %v4571 = vrot.slane %v4570, 2
      %v4572 = vmax.f32 %v4570, %v4571
      %v4573 = vrot.slane %v4572, 1
      %v4574 = vmax.f32 %v4572, %v4573
      %v4575 = vsel %vm275, %v3562, -inf
      %v4576 = vrot.slane %v4575, 4
      %v4577 = vmax.f32 %v4575, %v4576
      %v4578 = vrot.slane %v4577, 2
      %v4579 = vmax.f32 %v4577, %v4578
      %v4580 = vrot.slane %v4579, 1
      %v4581 = vmax.f32 %v4579, %v4580
      %v4582 = vsel %vm275, %v3564, -inf
      %v4583 = vrot.slane %v4582, 4
      %v4584 = vmax.f32 %v4582, %v4583
      %v4585 = vrot.slane %v4584, 2
      %v4586 = vmax.f32 %v4584, %v4585
      %v4587 = vrot.slane %v4586, 1
      %v4588 = vmax.f32 %v4586, %v4587
      %v4589 = vsel %vm273, %v3699, -inf
      %v4590 = vsel %vm273, %v3755, -inf
      %v4591 = vmax.f32 %v4589, %v4590
      %v4592 = vsel %vm273, %v3706, -inf
      %v4593 = vsel %vm273, %v3762, -inf
      %v4594 = vmax.f32 %v4592, %v4593
      %v4595 = vsel %vm273, %v3713, -inf
      %v4596 = vsel %vm273, %v3769, -inf
      %v4597 = vmax.f32 %v4595, %v4596
      %v4598 = vsel %vm273, %v3720, -inf
      %v4599 = vsel %vm273, %v3776, -inf
      %v4600 = vmax.f32 %v4598, %v4599
      %v4601 = vsel %vm273, %v3727, -inf
      %v4602 = vsel %vm273, %v3783, -inf
      %v4603 = vmax.f32 %v4601, %v4602
      %v4604 = vsel %vm273, %v3734, -inf
      %v4605 = vsel %vm273, %v3790, -inf
      %v4606 = vmax.f32 %v4604, %v4605
      %v4607 = vsel %vm273, %v3741, -inf
      %v4608 = vsel %vm273, %v3797, -inf
      %v4609 = vmax.f32 %v4607, %v4608
      %v4610 = vsel %vm273, %v3748, -inf
      %v4611 = vsel %vm273, %v3804, -inf
      %v4612 = vmax.f32 %v4610, %v4611
      %v4613 = vsel %vm273, %v3811, -inf
      %v4614 = vsel %vm273, %v3867, -inf
      %v4615 = vmax.f32 %v4613, %v4614
      %v4616 = vsel %vm273, %v3818, -inf
      %v4617 = vsel %vm273, %v3874, -inf
      %v4618 = vmax.f32 %v4616, %v4617
      %v4619 = vsel %vm273, %v3825, -inf
      %v4620 = vsel %vm273, %v3881, -inf
      %v4621 = vmax.f32 %v4619, %v4620
      %v4622 = vsel %vm273, %v3832, -inf
      %v4623 = vsel %vm273, %v3888, -inf
      %v4624 = vmax.f32 %v4622, %v4623
      %v4625 = vsel %vm273, %v3839, -inf
      %v4626 = vsel %vm273, %v3895, -inf
      %v4627 = vmax.f32 %v4625, %v4626
      %v4628 = vsel %vm273, %v3846, -inf
      %v4629 = vsel %vm273, %v3902, -inf
      %v4630 = vmax.f32 %v4628, %v4629
      %v4631 = vsel %vm273, %v3853, -inf
      %v4632 = vsel %vm273, %v3909, -inf
      %v4633 = vmax.f32 %v4631, %v4632
      %v4634 = vsel %vm273, %v3860, -inf
      %v4635 = vsel %vm273, %v3916, -inf
      %v4636 = vmax.f32 %v4634, %v4635
      %v4637 = vsel %vm273, %v3923, -inf
      %v4638 = vsel %vm273, %v3979, -inf
      %v4639 = vmax.f32 %v4637, %v4638
      %v4640 = vsel %vm273, %v3930, -inf
      %v4641 = vsel %vm273, %v3986, -inf
      %v4642 = vmax.f32 %v4640, %v4641
      %v4643 = vsel %vm273, %v3937, -inf
      %v4644 = vsel %vm273, %v3993, -inf
      %v4645 = vmax.f32 %v4643, %v4644
      %v4646 = vsel %vm273, %v3944, -inf
      %v4647 = vsel %vm273, %v4000, -inf
      %v4648 = vmax.f32 %v4646, %v4647
      %v4649 = vsel %vm273, %v3951, -inf
      %v4650 = vsel %vm273, %v4007, -inf
      %v4651 = vmax.f32 %v4649, %v4650
      %v4652 = vsel %vm273, %v3958, -inf
      %v4653 = vsel %vm273, %v4014, -inf
      %v4654 = vmax.f32 %v4652, %v4653
      %v4655 = vsel %vm273, %v3965, -inf
      %v4656 = vsel %vm273, %v4021, -inf
      %v4657 = vmax.f32 %v4655, %v4656
      %v4658 = vsel %vm273, %v3972, -inf
      %v4659 = vsel %vm273, %v4028, -inf
      %v4660 = vmax.f32 %v4658, %v4659
      %v4661 = vsel %vm273, %v4035, -inf
      %v4662 = vsel %vm273, %v4091, -inf
      %v4663 = vmax.f32 %v4661, %v4662
      %v4664 = vsel %vm273, %v4042, -inf
      %v4665 = vsel %vm273, %v4098, -inf
      %v4666 = vmax.f32 %v4664, %v4665
      %v4667 = vsel %vm273, %v4049, -inf
      %v4668 = vsel %vm273, %v4105, -inf
      %v4669 = vmax.f32 %v4667, %v4668
      %v4670 = vsel %vm273, %v4056, -inf
      %v4671 = vsel %vm273, %v4112, -inf
      %v4672 = vmax.f32 %v4670, %v4671
      %v4673 = vsel %vm273, %v4063, -inf
      %v4674 = vsel %vm273, %v4119, -inf
      %v4675 = vmax.f32 %v4673, %v4674
      %v4676 = vsel %vm273, %v4070, -inf
      %v4677 = vsel %vm273, %v4126, -inf
      %v4678 = vmax.f32 %v4676, %v4677
      %v4679 = vsel %vm273, %v4077, -inf
      %v4680 = vsel %vm273, %v4133, -inf
      %v4681 = vmax.f32 %v4679, %v4680
      %v4682 = vsel %vm273, %v4084, -inf
      %v4683 = vsel %vm273, %v4140, -inf
      %v4684 = vmax.f32 %v4682, %v4683
      %v4685 = vsel %vm273, %v4147, -inf
      %v4686 = vsel %vm273, %v4203, -inf
      %v4687 = vmax.f32 %v4685, %v4686
      %v4688 = vsel %vm273, %v4154, -inf
      %v4689 = vsel %vm273, %v4210, -inf
      %v4690 = vmax.f32 %v4688, %v4689
      %v4691 = vsel %vm273, %v4161, -inf
      %v4692 = vsel %vm273, %v4217, -inf
      %v4693 = vmax.f32 %v4691, %v4692
      %v4694 = vsel %vm273, %v4168, -inf
      %v4695 = vsel %vm273, %v4224, -inf
      %v4696 = vmax.f32 %v4694, %v4695
      %v4697 = vsel %vm273, %v4175, -inf
      %v4698 = vsel %vm273, %v4231, -inf
      %v4699 = vmax.f32 %v4697, %v4698
      %v4700 = vsel %vm273, %v4182, -inf
      %v4701 = vsel %vm273, %v4238, -inf
      %v4702 = vmax.f32 %v4700, %v4701
      %v4703 = vsel %vm273, %v4189, -inf
      %v4704 = vsel %vm273, %v4245, -inf
      %v4705 = vmax.f32 %v4703, %v4704
      %v4706 = vsel %vm273, %v4196, -inf
      %v4707 = vsel %vm273, %v4252, -inf
      %v4708 = vmax.f32 %v4706, %v4707
      %v4709 = vsel %vm273, %v4259, -inf
      %v4710 = vsel %vm273, %v4315, -inf
      %v4711 = vmax.f32 %v4709, %v4710
      %v4712 = vsel %vm273, %v4266, -inf
      %v4713 = vsel %vm273, %v4322, -inf
      %v4714 = vmax.f32 %v4712, %v4713
      %v4715 = vsel %vm273, %v4273, -inf
      %v4716 = vsel %vm273, %v4329, -inf
      %v4717 = vmax.f32 %v4715, %v4716
      %v4718 = vsel %vm273, %v4280, -inf
      %v4719 = vsel %vm273, %v4336, -inf
      %v4720 = vmax.f32 %v4718, %v4719
      %v4721 = vsel %vm273, %v4287, -inf
      %v4722 = vsel %vm273, %v4343, -inf
      %v4723 = vmax.f32 %v4721, %v4722
      %v4724 = vsel %vm273, %v4294, -inf
      %v4725 = vsel %vm273, %v4350, -inf
      %v4726 = vmax.f32 %v4724, %v4725
      %v4727 = vsel %vm273, %v4301, -inf
      %v4728 = vsel %vm273, %v4357, -inf
      %v4729 = vmax.f32 %v4727, %v4728
      %v4730 = vsel %vm273, %v4308, -inf
      %v4731 = vsel %vm273, %v4364, -inf
      %v4732 = vmax.f32 %v4730, %v4731
      %v4733 = vsel %vm273, %v4371, -inf
      %v4734 = vsel %vm273, %v4427, -inf
      %v4735 = vmax.f32 %v4733, %v4734
      %v4736 = vsel %vm273, %v4378, -inf
      %v4737 = vsel %vm273, %v4434, -inf
      %v4738 = vmax.f32 %v4736, %v4737
      %v4739 = vsel %vm273, %v4385, -inf
      %v4740 = vsel %vm273, %v4441, -inf
      %v4741 = vmax.f32 %v4739, %v4740
      %v4742 = vsel %vm273, %v4392, -inf
      %v4743 = vsel %vm273, %v4448, -inf
      %v4744 = vmax.f32 %v4742, %v4743
      %v4745 = vsel %vm273, %v4399, -inf
      %v4746 = vsel %vm273, %v4455, -inf
      %v4747 = vmax.f32 %v4745, %v4746
      %v4748 = vsel %vm273, %v4406, -inf
      %v4749 = vsel %vm273, %v4462, -inf
      %v4750 = vmax.f32 %v4748, %v4749
      %v4751 = vsel %vm273, %v4413, -inf
      %v4752 = vsel %vm273, %v4469, -inf
      %v4753 = vmax.f32 %v4751, %v4752
      %v4754 = vsel %vm273, %v4420, -inf
      %v4755 = vsel %vm273, %v4476, -inf
      %v4756 = vmax.f32 %v4754, %v4755
      %v4757 = vsel %vm273, %v4483, -inf
      %v4758 = vsel %vm273, %v4539, -inf
      %v4759 = vmax.f32 %v4757, %v4758
      %v4760 = vsel %vm273, %v4490, -inf
      %v4761 = vsel %vm273, %v4546, -inf
      %v4762 = vmax.f32 %v4760, %v4761
      %v4763 = vsel %vm273, %v4497, -inf
      %v4764 = vsel %vm273, %v4553, -inf
      %v4765 = vmax.f32 %v4763, %v4764
      %v4766 = vsel %vm273, %v4504, -inf
      %v4767 = vsel %vm273, %v4560, -inf
      %v4768 = vmax.f32 %v4766, %v4767
      %v4769 = vsel %vm273, %v4511, -inf
      %v4770 = vsel %vm273, %v4567, -inf
      %v4771 = vmax.f32 %v4769, %v4770
      %v4772 = vsel %vm273, %v4518, -inf
      %v4773 = vsel %vm273, %v4574, -inf
      %v4774 = vmax.f32 %v4772, %v4773
      %v4775 = vsel %vm273, %v4525, -inf
      %v4776 = vsel %vm273, %v4581, -inf
      %v4777 = vmax.f32 %v4775, %v4776
      %v4778 = vsel %vm273, %v4532, -inf
      %v4779 = vsel %vm273, %v4588, -inf
      %v4780 = vmax.f32 %v4778, %v4779
      %v4781 = vlaneseq
      %v4782 = vshrl.u32 %v4781, 7
      %v4783 = vsub.s32 0, %v4782
      %v4784 = vrot.slane %v226, %v4783
      %v4785 = vmul.f32 %v4591, %v4784
      %v4786 = vmul.f32 %v4594, %v4784
      %v4787 = vmul.f32 %v4597, %v4784
      %v4788 = vmul.f32 %v4600, %v4784
      %v4789 = vmul.f32 %v4603, %v4784
      %v4790 = vmul.f32 %v4606, %v4784
      %v4791 = vmul.f32 %v4609, %v4784
      %v4792 = vmul.f32 %v4612, %v4784
      %v4793 = vmul.f32 %v4615, %v4784
      %v4794 = vmul.f32 %v4618, %v4784
      %v4795 = vmul.f32 %v4621, %v4784
      %v4796 = vmul.f32 %v4624, %v4784
      %v4797 = vmul.f32 %v4627, %v4784
      %v4798 = vmul.f32 %v4630, %v4784
      %v4799 = vmul.f32 %v4633, %v4784
      %v4800 = vmul.f32 %v4636, %v4784
      %v4801 = vmul.f32 %v4639, %v4784
      %v4802 = vmul.f32 %v4642, %v4784
      %v4803 = vmul.f32 %v4645, %v4784
      %v4804 = vmul.f32 %v4648, %v4784
      %v4805 = vmul.f32 %v4651, %v4784
      %v4806 = vmul.f32 %v4654, %v4784
      %v4807 = vmul.f32 %v4657, %v4784
      %v4808 = vmul.f32 %v4660, %v4784
      %v4809 = vmul.f32 %v4663, %v4784
      %v4810 = vmul.f32 %v4666, %v4784
      %v4811 = vmul.f32 %v4669, %v4784
      %v4812 = vmul.f32 %v4672, %v4784
      %v4813 = vmul.f32 %v4675, %v4784
      %v4814 = vmul.f32 %v4678, %v4784
      %v4815 = vmul.f32 %v4681, %v4784
      %v4816 = vmul.f32 %v4684, %v4784
      %v4817 = vmul.f32 %v4687, %v4784
      %v4818 = vmul.f32 %v4690, %v4784
      %v4819 = vmul.f32 %v4693, %v4784
      %v4820 = vmul.f32 %v4696, %v4784
      %v4821 = vmul.f32 %v4699, %v4784
      %v4822 = vmul.f32 %v4702, %v4784
      %v4823 = vmul.f32 %v4705, %v4784
      %v4824 = vmul.f32 %v4708, %v4784
      %v4825 = vmul.f32 %v4711, %v4784
      %v4826 = vmul.f32 %v4714, %v4784
      %v4827 = vmul.f32 %v4717, %v4784
      %v4828 = vmul.f32 %v4720, %v4784
      %v4829 = vmul.f32 %v4723, %v4784
      %v4830 = vmul.f32 %v4726, %v4784
      %v4831 = vmul.f32 %v4729, %v4784
      %v4832 = vmul.f32 %v4732, %v4784
      %v4833 = vmul.f32 %v4735, %v4784
      %v4834 = vmul.f32 %v4738, %v4784
      %v4835 = vmul.f32 %v4741, %v4784
      %v4836 = vmul.f32 %v4744, %v4784
      %v4837 = vmul.f32 %v4747, %v4784
      %v4838 = vmul.f32 %v4750, %v4784
      %v4839 = vmul.f32 %v4753, %v4784
      %v4840 = vmul.f32 %v4756, %v4784
      %v4841 = vmul.f32 %v4759, %v4784
      %v4842 = vmul.f32 %v4762, %v4784
      %v4843 = vmul.f32 %v4765, %v4784
      %v4844 = vmul.f32 %v4768, %v4784
      %v4845 = vmul.f32 %v4771, %v4784
      %v4846 = vmul.f32 %v4774, %v4784
      %v4847 = vmul.f32 %v4777, %v4784
      %v4848 = vmul.f32 %v4780, %v4784
      %v4849 = vlaneseq
      %v4850 = vshrl.u32 %v4849, 7
      %v4851 = vsub.s32 1, %v4850
      %v4852 = vrot.slane %v226, %v4851
      %v4853 = vadd.f32 %v4785, %v4852
      %v4854 = vadd.f32 %v4786, %v4852
      %v4855 = vadd.f32 %v4787, %v4852
      %v4856 = vadd.f32 %v4788, %v4852
      %v4857 = vadd.f32 %v4789, %v4852
      %v4858 = vadd.f32 %v4790, %v4852
      %v4859 = vadd.f32 %v4791, %v4852
      %v4860 = vadd.f32 %v4792, %v4852
      %v4861 = vadd.f32 %v4793, %v4852
      %v4862 = vadd.f32 %v4794, %v4852
      %v4863 = vadd.f32 %v4795, %v4852
      %v4864 = vadd.f32 %v4796, %v4852
      %v4865 = vadd.f32 %v4797, %v4852
      %v4866 = vadd.f32 %v4798, %v4852
      %v4867 = vadd.f32 %v4799, %v4852
      %v4868 = vadd.f32 %v4800, %v4852
      %v4869 = vadd.f32 %v4801, %v4852
      %v4870 = vadd.f32 %v4802, %v4852
      %v4871 = vadd.f32 %v4803, %v4852
      %v4872 = vadd.f32 %v4804, %v4852
      %v4873 = vadd.f32 %v4805, %v4852
      %v4874 = vadd.f32 %v4806, %v4852
      %v4875 = vadd.f32 %v4807, %v4852
      %v4876 = vadd.f32 %v4808, %v4852
      %v4877 = vadd.f32 %v4809, %v4852
      %v4878 = vadd.f32 %v4810, %v4852
      %v4879 = vadd.f32 %v4811, %v4852
      %v4880 = vadd.f32 %v4812, %v4852
      %v4881 = vadd.f32 %v4813, %v4852
      %v4882 = vadd.f32 %v4814, %v4852
      %v4883 = vadd.f32 %v4815, %v4852
      %v4884 = vadd.f32 %v4816, %v4852
      %v4885 = vadd.f32 %v4817, %v4852
      %v4886 = vadd.f32 %v4818, %v4852
      %v4887 = vadd.f32 %v4819, %v4852
      %v4888 = vadd.f32 %v4820, %v4852
      %v4889 = vadd.f32 %v4821, %v4852
      %v4890 = vadd.f32 %v4822, %v4852
      %v4891 = vadd.f32 %v4823, %v4852
      %v4892 = vadd.f32 %v4824, %v4852
      %v4893 = vadd.f32 %v4825, %v4852
      %v4894 = vadd.f32 %v4826, %v4852
      %v4895 = vadd.f32 %v4827, %v4852
      %v4896 = vadd.f32 %v4828, %v4852
      %v4897 = vadd.f32 %v4829, %v4852
      %v4898 = vadd.f32 %v4830, %v4852
      %v4899 = vadd.f32 %v4831, %v4852
      %v4900 = vadd.f32 %v4832, %v4852
      %v4901 = vadd.f32 %v4833, %v4852
      %v4902 = vadd.f32 %v4834, %v4852
      %v4903 = vadd.f32 %v4835, %v4852
      %v4904 = vadd.f32 %v4836, %v4852
      %v4905 = vadd.f32 %v4837, %v4852
      %v4906 = vadd.f32 %v4838, %v4852
      %v4907 = vadd.f32 %v4839, %v4852
      %v4908 = vadd.f32 %v4840, %v4852
      %v4909 = vadd.f32 %v4841, %v4852
      %v4910 = vadd.f32 %v4842, %v4852
      %v4911 = vadd.f32 %v4843, %v4852
      %v4912 = vadd.f32 %v4844, %v4852
      %v4913 = vadd.f32 %v4845, %v4852
      %v4914 = vadd.f32 %v4846, %v4852
      %v4915 = vadd.f32 %v4847, %v4852
      %v4916 = vadd.f32 %v4848, %v4852
      %v4917 = vmax.f32 %v4853, 0.0
      %v4918 = vmax.f32 %v4854, 0.0
      %v4919 = vmax.f32 %v4855, 0.0
      %v4920 = vmax.f32 %v4856, 0.0
      %v4921 = vmax.f32 %v4857, 0.0
      %v4922 = vmax.f32 %v4858, 0.0
      %v4923 = vmax.f32 %v4859, 0.0
      %v4924 = vmax.f32 %v4860, 0.0
      %v4925 = vmax.f32 %v4861, 0.0
      %v4926 = vmax.f32 %v4862, 0.0
      %v4927 = vmax.f32 %v4863, 0.0
      %v4928 = vmax.f32 %v4864, 0.0
      %v4929 = vmax.f32 %v4865, 0.0
      %v4930 = vmax.f32 %v4866, 0.0
      %v4931 = vmax.f32 %v4867, 0.0
      %v4932 = vmax.f32 %v4868, 0.0
      %v4933 = vmax.f32 %v4869, 0.0
      %v4934 = vmax.f32 %v4870, 0.0
      %v4935 = vmax.f32 %v4871, 0.0
      %v4936 = vmax.f32 %v4872, 0.0
      %v4937 = vmax.f32 %v4873, 0.0
      %v4938 = vmax.f32 %v4874, 0.0
      %v4939 = vmax.f32 %v4875, 0.0
      %v4940 = vmax.f32 %v4876, 0.0
      %v4941 = vmax.f32 %v4877, 0.0
      %v4942 = vmax.f32 %v4878, 0.0
      %v4943 = vmax.f32 %v4879, 0.0
      %v4944 = vmax.f32 %v4880, 0.0
      %v4945 = vmax.f32 %v4881, 0.0
      %v4946 = vmax.f32 %v4882, 0.0
      %v4947 = vmax.f32 %v4883, 0.0
      %v4948 = vmax.f32 %v4884, 0.0
      %v4949 = vmax.f32 %v4885, 0.0
      %v4950 = vmax.f32 %v4886, 0.0
      %v4951 = vmax.f32 %v4887, 0.0
      %v4952 = vmax.f32 %v4888, 0.0
      %v4953 = vmax.f32 %v4889, 0.0
      %v4954 = vmax.f32 %v4890, 0.0
      %v4955 = vmax.f32 %v4891, 0.0
      %v4956 = vmax.f32 %v4892, 0.0
      %v4957 = vmax.f32 %v4893, 0.0
      %v4958 = vmax.f32 %v4894, 0.0
      %v4959 = vmax.f32 %v4895, 0.0
      %v4960 = vmax.f32 %v4896, 0.0
      %v4961 = vmax.f32 %v4897, 0.0
      %v4962 = vmax.f32 %v4898, 0.0
      %v4963 = vmax.f32 %v4899, 0.0
      %v4964 = vmax.f32 %v4900, 0.0
      %v4965 = vmax.f32 %v4901, 0.0
      %v4966 = vmax.f32 %v4902, 0.0
      %v4967 = vmax.f32 %v4903, 0.0
      %v4968 = vmax.f32 %v4904, 0.0
      %v4969 = vmax.f32 %v4905, 0.0
      %v4970 = vmax.f32 %v4906, 0.0
      %v4971 = vmax.f32 %v4907, 0.0
      %v4972 = vmax.f32 %v4908, 0.0
      %v4973 = vmax.f32 %v4909, 0.0
      %v4974 = vmax.f32 %v4910, 0.0
      %v4975 = vmax.f32 %v4911, 0.0
      %v4976 = vmax.f32 %v4912, 0.0
      %v4977 = vmax.f32 %v4913, 0.0
      %v4978 = vmax.f32 %v4914, 0.0
      %v4979 = vmax.f32 %v4915, 0.0
      %v4980 = vmax.f32 %v4916, 0.0
      %v5045 = vrot.slane %v4918, 7
      %vm5046 = vcmask 1041409
      %v5047 = vsel %vm5046, %v5045, %v4917
      %v5048 = vrot.slane %v4919, 6
      %vm5049 = vcmask 1042434
      %v5050 = vsel %vm5049, %v5048, %v5047
      %v5051 = vrot.slane %v4920, 5
      %vm5052 = vcmask 1043459
      %v5053 = vsel %vm5052, %v5051, %v5050
      %v5054 = vrot.slane %v4921, 4
      %vm5055 = vcmask 1044484
      %v5056 = vsel %vm5055, %v5054, %v5053
      %v5057 = vrot.slane %v4922, 3
      %vm5058 = vcmask 1045509
      %v5059 = vsel %vm5058, %v5057, %v5056
      %v5060 = vrot.slane %v4923, 2
      %vm5061 = vcmask 1046534
      %v5062 = vsel %vm5061, %v5060, %v5059
      %v5063 = vrot.slane %v4924, 1
      %vm5064 = vcmask 1047559
      %v5065 = vsel %vm5064, %v5063, %v5062
      %v5066 = vrot.slane %v4926, 7
      %v5067 = vsel %vm5046, %v5066, %v4925
      %v5068 = vrot.slane %v4927, 6
      %v5069 = vsel %vm5049, %v5068, %v5067
      %v5070 = vrot.slane %v4928, 5
      %v5071 = vsel %vm5052, %v5070, %v5069
      %v5072 = vrot.slane %v4929, 4
      %v5073 = vsel %vm5055, %v5072, %v5071
      %v5074 = vrot.slane %v4930, 3
      %v5075 = vsel %vm5058, %v5074, %v5073
      %v5076 = vrot.slane %v4931, 2
      %v5077 = vsel %vm5061, %v5076, %v5075
      %v5078 = vrot.slane %v4932, 1
      %v5079 = vsel %vm5064, %v5078, %v5077
      %v5080 = vrot.slane %v4934, 7
      %v5081 = vsel %vm5046, %v5080, %v4933
      %v5082 = vrot.slane %v4935, 6
      %v5083 = vsel %vm5049, %v5082, %v5081
      %v5084 = vrot.slane %v4936, 5
      %v5085 = vsel %vm5052, %v5084, %v5083
      %v5086 = vrot.slane %v4937, 4
      %v5087 = vsel %vm5055, %v5086, %v5085
      %v5088 = vrot.slane %v4938, 3
      %v5089 = vsel %vm5058, %v5088, %v5087
      %v5090 = vrot.slane %v4939, 2
      %v5091 = vsel %vm5061, %v5090, %v5089
      %v5092 = vrot.slane %v4940, 1
      %v5093 = vsel %vm5064, %v5092, %v5091
      %v5094 = vrot.slane %v4942, 7
      %v5095 = vsel %vm5046, %v5094, %v4941
      %v5096 = vrot.slane %v4943, 6
      %v5097 = vsel %vm5049, %v5096, %v5095
      %v5098 = vrot.slane %v4944, 5
      %v5099 = vsel %vm5052, %v5098, %v5097
      %v5100 = vrot.slane %v4945, 4
      %v5101 = vsel %vm5055, %v5100, %v5099
      %v5102 = vrot.slane %v4946, 3
      %v5103 = vsel %vm5058, %v5102, %v5101
      %v5104 = vrot.slane %v4947, 2
      %v5105 = vsel %vm5061, %v5104, %v5103
      %v5106 = vrot.slane %v4948, 1
      %v5107 = vsel %vm5064, %v5106, %v5105
      %v5108 = vrot.slane %v4950, 7
      %v5109 = vsel %vm5046, %v5108, %v4949
      %v5110 = vrot.slane %v4951, 6
      %v5111 = vsel %vm5049, %v5110, %v5109
      %v5112 = vrot.slane %v4952, 5
      %v5113 = vsel %vm5052, %v5112, %v5111
      %v5114 = vrot.slane %v4953, 4
      %v5115 = vsel %vm5055, %v5114, %v5113
      %v5116 = vrot.slane %v4954, 3
      %v5117 = vsel %vm5058, %v5116, %v5115
      %v5118 = vrot.slane %v4955, 2
      %v5119 = vsel %vm5061, %v5118, %v5117
      %v5120 = vrot.slane %v4956, 1
      %v5121 = vsel %vm5064, %v5120, %v5119
      %v5122 = vrot.slane %v4958, 7
      %v5123 = vsel %vm5046, %v5122, %v4957
      %v5124 = vrot.slane %v4959, 6
      %v5125 = vsel %vm5049, %v5124, %v5123
      %v5126 = vrot.slane %v4960, 5
      %v5127 = vsel %vm5052, %v5126, %v5125
      %v5128 = vrot.slane %v4961, 4
      %v5129 = vsel %vm5055, %v5128, %v5127
      %v5130 = vrot.slane %v4962, 3
      %v5131 = vsel %vm5058, %v5130, %v5129
      %v5132 = vrot.slane %v4963, 2
      %v5133 = vsel %vm5061, %v5132, %v5131
      %v5134 = vrot.slane %v4964, 1
      %v5135 = vsel %vm5064, %v5134, %v5133
      %v5136 = vrot.slane %v4966, 7
      %v5137 = vsel %vm5046, %v5136, %v4965
      %v5138 = vrot.slane %v4967, 6
      %v5139 = vsel %vm5049, %v5138, %v5137
      %v5140 = vrot.slane %v4968, 5
      %v5141 = vsel %vm5052, %v5140, %v5139
      %v5142 = vrot.slane %v4969, 4
      %v5143 = vsel %vm5055, %v5142, %v5141
      %v5144 = vrot.slane %v4970, 3
      %v5145 = vsel %vm5058, %v5144, %v5143
      %v5146 = vrot.slane %v4971, 2
      %v5147 = vsel %vm5061, %v5146, %v5145
      %v5148 = vrot.slane %v4972, 1
      %v5149 = vsel %vm5064, %v5148, %v5147
      %v5150 = vrot.slane %v4974, 7
      %v5151 = vsel %vm5046, %v5150, %v4973
      %v5152 = vrot.slane %v4975, 6
      %v5153 = vsel %vm5049, %v5152, %v5151
      %v5154 = vrot.slane %v4976, 5
      %v5155 = vsel %vm5052, %v5154, %v5153
      %v5156 = vrot.slane %v4977, 4
      %v5157 = vsel %vm5055, %v5156, %v5155
      %v5158 = vrot.slane %v4978, 3
      %v5159 = vsel %vm5058, %v5158, %v5157
      %v5160 = vrot.slane %v4979, 2
      %v5161 = vsel %vm5061, %v5160, %v5159
      %v5162 = vrot.slane %v4980, 1
      %v5163 = vsel %vm5064, %v5162, %v5161
      %5172 = vst.msk [vmem:[%s224] sm:$0xff] %vm273, %v5065
      %5173 = vst.msk [vmem:[%s224 + $0x8] sm:$0xff] %vm273, %v5079
      %5174 = vst.msk [vmem:[%s224 + $0x10] sm:$0xff] %vm273, %v5093
      %5175 = vst.msk [vmem:[%s224 + $0x18] sm:$0xff] %vm273, %v5107
      %5176 = vst.msk [vmem:[%s224 + $0x20] sm:$0xff] %vm273, %v5121
      %5177 = vst.msk [vmem:[%s224 + $0x28] sm:$0xff] %vm273, %v5135
      %5178 = vst.msk [vmem:[%s224 + $0x30] sm:$0xff] %vm273, %v5149
      %5179 = vst.msk [vmem:[%s224 + $0x38] sm:$0xff] %vm273, %v5163
      %s5180 = scalar_lea.vmem [#allocation3], 16
      %5181 = vst.msk [vmem:[%s5180 + $0x1] sm:$0xff] %vm273, %v5065
      %5182 = vst.msk [vmem:[%s5180 + $0x11] sm:$0xff] %vm273, %v5079
      %5183 = vst.msk [vmem:[%s5180 + $0x21] sm:$0xff] %vm273, %v5093
      %5184 = vst.msk [vmem:[%s5180 + $0x31] sm:$0xff] %vm273, %v5107
      %5185 = vst.msk [vmem:[%s5180 + $0x41] sm:$0xff] %vm273, %v5121
      %5186 = vst.msk [vmem:[%s5180 + $0x51] sm:$0xff] %vm273, %v5135
      %5187 = vst.msk [vmem:[%s5180 + $0x61] sm:$0xff] %vm273, %v5149
      %5188 = vst.msk [vmem:[%s5180 + $0x71] sm:$0xff] %vm273, %v5163
      %v5189 = vld [vmem:[#allocation3] sm:$0xff]
      %v5190 = vld [vmem:[#allocation3 + $0x10] sm:$0xff]
      %v5191 = vld [vmem:[#allocation3 + $0x20] sm:$0xff]
      %v5192 = vld [vmem:[#allocation3 + $0x30] sm:$0xff]
      %v5193 = vld [vmem:[#allocation3 + $0x40] sm:$0xff]
      %v5194 = vld [vmem:[#allocation3 + $0x50] sm:$0xff]
      %v5195 = vld [vmem:[#allocation3 + $0x60] sm:$0xff]
      %v5196 = vld [vmem:[#allocation3 + $0x70] sm:$0xff]
      %v5197 = vpack.c.bf16 %v5189, %v5189
      %v5198 = vpack.c.bf16 %v5190, %v5190
      %v5199 = vpack.c.bf16 %v5191, %v5191
      %v5200 = vpack.c.bf16 %v5192, %v5192
      %v5201 = vpack.c.bf16 %v5193, %v5193
      %v5202 = vpack.c.bf16 %v5194, %v5194
      %v5203 = vpack.c.bf16 %v5195, %v5195
      %v5204 = vpack.c.bf16 %v5196, %v5196
      %v5205 = vld [vmem:[%s2] sm:$0xf]
      %v5206 = vld [vmem:[#allocation3 + $0x1] sm:$0xff]
      %v5207 = vld [vmem:[#allocation3 + $0x11] sm:$0xff]
      %v5208 = vld [vmem:[#allocation3 + $0x21] sm:$0xff]
      %v5209 = vld [vmem:[#allocation3 + $0x31] sm:$0xff]
      %v5210 = vld [vmem:[#allocation3 + $0x41] sm:$0xff]
      %v5211 = vld [vmem:[#allocation3 + $0x51] sm:$0xff]
      %v5212 = vld [vmem:[#allocation3 + $0x61] sm:$0xff]
      %v5213 = vld [vmem:[#allocation3 + $0x71] sm:$0xff]
      %v5214 = vpack.c.bf16 %v5206, %v5206
      %v5215 = vpack.c.bf16 %v5207, %v5207
      %v5216 = vpack.c.bf16 %v5208, %v5208
      %v5217 = vpack.c.bf16 %v5209, %v5209
      %v5218 = vpack.c.bf16 %v5210, %v5210
      %v5219 = vpack.c.bf16 %v5211, %v5211
      %v5220 = vpack.c.bf16 %v5212, %v5212
      %v5221 = vpack.c.bf16 %v5213, %v5213
      %v5222 = vld [vmem:[%s2 + $0x4] sm:$0xf]
      %v5231 = vunpack.c.l.b16 %v5214
      %v5232 = vunpack.c.l.b16 %v5215
      %v5233 = vunpack.c.l.b16 %v5216
      %v5234 = vunpack.c.l.b16 %v5217
      %v5235 = vunpack.c.l.b16 %v5218
      %v5236 = vunpack.c.l.b16 %v5219
      %v5237 = vunpack.c.l.b16 %v5220
      %v5238 = vunpack.c.l.b16 %v5221
      %v5239 = vpack.c.b16 %v5232, %v5231
      %v5240 = vpack.c.b16 %v5234, %v5233
      %v5241 = vpack.c.b16 %v5236, %v5235
      %v5242 = vpack.c.b16 %v5238, %v5237
      %v5244 = vsel %vm273, %v5239, 0
      %v5247 = vsel %vm273, %v5240, 0
      %v5250 = vsel %vm273, %v5241, 0
      %v5253 = vsel %vm273, %v5242, 0
      %vm5255 = vcmask 1043456
      %v5257 = vsel %vm5255, %v5222, 0
      %5259 = vmatprep.subr.bf16.mxu0 0
      %5260 = vmatpush1.bf16.msra.mxu0 %v5257
      %5261 = vmatprep.subr.bf16.mxu0 0
      %5262 = vmatpush1.bf16.msra.mxu0 0
      %5263 = vmatprep.subr.bf16.mxu0 0
      %5264 = vmatpush1.bf16.msra.mxu0 0
      %5265 = vmatprep.subr.bf16.mxu0 0
      %5266 = vmatpush1.bf16.msra.mxu0 0
      %5267 = vmatprep.subr.bf16.mxu0 0
      %5268 = vmatpush1.bf16.msra.mxu0 0
      %5269 = vmatprep.subr.bf16.mxu0 0
      %5270 = vmatpush1.bf16.msra.mxu0 0
      %5271 = vmatprep.subr.bf16.mxu0 0
      %5272 = vmatpush1.bf16.msra.mxu0 0
      %5273 = vmatprep.subr.bf16.mxu0 0
      %5274 = vmatpush1.bf16.msra.mxu0 0
      %5275 = vmatprep.subr.bf16.mxu0 0
      %5276 = vmatpush1.bf16.msra.mxu0 0
      %5277 = vmatprep.subr.bf16.mxu0 0
      %5278 = vmatpush1.bf16.msra.mxu0 0
      %5279 = vmatprep.subr.bf16.mxu0 0
      %5280 = vmatpush1.bf16.msra.mxu0 0
      %5281 = vmatprep.subr.bf16.mxu0 0
      %5282 = vmatpush1.bf16.msra.mxu0 0
      %5283 = vmatprep.subr.bf16.mxu0 0
      %5284 = vmatpush1.bf16.msra.mxu0 0
      %5285 = vmatprep.subr.bf16.mxu0 0
      %5286 = vmatpush1.bf16.msra.mxu0 0
      %5287 = vmatprep.subr.bf16.mxu0 0
      %5288 = vmatpush1.bf16.msra.mxu0 0
      %5289 = vmatprep.subr.bf16.mxu0 0
      %5290 = vmatpush1.bf16.msra.mxu0 0
      %5291 = vmatprep.mubr.bf16.mxu0 0
      %5292 = vmatmul.mubr.bf16.gmra.mrb[0].mxu0 %v5244
      %v5293 = vpop.f32.mrb[0].mxu0
      %v5294 = vadd.f32 0.0, %v5293
      %v5295 = vpop.f32.mrb[0].mxu0
      %v5296 = vpop.f32.mrb[0].mxu0
      %v5297 = vadd.f32 0.0, %v5296
      %v5298 = vpop.f32.mrb[0].mxu0
      %5299 = vmatprep.mubr.bf16.mxu0 0
      %5300 = vmatmul.mubr.bf16.gmra.mrb[0].mxu0 %v5247
      %v5301 = vpop.f32.mrb[0].mxu0
      %v5302 = vadd.f32 0.0, %v5301
      %v5303 = vpop.f32.mrb[0].mxu0
      %v5304 = vpop.f32.mrb[0].mxu0
      %v5305 = vadd.f32 0.0, %v5304
      %v5306 = vpop.f32.mrb[0].mxu0
      %5307 = vmatprep.mubr.bf16.mxu0 0
      %5308 = vmatmul.mubr.bf16.gmra.mrb[0].mxu0 %v5250
      %v5309 = vpop.f32.mrb[0].mxu0
      %v5310 = vadd.f32 0.0, %v5309
      %v5311 = vpop.f32.mrb[0].mxu0
      %v5312 = vpop.f32.mrb[0].mxu0
      %v5313 = vadd.f32 0.0, %v5312
      %v5314 = vpop.f32.mrb[0].mxu0
      %5315 = vmatprep.mubr.bf16.mxu0 0
      %5316 = vmatmul.mubr.bf16.gmra.mrb[0].mxu0 %v5253
      %v5317 = vpop.f32.mrb[0].mxu0
      %v5318 = vadd.f32 0.0, %v5317
      %v5319 = vpop.f32.mrb[0].mxu0
      %v5320 = vpop.f32.mrb[0].mxu0
      %v5321 = vadd.f32 0.0, %v5320
      %v5322 = vpop.f32.mrb[0].mxu0
      %5323 = vdwg.mxu0
      %v5332 = vunpack.c.l.b16 %v5197
      %v5333 = vunpack.c.l.b16 %v5198
      %v5334 = vunpack.c.l.b16 %v5199
      %v5335 = vunpack.c.l.b16 %v5200
      %v5336 = vunpack.c.l.b16 %v5201
      %v5337 = vunpack.c.l.b16 %v5202
      %v5338 = vunpack.c.l.b16 %v5203
      %v5339 = vunpack.c.l.b16 %v5204
      %v5340 = vpack.c.b16 %v5333, %v5332
      %v5341 = vpack.c.b16 %v5335, %v5334
      %v5342 = vpack.c.b16 %v5337, %v5336
      %v5343 = vpack.c.b16 %v5339, %v5338
      %v5345 = vsel %vm273, %v5340, 0
      %v5348 = vsel %vm273, %v5341, 0
      %v5351 = vsel %vm273, %v5342, 0
      %v5354 = vsel %vm273, %v5343, 0
      %v5357 = vsel %vm5255, %v5205, 0
      %5359 = vmatprep.subr.bf16.mxu0 0
      %5360 = vmatpush1.bf16.msra.mxu0 %v5357
      %5361 = vmatprep.subr.bf16.mxu0 0
      %5362 = vmatpush1.bf16.msra.mxu0 0
      %5363 = vmatprep.subr.bf16.mxu0 0
      %5364 = vmatpush1.bf16.msra.mxu0 0
      %5365 = vmatprep.subr.bf16.mxu0 0
      %5366 = vmatpush1.bf16.msra.mxu0 0
      %5367 = vmatprep.subr.bf16.mxu0 0
      %5368 = vmatpush1.bf16.msra.mxu0 0
      %5369 = vmatprep.subr.bf16.mxu0 0
      %5370 = vmatpush1.bf16.msra.mxu0 0
      %5371 = vmatprep.subr.bf16.mxu0 0
      %5372 = vmatpush1.bf16.msra.mxu0 0
      %5373 = vmatprep.subr.bf16.mxu0 0
      %5374 = vmatpush1.bf16.msra.mxu0 0
      %5375 = vmatprep.subr.bf16.mxu0 0
      %5376 = vmatpush1.bf16.msra.mxu0 0
      %5377 = vmatprep.subr.bf16.mxu0 0
      %5378 = vmatpush1.bf16.msra.mxu0 0
      %5379 = vmatprep.subr.bf16.mxu0 0
      %5380 = vmatpush1.bf16.msra.mxu0 0
      %5381 = vmatprep.subr.bf16.mxu0 0
      %5382 = vmatpush1.bf16.msra.mxu0 0
      %5383 = vmatprep.subr.bf16.mxu0 0
      %5384 = vmatpush1.bf16.msra.mxu0 0
      %5385 = vmatprep.subr.bf16.mxu0 0
      %5386 = vmatpush1.bf16.msra.mxu0 0
      %5387 = vmatprep.subr.bf16.mxu0 0
      %5388 = vmatpush1.bf16.msra.mxu0 0
      %5389 = vmatprep.subr.bf16.mxu0 0
      %5390 = vmatpush1.bf16.msra.mxu0 0
      %5391 = vmatprep.mubr.bf16.mxu0 0
      %5392 = vmatmul.mubr.bf16.gmra.mrb[0].mxu0 %v5345
      %v5393 = vpop.f32.mrb[0].mxu0
      %v5394 = vadd.f32 %v5294, %v5393
      %v5395 = vpop.f32.mrb[0].mxu0
      %v5396 = vpop.f32.mrb[0].mxu0
      %v5397 = vadd.f32 %v5297, %v5396
      %v5398 = vpop.f32.mrb[0].mxu0
      %5399 = vmatprep.mubr.bf16.mxu0 0
      %5400 = vmatmul.mubr.bf16.gmra.mrb[0].mxu0 %v5348
      %v5401 = vpop.f32.mrb[0].mxu0
      %v5402 = vadd.f32 %v5302, %v5401
      %v5403 = vpop.f32.mrb[0].mxu0
      %v5404 = vpop.f32.mrb[0].mxu0
      %v5405 = vadd.f32 %v5305, %v5404
      %v5406 = vpop.f32.mrb[0].mxu0
      %5407 = vmatprep.mubr.bf16.mxu0 0
      %5408 = vmatmul.mubr.bf16.gmra.mrb[0].mxu0 %v5351
      %v5409 = vpop.f32.mrb[0].mxu0
      %v5410 = vadd.f32 %v5310, %v5409
      %v5411 = vpop.f32.mrb[0].mxu0
      %v5412 = vpop.f32.mrb[0].mxu0
      %v5413 = vadd.f32 %v5313, %v5412
      %v5414 = vpop.f32.mrb[0].mxu0
      %5415 = vmatprep.mubr.bf16.mxu0 0
      %5416 = vmatmul.mubr.bf16.gmra.mrb[0].mxu0 %v5354
      %v5417 = vpop.f32.mrb[0].mxu0
      %v5418 = vadd.f32 %v5318, %v5417
      %v5419 = vpop.f32.mrb[0].mxu0
      %v5420 = vpop.f32.mrb[0].mxu0
      %v5421 = vadd.f32 %v5321, %v5420
      %v5422 = vpop.f32.mrb[0].mxu0
      %5423 = vdwg.mxu0
      %v5424 = vld [vmem:[#allocation3 + $0x2] sm:$0xff]
      %v5425 = vld [vmem:[#allocation3 + $0x12] sm:$0xff]
      %v5426 = vld [vmem:[#allocation3 + $0x22] sm:$0xff]
      %v5427 = vld [vmem:[#allocation3 + $0x32] sm:$0xff]
      %v5428 = vld [vmem:[#allocation3 + $0x42] sm:$0xff]
      %v5429 = vld [vmem:[#allocation3 + $0x52] sm:$0xff]
      %v5430 = vld [vmem:[#allocation3 + $0x62] sm:$0xff]
      %v5431 = vld [vmem:[#allocation3 + $0x72] sm:$0xff]
      %v5432 = vpack.c.bf16 %v5424, %v5424
      %v5433 = vpack.c.bf16 %v5425, %v5425
      %v5434 = vpack.c.bf16 %v5426, %v5426
      %v5435 = vpack.c.bf16 %v5427, %v5427
      %v5436 = vpack.c.bf16 %v5428, %v5428
      %v5437 = vpack.c.bf16 %v5429, %v5429
      %v5438 = vpack.c.bf16 %v5430, %v5430
      %v5439 = vpack.c.bf16 %v5431, %v5431
      %v5440 = vld [vmem:[%s2 + $0x8] sm:$0xf]
      %v5449 = vunpack.c.l.b16 %v5432
      %v5450 = vunpack.c.l.b16 %v5433
      %v5451 = vunpack.c.l.b16 %v5434
      %v5452 = vunpack.c.l.b16 %v5435
      %v5453 = vunpack.c.l.b16 %v5436
      %v5454 = vunpack.c.l.b16 %v5437
      %v5455 = vunpack.c.l.b16 %v5438
      %v5456 = vunpack.c.l.b16 %v5439
      %v5457 = vpack.c.b16 %v5450, %v5449
      %v5458 = vpack.c.b16 %v5452, %v5451
      %v5459 = vpack.c.b16 %v5454, %v5453
      %v5460 = vpack.c.b16 %v5456, %v5455
      %v5462 = vsel %vm273, %v5457, 0
      %v5465 = vsel %vm273, %v5458, 0
      %v5468 = vsel %vm273, %v5459, 0
      %v5471 = vsel %vm273, %v5460, 0
      %v5474 = vsel %vm5255, %v5440, 0
      %5476 = vmatprep.subr.bf16.mxu0 0
      %5477 = vmatpush1.bf16.msra.mxu0 %v5474
      %5478 = vmatprep.subr.bf16.mxu0 0
      %5479 = vmatpush1.bf16.msra.mxu0 0
      %5480 = vmatprep.subr.bf16.mxu0 0
      %5481 = vmatpush1.bf16.msra.mxu0 0
      %5482 = vmatprep.subr.bf16.mxu0 0
      %5483 = vmatpush1.bf16.msra.mxu0 0
      %5484 = vmatprep.subr.bf16.mxu0 0
      %5485 = vmatpush1.bf16.msra.mxu0 0
      %5486 = vmatprep.subr.bf16.mxu0 0
      %5487 = vmatpush1.bf16.msra.mxu0 0
      %5488 = vmatprep.subr.bf16.mxu0 0
      %5489 = vmatpush1.bf16.msra.mxu0 0
      %5490 = vmatprep.subr.bf16.mxu0 0
      %5491 = vmatpush1.bf16.msra.mxu0 0
      %5492 = vmatprep.subr.bf16.mxu0 0
      %5493 = vmatpush1.bf16.msra.mxu0 0
      %5494 = vmatprep.subr.bf16.mxu0 0
      %5495 = vmatpush1.bf16.msra.mxu0 0
      %5496 = vmatprep.subr.bf16.mxu0 0
      %5497 = vmatpush1.bf16.msra.mxu0 0
      %5498 = vmatprep.subr.bf16.mxu0 0
      %5499 = vmatpush1.bf16.msra.mxu0 0
      %5500 = vmatprep.subr.bf16.mxu0 0
      %5501 = vmatpush1.bf16.msra.mxu0 0
      %5502 = vmatprep.subr.bf16.mxu0 0
      %5503 = vmatpush1.bf16.msra.mxu0 0
      %5504 = vmatprep.subr.bf16.mxu0 0
      %5505 = vmatpush1.bf16.msra.mxu0 0
      %5506 = vmatprep.subr.bf16.mxu0 0
      %5507 = vmatpush1.bf16.msra.mxu0 0
      %5508 = vmatprep.mubr.bf16.mxu0 0
      %5509 = vmatmul.mubr.bf16.gmra.mrb[0].mxu0 %v5462
      %v5510 = vpop.f32.mrb[0].mxu0
      %v5511 = vadd.f32 0.0, %v5510
      %v5512 = vpop.f32.mrb[0].mxu0
      %v5513 = vpop.f32.mrb[0].mxu0
      %v5514 = vadd.f32 0.0, %v5513
      %v5515 = vpop.f32.mrb[0].mxu0
      %5516 = vmatprep.mubr.bf16.mxu0 0
      %5517 = vmatmul.mubr.bf16.gmra.mrb[0].mxu0 %v5465
      %v5518 = vpop.f32.mrb[0].mxu0
      %v5519 = vadd.f32 0.0, %v5518
      %v5520 = vpop.f32.mrb[0].mxu0
      %v5521 = vpop.f32.mrb[0].mxu0
      %v5522 = vadd.f32 0.0, %v5521
      %v5523 = vpop.f32.mrb[0].mxu0
      %5524 = vmatprep.mubr.bf16.mxu0 0
      %5525 = vmatmul.mubr.bf16.gmra.mrb[0].mxu0 %v5468
      %v5526 = vpop.f32.mrb[0].mxu0
      %v5527 = vadd.f32 0.0, %v5526
      %v5528 = vpop.f32.mrb[0].mxu0
      %v5529 = vpop.f32.mrb[0].mxu0
      %v5530 = vadd.f32 0.0, %v5529
      %v5531 = vpop.f32.mrb[0].mxu0
      %5532 = vmatprep.mubr.bf16.mxu0 0
      %5533 = vmatmul.mubr.bf16.gmra.mrb[0].mxu0 %v5471
      %v5534 = vpop.f32.mrb[0].mxu0
      %v5535 = vadd.f32 0.0, %v5534
      %v5536 = vpop.f32.mrb[0].mxu0
      %v5537 = vpop.f32.mrb[0].mxu0
      %v5538 = vadd.f32 0.0, %v5537
      %v5539 = vpop.f32.mrb[0].mxu0
      %5540 = vdwg.mxu0
      %v5541 = vadd.f32 %v5394, %v5511
      %v5542 = vadd.f32 %v5397, %v5514
      %v5543 = vadd.f32 %v5402, %v5519
      %v5544 = vadd.f32 %v5405, %v5522
      %v5545 = vadd.f32 %v5410, %v5527
      %v5546 = vadd.f32 %v5413, %v5530
      %v5547 = vadd.f32 %v5418, %v5535
      %v5548 = vadd.f32 %v5421, %v5538
      %v5549 = vld [vmem:[%s5180] sm:$0xff]
      %v5550 = vld [vmem:[%s5180 + $0x10] sm:$0xff]
      %v5551 = vld [vmem:[%s5180 + $0x20] sm:$0xff]
      %v5552 = vld [vmem:[%s5180 + $0x30] sm:$0xff]
      %v5553 = vld [vmem:[%s5180 + $0x40] sm:$0xff]
      %v5554 = vld [vmem:[%s5180 + $0x50] sm:$0xff]
      %v5555 = vld [vmem:[%s5180 + $0x60] sm:$0xff]
      %v5556 = vld [vmem:[%s5180 + $0x70] sm:$0xff]
      %v5557 = vpack.c.bf16 %v5549, %v5549
      %v5558 = vpack.c.bf16 %v5550, %v5550
      %v5559 = vpack.c.bf16 %v5551, %v5551
      %v5560 = vpack.c.bf16 %v5552, %v5552
      %v5561 = vpack.c.bf16 %v5553, %v5553
      %v5562 = vpack.c.bf16 %v5554, %v5554
      %v5563 = vpack.c.bf16 %v5555, %v5555
      %v5564 = vpack.c.bf16 %v5556, %v5556
      %v5565 = vld [vmem:[%s2 + $0xc] sm:$0xf]
      %v5574 = vunpack.c.l.b16 %v5557
      %v5575 = vunpack.c.l.b16 %v5558
      %v5576 = vunpack.c.l.b16 %v5559
      %v5577 = vunpack.c.l.b16 %v5560
      %v5578 = vunpack.c.l.b16 %v5561
      %v5579 = vunpack.c.l.b16 %v5562
      %v5580 = vunpack.c.l.b16 %v5563
      %v5581 = vunpack.c.l.b16 %v5564
      %v5582 = vpack.c.b16 %v5575, %v5574
      %v5583 = vpack.c.b16 %v5577, %v5576
      %v5584 = vpack.c.b16 %v5579, %v5578
      %v5585 = vpack.c.b16 %v5581, %v5580
      %v5587 = vsel %vm273, %v5582, 0
      %v5590 = vsel %vm273, %v5583, 0
      %v5593 = vsel %vm273, %v5584, 0
      %v5596 = vsel %vm273, %v5585, 0
      %v5599 = vsel %vm5255, %v5565, 0
      %5601 = vmatprep.subr.bf16.mxu0 0
      %5602 = vmatpush1.bf16.msra.mxu0 %v5599
      %5603 = vmatprep.subr.bf16.mxu0 0
      %5604 = vmatpush1.bf16.msra.mxu0 0
      %5605 = vmatprep.subr.bf16.mxu0 0
      %5606 = vmatpush1.bf16.msra.mxu0 0
      %5607 = vmatprep.subr.bf16.mxu0 0
      %5608 = vmatpush1.bf16.msra.mxu0 0
      %5609 = vmatprep.subr.bf16.mxu0 0
      %5610 = vmatpush1.bf16.msra.mxu0 0
      %5611 = vmatprep.subr.bf16.mxu0 0
      %5612 = vmatpush1.bf16.msra.mxu0 0
      %5613 = vmatprep.subr.bf16.mxu0 0
      %5614 = vmatpush1.bf16.msra.mxu0 0
      %5615 = vmatprep.subr.bf16.mxu0 0
      %5616 = vmatpush1.bf16.msra.mxu0 0
      %5617 = vmatprep.subr.bf16.mxu0 0
      %5618 = vmatpush1.bf16.msra.mxu0 0
      %5619 = vmatprep.subr.bf16.mxu0 0
      %5620 = vmatpush1.bf16.msra.mxu0 0
      %5621 = vmatprep.subr.bf16.mxu0 0
      %5622 = vmatpush1.bf16.msra.mxu0 0
      %5623 = vmatprep.subr.bf16.mxu0 0
      %5624 = vmatpush1.bf16.msra.mxu0 0
      %5625 = vmatprep.subr.bf16.mxu0 0
      %5626 = vmatpush1.bf16.msra.mxu0 0
      %5627 = vmatprep.subr.bf16.mxu0 0
      %5628 = vmatpush1.bf16.msra.mxu0 0
      %5629 = vmatprep.subr.bf16.mxu0 0
      %5630 = vmatpush1.bf16.msra.mxu0 0
      %5631 = vmatprep.subr.bf16.mxu0 0
      %5632 = vmatpush1.bf16.msra.mxu0 0
      %5633 = vmatprep.mubr.bf16.mxu0 0
      %5634 = vmatmul.mubr.bf16.gmra.mrb[0].mxu0 %v5587
      %v5635 = vpop.f32.mrb[0].mxu0
      %v5636 = vadd.f32 0.0, %v5635
      %v5637 = vpop.f32.mrb[0].mxu0
      %v5638 = vpop.f32.mrb[0].mxu0
      %v5639 = vadd.f32 0.0, %v5638
      %v5640 = vpop.f32.mrb[0].mxu0
      %5641 = vmatprep.mubr.bf16.mxu0 0
      %5642 = vmatmul.mubr.bf16.gmra.mrb[0].mxu0 %v5590
      %v5643 = vpop.f32.mrb[0].mxu0
      %v5644 = vadd.f32 0.0, %v5643
      %v5645 = vpop.f32.mrb[0].mxu0
      %v5646 = vpop.f32.mrb[0].mxu0
      %v5647 = vadd.f32 0.0, %v5646
      %v5648 = vpop.f32.mrb[0].mxu0
      %5649 = vmatprep.mubr.bf16.mxu0 0
      %5650 = vmatmul.mubr.bf16.gmra.mrb[0].mxu0 %v5593
      %v5651 = vpop.f32.mrb[0].mxu0
      %v5652 = vadd.f32 0.0, %v5651
      %v5653 = vpop.f32.mrb[0].mxu0
      %v5654 = vpop.f32.mrb[0].mxu0
      %v5655 = vadd.f32 0.0, %v5654
      %v5656 = vpop.f32.mrb[0].mxu0
      %5657 = vmatprep.mubr.bf16.mxu0 0
      %5658 = vmatmul.mubr.bf16.gmra.mrb[0].mxu0 %v5596
      %v5659 = vpop.f32.mrb[0].mxu0
      %v5660 = vadd.f32 0.0, %v5659
      %v5661 = vpop.f32.mrb[0].mxu0
      %v5662 = vpop.f32.mrb[0].mxu0
      %v5663 = vadd.f32 0.0, %v5662
      %v5664 = vpop.f32.mrb[0].mxu0
      %5665 = vdwg.mxu0
      %v5666 = vadd.f32 %v5541, %v5636
      %v5667 = vadd.f32 %v5542, %v5639
      %v5668 = vadd.f32 %v5543, %v5644
      %v5669 = vadd.f32 %v5544, %v5647
      %v5670 = vadd.f32 %v5545, %v5652
      %v5671 = vadd.f32 %v5546, %v5655
      %v5672 = vadd.f32 %v5547, %v5660
      %v5673 = vadd.f32 %v5548, %v5663
      %v5674 = vld [vmem:[%s5180 + $0x1] sm:$0xff]
      %v5675 = vld [vmem:[%s5180 + $0x11] sm:$0xff]
      %v5676 = vld [vmem:[%s5180 + $0x21] sm:$0xff]
      %v5677 = vld [vmem:[%s5180 + $0x31] sm:$0xff]
      %v5678 = vld [vmem:[%s5180 + $0x41] sm:$0xff]
      %v5679 = vld [vmem:[%s5180 + $0x51] sm:$0xff]
      %v5680 = vld [vmem:[%s5180 + $0x61] sm:$0xff]
      %v5681 = vld [vmem:[%s5180 + $0x71] sm:$0xff]
      %v5682 = vpack.c.bf16 %v5674, %v5674
      %v5683 = vpack.c.bf16 %v5675, %v5675
      %v5684 = vpack.c.bf16 %v5676, %v5676
      %v5685 = vpack.c.bf16 %v5677, %v5677
      %v5686 = vpack.c.bf16 %v5678, %v5678
      %v5687 = vpack.c.bf16 %v5679, %v5679
      %v5688 = vpack.c.bf16 %v5680, %v5680
      %v5689 = vpack.c.bf16 %v5681, %v5681
      %v5690 = vld [vmem:[%s2 + $0x10] sm:$0xf]
      %v5699 = vunpack.c.l.b16 %v5682
      %v5700 = vunpack.c.l.b16 %v5683
      %v5701 = vunpack.c.l.b16 %v5684
      %v5702 = vunpack.c.l.b16 %v5685
      %v5703 = vunpack.c.l.b16 %v5686
      %v5704 = vunpack.c.l.b16 %v5687
      %v5705 = vunpack.c.l.b16 %v5688
      %v5706 = vunpack.c.l.b16 %v5689
      %v5707 = vpack.c.b16 %v5700, %v5699
      %v5708 = vpack.c.b16 %v5702, %v5701
      %v5709 = vpack.c.b16 %v5704, %v5703
      %v5710 = vpack.c.b16 %v5706, %v5705
      %v5712 = vsel %vm273, %v5707, 0
      %v5715 = vsel %vm273, %v5708, 0
      %v5718 = vsel %vm273, %v5709, 0
      %v5721 = vsel %vm273, %v5710, 0
      %v5724 = vsel %vm5255, %v5690, 0
      %5726 = vmatprep.subr.bf16.mxu0 0
      %5727 = vmatpush1.bf16.msra.mxu0 %v5724
      %5728 = vmatprep.subr.bf16.mxu0 0
      %5729 = vmatpush1.bf16.msra.mxu0 0
      %5730 = vmatprep.subr.bf16.mxu0 0
      %5731 = vmatpush1.bf16.msra.mxu0 0
      %5732 = vmatprep.subr.bf16.mxu0 0
      %5733 = vmatpush1.bf16.msra.mxu0 0
      %5734 = vmatprep.subr.bf16.mxu0 0
      %5735 = vmatpush1.bf16.msra.mxu0 0
      %5736 = vmatprep.subr.bf16.mxu0 0
      %5737 = vmatpush1.bf16.msra.mxu0 0
      %5738 = vmatprep.subr.bf16.mxu0 0
      %5739 = vmatpush1.bf16.msra.mxu0 0
      %5740 = vmatprep.subr.bf16.mxu0 0
      %5741 = vmatpush1.bf16.msra.mxu0 0
      %5742 = vmatprep.subr.bf16.mxu0 0
      %5743 = vmatpush1.bf16.msra.mxu0 0
      %5744 = vmatprep.subr.bf16.mxu0 0
      %5745 = vmatpush1.bf16.msra.mxu0 0
      %5746 = vmatprep.subr.bf16.mxu0 0
      %5747 = vmatpush1.bf16.msra.mxu0 0
      %5748 = vmatprep.subr.bf16.mxu0 0
      %5749 = vmatpush1.bf16.msra.mxu0 0
      %5750 = vmatprep.subr.bf16.mxu0 0
      %5751 = vmatpush1.bf16.msra.mxu0 0
      %5752 = vmatprep.subr.bf16.mxu0 0
      %5753 = vmatpush1.bf16.msra.mxu0 0
      %5754 = vmatprep.subr.bf16.mxu0 0
      %5755 = vmatpush1.bf16.msra.mxu0 0
      %5756 = vmatprep.subr.bf16.mxu0 0
      %5757 = vmatpush1.bf16.msra.mxu0 0
      %5758 = vmatprep.mubr.bf16.mxu0 0
      %5759 = vmatmul.mubr.bf16.gmra.mrb[0].mxu0 %v5712
      %v5760 = vpop.f32.mrb[0].mxu0
      %v5761 = vadd.f32 0.0, %v5760
      %v5762 = vpop.f32.mrb[0].mxu0
      %v5763 = vpop.f32.mrb[0].mxu0
      %v5764 = vadd.f32 0.0, %v5763
      %v5765 = vpop.f32.mrb[0].mxu0
      %5766 = vmatprep.mubr.bf16.mxu0 0
      %5767 = vmatmul.mubr.bf16.gmra.mrb[0].mxu0 %v5715
      %v5768 = vpop.f32.mrb[0].mxu0
      %v5769 = vadd.f32 0.0, %v5768
      %v5770 = vpop.f32.mrb[0].mxu0
      %v5771 = vpop.f32.mrb[0].mxu0
      %v5772 = vadd.f32 0.0, %v5771
      %v5773 = vpop.f32.mrb[0].mxu0
      %5774 = vmatprep.mubr.bf16.mxu0 0
      %5775 = vmatmul.mubr.bf16.gmra.mrb[0].mxu0 %v5718
      %v5776 = vpop.f32.mrb[0].mxu0
      %v5777 = vadd.f32 0.0, %v5776
      %v5778 = vpop.f32.mrb[0].mxu0
      %v5779 = vpop.f32.mrb[0].mxu0
      %v5780 = vadd.f32 0.0, %v5779
      %v5781 = vpop.f32.mrb[0].mxu0
      %5782 = vmatprep.mubr.bf16.mxu0 0
      %5783 = vmatmul.mubr.bf16.gmra.mrb[0].mxu0 %v5721
      %v5784 = vpop.f32.mrb[0].mxu0
      %v5785 = vadd.f32 0.0, %v5784
      %v5786 = vpop.f32.mrb[0].mxu0
      %v5787 = vpop.f32.mrb[0].mxu0
      %v5788 = vadd.f32 0.0, %v5787
      %v5789 = vpop.f32.mrb[0].mxu0
      %5790 = vdwg.mxu0
      %v5791 = vadd.f32 %v5666, %v5761
      %v5792 = vadd.f32 %v5667, %v5764
      %v5793 = vadd.f32 %v5668, %v5769
      %v5794 = vadd.f32 %v5669, %v5772
      %v5795 = vadd.f32 %v5670, %v5777
      %v5796 = vadd.f32 %v5671, %v5780
      %v5797 = vadd.f32 %v5672, %v5785
      %v5798 = vadd.f32 %v5673, %v5788
      %v5799 = vld [vmem:[%s5180 + $0x2] sm:$0xff]
      %v5800 = vld [vmem:[%s5180 + $0x12] sm:$0xff]
      %v5801 = vld [vmem:[%s5180 + $0x22] sm:$0xff]
      %v5802 = vld [vmem:[%s5180 + $0x32] sm:$0xff]
      %v5803 = vld [vmem:[%s5180 + $0x42] sm:$0xff]
      %v5804 = vld [vmem:[%s5180 + $0x52] sm:$0xff]
      %v5805 = vld [vmem:[%s5180 + $0x62] sm:$0xff]
      %v5806 = vld [vmem:[%s5180 + $0x72] sm:$0xff]
      %v5807 = vpack.c.bf16 %v5799, %v5799
      %v5808 = vpack.c.bf16 %v5800, %v5800
      %v5809 = vpack.c.bf16 %v5801, %v5801
      %v5810 = vpack.c.bf16 %v5802, %v5802
      %v5811 = vpack.c.bf16 %v5803, %v5803
      %v5812 = vpack.c.bf16 %v5804, %v5804
      %v5813 = vpack.c.bf16 %v5805, %v5805
      %v5814 = vpack.c.bf16 %v5806, %v5806
      %v5815 = vld [vmem:[%s2 + $0x14] sm:$0xf]
      %v5824 = vunpack.c.l.b16 %v5807
      %v5825 = vunpack.c.l.b16 %v5808
      %v5826 = vunpack.c.l.b16 %v5809
      %v5827 = vunpack.c.l.b16 %v5810
      %v5828 = vunpack.c.l.b16 %v5811
      %v5829 = vunpack.c.l.b16 %v5812
      %v5830 = vunpack.c.l.b16 %v5813
      %v5831 = vunpack.c.l.b16 %v5814
      %v5832 = vpack.c.b16 %v5825, %v5824
      %v5833 = vpack.c.b16 %v5827, %v5826
      %v5834 = vpack.c.b16 %v5829, %v5828
      %v5835 = vpack.c.b16 %v5831, %v5830
      %v5837 = vsel %vm273, %v5832, 0
      %v5840 = vsel %vm273, %v5833, 0
      %v5843 = vsel %vm273, %v5834, 0
      %v5846 = vsel %vm273, %v5835, 0
      %v5849 = vsel %vm5255, %v5815, 0
      %5851 = vmatprep.subr.bf16.mxu0 0
      %5852 = vmatpush1.bf16.msra.mxu0 %v5849
      %5853 = vmatprep.subr.bf16.mxu0 0
      %5854 = vmatpush1.bf16.msra.mxu0 0
      %5855 = vmatprep.subr.bf16.mxu0 0
      %5856 = vmatpush1.bf16.msra.mxu0 0
      %5857 = vmatprep.subr.bf16.mxu0 0
      %5858 = vmatpush1.bf16.msra.mxu0 0
      %5859 = vmatprep.subr.bf16.mxu0 0
      %5860 = vmatpush1.bf16.msra.mxu0 0
      %5861 = vmatprep.subr.bf16.mxu0 0
      %5862 = vmatpush1.bf16.msra.mxu0 0
      %5863 = vmatprep.subr.bf16.mxu0 0
      %5864 = vmatpush1.bf16.msra.mxu0 0
      %5865 = vmatprep.subr.bf16.mxu0 0
      %5866 = vmatpush1.bf16.msra.mxu0 0
      %5867 = vmatprep.subr.bf16.mxu0 0
      %5868 = vmatpush1.bf16.msra.mxu0 0
      %5869 = vmatprep.subr.bf16.mxu0 0
      %5870 = vmatpush1.bf16.msra.mxu0 0
      %5871 = vmatprep.subr.bf16.mxu0 0
      %5872 = vmatpush1.bf16.msra.mxu0 0
      %5873 = vmatprep.subr.bf16.mxu0 0
      %5874 = vmatpush1.bf16.msra.mxu0 0
      %5875 = vmatprep.subr.bf16.mxu0 0
      %5876 = vmatpush1.bf16.msra.mxu0 0
      %5877 = vmatprep.subr.bf16.mxu0 0
      %5878 = vmatpush1.bf16.msra.mxu0 0
      %5879 = vmatprep.subr.bf16.mxu0 0
      %5880 = vmatpush1.bf16.msra.mxu0 0
      %5881 = vmatprep.subr.bf16.mxu0 0
      %5882 = vmatpush1.bf16.msra.mxu0 0
      %5883 = vmatprep.mubr.bf16.mxu0 0
      %5884 = vmatmul.mubr.bf16.gmra.mrb[0].mxu0 %v5837
      %v5885 = vpop.f32.mrb[0].mxu0
      %v5886 = vadd.f32 0.0, %v5885
      %v5887 = vpop.f32.mrb[0].mxu0
      %v5888 = vpop.f32.mrb[0].mxu0
      %v5889 = vadd.f32 0.0, %v5888
      %v5890 = vpop.f32.mrb[0].mxu0
      %5891 = vmatprep.mubr.bf16.mxu0 0
      %5892 = vmatmul.mubr.bf16.gmra.mrb[0].mxu0 %v5840
      %v5893 = vpop.f32.mrb[0].mxu0
      %v5894 = vadd.f32 0.0, %v5893
      %v5895 = vpop.f32.mrb[0].mxu0
      %v5896 = vpop.f32.mrb[0].mxu0
      %v5897 = vadd.f32 0.0, %v5896
      %v5898 = vpop.f32.mrb[0].mxu0
      %5899 = vmatprep.mubr.bf16.mxu0 0
      %5900 = vmatmul.mubr.bf16.gmra.mrb[0].mxu0 %v5843
      %v5901 = vpop.f32.mrb[0].mxu0
      %v5902 = vadd.f32 0.0, %v5901
      %v5903 = vpop.f32.mrb[0].mxu0
      %v5904 = vpop.f32.mrb[0].mxu0
      %v5905 = vadd.f32 0.0, %v5904
      %v5906 = vpop.f32.mrb[0].mxu0
      %5907 = vmatprep.mubr.bf16.mxu0 0
      %5908 = vmatmul.mubr.bf16.gmra.mrb[0].mxu0 %v5846
      %v5909 = vpop.f32.mrb[0].mxu0
      %v5910 = vadd.f32 0.0, %v5909
      %v5911 = vpop.f32.mrb[0].mxu0
      %v5912 = vpop.f32.mrb[0].mxu0
      %v5913 = vadd.f32 0.0, %v5912
      %v5914 = vpop.f32.mrb[0].mxu0
      %5915 = vdwg.mxu0
      %v5916 = vadd.f32 %v5791, %v5886
      %v5917 = vadd.f32 %v5792, %v5889
      %v5918 = vadd.f32 %v5793, %v5894
      %v5919 = vadd.f32 %v5794, %v5897
      %v5920 = vadd.f32 %v5795, %v5902
      %v5921 = vadd.f32 %v5796, %v5905
      %v5922 = vadd.f32 %v5797, %v5910
      %v5923 = vadd.f32 %v5798, %v5913
      %s5924 = scalar_lea.vmem [#allocation3], 32
      %v5925 = vld [vmem:[%s5924] sm:$0xff]
      %v5926 = vld [vmem:[%s5924 + $0x10] sm:$0xff]
      %v5927 = vld [vmem:[%s5924 + $0x20] sm:$0xff]
      %v5928 = vld [vmem:[%s5924 + $0x30] sm:$0xff]
      %v5929 = vld [vmem:[%s5924 + $0x40] sm:$0xff]
      %v5930 = vld [vmem:[%s5924 + $0x50] sm:$0xff]
      %v5931 = vld [vmem:[%s5924 + $0x60] sm:$0xff]
      %v5932 = vld [vmem:[%s5924 + $0x70] sm:$0xff]
      %v5933 = vpack.c.bf16 %v5925, %v5925
      %v5934 = vpack.c.bf16 %v5926, %v5926
      %v5935 = vpack.c.bf16 %v5927, %v5927
      %v5936 = vpack.c.bf16 %v5928, %v5928
      %v5937 = vpack.c.bf16 %v5929, %v5929
      %v5938 = vpack.c.bf16 %v5930, %v5930
      %v5939 = vpack.c.bf16 %v5931, %v5931
      %v5940 = vpack.c.bf16 %v5932, %v5932
      %v5941 = vld [vmem:[%s2 + $0x18] sm:$0xf]
      %v5950 = vunpack.c.l.b16 %v5933
      %v5951 = vunpack.c.l.b16 %v5934
      %v5952 = vunpack.c.l.b16 %v5935
      %v5953 = vunpack.c.l.b16 %v5936
      %v5954 = vunpack.c.l.b16 %v5937
      %v5955 = vunpack.c.l.b16 %v5938
      %v5956 = vunpack.c.l.b16 %v5939
      %v5957 = vunpack.c.l.b16 %v5940
      %v5958 = vpack.c.b16 %v5951, %v5950
      %v5959 = vpack.c.b16 %v5953, %v5952
      %v5960 = vpack.c.b16 %v5955, %v5954
      %v5961 = vpack.c.b16 %v5957, %v5956
      %v5963 = vsel %vm273, %v5958, 0
      %v5966 = vsel %vm273, %v5959, 0
      %v5969 = vsel %vm273, %v5960, 0
      %v5972 = vsel %vm273, %v5961, 0
      %v5975 = vsel %vm5255, %v5941, 0
      %5977 = vmatprep.subr.bf16.mxu0 0
      %5978 = vmatpush1.bf16.msra.mxu0 %v5975
      %5979 = vmatprep.subr.bf16.mxu0 0
      %5980 = vmatpush1.bf16.msra.mxu0 0
      %5981 = vmatprep.subr.bf16.mxu0 0
      %5982 = vmatpush1.bf16.msra.mxu0 0
      %5983 = vmatprep.subr.bf16.mxu0 0
      %5984 = vmatpush1.bf16.msra.mxu0 0
      %5985 = vmatprep.subr.bf16.mxu0 0
      %5986 = vmatpush1.bf16.msra.mxu0 0
      %5987 = vmatprep.subr.bf16.mxu0 0
      %5988 = vmatpush1.bf16.msra.mxu0 0
      %5989 = vmatprep.subr.bf16.mxu0 0
      %5990 = vmatpush1.bf16.msra.mxu0 0
      %5991 = vmatprep.subr.bf16.mxu0 0
      %5992 = vmatpush1.bf16.msra.mxu0 0
      %5993 = vmatprep.subr.bf16.mxu0 0
      %5994 = vmatpush1.bf16.msra.mxu0 0
      %5995 = vmatprep.subr.bf16.mxu0 0
      %5996 = vmatpush1.bf16.msra.mxu0 0
      %5997 = vmatprep.subr.bf16.mxu0 0
      %5998 = vmatpush1.bf16.msra.mxu0 0
      %5999 = vmatprep.subr.bf16.mxu0 0
      %6000 = vmatpush1.bf16.msra.mxu0 0
      %6001 = vmatprep.subr.bf16.mxu0 0
      %6002 = vmatpush1.bf16.msra.mxu0 0
      %6003 = vmatprep.subr.bf16.mxu0 0
      %6004 = vmatpush1.bf16.msra.mxu0 0
      %6005 = vmatprep.subr.bf16.mxu0 0
      %6006 = vmatpush1.bf16.msra.mxu0 0
      %6007 = vmatprep.subr.bf16.mxu0 0
      %6008 = vmatpush1.bf16.msra.mxu0 0
      %6009 = vmatprep.mubr.bf16.mxu0 0
      %6010 = vmatmul.mubr.bf16.gmra.mrb[0].mxu0 %v5963
      %v6011 = vpop.f32.mrb[0].mxu0
      %v6012 = vadd.f32 0.0, %v6011
      %v6013 = vpop.f32.mrb[0].mxu0
      %v6014 = vpop.f32.mrb[0].mxu0
      %v6015 = vadd.f32 0.0, %v6014
      %v6016 = vpop.f32.mrb[0].mxu0
      %6017 = vmatprep.mubr.bf16.mxu0 0
      %6018 = vmatmul.mubr.bf16.gmra.mrb[0].mxu0 %v5966
      %v6019 = vpop.f32.mrb[0].mxu0
      %v6020 = vadd.f32 0.0, %v6019
      %v6021 = vpop.f32.mrb[0].mxu0
      %v6022 = vpop.f32.mrb[0].mxu0
      %v6023 = vadd.f32 0.0, %v6022
      %v6024 = vpop.f32.mrb[0].mxu0
      %6025 = vmatprep.mubr.bf16.mxu0 0
      %6026 = vmatmul.mubr.bf16.gmra.mrb[0].mxu0 %v5969
      %v6027 = vpop.f32.mrb[0].mxu0
      %v6028 = vadd.f32 0.0, %v6027
      %v6029 = vpop.f32.mrb[0].mxu0
      %v6030 = vpop.f32.mrb[0].mxu0
      %v6031 = vadd.f32 0.0, %v6030
      %v6032 = vpop.f32.mrb[0].mxu0
      %6033 = vmatprep.mubr.bf16.mxu0 0
      %6034 = vmatmul.mubr.bf16.gmra.mrb[0].mxu0 %v5972
      %v6035 = vpop.f32.mrb[0].mxu0
      %v6036 = vadd.f32 0.0, %v6035
      %v6037 = vpop.f32.mrb[0].mxu0
      %v6038 = vpop.f32.mrb[0].mxu0
      %v6039 = vadd.f32 0.0, %v6038
      %v6040 = vpop.f32.mrb[0].mxu0
      %6041 = vdwg.mxu0
      %v6042 = vadd.f32 %v5916, %v6012
      %v6043 = vadd.f32 %v5917, %v6015
      %v6044 = vadd.f32 %v5918, %v6020
      %v6045 = vadd.f32 %v5919, %v6023
      %v6046 = vadd.f32 %v5920, %v6028
      %v6047 = vadd.f32 %v5921, %v6031
      %v6048 = vadd.f32 %v5922, %v6036
      %v6049 = vadd.f32 %v5923, %v6039
      %v6050 = vld [vmem:[%s5924 + $0x1] sm:$0xff]
      %v6051 = vld [vmem:[%s5924 + $0x11] sm:$0xff]
      %v6052 = vld [vmem:[%s5924 + $0x21] sm:$0xff]
      %v6053 = vld [vmem:[%s5924 + $0x31] sm:$0xff]
      %v6054 = vld [vmem:[%s5924 + $0x41] sm:$0xff]
      %v6055 = vld [vmem:[%s5924 + $0x51] sm:$0xff]
      %v6056 = vld [vmem:[%s5924 + $0x61] sm:$0xff]
      %v6057 = vld [vmem:[%s5924 + $0x71] sm:$0xff]
      %v6058 = vpack.c.bf16 %v6050, %v6050
      %v6059 = vpack.c.bf16 %v6051, %v6051
      %v6060 = vpack.c.bf16 %v6052, %v6052
      %v6061 = vpack.c.bf16 %v6053, %v6053
      %v6062 = vpack.c.bf16 %v6054, %v6054
      %v6063 = vpack.c.bf16 %v6055, %v6055
      %v6064 = vpack.c.bf16 %v6056, %v6056
      %v6065 = vpack.c.bf16 %v6057, %v6057
      %v6066 = vld [vmem:[%s2 + $0x1c] sm:$0xf]
      %v6075 = vunpack.c.l.b16 %v6058
      %v6076 = vunpack.c.l.b16 %v6059
      %v6077 = vunpack.c.l.b16 %v6060
      %v6078 = vunpack.c.l.b16 %v6061
      %v6079 = vunpack.c.l.b16 %v6062
      %v6080 = vunpack.c.l.b16 %v6063
      %v6081 = vunpack.c.l.b16 %v6064
      %v6082 = vunpack.c.l.b16 %v6065
      %v6083 = vpack.c.b16 %v6076, %v6075
      %v6084 = vpack.c.b16 %v6078, %v6077
      %v6085 = vpack.c.b16 %v6080, %v6079
      %v6086 = vpack.c.b16 %v6082, %v6081
      %v6088 = vsel %vm273, %v6083, 0
      %v6091 = vsel %vm273, %v6084, 0
      %v6094 = vsel %vm273, %v6085, 0
      %v6097 = vsel %vm273, %v6086, 0
      %v6100 = vsel %vm5255, %v6066, 0
      %6102 = vmatprep.subr.bf16.mxu0 0
      %6103 = vmatpush1.bf16.msra.mxu0 %v6100
      %6104 = vmatprep.subr.bf16.mxu0 0
      %6105 = vmatpush1.bf16.msra.mxu0 0
      %6106 = vmatprep.subr.bf16.mxu0 0
      %6107 = vmatpush1.bf16.msra.mxu0 0
      %6108 = vmatprep.subr.bf16.mxu0 0
      %6109 = vmatpush1.bf16.msra.mxu0 0
      %6110 = vmatprep.subr.bf16.mxu0 0
      %6111 = vmatpush1.bf16.msra.mxu0 0
      %6112 = vmatprep.subr.bf16.mxu0 0
      %6113 = vmatpush1.bf16.msra.mxu0 0
      %6114 = vmatprep.subr.bf16.mxu0 0
      %6115 = vmatpush1.bf16.msra.mxu0 0
      %6116 = vmatprep.subr.bf16.mxu0 0
      %6117 = vmatpush1.bf16.msra.mxu0 0
      %6118 = vmatprep.subr.bf16.mxu0 0
      %6119 = vmatpush1.bf16.msra.mxu0 0
      %6120 = vmatprep.subr.bf16.mxu0 0
      %6121 = vmatpush1.bf16.msra.mxu0 0
      %6122 = vmatprep.subr.bf16.mxu0 0
      %6123 = vmatpush1.bf16.msra.mxu0 0
      %6124 = vmatprep.subr.bf16.mxu0 0
      %6125 = vmatpush1.bf16.msra.mxu0 0
      %6126 = vmatprep.subr.bf16.mxu0 0
      %6127 = vmatpush1.bf16.msra.mxu0 0
      %6128 = vmatprep.subr.bf16.mxu0 0
      %6129 = vmatpush1.bf16.msra.mxu0 0
      %6130 = vmatprep.subr.bf16.mxu0 0
      %6131 = vmatpush1.bf16.msra.mxu0 0
      %6132 = vmatprep.subr.bf16.mxu0 0
      %6133 = vmatpush1.bf16.msra.mxu0 0
      %6134 = vmatprep.mubr.bf16.mxu0 0
      %6135 = vmatmul.mubr.bf16.gmra.mrb[0].mxu0 %v6088
      %v6136 = vpop.f32.mrb[0].mxu0
      %v6137 = vadd.f32 0.0, %v6136
      %v6138 = vpop.f32.mrb[0].mxu0
      %v6139 = vpop.f32.mrb[0].mxu0
      %v6140 = vadd.f32 0.0, %v6139
      %v6141 = vpop.f32.mrb[0].mxu0
      %6142 = vmatprep.mubr.bf16.mxu0 0
      %6143 = vmatmul.mubr.bf16.gmra.mrb[0].mxu0 %v6091
      %v6144 = vpop.f32.mrb[0].mxu0
      %v6145 = vadd.f32 0.0, %v6144
      %v6146 = vpop.f32.mrb[0].mxu0
      %v6147 = vpop.f32.mrb[0].mxu0
      %v6148 = vadd.f32 0.0, %v6147
      %v6149 = vpop.f32.mrb[0].mxu0
      %6150 = vmatprep.mubr.bf16.mxu0 0
      %6151 = vmatmul.mubr.bf16.gmra.mrb[0].mxu0 %v6094
      %v6152 = vpop.f32.mrb[0].mxu0
      %v6153 = vadd.f32 0.0, %v6152
      %v6154 = vpop.f32.mrb[0].mxu0
      %v6155 = vpop.f32.mrb[0].mxu0
      %v6156 = vadd.f32 0.0, %v6155
      %v6157 = vpop.f32.mrb[0].mxu0
      %6158 = vmatprep.mubr.bf16.mxu0 0
      %6159 = vmatmul.mubr.bf16.gmra.mrb[0].mxu0 %v6097
      %v6160 = vpop.f32.mrb[0].mxu0
      %v6161 = vadd.f32 0.0, %v6160
      %v6162 = vpop.f32.mrb[0].mxu0
      %v6163 = vpop.f32.mrb[0].mxu0
      %v6164 = vadd.f32 0.0, %v6163
      %v6165 = vpop.f32.mrb[0].mxu0
      %6166 = vdwg.mxu0
      %v6167 = vadd.f32 %v6042, %v6137
      %v6168 = vadd.f32 %v6043, %v6140
      %v6169 = vadd.f32 %v6044, %v6145
      %v6170 = vadd.f32 %v6045, %v6148
      %v6171 = vadd.f32 %v6046, %v6153
      %v6172 = vadd.f32 %v6047, %v6156
      %v6173 = vadd.f32 %v6048, %v6161
      %v6174 = vadd.f32 %v6049, %v6164
      %v6175 = vld [vmem:[%s5924 + $0x2] sm:$0xff]
      %v6176 = vld [vmem:[%s5924 + $0x12] sm:$0xff]
      %v6177 = vld [vmem:[%s5924 + $0x22] sm:$0xff]
      %v6178 = vld [vmem:[%s5924 + $0x32] sm:$0xff]
      %v6179 = vld [vmem:[%s5924 + $0x42] sm:$0xff]
      %v6180 = vld [vmem:[%s5924 + $0x52] sm:$0xff]
      %v6181 = vld [vmem:[%s5924 + $0x62] sm:$0xff]
      %v6182 = vld [vmem:[%s5924 + $0x72] sm:$0xff]
      %v6183 = vpack.c.bf16 %v6175, %v6175
      %v6184 = vpack.c.bf16 %v6176, %v6176
      %v6185 = vpack.c.bf16 %v6177, %v6177
      %v6186 = vpack.c.bf16 %v6178, %v6178
      %v6187 = vpack.c.bf16 %v6179, %v6179
      %v6188 = vpack.c.bf16 %v6180, %v6180
      %v6189 = vpack.c.bf16 %v6181, %v6181
      %v6190 = vpack.c.bf16 %v6182, %v6182
      %v6191 = vld [vmem:[%s2 + $0x20] sm:$0xf]
      %v6200 = vunpack.c.l.b16 %v6183
      %v6201 = vunpack.c.l.b16 %v6184
      %v6202 = vunpack.c.l.b16 %v6185
      %v6203 = vunpack.c.l.b16 %v6186
      %v6204 = vunpack.c.l.b16 %v6187
      %v6205 = vunpack.c.l.b16 %v6188
      %v6206 = vunpack.c.l.b16 %v6189
      %v6207 = vunpack.c.l.b16 %v6190
      %v6208 = vpack.c.b16 %v6201, %v6200
      %v6209 = vpack.c.b16 %v6203, %v6202
      %v6210 = vpack.c.b16 %v6205, %v6204
      %v6211 = vpack.c.b16 %v6207, %v6206
      %v6213 = vsel %vm273, %v6208, 0
      %v6216 = vsel %vm273, %v6209, 0
      %v6219 = vsel %vm273, %v6210, 0
      %v6222 = vsel %vm273, %v6211, 0
      %v6225 = vsel %vm5255, %v6191, 0
      %6227 = vmatprep.subr.bf16.mxu0 0
      %6228 = vmatpush1.bf16.msra.mxu0 %v6225
      %6229 = vmatprep.subr.bf16.mxu0 0
      %6230 = vmatpush1.bf16.msra.mxu0 0
      %6231 = vmatprep.subr.bf16.mxu0 0
      %6232 = vmatpush1.bf16.msra.mxu0 0
      %6233 = vmatprep.subr.bf16.mxu0 0
      %6234 = vmatpush1.bf16.msra.mxu0 0
      %6235 = vmatprep.subr.bf16.mxu0 0
      %6236 = vmatpush1.bf16.msra.mxu0 0
      %6237 = vmatprep.subr.bf16.mxu0 0
      %6238 = vmatpush1.bf16.msra.mxu0 0
      %6239 = vmatprep.subr.bf16.mxu0 0
      %6240 = vmatpush1.bf16.msra.mxu0 0
      %6241 = vmatprep.subr.bf16.mxu0 0
      %6242 = vmatpush1.bf16.msra.mxu0 0
      %6243 = vmatprep.subr.bf16.mxu0 0
      %6244 = vmatpush1.bf16.msra.mxu0 0
      %6245 = vmatprep.subr.bf16.mxu0 0
      %6246 = vmatpush1.bf16.msra.mxu0 0
      %6247 = vmatprep.subr.bf16.mxu0 0
      %6248 = vmatpush1.bf16.msra.mxu0 0
      %6249 = vmatprep.subr.bf16.mxu0 0
      %6250 = vmatpush1.bf16.msra.mxu0 0
      %6251 = vmatprep.subr.bf16.mxu0 0
      %6252 = vmatpush1.bf16.msra.mxu0 0
      %6253 = vmatprep.subr.bf16.mxu0 0
      %6254 = vmatpush1.bf16.msra.mxu0 0
      %6255 = vmatprep.subr.bf16.mxu0 0
      %6256 = vmatpush1.bf16.msra.mxu0 0
      %6257 = vmatprep.subr.bf16.mxu0 0
      %6258 = vmatpush1.bf16.msra.mxu0 0
      %6259 = vmatprep.mubr.bf16.mxu0 0
      %6260 = vmatmul.mubr.bf16.gmra.mrb[0].mxu0 %v6213
      %v6261 = vpop.f32.mrb[0].mxu0
      %v6262 = vadd.f32 0.0, %v6261
      %v6263 = vpop.f32.mrb[0].mxu0
      %v6264 = vpop.f32.mrb[0].mxu0
      %v6265 = vadd.f32 0.0, %v6264
      %v6266 = vpop.f32.mrb[0].mxu0
      %6267 = vmatprep.mubr.bf16.mxu0 0
      %6268 = vmatmul.mubr.bf16.gmra.mrb[0].mxu0 %v6216
      %v6269 = vpop.f32.mrb[0].mxu0
      %v6270 = vadd.f32 0.0, %v6269
      %v6271 = vpop.f32.mrb[0].mxu0
      %v6272 = vpop.f32.mrb[0].mxu0
      %v6273 = vadd.f32 0.0, %v6272
      %v6274 = vpop.f32.mrb[0].mxu0
      %6275 = vmatprep.mubr.bf16.mxu0 0
      %6276 = vmatmul.mubr.bf16.gmra.mrb[0].mxu0 %v6219
      %v6277 = vpop.f32.mrb[0].mxu0
      %v6278 = vadd.f32 0.0, %v6277
      %v6279 = vpop.f32.mrb[0].mxu0
      %v6280 = vpop.f32.mrb[0].mxu0
      %v6281 = vadd.f32 0.0, %v6280
      %v6282 = vpop.f32.mrb[0].mxu0
      %6283 = vmatprep.mubr.bf16.mxu0 0
      %6284 = vmatmul.mubr.bf16.gmra.mrb[0].mxu0 %v6222
      %v6285 = vpop.f32.mrb[0].mxu0
      %v6286 = vadd.f32 0.0, %v6285
      %v6287 = vpop.f32.mrb[0].mxu0
      %v6288 = vpop.f32.mrb[0].mxu0
      %v6289 = vadd.f32 0.0, %v6288
      %v6290 = vpop.f32.mrb[0].mxu0
      %6291 = vdwg.mxu0
      %v6292 = vadd.f32 %v6167, %v6262
      %v6293 = vadd.f32 %v6168, %v6265
      %v6294 = vadd.f32 %v6169, %v6270
      %v6295 = vadd.f32 %v6170, %v6273
      %v6296 = vadd.f32 %v6171, %v6278
      %v6297 = vadd.f32 %v6172, %v6281
      %v6298 = vadd.f32 %v6173, %v6286
      %v6299 = vadd.f32 %v6174, %v6289
      %v6300 = vlaneseq
      %v6301 = vshrl.u32 %v6300, 7
      %v6302 = vsub.s32 2, %v6301
      %v6303 = vrot.slane %v226, %v6302
      %v6304 = vmul.f32 %v6292, %v6303
      %v6305 = vmul.f32 %v6293, %v6303
      %v6306 = vmul.f32 %v6294, %v6303
      %v6307 = vmul.f32 %v6295, %v6303
      %v6308 = vmul.f32 %v6296, %v6303
      %v6309 = vmul.f32 %v6297, %v6303
      %v6310 = vmul.f32 %v6298, %v6303
      %v6311 = vmul.f32 %v6299, %v6303
      %v6312 = vlaneseq
      %v6313 = vshrl.u32 %v6312, 7
      %v6314 = vsub.s32 3, %v6313
      %v6315 = vrot.slane %v226, %v6314
      %v6316 = vadd.f32 %v6304, %v6315
      %v6317 = vadd.f32 %v6305, %v6315
      %v6318 = vadd.f32 %v6306, %v6315
      %v6319 = vadd.f32 %v6307, %v6315
      %v6320 = vadd.f32 %v6308, %v6315
      %v6321 = vadd.f32 %v6309, %v6315
      %v6322 = vadd.f32 %v6310, %v6315
      %v6323 = vadd.f32 %v6311, %v6315
      %v6324 = vmax.f32 %v6316, 0.0
      %v6325 = vmax.f32 %v6317, 0.0
      %v6326 = vmax.f32 %v6318, 0.0
      %v6327 = vmax.f32 %v6319, 0.0
      %v6328 = vmax.f32 %v6320, 0.0
      %v6329 = vmax.f32 %v6321, 0.0
      %v6330 = vmax.f32 %v6322, 0.0
      %v6331 = vmax.f32 %v6323, 0.0
      %6332 = vst.msk [vmem:[%s5180 + $0x1] sm:$0xff] %vm273, %v6324
      %6333 = vst.msk [vmem:[%s5180 + $0x11] sm:$0xff] %vm273, %v6325
      %6334 = vst.msk [vmem:[%s5180 + $0x21] sm:$0xff] %vm273, %v6326
      %6335 = vst.msk [vmem:[%s5180 + $0x31] sm:$0xff] %vm273, %v6327
      %6336 = vst.msk [vmem:[%s5180 + $0x41] sm:$0xff] %vm273, %v6328
      %6337 = vst.msk [vmem:[%s5180 + $0x51] sm:$0xff] %vm273, %v6329
      %6338 = vst.msk [vmem:[%s5180 + $0x61] sm:$0xff] %vm273, %v6330
      %6339 = vst.msk [vmem:[%s5180 + $0x71] sm:$0xff] %vm273, %v6331
      %v6340 = vld [vmem:[#allocation3] sm:$0xff]
      %v6341 = vld [vmem:[#allocation3 + $0x10] sm:$0xff]
      %v6342 = vld [vmem:[#allocation3 + $0x20] sm:$0xff]
      %v6343 = vld [vmem:[#allocation3 + $0x30] sm:$0xff]
      %v6344 = vld [vmem:[#allocation3 + $0x40] sm:$0xff]
      %v6345 = vld [vmem:[#allocation3 + $0x50] sm:$0xff]
      %v6346 = vld [vmem:[#allocation3 + $0x60] sm:$0xff]
      %v6347 = vld [vmem:[#allocation3 + $0x70] sm:$0xff]
      %v6348 = vpack.c.bf16 %v6340, %v6340
      %v6349 = vpack.c.bf16 %v6341, %v6341
      %v6350 = vpack.c.bf16 %v6342, %v6342
      %v6351 = vpack.c.bf16 %v6343, %v6343
      %v6352 = vpack.c.bf16 %v6344, %v6344
      %v6353 = vpack.c.bf16 %v6345, %v6345
      %v6354 = vpack.c.bf16 %v6346, %v6346
      %v6355 = vpack.c.bf16 %v6347, %v6347
      %v6356 = vld [vmem:[%s3] sm:$0xf]
      %v6357 = vld [vmem:[#allocation3 + $0x1] sm:$0xff]
      %v6358 = vld [vmem:[#allocation3 + $0x11] sm:$0xff]
      %v6359 = vld [vmem:[#allocation3 + $0x21] sm:$0xff]
      %v6360 = vld [vmem:[#allocation3 + $0x31] sm:$0xff]
      %v6361 = vld [vmem:[#allocation3 + $0x41] sm:$0xff]
      %v6362 = vld [vmem:[#allocation3 + $0x51] sm:$0xff]
      %v6363 = vld [vmem:[#allocation3 + $0x61] sm:$0xff]
      %v6364 = vld [vmem:[#allocation3 + $0x71] sm:$0xff]
      %v6365 = vpack.c.bf16 %v6357, %v6357
      %v6366 = vpack.c.bf16 %v6358, %v6358
      %v6367 = vpack.c.bf16 %v6359, %v6359
      %v6368 = vpack.c.bf16 %v6360, %v6360
      %v6369 = vpack.c.bf16 %v6361, %v6361
      %v6370 = vpack.c.bf16 %v6362, %v6362
      %v6371 = vpack.c.bf16 %v6363, %v6363
      %v6372 = vpack.c.bf16 %v6364, %v6364
      %v6373 = vld [vmem:[%s3 + $0x4] sm:$0xf]
      %v6382 = vunpack.c.l.b16 %v6365
      %v6383 = vunpack.c.l.b16 %v6366
      %v6384 = vunpack.c.l.b16 %v6367
      %v6385 = vunpack.c.l.b16 %v6368
      %v6386 = vunpack.c.l.b16 %v6369
      %v6387 = vunpack.c.l.b16 %v6370
      %v6388 = vunpack.c.l.b16 %v6371
      %v6389 = vunpack.c.l.b16 %v6372
      %v6390 = vpack.c.b16 %v6383, %v6382
      %v6391 = vpack.c.b16 %v6385, %v6384
      %v6392 = vpack.c.b16 %v6387, %v6386
      %v6393 = vpack.c.b16 %v6389, %v6388
      %v6395 = vsel %vm273, %v6390, 0
      %v6398 = vsel %vm273, %v6391, 0
      %v6401 = vsel %vm273, %v6392, 0
      %v6404 = vsel %vm273, %v6393, 0
      %v6407 = vsel %vm5255, %v6373, 0
      %6409 = vmatprep.subr.bf16.mxu0 0
      %6410 = vmatpush1.bf16.msra.mxu0 %v6407
      %6411 = vmatprep.subr.bf16.mxu0 0
      %6412 = vmatpush1.bf16.msra.mxu0 0
      %6413 = vmatprep.subr.bf16.mxu0 0
      %6414 = vmatpush1.bf16.msra.mxu0 0
      %6415 = vmatprep.subr.bf16.mxu0 0
      %6416 = vmatpush1.bf16.msra.mxu0 0
      %6417 = vmatprep.subr.bf16.mxu0 0
      %6418 = vmatpush1.bf16.msra.mxu0 0
      %6419 = vmatprep.subr.bf16.mxu0 0
      %6420 = vmatpush1.bf16.msra.mxu0 0
      %6421 = vmatprep.subr.bf16.mxu0 0
      %6422 = vmatpush1.bf16.msra.mxu0 0
      %6423 = vmatprep.subr.bf16.mxu0 0
      %6424 = vmatpush1.bf16.msra.mxu0 0
      %6425 = vmatprep.subr.bf16.mxu0 0
      %6426 = vmatpush1.bf16.msra.mxu0 0
      %6427 = vmatprep.subr.bf16.mxu0 0
      %6428 = vmatpush1.bf16.msra.mxu0 0
      %6429 = vmatprep.subr.bf16.mxu0 0
      %6430 = vmatpush1.bf16.msra.mxu0 0
      %6431 = vmatprep.subr.bf16.mxu0 0
      %6432 = vmatpush1.bf16.msra.mxu0 0
      %6433 = vmatprep.subr.bf16.mxu0 0
      %6434 = vmatpush1.bf16.msra.mxu0 0
      %6435 = vmatprep.subr.bf16.mxu0 0
      %6436 = vmatpush1.bf16.msra.mxu0 0
      %6437 = vmatprep.subr.bf16.mxu0 0
      %6438 = vmatpush1.bf16.msra.mxu0 0
      %6439 = vmatprep.subr.bf16.mxu0 0
      %6440 = vmatpush1.bf16.msra.mxu0 0
      %6441 = vmatprep.mubr.bf16.mxu0 0
      %6442 = vmatmul.mubr.bf16.gmra.mrb[0].mxu0 %v6395
      %v6443 = vpop.f32.mrb[0].mxu0
      %v6444 = vadd.f32 0.0, %v6443
      %v6445 = vpop.f32.mrb[0].mxu0
      %v6446 = vpop.f32.mrb[0].mxu0
      %v6447 = vadd.f32 0.0, %v6446
      %v6448 = vpop.f32.mrb[0].mxu0
      %6449 = vmatprep.mubr.bf16.mxu0 0
      %6450 = vmatmul.mubr.bf16.gmra.mrb[0].mxu0 %v6398
      %v6451 = vpop.f32.mrb[0].mxu0
      %v6452 = vadd.f32 0.0, %v6451
      %v6453 = vpop.f32.mrb[0].mxu0
      %v6454 = vpop.f32.mrb[0].mxu0
      %v6455 = vadd.f32 0.0, %v6454
      %v6456 = vpop.f32.mrb[0].mxu0
      %6457 = vmatprep.mubr.bf16.mxu0 0
      %6458 = vmatmul.mubr.bf16.gmra.mrb[0].mxu0 %v6401
      %v6459 = vpop.f32.mrb[0].mxu0
      %v6460 = vadd.f32 0.0, %v6459
      %v6461 = vpop.f32.mrb[0].mxu0
      %v6462 = vpop.f32.mrb[0].mxu0
      %v6463 = vadd.f32 0.0, %v6462
      %v6464 = vpop.f32.mrb[0].mxu0
      %6465 = vmatprep.mubr.bf16.mxu0 0
      %6466 = vmatmul.mubr.bf16.gmra.mrb[0].mxu0 %v6404
      %v6467 = vpop.f32.mrb[0].mxu0
      %v6468 = vadd.f32 0.0, %v6467
      %v6469 = vpop.f32.mrb[0].mxu0
      %v6470 = vpop.f32.mrb[0].mxu0
      %v6471 = vadd.f32 0.0, %v6470
      %v6472 = vpop.f32.mrb[0].mxu0
      %6473 = vdwg.mxu0
      %v6482 = vunpack.c.l.b16 %v6348
      %v6483 = vunpack.c.l.b16 %v6349
      %v6484 = vunpack.c.l.b16 %v6350
      %v6485 = vunpack.c.l.b16 %v6351
      %v6486 = vunpack.c.l.b16 %v6352
      %v6487 = vunpack.c.l.b16 %v6353
      %v6488 = vunpack.c.l.b16 %v6354
      %v6489 = vunpack.c.l.b16 %v6355
      %v6490 = vpack.c.b16 %v6483, %v6482
      %v6491 = vpack.c.b16 %v6485, %v6484
      %v6492 = vpack.c.b16 %v6487, %v6486
      %v6493 = vpack.c.b16 %v6489, %v6488
      %v6495 = vsel %vm273, %v6490, 0
      %v6498 = vsel %vm273, %v6491, 0
      %v6501 = vsel %vm273, %v6492, 0
      %v6504 = vsel %vm273, %v6493, 0
      %v6507 = vsel %vm5255, %v6356, 0
      %6509 = vmatprep.subr.bf16.mxu0 0
      %6510 = vmatpush1.bf16.msra.mxu0 %v6507
      %6511 = vmatprep.subr.bf16.mxu0 0
      %6512 = vmatpush1.bf16.msra.mxu0 0
      %6513 = vmatprep.subr.bf16.mxu0 0
      %6514 = vmatpush1.bf16.msra.mxu0 0
      %6515 = vmatprep.subr.bf16.mxu0 0
      %6516 = vmatpush1.bf16.msra.mxu0 0
      %6517 = vmatprep.subr.bf16.mxu0 0
      %6518 = vmatpush1.bf16.msra.mxu0 0
      %6519 = vmatprep.subr.bf16.mxu0 0
      %6520 = vmatpush1.bf16.msra.mxu0 0
      %6521 = vmatprep.subr.bf16.mxu0 0
      %6522 = vmatpush1.bf16.msra.mxu0 0
      %6523 = vmatprep.subr.bf16.mxu0 0
      %6524 = vmatpush1.bf16.msra.mxu0 0
      %6525 = vmatprep.subr.bf16.mxu0 0
      %6526 = vmatpush1.bf16.msra.mxu0 0
      %6527 = vmatprep.subr.bf16.mxu0 0
      %6528 = vmatpush1.bf16.msra.mxu0 0
      %6529 = vmatprep.subr.bf16.mxu0 0
      %6530 = vmatpush1.bf16.msra.mxu0 0
      %6531 = vmatprep.subr.bf16.mxu0 0
      %6532 = vmatpush1.bf16.msra.mxu0 0
      %6533 = vmatprep.subr.bf16.mxu0 0
      %6534 = vmatpush1.bf16.msra.mxu0 0
      %6535 = vmatprep.subr.bf16.mxu0 0
      %6536 = vmatpush1.bf16.msra.mxu0 0
      %6537 = vmatprep.subr.bf16.mxu0 0
      %6538 = vmatpush1.bf16.msra.mxu0 0
      %6539 = vmatprep.subr.bf16.mxu0 0
      %6540 = vmatpush1.bf16.msra.mxu0 0
      %6541 = vmatprep.mubr.bf16.mxu0 0
      %6542 = vmatmul.mubr.bf16.gmra.mrb[0].mxu0 %v6495
      %v6543 = vpop.f32.mrb[0].mxu0
      %v6544 = vadd.f32 %v6444, %v6543
      %v6545 = vpop.f32.mrb[0].mxu0
      %v6546 = vpop.f32.mrb[0].mxu0
      %v6547 = vadd.f32 %v6447, %v6546
      %v6548 = vpop.f32.mrb[0].mxu0
      %6549 = vmatprep.mubr.bf16.mxu0 0
      %6550 = vmatmul.mubr.bf16.gmra.mrb[0].mxu0 %v6498
      %v6551 = vpop.f32.mrb[0].mxu0
      %v6552 = vadd.f32 %v6452, %v6551
      %v6553 = vpop.f32.mrb[0].mxu0
      %v6554 = vpop.f32.mrb[0].mxu0
      %v6555 = vadd.f32 %v6455, %v6554
      %v6556 = vpop.f32.mrb[0].mxu0
      %6557 = vmatprep.mubr.bf16.mxu0 0
      %6558 = vmatmul.mubr.bf16.gmra.mrb[0].mxu0 %v6501
      %v6559 = vpop.f32.mrb[0].mxu0
      %v6560 = vadd.f32 %v6460, %v6559
      %v6561 = vpop.f32.mrb[0].mxu0
      %v6562 = vpop.f32.mrb[0].mxu0
      %v6563 = vadd.f32 %v6463, %v6562
      %v6564 = vpop.f32.mrb[0].mxu0
      %6565 = vmatprep.mubr.bf16.mxu0 0
      %6566 = vmatmul.mubr.bf16.gmra.mrb[0].mxu0 %v6504
      %v6567 = vpop.f32.mrb[0].mxu0
      %v6568 = vadd.f32 %v6468, %v6567
      %v6569 = vpop.f32.mrb[0].mxu0
      %v6570 = vpop.f32.mrb[0].mxu0
      %v6571 = vadd.f32 %v6471, %v6570
      %v6572 = vpop.f32.mrb[0].mxu0
      %6573 = vdwg.mxu0
      %v6574 = vld [vmem:[#allocation3 + $0x2] sm:$0xff]
      %v6575 = vld [vmem:[#allocation3 + $0x12] sm:$0xff]
      %v6576 = vld [vmem:[#allocation3 + $0x22] sm:$0xff]
      %v6577 = vld [vmem:[#allocation3 + $0x32] sm:$0xff]
      %v6578 = vld [vmem:[#allocation3 + $0x42] sm:$0xff]
      %v6579 = vld [vmem:[#allocation3 + $0x52] sm:$0xff]
      %v6580 = vld [vmem:[#allocation3 + $0x62] sm:$0xff]
      %v6581 = vld [vmem:[#allocation3 + $0x72] sm:$0xff]
      %v6582 = vpack.c.bf16 %v6574, %v6574
      %v6583 = vpack.c.bf16 %v6575, %v6575
      %v6584 = vpack.c.bf16 %v6576, %v6576
      %v6585 = vpack.c.bf16 %v6577, %v6577
      %v6586 = vpack.c.bf16 %v6578, %v6578
      %v6587 = vpack.c.bf16 %v6579, %v6579
      %v6588 = vpack.c.bf16 %v6580, %v6580
      %v6589 = vpack.c.bf16 %v6581, %v6581
      %v6590 = vld [vmem:[%s3 + $0x8] sm:$0xf]
      %v6599 = vunpack.c.l.b16 %v6582
      %v6600 = vunpack.c.l.b16 %v6583
      %v6601 = vunpack.c.l.b16 %v6584
      %v6602 = vunpack.c.l.b16 %v6585
      %v6603 = vunpack.c.l.b16 %v6586
      %v6604 = vunpack.c.l.b16 %v6587
      %v6605 = vunpack.c.l.b16 %v6588
      %v6606 = vunpack.c.l.b16 %v6589
      %v6607 = vpack.c.b16 %v6600, %v6599
      %v6608 = vpack.c.b16 %v6602, %v6601
      %v6609 = vpack.c.b16 %v6604, %v6603
      %v6610 = vpack.c.b16 %v6606, %v6605
      %v6612 = vsel %vm273, %v6607, 0
      %v6615 = vsel %vm273, %v6608, 0
      %v6618 = vsel %vm273, %v6609, 0
      %v6621 = vsel %vm273, %v6610, 0
      %v6624 = vsel %vm5255, %v6590, 0
      %6626 = vmatprep.subr.bf16.mxu0 0
      %6627 = vmatpush1.bf16.msra.mxu0 %v6624
      %6628 = vmatprep.subr.bf16.mxu0 0
      %6629 = vmatpush1.bf16.msra.mxu0 0
      %6630 = vmatprep.subr.bf16.mxu0 0
      %6631 = vmatpush1.bf16.msra.mxu0 0
      %6632 = vmatprep.subr.bf16.mxu0 0
      %6633 = vmatpush1.bf16.msra.mxu0 0
      %6634 = vmatprep.subr.bf16.mxu0 0
      %6635 = vmatpush1.bf16.msra.mxu0 0
      %6636 = vmatprep.subr.bf16.mxu0 0
      %6637 = vmatpush1.bf16.msra.mxu0 0
      %6638 = vmatprep.subr.bf16.mxu0 0
      %6639 = vmatpush1.bf16.msra.mxu0 0
      %6640 = vmatprep.subr.bf16.mxu0 0
      %6641 = vmatpush1.bf16.msra.mxu0 0
      %6642 = vmatprep.subr.bf16.mxu0 0
      %6643 = vmatpush1.bf16.msra.mxu0 0
      %6644 = vmatprep.subr.bf16.mxu0 0
      %6645 = vmatpush1.bf16.msra.mxu0 0
      %6646 = vmatprep.subr.bf16.mxu0 0
      %6647 = vmatpush1.bf16.msra.mxu0 0
      %6648 = vmatprep.subr.bf16.mxu0 0
      %6649 = vmatpush1.bf16.msra.mxu0 0
      %6650 = vmatprep.subr.bf16.mxu0 0
      %6651 = vmatpush1.bf16.msra.mxu0 0
      %6652 = vmatprep.subr.bf16.mxu0 0
      %6653 = vmatpush1.bf16.msra.mxu0 0
      %6654 = vmatprep.subr.bf16.mxu0 0
      %6655 = vmatpush1.bf16.msra.mxu0 0
      %6656 = vmatprep.subr.bf16.mxu0 0
      %6657 = vmatpush1.bf16.msra.mxu0 0
      %6658 = vmatprep.mubr.bf16.mxu0 0
      %6659 = vmatmul.mubr.bf16.gmra.mrb[0].mxu0 %v6612
      %v6660 = vpop.f32.mrb[0].mxu0
      %v6661 = vadd.f32 0.0, %v6660
      %v6662 = vpop.f32.mrb[0].mxu0
      %v6663 = vpop.f32.mrb[0].mxu0
      %v6664 = vadd.f32 0.0, %v6663
      %v6665 = vpop.f32.mrb[0].mxu0
      %6666 = vmatprep.mubr.bf16.mxu0 0
      %6667 = vmatmul.mubr.bf16.gmra.mrb[0].mxu0 %v6615
      %v6668 = vpop.f32.mrb[0].mxu0
      %v6669 = vadd.f32 0.0, %v6668
      %v6670 = vpop.f32.mrb[0].mxu0
      %v6671 = vpop.f32.mrb[0].mxu0
      %v6672 = vadd.f32 0.0, %v6671
      %v6673 = vpop.f32.mrb[0].mxu0
      %6674 = vmatprep.mubr.bf16.mxu0 0
      %6675 = vmatmul.mubr.bf16.gmra.mrb[0].mxu0 %v6618
      %v6676 = vpop.f32.mrb[0].mxu0
      %v6677 = vadd.f32 0.0, %v6676
      %v6678 = vpop.f32.mrb[0].mxu0
      %v6679 = vpop.f32.mrb[0].mxu0
      %v6680 = vadd.f32 0.0, %v6679
      %v6681 = vpop.f32.mrb[0].mxu0
      %6682 = vmatprep.mubr.bf16.mxu0 0
      %6683 = vmatmul.mubr.bf16.gmra.mrb[0].mxu0 %v6621
      %v6684 = vpop.f32.mrb[0].mxu0
      %v6685 = vadd.f32 0.0, %v6684
      %v6686 = vpop.f32.mrb[0].mxu0
      %v6687 = vpop.f32.mrb[0].mxu0
      %v6688 = vadd.f32 0.0, %v6687
      %v6689 = vpop.f32.mrb[0].mxu0
      %6690 = vdwg.mxu0
      %v6691 = vadd.f32 %v6544, %v6661
      %v6692 = vadd.f32 %v6547, %v6664
      %v6693 = vadd.f32 %v6552, %v6669
      %v6694 = vadd.f32 %v6555, %v6672
      %v6695 = vadd.f32 %v6560, %v6677
      %v6696 = vadd.f32 %v6563, %v6680
      %v6697 = vadd.f32 %v6568, %v6685
      %v6698 = vadd.f32 %v6571, %v6688
      %v6699 = vld [vmem:[%s5180] sm:$0xff]
      %v6700 = vld [vmem:[%s5180 + $0x10] sm:$0xff]
      %v6701 = vld [vmem:[%s5180 + $0x20] sm:$0xff]
      %v6702 = vld [vmem:[%s5180 + $0x30] sm:$0xff]
      %v6703 = vld [vmem:[%s5180 + $0x40] sm:$0xff]
      %v6704 = vld [vmem:[%s5180 + $0x50] sm:$0xff]
      %v6705 = vld [vmem:[%s5180 + $0x60] sm:$0xff]
      %v6706 = vld [vmem:[%s5180 + $0x70] sm:$0xff]
      %v6707 = vpack.c.bf16 %v6699, %v6699
      %v6708 = vpack.c.bf16 %v6700, %v6700
      %v6709 = vpack.c.bf16 %v6701, %v6701
      %v6710 = vpack.c.bf16 %v6702, %v6702
      %v6711 = vpack.c.bf16 %v6703, %v6703
      %v6712 = vpack.c.bf16 %v6704, %v6704
      %v6713 = vpack.c.bf16 %v6705, %v6705
      %v6714 = vpack.c.bf16 %v6706, %v6706
      %v6715 = vld [vmem:[%s3 + $0xc] sm:$0xf]
      %v6724 = vunpack.c.l.b16 %v6707
      %v6725 = vunpack.c.l.b16 %v6708
      %v6726 = vunpack.c.l.b16 %v6709
      %v6727 = vunpack.c.l.b16 %v6710
      %v6728 = vunpack.c.l.b16 %v6711
      %v6729 = vunpack.c.l.b16 %v6712
      %v6730 = vunpack.c.l.b16 %v6713
      %v6731 = vunpack.c.l.b16 %v6714
      %v6732 = vpack.c.b16 %v6725, %v6724
      %v6733 = vpack.c.b16 %v6727, %v6726
      %v6734 = vpack.c.b16 %v6729, %v6728
      %v6735 = vpack.c.b16 %v6731, %v6730
      %v6737 = vsel %vm273, %v6732, 0
      %v6740 = vsel %vm273, %v6733, 0
      %v6743 = vsel %vm273, %v6734, 0
      %v6746 = vsel %vm273, %v6735, 0
      %v6749 = vsel %vm5255, %v6715, 0
      %6751 = vmatprep.subr.bf16.mxu0 0
      %6752 = vmatpush1.bf16.msra.mxu0 %v6749
      %6753 = vmatprep.subr.bf16.mxu0 0
      %6754 = vmatpush1.bf16.msra.mxu0 0
      %6755 = vmatprep.subr.bf16.mxu0 0
      %6756 = vmatpush1.bf16.msra.mxu0 0
      %6757 = vmatprep.subr.bf16.mxu0 0
      %6758 = vmatpush1.bf16.msra.mxu0 0
      %6759 = vmatprep.subr.bf16.mxu0 0
      %6760 = vmatpush1.bf16.msra.mxu0 0
      %6761 = vmatprep.subr.bf16.mxu0 0
      %6762 = vmatpush1.bf16.msra.mxu0 0
      %6763 = vmatprep.subr.bf16.mxu0 0
      %6764 = vmatpush1.bf16.msra.mxu0 0
      %6765 = vmatprep.subr.bf16.mxu0 0
      %6766 = vmatpush1.bf16.msra.mxu0 0
      %6767 = vmatprep.subr.bf16.mxu0 0
      %6768 = vmatpush1.bf16.msra.mxu0 0
      %6769 = vmatprep.subr.bf16.mxu0 0
      %6770 = vmatpush1.bf16.msra.mxu0 0
      %6771 = vmatprep.subr.bf16.mxu0 0
      %6772 = vmatpush1.bf16.msra.mxu0 0
      %6773 = vmatprep.subr.bf16.mxu0 0
      %6774 = vmatpush1.bf16.msra.mxu0 0
      %6775 = vmatprep.subr.bf16.mxu0 0
      %6776 = vmatpush1.bf16.msra.mxu0 0
      %6777 = vmatprep.subr.bf16.mxu0 0
      %6778 = vmatpush1.bf16.msra.mxu0 0
      %6779 = vmatprep.subr.bf16.mxu0 0
      %6780 = vmatpush1.bf16.msra.mxu0 0
      %6781 = vmatprep.subr.bf16.mxu0 0
      %6782 = vmatpush1.bf16.msra.mxu0 0
      %6783 = vmatprep.mubr.bf16.mxu0 0
      %6784 = vmatmul.mubr.bf16.gmra.mrb[0].mxu0 %v6737
      %v6785 = vpop.f32.mrb[0].mxu0
      %v6786 = vadd.f32 0.0, %v6785
      %v6787 = vpop.f32.mrb[0].mxu0
      %v6788 = vpop.f32.mrb[0].mxu0
      %v6789 = vadd.f32 0.0, %v6788
      %v6790 = vpop.f32.mrb[0].mxu0
      %6791 = vmatprep.mubr.bf16.mxu0 0
      %6792 = vmatmul.mubr.bf16.gmra.mrb[0].mxu0 %v6740
      %v6793 = vpop.f32.mrb[0].mxu0
      %v6794 = vadd.f32 0.0, %v6793
      %v6795 = vpop.f32.mrb[0].mxu0
      %v6796 = vpop.f32.mrb[0].mxu0
      %v6797 = vadd.f32 0.0, %v6796
      %v6798 = vpop.f32.mrb[0].mxu0
      %6799 = vmatprep.mubr.bf16.mxu0 0
      %6800 = vmatmul.mubr.bf16.gmra.mrb[0].mxu0 %v6743
      %v6801 = vpop.f32.mrb[0].mxu0
      %v6802 = vadd.f32 0.0, %v6801
      %v6803 = vpop.f32.mrb[0].mxu0
      %v6804 = vpop.f32.mrb[0].mxu0
      %v6805 = vadd.f32 0.0, %v6804
      %v6806 = vpop.f32.mrb[0].mxu0
      %6807 = vmatprep.mubr.bf16.mxu0 0
      %6808 = vmatmul.mubr.bf16.gmra.mrb[0].mxu0 %v6746
      %v6809 = vpop.f32.mrb[0].mxu0
      %v6810 = vadd.f32 0.0, %v6809
      %v6811 = vpop.f32.mrb[0].mxu0
      %v6812 = vpop.f32.mrb[0].mxu0
      %v6813 = vadd.f32 0.0, %v6812
      %v6814 = vpop.f32.mrb[0].mxu0
      %6815 = vdwg.mxu0
      %v6816 = vadd.f32 %v6691, %v6786
      %v6817 = vadd.f32 %v6692, %v6789
      %v6818 = vadd.f32 %v6693, %v6794
      %v6819 = vadd.f32 %v6694, %v6797
      %v6820 = vadd.f32 %v6695, %v6802
      %v6821 = vadd.f32 %v6696, %v6805
      %v6822 = vadd.f32 %v6697, %v6810
      %v6823 = vadd.f32 %v6698, %v6813
      %v6824 = vld [vmem:[%s5180 + $0x1] sm:$0xff]
      %v6825 = vld [vmem:[%s5180 + $0x11] sm:$0xff]
      %v6826 = vld [vmem:[%s5180 + $0x21] sm:$0xff]
      %v6827 = vld [vmem:[%s5180 + $0x31] sm:$0xff]
      %v6828 = vld [vmem:[%s5180 + $0x41] sm:$0xff]
      %v6829 = vld [vmem:[%s5180 + $0x51] sm:$0xff]
      %v6830 = vld [vmem:[%s5180 + $0x61] sm:$0xff]
      %v6831 = vld [vmem:[%s5180 + $0x71] sm:$0xff]
      %v6832 = vpack.c.bf16 %v6824, %v6824
      %v6833 = vpack.c.bf16 %v6825, %v6825
      %v6834 = vpack.c.bf16 %v6826, %v6826
      %v6835 = vpack.c.bf16 %v6827, %v6827
      %v6836 = vpack.c.bf16 %v6828, %v6828
      %v6837 = vpack.c.bf16 %v6829, %v6829
      %v6838 = vpack.c.bf16 %v6830, %v6830
      %v6839 = vpack.c.bf16 %v6831, %v6831
      %v6840 = vld [vmem:[%s3 + $0x10] sm:$0xf]
      %v6849 = vunpack.c.l.b16 %v6832
      %v6850 = vunpack.c.l.b16 %v6833
      %v6851 = vunpack.c.l.b16 %v6834
      %v6852 = vunpack.c.l.b16 %v6835
      %v6853 = vunpack.c.l.b16 %v6836
      %v6854 = vunpack.c.l.b16 %v6837
      %v6855 = vunpack.c.l.b16 %v6838
      %v6856 = vunpack.c.l.b16 %v6839
      %v6857 = vpack.c.b16 %v6850, %v6849
      %v6858 = vpack.c.b16 %v6852, %v6851
      %v6859 = vpack.c.b16 %v6854, %v6853
      %v6860 = vpack.c.b16 %v6856, %v6855
      %v6862 = vsel %vm273, %v6857, 0
      %v6865 = vsel %vm273, %v6858, 0
      %v6868 = vsel %vm273, %v6859, 0
      %v6871 = vsel %vm273, %v6860, 0
      %v6874 = vsel %vm5255, %v6840, 0
      %6876 = vmatprep.subr.bf16.mxu0 0
      %6877 = vmatpush1.bf16.msra.mxu0 %v6874
      %6878 = vmatprep.subr.bf16.mxu0 0
      %6879 = vmatpush1.bf16.msra.mxu0 0
      %6880 = vmatprep.subr.bf16.mxu0 0
      %6881 = vmatpush1.bf16.msra.mxu0 0
      %6882 = vmatprep.subr.bf16.mxu0 0
      %6883 = vmatpush1.bf16.msra.mxu0 0
      %6884 = vmatprep.subr.bf16.mxu0 0
      %6885 = vmatpush1.bf16.msra.mxu0 0
      %6886 = vmatprep.subr.bf16.mxu0 0
      %6887 = vmatpush1.bf16.msra.mxu0 0
      %6888 = vmatprep.subr.bf16.mxu0 0
      %6889 = vmatpush1.bf16.msra.mxu0 0
      %6890 = vmatprep.subr.bf16.mxu0 0
      %6891 = vmatpush1.bf16.msra.mxu0 0
      %6892 = vmatprep.subr.bf16.mxu0 0
      %6893 = vmatpush1.bf16.msra.mxu0 0
      %6894 = vmatprep.subr.bf16.mxu0 0
      %6895 = vmatpush1.bf16.msra.mxu0 0
      %6896 = vmatprep.subr.bf16.mxu0 0
      %6897 = vmatpush1.bf16.msra.mxu0 0
      %6898 = vmatprep.subr.bf16.mxu0 0
      %6899 = vmatpush1.bf16.msra.mxu0 0
      %6900 = vmatprep.subr.bf16.mxu0 0
      %6901 = vmatpush1.bf16.msra.mxu0 0
      %6902 = vmatprep.subr.bf16.mxu0 0
      %6903 = vmatpush1.bf16.msra.mxu0 0
      %6904 = vmatprep.subr.bf16.mxu0 0
      %6905 = vmatpush1.bf16.msra.mxu0 0
      %6906 = vmatprep.subr.bf16.mxu0 0
      %6907 = vmatpush1.bf16.msra.mxu0 0
      %6908 = vmatprep.mubr.bf16.mxu0 0
      %6909 = vmatmul.mubr.bf16.gmra.mrb[0].mxu0 %v6862
      %v6910 = vpop.f32.mrb[0].mxu0
      %v6911 = vadd.f32 0.0, %v6910
      %v6912 = vpop.f32.mrb[0].mxu0
      %v6913 = vpop.f32.mrb[0].mxu0
      %v6914 = vadd.f32 0.0, %v6913
      %v6915 = vpop.f32.mrb[0].mxu0
      %6916 = vmatprep.mubr.bf16.mxu0 0
      %6917 = vmatmul.mubr.bf16.gmra.mrb[0].mxu0 %v6865
      %v6918 = vpop.f32.mrb[0].mxu0
      %v6919 = vadd.f32 0.0, %v6918
      %v6920 = vpop.f32.mrb[0].mxu0
      %v6921 = vpop.f32.mrb[0].mxu0
      %v6922 = vadd.f32 0.0, %v6921
      %v6923 = vpop.f32.mrb[0].mxu0
      %6924 = vmatprep.mubr.bf16.mxu0 0
      %6925 = vmatmul.mubr.bf16.gmra.mrb[0].mxu0 %v6868
      %v6926 = vpop.f32.mrb[0].mxu0
      %v6927 = vadd.f32 0.0, %v6926
      %v6928 = vpop.f32.mrb[0].mxu0
      %v6929 = vpop.f32.mrb[0].mxu0
      %v6930 = vadd.f32 0.0, %v6929
      %v6931 = vpop.f32.mrb[0].mxu0
      %6932 = vmatprep.mubr.bf16.mxu0 0
      %6933 = vmatmul.mubr.bf16.gmra.mrb[0].mxu0 %v6871
      %v6934 = vpop.f32.mrb[0].mxu0
      %v6935 = vadd.f32 0.0, %v6934
      %v6936 = vpop.f32.mrb[0].mxu0
      %v6937 = vpop.f32.mrb[0].mxu0
      %v6938 = vadd.f32 0.0, %v6937
      %v6939 = vpop.f32.mrb[0].mxu0
      %6940 = vdwg.mxu0
      %v6941 = vadd.f32 %v6816, %v6911
      %v6942 = vadd.f32 %v6817, %v6914
      %v6943 = vadd.f32 %v6818, %v6919
      %v6944 = vadd.f32 %v6819, %v6922
      %v6945 = vadd.f32 %v6820, %v6927
      %v6946 = vadd.f32 %v6821, %v6930
      %v6947 = vadd.f32 %v6822, %v6935
      %v6948 = vadd.f32 %v6823, %v6938
      %v6949 = vld [vmem:[%s5180 + $0x2] sm:$0xff]
      %v6950 = vld [vmem:[%s5180 + $0x12] sm:$0xff]
      %v6951 = vld [vmem:[%s5180 + $0x22] sm:$0xff]
      %v6952 = vld [vmem:[%s5180 + $0x32] sm:$0xff]
      %v6953 = vld [vmem:[%s5180 + $0x42] sm:$0xff]
      %v6954 = vld [vmem:[%s5180 + $0x52] sm:$0xff]
      %v6955 = vld [vmem:[%s5180 + $0x62] sm:$0xff]
      %v6956 = vld [vmem:[%s5180 + $0x72] sm:$0xff]
      %v6957 = vpack.c.bf16 %v6949, %v6949
      %v6958 = vpack.c.bf16 %v6950, %v6950
      %v6959 = vpack.c.bf16 %v6951, %v6951
      %v6960 = vpack.c.bf16 %v6952, %v6952
      %v6961 = vpack.c.bf16 %v6953, %v6953
      %v6962 = vpack.c.bf16 %v6954, %v6954
      %v6963 = vpack.c.bf16 %v6955, %v6955
      %v6964 = vpack.c.bf16 %v6956, %v6956
      %v6965 = vld [vmem:[%s3 + $0x14] sm:$0xf]
      %v6974 = vunpack.c.l.b16 %v6957
      %v6975 = vunpack.c.l.b16 %v6958
      %v6976 = vunpack.c.l.b16 %v6959
      %v6977 = vunpack.c.l.b16 %v6960
      %v6978 = vunpack.c.l.b16 %v6961
      %v6979 = vunpack.c.l.b16 %v6962
      %v6980 = vunpack.c.l.b16 %v6963
      %v6981 = vunpack.c.l.b16 %v6964
      %v6982 = vpack.c.b16 %v6975, %v6974
      %v6983 = vpack.c.b16 %v6977, %v6976
      %v6984 = vpack.c.b16 %v6979, %v6978
      %v6985 = vpack.c.b16 %v6981, %v6980
      %v6987 = vsel %vm273, %v6982, 0
      %v6990 = vsel %vm273, %v6983, 0
      %v6993 = vsel %vm273, %v6984, 0
      %v6996 = vsel %vm273, %v6985, 0
      %v6999 = vsel %vm5255, %v6965, 0
      %7001 = vmatprep.subr.bf16.mxu0 0
      %7002 = vmatpush1.bf16.msra.mxu0 %v6999
      %7003 = vmatprep.subr.bf16.mxu0 0
      %7004 = vmatpush1.bf16.msra.mxu0 0
      %7005 = vmatprep.subr.bf16.mxu0 0
      %7006 = vmatpush1.bf16.msra.mxu0 0
      %7007 = vmatprep.subr.bf16.mxu0 0
      %7008 = vmatpush1.bf16.msra.mxu0 0
      %7009 = vmatprep.subr.bf16.mxu0 0
      %7010 = vmatpush1.bf16.msra.mxu0 0
      %7011 = vmatprep.subr.bf16.mxu0 0
      %7012 = vmatpush1.bf16.msra.mxu0 0
      %7013 = vmatprep.subr.bf16.mxu0 0
      %7014 = vmatpush1.bf16.msra.mxu0 0
      %7015 = vmatprep.subr.bf16.mxu0 0
      %7016 = vmatpush1.bf16.msra.mxu0 0
      %7017 = vmatprep.subr.bf16.mxu0 0
      %7018 = vmatpush1.bf16.msra.mxu0 0
      %7019 = vmatprep.subr.bf16.mxu0 0
      %7020 = vmatpush1.bf16.msra.mxu0 0
      %7021 = vmatprep.subr.bf16.mxu0 0
      %7022 = vmatpush1.bf16.msra.mxu0 0
      %7023 = vmatprep.subr.bf16.mxu0 0
      %7024 = vmatpush1.bf16.msra.mxu0 0
      %7025 = vmatprep.subr.bf16.mxu0 0
      %7026 = vmatpush1.bf16.msra.mxu0 0
      %7027 = vmatprep.subr.bf16.mxu0 0
      %7028 = vmatpush1.bf16.msra.mxu0 0
      %7029 = vmatprep.subr.bf16.mxu0 0
      %7030 = vmatpush1.bf16.msra.mxu0 0
      %7031 = vmatprep.subr.bf16.mxu0 0
      %7032 = vmatpush1.bf16.msra.mxu0 0
      %7033 = vmatprep.mubr.bf16.mxu0 0
      %7034 = vmatmul.mubr.bf16.gmra.mrb[0].mxu0 %v6987
      %v7035 = vpop.f32.mrb[0].mxu0
      %v7036 = vadd.f32 0.0, %v7035
      %v7037 = vpop.f32.mrb[0].mxu0
      %v7038 = vpop.f32.mrb[0].mxu0
      %v7039 = vadd.f32 0.0, %v7038
      %v7040 = vpop.f32.mrb[0].mxu0
      %7041 = vmatprep.mubr.bf16.mxu0 0
      %7042 = vmatmul.mubr.bf16.gmra.mrb[0].mxu0 %v6990
      %v7043 = vpop.f32.mrb[0].mxu0
      %v7044 = vadd.f32 0.0, %v7043
      %v7045 = vpop.f32.mrb[0].mxu0
      %v7046 = vpop.f32.mrb[0].mxu0
      %v7047 = vadd.f32 0.0, %v7046
      %v7048 = vpop.f32.mrb[0].mxu0
      %7049 = vmatprep.mubr.bf16.mxu0 0
      %7050 = vmatmul.mubr.bf16.gmra.mrb[0].mxu0 %v6993
      %v7051 = vpop.f32.mrb[0].mxu0
      %v7052 = vadd.f32 0.0, %v7051
      %v7053 = vpop.f32.mrb[0].mxu0
      %v7054 = vpop.f32.mrb[0].mxu0
      %v7055 = vadd.f32 0.0, %v7054
      %v7056 = vpop.f32.mrb[0].mxu0
      %7057 = vmatprep.mubr.bf16.mxu0 0
      %7058 = vmatmul.mubr.bf16.gmra.mrb[0].mxu0 %v6996
      %v7059 = vpop.f32.mrb[0].mxu0
      %v7060 = vadd.f32 0.0, %v7059
      %v7061 = vpop.f32.mrb[0].mxu0
      %v7062 = vpop.f32.mrb[0].mxu0
      %v7063 = vadd.f32 0.0, %v7062
      %v7064 = vpop.f32.mrb[0].mxu0
      %7065 = vdwg.mxu0
      %v7066 = vadd.f32 %v6941, %v7036
      %v7067 = vadd.f32 %v6942, %v7039
      %v7068 = vadd.f32 %v6943, %v7044
      %v7069 = vadd.f32 %v6944, %v7047
      %v7070 = vadd.f32 %v6945, %v7052
      %v7071 = vadd.f32 %v6946, %v7055
      %v7072 = vadd.f32 %v6947, %v7060
      %v7073 = vadd.f32 %v6948, %v7063
      %v7074 = vld [vmem:[%s5924] sm:$0xff]
      %v7075 = vld [vmem:[%s5924 + $0x10] sm:$0xff]
      %v7076 = vld [vmem:[%s5924 + $0x20] sm:$0xff]
      %v7077 = vld [vmem:[%s5924 + $0x30] sm:$0xff]
      %v7078 = vld [vmem:[%s5924 + $0x40] sm:$0xff]
      %v7079 = vld [vmem:[%s5924 + $0x50] sm:$0xff]
      %v7080 = vld [vmem:[%s5924 + $0x60] sm:$0xff]
      %v7081 = vld [vmem:[%s5924 + $0x70] sm:$0xff]
      %v7082 = vpack.c.bf16 %v7074, %v7074
      %v7083 = vpack.c.bf16 %v7075, %v7075
      %v7084 = vpack.c.bf16 %v7076, %v7076
      %v7085 = vpack.c.bf16 %v7077, %v7077
      %v7086 = vpack.c.bf16 %v7078, %v7078
      %v7087 = vpack.c.bf16 %v7079, %v7079
      %v7088 = vpack.c.bf16 %v7080, %v7080
      %v7089 = vpack.c.bf16 %v7081, %v7081
      %v7090 = vld [vmem:[%s3 + $0x18] sm:$0xf]
      %v7099 = vunpack.c.l.b16 %v7082
      %v7100 = vunpack.c.l.b16 %v7083
      %v7101 = vunpack.c.l.b16 %v7084
      %v7102 = vunpack.c.l.b16 %v7085
      %v7103 = vunpack.c.l.b16 %v7086
      %v7104 = vunpack.c.l.b16 %v7087
      %v7105 = vunpack.c.l.b16 %v7088
      %v7106 = vunpack.c.l.b16 %v7089
      %v7107 = vpack.c.b16 %v7100, %v7099
      %v7108 = vpack.c.b16 %v7102, %v7101
      %v7109 = vpack.c.b16 %v7104, %v7103
      %v7110 = vpack.c.b16 %v7106, %v7105
      %v7112 = vsel %vm273, %v7107, 0
      %v7115 = vsel %vm273, %v7108, 0
      %v7118 = vsel %vm273, %v7109, 0
      %v7121 = vsel %vm273, %v7110, 0
      %v7124 = vsel %vm5255, %v7090, 0
      %7126 = vmatprep.subr.bf16.mxu0 0
      %7127 = vmatpush1.bf16.msra.mxu0 %v7124
      %7128 = vmatprep.subr.bf16.mxu0 0
      %7129 = vmatpush1.bf16.msra.mxu0 0
      %7130 = vmatprep.subr.bf16.mxu0 0
      %7131 = vmatpush1.bf16.msra.mxu0 0
      %7132 = vmatprep.subr.bf16.mxu0 0
      %7133 = vmatpush1.bf16.msra.mxu0 0
      %7134 = vmatprep.subr.bf16.mxu0 0
      %7135 = vmatpush1.bf16.msra.mxu0 0
      %7136 = vmatprep.subr.bf16.mxu0 0
      %7137 = vmatpush1.bf16.msra.mxu0 0
      %7138 = vmatprep.subr.bf16.mxu0 0
      %7139 = vmatpush1.bf16.msra.mxu0 0
      %7140 = vmatprep.subr.bf16.mxu0 0
      %7141 = vmatpush1.bf16.msra.mxu0 0
      %7142 = vmatprep.subr.bf16.mxu0 0
      %7143 = vmatpush1.bf16.msra.mxu0 0
      %7144 = vmatprep.subr.bf16.mxu0 0
      %7145 = vmatpush1.bf16.msra.mxu0 0
      %7146 = vmatprep.subr.bf16.mxu0 0
      %7147 = vmatpush1.bf16.msra.mxu0 0
      %7148 = vmatprep.subr.bf16.mxu0 0
      %7149 = vmatpush1.bf16.msra.mxu0 0
      %7150 = vmatprep.subr.bf16.mxu0 0
      %7151 = vmatpush1.bf16.msra.mxu0 0
      %7152 = vmatprep.subr.bf16.mxu0 0
      %7153 = vmatpush1.bf16.msra.mxu0 0
      %7154 = vmatprep.subr.bf16.mxu0 0
      %7155 = vmatpush1.bf16.msra.mxu0 0
      %7156 = vmatprep.subr.bf16.mxu0 0
      %7157 = vmatpush1.bf16.msra.mxu0 0
      %7158 = vmatprep.mubr.bf16.mxu0 0
      %7159 = vmatmul.mubr.bf16.gmra.mrb[0].mxu0 %v7112
      %v7160 = vpop.f32.mrb[0].mxu0
      %v7161 = vadd.f32 0.0, %v7160
      %v7162 = vpop.f32.mrb[0].mxu0
      %v7163 = vpop.f32.mrb[0].mxu0
      %v7164 = vadd.f32 0.0, %v7163
      %v7165 = vpop.f32.mrb[0].mxu0
      %7166 = vmatprep.mubr.bf16.mxu0 0
      %7167 = vmatmul.mubr.bf16.gmra.mrb[0].mxu0 %v7115
      %v7168 = vpop.f32.mrb[0].mxu0
      %v7169 = vadd.f32 0.0, %v7168
      %v7170 = vpop.f32.mrb[0].mxu0
      %v7171 = vpop.f32.mrb[0].mxu0
      %v7172 = vadd.f32 0.0, %v7171
      %v7173 = vpop.f32.mrb[0].mxu0
      %7174 = vmatprep.mubr.bf16.mxu0 0
      %7175 = vmatmul.mubr.bf16.gmra.mrb[0].mxu0 %v7118
      %v7176 = vpop.f32.mrb[0].mxu0
      %v7177 = vadd.f32 0.0, %v7176
      %v7178 = vpop.f32.mrb[0].mxu0
      %v7179 = vpop.f32.mrb[0].mxu0
      %v7180 = vadd.f32 0.0, %v7179
      %v7181 = vpop.f32.mrb[0].mxu0
      %7182 = vmatprep.mubr.bf16.mxu0 0
      %7183 = vmatmul.mubr.bf16.gmra.mrb[0].mxu0 %v7121
      %v7184 = vpop.f32.mrb[0].mxu0
      %v7185 = vadd.f32 0.0, %v7184
      %v7186 = vpop.f32.mrb[0].mxu0
      %v7187 = vpop.f32.mrb[0].mxu0
      %v7188 = vadd.f32 0.0, %v7187
      %v7189 = vpop.f32.mrb[0].mxu0
      %7190 = vdwg.mxu0
      %v7191 = vadd.f32 %v7066, %v7161
      %v7192 = vadd.f32 %v7067, %v7164
      %v7193 = vadd.f32 %v7068, %v7169
      %v7194 = vadd.f32 %v7069, %v7172
      %v7195 = vadd.f32 %v7070, %v7177
      %v7196 = vadd.f32 %v7071, %v7180
      %v7197 = vadd.f32 %v7072, %v7185
      %v7198 = vadd.f32 %v7073, %v7188
      %v7199 = vld [vmem:[%s5924 + $0x1] sm:$0xff]
      %v7200 = vld [vmem:[%s5924 + $0x11] sm:$0xff]
      %v7201 = vld [vmem:[%s5924 + $0x21] sm:$0xff]
      %v7202 = vld [vmem:[%s5924 + $0x31] sm:$0xff]
      %v7203 = vld [vmem:[%s5924 + $0x41] sm:$0xff]
      %v7204 = vld [vmem:[%s5924 + $0x51] sm:$0xff]
      %v7205 = vld [vmem:[%s5924 + $0x61] sm:$0xff]
      %v7206 = vld [vmem:[%s5924 + $0x71] sm:$0xff]
      %v7207 = vpack.c.bf16 %v7199, %v7199
      %v7208 = vpack.c.bf16 %v7200, %v7200
      %v7209 = vpack.c.bf16 %v7201, %v7201
      %v7210 = vpack.c.bf16 %v7202, %v7202
      %v7211 = vpack.c.bf16 %v7203, %v7203
      %v7212 = vpack.c.bf16 %v7204, %v7204
      %v7213 = vpack.c.bf16 %v7205, %v7205
      %v7214 = vpack.c.bf16 %v7206, %v7206
      %v7215 = vld [vmem:[%s3 + $0x1c] sm:$0xf]
      %v7224 = vunpack.c.l.b16 %v7207
      %v7225 = vunpack.c.l.b16 %v7208
      %v7226 = vunpack.c.l.b16 %v7209
      %v7227 = vunpack.c.l.b16 %v7210
      %v7228 = vunpack.c.l.b16 %v7211
      %v7229 = vunpack.c.l.b16 %v7212
      %v7230 = vunpack.c.l.b16 %v7213
      %v7231 = vunpack.c.l.b16 %v7214
      %v7232 = vpack.c.b16 %v7225, %v7224
      %v7233 = vpack.c.b16 %v7227, %v7226
      %v7234 = vpack.c.b16 %v7229, %v7228
      %v7235 = vpack.c.b16 %v7231, %v7230
      %v7237 = vsel %vm273, %v7232, 0
      %v7240 = vsel %vm273, %v7233, 0
      %v7243 = vsel %vm273, %v7234, 0
      %v7246 = vsel %vm273, %v7235, 0
      %v7249 = vsel %vm5255, %v7215, 0
      %7251 = vmatprep.subr.bf16.mxu0 0
      %7252 = vmatpush1.bf16.msra.mxu0 %v7249
      %7253 = vmatprep.subr.bf16.mxu0 0
      %7254 = vmatpush1.bf16.msra.mxu0 0
      %7255 = vmatprep.subr.bf16.mxu0 0
      %7256 = vmatpush1.bf16.msra.mxu0 0
      %7257 = vmatprep.subr.bf16.mxu0 0
      %7258 = vmatpush1.bf16.msra.mxu0 0
      %7259 = vmatprep.subr.bf16.mxu0 0
      %7260 = vmatpush1.bf16.msra.mxu0 0
      %7261 = vmatprep.subr.bf16.mxu0 0
      %7262 = vmatpush1.bf16.msra.mxu0 0
      %7263 = vmatprep.subr.bf16.mxu0 0
      %7264 = vmatpush1.bf16.msra.mxu0 0
      %7265 = vmatprep.subr.bf16.mxu0 0
      %7266 = vmatpush1.bf16.msra.mxu0 0
      %7267 = vmatprep.subr.bf16.mxu0 0
      %7268 = vmatpush1.bf16.msra.mxu0 0
      %7269 = vmatprep.subr.bf16.mxu0 0
      %7270 = vmatpush1.bf16.msra.mxu0 0
      %7271 = vmatprep.subr.bf16.mxu0 0
      %7272 = vmatpush1.bf16.msra.mxu0 0
      %7273 = vmatprep.subr.bf16.mxu0 0
      %7274 = vmatpush1.bf16.msra.mxu0 0
      %7275 = vmatprep.subr.bf16.mxu0 0
      %7276 = vmatpush1.bf16.msra.mxu0 0
      %7277 = vmatprep.subr.bf16.mxu0 0
      %7278 = vmatpush1.bf16.msra.mxu0 0
      %7279 = vmatprep.subr.bf16.mxu0 0
      %7280 = vmatpush1.bf16.msra.mxu0 0
      %7281 = vmatprep.subr.bf16.mxu0 0
      %7282 = vmatpush1.bf16.msra.mxu0 0
      %7283 = vmatprep.mubr.bf16.mxu0 0
      %7284 = vmatmul.mubr.bf16.gmra.mrb[0].mxu0 %v7237
      %v7285 = vpop.f32.mrb[0].mxu0
      %v7286 = vadd.f32 0.0, %v7285
      %v7287 = vpop.f32.mrb[0].mxu0
      %v7288 = vpop.f32.mrb[0].mxu0
      %v7289 = vadd.f32 0.0, %v7288
      %v7290 = vpop.f32.mrb[0].mxu0
      %7291 = vmatprep.mubr.bf16.mxu0 0
      %7292 = vmatmul.mubr.bf16.gmra.mrb[0].mxu0 %v7240
      %v7293 = vpop.f32.mrb[0].mxu0
      %v7294 = vadd.f32 0.0, %v7293
      %v7295 = vpop.f32.mrb[0].mxu0
      %v7296 = vpop.f32.mrb[0].mxu0
      %v7297 = vadd.f32 0.0, %v7296
      %v7298 = vpop.f32.mrb[0].mxu0
      %7299 = vmatprep.mubr.bf16.mxu0 0
      %7300 = vmatmul.mubr.bf16.gmra.mrb[0].mxu0 %v7243
      %v7301 = vpop.f32.mrb[0].mxu0
      %v7302 = vadd.f32 0.0, %v7301
      %v7303 = vpop.f32.mrb[0].mxu0
      %v7304 = vpop.f32.mrb[0].mxu0
      %v7305 = vadd.f32 0.0, %v7304
      %v7306 = vpop.f32.mrb[0].mxu0
      %7307 = vmatprep.mubr.bf16.mxu0 0
      %7308 = vmatmul.mubr.bf16.gmra.mrb[0].mxu0 %v7246
      %v7309 = vpop.f32.mrb[0].mxu0
      %v7310 = vadd.f32 0.0, %v7309
      %v7311 = vpop.f32.mrb[0].mxu0
      %v7312 = vpop.f32.mrb[0].mxu0
      %v7313 = vadd.f32 0.0, %v7312
      %v7314 = vpop.f32.mrb[0].mxu0
      %7315 = vdwg.mxu0
      %v7316 = vadd.f32 %v7191, %v7286
      %v7317 = vadd.f32 %v7192, %v7289
      %v7318 = vadd.f32 %v7193, %v7294
      %v7319 = vadd.f32 %v7194, %v7297
      %v7320 = vadd.f32 %v7195, %v7302
      %v7321 = vadd.f32 %v7196, %v7305
      %v7322 = vadd.f32 %v7197, %v7310
      %v7323 = vadd.f32 %v7198, %v7313
      %v7324 = vld [vmem:[%s5924 + $0x2] sm:$0xff]
      %v7325 = vld [vmem:[%s5924 + $0x12] sm:$0xff]
      %v7326 = vld [vmem:[%s5924 + $0x22] sm:$0xff]
      %v7327 = vld [vmem:[%s5924 + $0x32] sm:$0xff]
      %v7328 = vld [vmem:[%s5924 + $0x42] sm:$0xff]
      %v7329 = vld [vmem:[%s5924 + $0x52] sm:$0xff]
      %v7330 = vld [vmem:[%s5924 + $0x62] sm:$0xff]
      %v7331 = vld [vmem:[%s5924 + $0x72] sm:$0xff]
      %v7332 = vpack.c.bf16 %v7324, %v7324
      %v7333 = vpack.c.bf16 %v7325, %v7325
      %v7334 = vpack.c.bf16 %v7326, %v7326
      %v7335 = vpack.c.bf16 %v7327, %v7327
      %v7336 = vpack.c.bf16 %v7328, %v7328
      %v7337 = vpack.c.bf16 %v7329, %v7329
      %v7338 = vpack.c.bf16 %v7330, %v7330
      %v7339 = vpack.c.bf16 %v7331, %v7331
      %v7340 = vld [vmem:[%s3 + $0x20] sm:$0xf]
      %v7349 = vunpack.c.l.b16 %v7332
      %v7350 = vunpack.c.l.b16 %v7333
      %v7351 = vunpack.c.l.b16 %v7334
      %v7352 = vunpack.c.l.b16 %v7335
      %v7353 = vunpack.c.l.b16 %v7336
      %v7354 = vunpack.c.l.b16 %v7337
      %v7355 = vunpack.c.l.b16 %v7338
      %v7356 = vunpack.c.l.b16 %v7339
      %v7357 = vpack.c.b16 %v7350, %v7349
      %v7358 = vpack.c.b16 %v7352, %v7351
      %v7359 = vpack.c.b16 %v7354, %v7353
      %v7360 = vpack.c.b16 %v7356, %v7355
      %v7362 = vsel %vm273, %v7357, 0
      %v7365 = vsel %vm273, %v7358, 0
      %v7368 = vsel %vm273, %v7359, 0
      %v7371 = vsel %vm273, %v7360, 0
      %v7374 = vsel %vm5255, %v7340, 0
      %7376 = vmatprep.subr.bf16.mxu0 0
      %7377 = vmatpush1.bf16.msra.mxu0 %v7374
      %7378 = vmatprep.subr.bf16.mxu0 0
      %7379 = vmatpush1.bf16.msra.mxu0 0
      %7380 = vmatprep.subr.bf16.mxu0 0
      %7381 = vmatpush1.bf16.msra.mxu0 0
      %7382 = vmatprep.subr.bf16.mxu0 0
      %7383 = vmatpush1.bf16.msra.mxu0 0
      %7384 = vmatprep.subr.bf16.mxu0 0
      %7385 = vmatpush1.bf16.msra.mxu0 0
      %7386 = vmatprep.subr.bf16.mxu0 0
      %7387 = vmatpush1.bf16.msra.mxu0 0
      %7388 = vmatprep.subr.bf16.mxu0 0
      %7389 = vmatpush1.bf16.msra.mxu0 0
      %7390 = vmatprep.subr.bf16.mxu0 0
      %7391 = vmatpush1.bf16.msra.mxu0 0
      %7392 = vmatprep.subr.bf16.mxu0 0
      %7393 = vmatpush1.bf16.msra.mxu0 0
      %7394 = vmatprep.subr.bf16.mxu0 0
      %7395 = vmatpush1.bf16.msra.mxu0 0
      %7396 = vmatprep.subr.bf16.mxu0 0
      %7397 = vmatpush1.bf16.msra.mxu0 0
      %7398 = vmatprep.subr.bf16.mxu0 0
      %7399 = vmatpush1.bf16.msra.mxu0 0
      %7400 = vmatprep.subr.bf16.mxu0 0
      %7401 = vmatpush1.bf16.msra.mxu0 0
      %7402 = vmatprep.subr.bf16.mxu0 0
      %7403 = vmatpush1.bf16.msra.mxu0 0
      %7404 = vmatprep.subr.bf16.mxu0 0
      %7405 = vmatpush1.bf16.msra.mxu0 0
      %7406 = vmatprep.subr.bf16.mxu0 0
      %7407 = vmatpush1.bf16.msra.mxu0 0
      %7408 = vmatprep.mubr.bf16.mxu0 0
      %7409 = vmatmul.mubr.bf16.gmra.mrb[0].mxu0 %v7362
      %v7410 = vpop.f32.mrb[0].mxu0
      %v7411 = vadd.f32 0.0, %v7410
      %v7412 = vpop.f32.mrb[0].mxu0
      %v7413 = vpop.f32.mrb[0].mxu0
      %v7414 = vadd.f32 0.0, %v7413
      %v7415 = vpop.f32.mrb[0].mxu0
      %7416 = vmatprep.mubr.bf16.mxu0 0
      %7417 = vmatmul.mubr.bf16.gmra.mrb[0].mxu0 %v7365
      %v7418 = vpop.f32.mrb[0].mxu0
      %v7419 = vadd.f32 0.0, %v7418
      %v7420 = vpop.f32.mrb[0].mxu0
      %v7421 = vpop.f32.mrb[0].mxu0
      %v7422 = vadd.f32 0.0, %v7421
      %v7423 = vpop.f32.mrb[0].mxu0
      %7424 = vmatprep.mubr.bf16.mxu0 0
      %7425 = vmatmul.mubr.bf16.gmra.mrb[0].mxu0 %v7368
      %v7426 = vpop.f32.mrb[0].mxu0
      %v7427 = vadd.f32 0.0, %v7426
      %v7428 = vpop.f32.mrb[0].mxu0
      %v7429 = vpop.f32.mrb[0].mxu0
      %v7430 = vadd.f32 0.0, %v7429
      %v7431 = vpop.f32.mrb[0].mxu0
      %7432 = vmatprep.mubr.bf16.mxu0 0
      %7433 = vmatmul.mubr.bf16.gmra.mrb[0].mxu0 %v7371
      %v7434 = vpop.f32.mrb[0].mxu0
      %v7435 = vadd.f32 0.0, %v7434
      %v7436 = vpop.f32.mrb[0].mxu0
      %v7437 = vpop.f32.mrb[0].mxu0
      %v7438 = vadd.f32 0.0, %v7437
      %v7439 = vpop.f32.mrb[0].mxu0
      %7440 = vdwg.mxu0
      %v7441 = vadd.f32 %v7316, %v7411
      %v7442 = vadd.f32 %v7317, %v7414
      %v7443 = vadd.f32 %v7318, %v7419
      %v7444 = vadd.f32 %v7319, %v7422
      %v7445 = vadd.f32 %v7320, %v7427
      %v7446 = vadd.f32 %v7321, %v7430
      %v7447 = vadd.f32 %v7322, %v7435
      %v7448 = vadd.f32 %v7323, %v7438
      %v7449 = vlaneseq
      %v7450 = vshrl.u32 %v7449, 7
      %v7451 = vsub.s32 4, %v7450
      %v7452 = vrot.slane %v226, %v7451
      %v7453 = vmul.f32 %v7441, %v7452
      %v7454 = vmul.f32 %v7442, %v7452
      %v7455 = vmul.f32 %v7443, %v7452
      %v7456 = vmul.f32 %v7444, %v7452
      %v7457 = vmul.f32 %v7445, %v7452
      %v7458 = vmul.f32 %v7446, %v7452
      %v7459 = vmul.f32 %v7447, %v7452
      %v7460 = vmul.f32 %v7448, %v7452
      %v7461 = vlaneseq
      %v7462 = vshrl.u32 %v7461, 7
      %v7463 = vsub.s32 5, %v7462
      %v7464 = vrot.slane %v226, %v7463
      %v7465 = vadd.f32 %v7453, %v7464
      %v7466 = vadd.f32 %v7454, %v7464
      %v7467 = vadd.f32 %v7455, %v7464
      %v7468 = vadd.f32 %v7456, %v7464
      %v7469 = vadd.f32 %v7457, %v7464
      %v7470 = vadd.f32 %v7458, %v7464
      %v7471 = vadd.f32 %v7459, %v7464
      %v7472 = vadd.f32 %v7460, %v7464
      %v7473 = vmax.f32 %v7465, 0.0
      %v7474 = vmax.f32 %v7466, 0.0
      %v7475 = vmax.f32 %v7467, 0.0
      %v7476 = vmax.f32 %v7468, 0.0
      %v7477 = vmax.f32 %v7469, 0.0
      %v7478 = vmax.f32 %v7470, 0.0
      %v7479 = vmax.f32 %v7471, 0.0
      %v7480 = vmax.f32 %v7472, 0.0
      %v7481 = vld [vmem:[%s224] sm:$0xff]
      %v7482 = vld [vmem:[%s224 + $0x8] sm:$0xff]
      %v7483 = vld [vmem:[%s224 + $0x10] sm:$0xff]
      %v7484 = vld [vmem:[%s224 + $0x18] sm:$0xff]
      %v7485 = vld [vmem:[%s224 + $0x20] sm:$0xff]
      %v7486 = vld [vmem:[%s224 + $0x28] sm:$0xff]
      %v7487 = vld [vmem:[%s224 + $0x30] sm:$0xff]
      %v7488 = vld [vmem:[%s224 + $0x38] sm:$0xff]
      %v7489 = vadd.f32 %v7481, %v7473
      %v7490 = vadd.f32 %v7482, %v7474
      %v7491 = vadd.f32 %v7483, %v7475
      %v7492 = vadd.f32 %v7484, %v7476
      %v7493 = vadd.f32 %v7485, %v7477
      %v7494 = vadd.f32 %v7486, %v7478
      %v7495 = vadd.f32 %v7487, %v7479
      %v7496 = vadd.f32 %v7488, %v7480
      %7497 = vst.msk [vmem:[%s224] sm:$0xff] %vm273, %v7489
      %7498 = vst.msk [vmem:[%s224 + $0x8] sm:$0xff] %vm273, %v7490
      %7499 = vst.msk [vmem:[%s224 + $0x10] sm:$0xff] %vm273, %v7491
      %7500 = vst.msk [vmem:[%s224 + $0x18] sm:$0xff] %vm273, %v7492
      %7501 = vst.msk [vmem:[%s224 + $0x20] sm:$0xff] %vm273, %v7493
      %7502 = vst.msk [vmem:[%s224 + $0x28] sm:$0xff] %vm273, %v7494
      %7503 = vst.msk [vmem:[%s224 + $0x30] sm:$0xff] %vm273, %v7495
      %7504 = vst.msk [vmem:[%s224 + $0x38] sm:$0xff] %vm273, %v7496
      %p7505 = scmp.lt.s32.totalorder %s16, 1
      %s7506 = scalar_select %p7505, %s16, 1
      %s7507 = smul.addr %s7506, 8
      %s7508 = smul.addr %s7507, 8
      %s7509 = scalar_lea.vmem %s5, %s7508
      // Predicated region
      $region41: #{res_block_forward.1} parent=39 // pred_check
        %p7510 = pneg %p144
      $region42: #{res_block_forward.1} parent=39 // pred_check_branch
        %7512 = sbr.rel (%p7510) target = $region44
      $region43: #{res_block_forward.1} parent=39 // pred_region
        _
      $region44: #{res_block_forward.1} parent=39 // pred_fallthru
        _
    $region40: #{res_block_forward.1} parent=5 // pred_fallthru
      _
    %p7513 = scmp.le.s32.totalorder 2, %s11
    // Predicated region
    $region45: #{res_block_forward.1} parent=5 // pred_check
      %p7514 = pneg %p7513
    $region46: #{res_block_forward.1} parent=5 // pred_check_branch
      %7516 = sbr.rel (%p7514) target = $region48
    $region47: #{res_block_forward.1} parent=5 // pred_region
      %s7517 = ssub.s32 %s11, 2
      // Predicated region
      $region49: #{res_block_forward.1} parent=47 // pred_check
        %p7518 = pneg %p150
      $region50: #{res_block_forward.1} parent=47 // pred_check_branch
        %7520 = sbr.rel (%p7518) target = $region52
      $region51: #{res_block_forward.1} parent=47 // pred_region
        %p7521 = scmp.lt.s32.totalorder %s17, 1
        %s7522 = scalar_select %p7521, %s17, 1
        %s7523 = smul.addr %s7522, 8
        %s7524 = smul.addr %s7523, 8
        %s7525 = scalar_lea.vmem %s5, %s7524
      $region52: #{res_block_forward.1} parent=47 // pred_fallthru
        _
    $region48: #{res_block_forward.1} parent=5 // pred_fallthru
      _
  $region6: #{res_block_forward.1} parent=0 // loop_footer
    %s15 = sadd.s32 1, %s11
  $region7: #{res_block_forward.1} parent=0 // loop_footer_branch
    %10 = sbr.rel target = $region3
  $region8: #{res_block_forward.1} parent=0 // loop_exit
    _

</llo_original>
